<compile_context>
chip_gen: v7x
topology: tpu7x:2x2x1
jax: 0.10.0
libtpu: 0.0.40
codegen_flags: <defaults>
</compile_context>

<pallas_src>
import math
from functools import partial

import jax
import jax.numpy as jnp
import numpy as np
from jax.experimental import pallas as pl
from jax.experimental.pallas import tpu as pltpu

EPS = 1e-5  # nn.LayerNorm default eps


# ----------------------------------------------------------------------------- helpers
def _gelu_tanh(x):
    # tanh-approximate GELU (EUP tanh instead of a ~10-op VPU erf polynomial).
    # Max abs deviation from exact erf-GELU ~1e-3, well inside the test tolerance.
    c = math.sqrt(2.0 / math.pi)
    return 0.5 * x * (1.0 + jnp.tanh(c * (x + 0.044715 * x * x * x)))


def _ln(x, g, b):
    mu = jnp.mean(x, axis=-1, keepdims=True)
    xc = x - mu
    var = jnp.mean(xc * xc, axis=-1, keepdims=True)
    return xc * jax.lax.rsqrt(var + EPS) * g + b


def gen_spiral_offsets(c):
    """Mirror SpiralFC.gen_offset(): per-channel (dy, dx) integer offsets."""
    k = 2
    R = 14
    num_dim = c // k
    dys = [0] * c
    dxs = [0] * c
    # The original outer loop over `num_dims` rewrites the SAME indices twice, so only
    # offset groups (== channels) 0 .. c//2-1 are actually written.
    # TODO(synk): channels c//2 .. c-1 keep torch.empty (uninitialized) offsets in the
    # reference; we deterministically use 0 for those channels.
    for i in range(num_dim):
        if i <= num_dim // 2:
            dys[i] = int(round(i * (R / num_dim) * math.cos(math.pi * i / 16)))
            dxs[i] = int(round(i * (R / num_dim) * math.sin(math.pi * i / 16)))
        else:
            dys[i] = int(round((R - i * (R / num_dim)) * math.cos(math.pi * i / 16)))
            dxs[i] = int(round((R - i * (R / num_dim)) * math.sin(math.pi * i / 16)))
    return dys, dxs


def build_shift_groups(dys, dxs, H, W, B):
    """Group channels by unique (dy, dx); return factorized masks.

    Returns:
      shifts:   tuple of flat token shifts dy*W+dx, one per group (zero-shift group first).
      allvalid: tuple of bools, True iff every token's shifted position is inside the image.
      rowvalid: (B*N, G) f32, rowvalid[t, g] = 1 iff token t's position shifted by group g's
                offset stays inside its image (tiled identically over the B images).
      chanmask: (G, C) f32, chanmask[g, c] = 1 iff channel c belongs to group g.
    """
    C = len(dys)
    N = H * W
    groups = {}
    for c, (dy, dx) in enumerate(zip(dys, dxs)):
        groups.setdefault((dy, dx), []).append(c)
    keys = sorted(groups.keys(), key=lambda k: (k != (0, 0), k))  # (0,0) group first
    G = len(keys)
    ii = np.repeat(np.arange(H), W)
    jj = np.tile(np.arange(W), H)
    shifts, allvalid = [], []
    rowvalid = np.zeros((N, G), np.float32)
    chanmask = np.zeros((G, C), np.float32)
    for g, (dy, dx) in enumerate(keys):
        shifts.append(dy * W + dx)
        valid = ((ii + dy >= 0) & (ii + dy < H) & (jj + dx >= 0) & (jj + dx < W))
        rowvalid[:, g] = valid.astype(np.float32)
        allvalid.append(bool(valid.all()))
        chanmask[g, groups[(dy, dx)]] = 1.0
    rowvalid = np.tile(rowvalid, (B, 1))  # identical per image -> (B*N, G)
    return tuple(shifts), tuple(allvalid), jnp.asarray(rowvalid), jnp.asarray(chanmask)


def spiral_shift(y, dys, dxs):
    """Reference-only glue: sampled[b,i,j,c] = y[b,i+dy_c,j+dx_c,c] (zero-padded)."""
    B, H, W, C = y.shape
    M = max([abs(v) for v in dys + dxs] + [1])
    yp = jnp.pad(y, ((0, 0), (M, M), (M, M), (0, 0)))
    cols = []
    for c in range(C):
        dy, dx = dys[c], dxs[c]
        cols.append(yp[:, M + dy:M + dy + H, M + dx:M + dx + W, c])
    return jnp.stack(cols, axis=-1)


# ----------------------------------------------------------------------------- fused kernel
def spiral_block_kernel(x_ref, rv_ref, cm_ref,
                        g1_ref, be1_ref,
                        wcw_ref, wsw_ref, bcs_ref,
                        w1d_ref, b1_ref,
                        w2f_ref, b2f_ref, w2fs_ref, b2fs_ref,
                        wpd_ref, bp_ref,
                        g2_ref, be2_ref,
                        wm1_ref, bm1_ref, wm2_ref, bm2_ref,
                        o_ref,
                        *, shifts, allvalid, tokens_per_image, inv_skip):
    f32, bf16 = jnp.float32, jnp.bfloat16
    Mb, C = x_ref.shape
    N = tokens_per_image
    Bb = Mb // N              # images per grid block (static)
    n_groups = len(shifts)

    # ---- norm_1 fused in-kernel (no HBM round-trip for y1) ----
    y1 = _ln(x_ref[...], g1_ref[...], be1_ref[...])               # (Mb, C) f32

    # ---- SpiralFC sampling: per-group sublane roll (XLU) + factorized masks ----
    # rolled[t] = y1[(t + s) mod Mb]; out-of-image / cross-image / wrap-around positions
    # are zeroed by rowvalid; chanmask selects the channels belonging to each offset group.
    def group_term(g):
        s = shifts[g]
        rolled = y1 if s == 0 else pltpu.roll(y1, shift=(-s) % Mb, axis=0)
        if not allvalid[g]:
            rolled = rolled * rv_ref[:, g:g + 1]                  # (Mb, 1) row-validity
        return rolled * cm_ref[g:g + 1, :]                        # (1, C) channel select

    sh = group_term(0)
    for g in range(1, n_groups):
        sh = sh + group_term(g)                                   # channel groups disjoint

    # ---- per-image reweight MLP (tiny M=1 chain, off the big-matmul critical path) ----
    # pooled_b = mean_b(x_cross + x_self) = mean_b(sh) @ [Wc^T|0] + mean_b(y1) @ [0|Ws^T] + bcs
    acats = []
    for b in range(Bb):
        lo = b * N
        msh = jnp.mean(sh[lo:lo + N], axis=0, keepdims=True)      # (1, C) f32
        my1 = jnp.mean(y1[lo:lo + N], axis=0, keepdims=True)
        pooled = (jnp.dot(msh.astype(bf16), wcw_ref[...], preferred_element_type=f32)
                  + jnp.dot(my1.astype(bf16), wsw_ref[...], preferred_element_type=f32)
                  + bcs_ref[...])                                 # (1, 2C)
        h = _gelu_tanh(jnp.dot(pooled.astype(bf16), w1d_ref[...],
                               preferred_element_type=f32) + b1_ref[...])
        hb = h.astype(bf16)
        rr = jnp.dot(hb, w2f_ref[...], preferred_element_type=f32) + b2f_ref[...]   # [r0|r1]
        rs = jnp.dot(hb, w2fs_ref[...], preferred_element_type=f32) + b2fs_ref[...]  # [r1|r0]
        mx = jnp.maximum(rr, rs)
        e, es = jnp.exp(rr - mx), jnp.exp(rs - mx)
        acats.append(e * pl.reciprocal(e + es, approx=True))      # [a0 | a1], (1, 2C)

    # ---- fused fc_cross / fc_self -> one (Mb, 2C) slab [x_cross | x_self] ----
    xcs = (jnp.dot(sh.astype(bf16), wcw_ref[...], preferred_element_type=f32)
           + jnp.dot(y1.astype(bf16), wsw_ref[...], preferred_element_type=f32)
           + bcs_ref[...])                                        # (Mb, 2C) f32

    # ---- per-image pair-softmax weighting + proj folded into one K=2C matmul ----
    if Bb == 1:
        z = xcs * acats[0]
    else:
        z = jnp.concatenate([xcs[b * N:(b + 1) * N] * acats[b] for b in range(Bb)], axis=0)
    attn = jnp.dot(z.astype(bf16), wpd_ref[...], preferred_element_type=f32) + bp_ref[...]

    # residual 1 (drop_path / proj_drop identity in eval mode); re-read x from VMEM
    x2 = x_ref[...] + attn * inv_skip

    # ---- norm_2 + MLP (internal residual, input_dim == output_dim) ----
    y2 = _ln(x2, g2_ref[...], be2_ref[...])
    hm = _gelu_tanh(jnp.dot(y2.astype(bf16), wm1_ref[...],
                            preferred_element_type=f32) + bm1_ref[...])
    mlp = (jnp.dot(hm.astype(bf16), wm2_ref[...], preferred_element_type=f32)
           + bm2_ref[...] + y2)

    # residual 2
    o_ref[...] = (x2 + mlp * inv_skip).astype(o_ref.dtype)


# ----------------------------------------------------------------------------- wrappers
def prepare_params(p):
    """One-time host-side weight prep: transposes, fused layouts, bf16 casts for MXU."""
    bf16, f32 = jnp.bfloat16, jnp.float32
    C = p["ws"].shape[0]
    row = lambda v: v.reshape(1, -1).astype(f32)
    zc = jnp.zeros((C, C), f32)
    wcw = jnp.concatenate([p["wc"].T, zc], axis=1).astype(bf16)        # sh  @ wcw -> [x_cross | 0]
    wsw = jnp.concatenate([zc, p["ws"].T], axis=1).astype(bf16)        # y1  @ wsw -> [0 | x_self]
    bcs = jnp.concatenate([p["bc"], p["bs"]]).reshape(1, -1).astype(f32)
    w1d = jnp.concatenate([p["w1"].T, p["w1"].T], axis=0).astype(bf16)  # (2C, C//4)
    w2e, w2o = p["w2"][0::2, :], p["w2"][1::2, :]
    b2e, b2o = p["b2"][0::2], p["b2"][1::2]
    w2f = jnp.concatenate([w2e.T, w2o.T], axis=1).astype(bf16)          # -> [r0 | r1]
    w2fs = jnp.concatenate([w2o.T, w2e.T], axis=1).astype(bf16)         # -> [r1 | r0]
    b2f = jnp.concatenate([b2e, b2o]).reshape(1, -1).astype(f32)
    b2fs = jnp.concatenate([b2o, b2e]).reshape(1, -1).astype(f32)
    wpd = jnp.concatenate([p["wp"].T, p["wp"].T], axis=0).astype(bf16)  # (2C, C)
    return (row(p["g1"]), row(p["be1"]),
            wcw, wsw, bcs,
            w1d, row(p["b1"]),
            w2f, b2f, w2fs, b2fs,
            wpd, row(p["bp"]),
            row(p["g2"]), row(p["be2"]),
            p["wm1"].T.astype(bf16), row(p["bm1"]),
            p["wm2"].T.astype(bf16), row(p["bm2"]))


def _pick_num_blocks(B):
    """v5e/v6e (1 TC): flatten the whole batch into one block (fatter MXU M, one grid step).
    v7x (2 TCs): keep 2 parallel blocks so the megacore can shard the grid axis."""
    try:
        kind = jax.devices()[0].device_kind.lower()
    except Exception:
        kind = ""
    if ("v7" in kind or "7x" in kind) and B >= 2 and B % 2 == 0:
        return 2
    return 1


def spiral_block(x, prep, rowvalid, chanmask, shifts, allvalid, skip_lam, num_blocks=None):
    B, H, W, C = x.shape
    N = H * W
    M = B * N
    if num_blocks is None:
        num_blocks = _pick_num_blocks(B)
    assert B % num_blocks == 0, "num_blocks must divide the batch"
    Mb = M // num_blocks
    G = rowvalid.shape[1]

    x2d = x.reshape(M, C)                   # free reshape (row-major contiguous)
    args = (x2d, rowvalid, chanmask) + tuple(prep)

    def const_spec(a):
        zeros = (0,) * a.ndim
        return pl.BlockSpec(a.shape, lambda i: zeros)

    in_specs = [pl.BlockSpec((Mb, C), lambda i: (i, 0)),      # tokens
                pl.BlockSpec((Mb, G), lambda i: (i, 0))]      # per-token row validity
    in_specs += [const_spec(a) for a in args[2:]]             # chanmask + weights

    out = pl.pallas_call(
        partial(spiral_block_kernel, shifts=tuple(shifts), allvalid=tuple(allvalid),
                tokens_per_image=N, inv_skip=float(1.0 / skip_lam)),
        out_shape=jax.ShapeDtypeStruct((M, C), x.dtype),
        grid=(num_blocks,),
        in_specs=in_specs,
        out_specs=pl.BlockSpec((Mb, C), lambda i: (i, 0)),
        compiler_params=pltpu.CompilerParams(
            # blocks are fully independent -> megacore-shardable on v7x
            dimension_semantics=("parallel",)),
    )(*args)
    return out.reshape(B, H, W, C)


# ----------------------------------------------------------------------------- params / reference
def init_params(key, C, hidden):
    ks = jax.random.split(key, 18)
    w = lambda k, s, sc=0.05: (sc * jax.random.normal(k, s)).astype(jnp.float32)
    return {
        "g1": (1.0 + 0.1 * jax.random.normal(ks[14], (C,))).astype(jnp.float32),
        "be1": w(ks[15], (C,), 0.1),
        "g2": (1.0 + 0.1 * jax.random.normal(ks[16], (C,))).astype(jnp.float32),
        "be2": w(ks[17], (C,), 0.1),
        "ws": w(ks[0], (C, C)), "bs": w(ks[1], (C,)),
        "wc": w(ks[2], (C, C)), "bc": w(ks[3], (C,)),            # SpiralFC weight (C,C,1,1) squeezed
        "w1": w(ks[4], (C // 4, C)), "b1": w(ks[5], (C // 4,)),  # reweight fc1
        "w2": w(ks[6], (2 * C, C // 4)), "b2": w(ks[7], (2 * C,)),  # reweight fc2
        "wp": w(ks[8], (C, C)), "bp": w(ks[9], (C,)),
        "wm1": w(ks[10], (hidden, C)), "bm1": w(ks[11], (hidden,)),
        "wm2": w(ks[12], (C, hidden)), "bm2": w(ks[13], (C,)),
    }


def reference(x, p, dys, dxs, skip_lam):
    def ln(v, g, b):
        mu = v.mean(-1, keepdims=True)
        var = ((v - mu) ** 2).mean(-1, keepdims=True)
        return (v - mu) / jnp.sqrt(var + EPS) * g + b
    gelu = lambda v: jax.nn.gelu(v, approximate=False)
    B, H, W, C = x.shape
    y1 = ln(x, p["g1"], p["be1"])
    sh = spiral_shift(y1, dys, dxs)
    x_cross = sh @ p["wc"].T + p["bc"]
    x_self = y1 @ p["ws"].T + p["bs"]
    pooled = (x_cross + x_self).mean(axis=(1, 2))
    r = gelu(pooled @ p["w1"].T + p["b1"]) @ p["w2"].T + p["b2"]
    a = jax.nn.softmax(r.reshape(B, C, 2), axis=-1)
    z = x_cross * a[..., 0][:, None, None, :] + x_self * a[..., 1][:, None, None, :]
    x2 = x + (z @ p["wp"].T + p["bp"]) / skip_lam
    y2 = ln(x2, p["g2"], p["be2"])
    mlp = gelu(y2 @ p["wm1"].T + p["bm1"]) @ p["wm2"].T + p["bm2"] + y2
    return x2 + mlp / skip_lam


if __name__ == "__main__":
    B, H, W, C = 2, 16, 16, 32
    mlp_ratio, skip_lam = 2.0, 2.0
    hidden = int(C * mlp_ratio)

    key = jax.random.PRNGKey(0)
    kx, kp = jax.random.split(key)
    x = jax.random.normal(kx, (B, H, W, C), jnp.float32)
    params = init_params(kp, C, hidden)

    dys, dxs = gen_spiral_offsets(C)
    shifts, allvalid, rowvalid, chanmask = build_shift_groups(dys, dxs, H, W, B)
    prep = prepare_params(params)            # one-time weight layout/bf16 prep

    out = spiral_block(x, prep, rowvalid, chanmask, shifts, allvalid, skip_lam)
    out = jax.block_until_ready(out)

    ref = reference(x, params, dys, dxs, skip_lam)
    err = float(jnp.max(jnp.abs(out - ref)))
    assert out.shape == (B, H, W, C)
    assert err < 5e-2, f"max abs error {err}"
    print("KERNEL_OK")
</pallas_src>

<mosaic_0001>
module attributes {stable_mosaic.version = 11 : i64} {
  func.func @spiral_block_kernel(%arg0: i32, %arg1: memref<512x32xf32, #tpu.memory_space<vmem>>, %arg2: memref<512x14xf32, #tpu.memory_space<vmem>>, %arg3: memref<14x32xf32, #tpu.memory_space<vmem>>, %arg4: memref<1x32xf32, #tpu.memory_space<vmem>>, %arg5: memref<1x32xf32, #tpu.memory_space<vmem>>, %arg6: memref<32x64xbf16, #tpu.memory_space<vmem>>, %arg7: memref<32x64xbf16, #tpu.memory_space<vmem>>, %arg8: memref<1x64xf32, #tpu.memory_space<vmem>>, %arg9: memref<64x8xbf16, #tpu.memory_space<vmem>>, %arg10: memref<1x8xf32, #tpu.memory_space<vmem>>, %arg11: memref<8x64xbf16, #tpu.memory_space<vmem>>, %arg12: memref<1x64xf32, #tpu.memory_space<vmem>>, %arg13: memref<8x64xbf16, #tpu.memory_space<vmem>>, %arg14: memref<1x64xf32, #tpu.memory_space<vmem>>, %arg15: memref<64x32xbf16, #tpu.memory_space<vmem>>, %arg16: memref<1x32xf32, #tpu.memory_space<vmem>>, %arg17: memref<1x32xf32, #tpu.memory_space<vmem>>, %arg18: memref<1x32xf32, #tpu.memory_space<vmem>>, %arg19: memref<32x64xbf16, #tpu.memory_space<vmem>>, %arg20: memref<1x64xf32, #tpu.memory_space<vmem>>, %arg21: memref<64x32xbf16, #tpu.memory_space<vmem>>, %arg22: memref<1x32xf32, #tpu.memory_space<vmem>>, %arg23: memref<512x32xf32, #tpu.memory_space<vmem>>) attributes {dimension_semantics = [#tpu.dimension_semantics<parallel>], iteration_bounds = array<i64: 1>, scalar_prefetch = 0 : i64, scratch_operands = 0 : i64, tpu.core_type = #tpu.core_type<tc>, window_params = [{transform_indices = @transform_0, window_bounds = array<i64: 512, 32>}, {transform_indices = @transform_1, window_bounds = array<i64: 512, 14>}, {pipeline_mode = #tpu.pipeline_mode<synchronous>, transform_indices = @transform_2, window_bounds = array<i64: 14, 32>}, {pipeline_mode = #tpu.pipeline_mode<synchronous>, transform_indices = @transform_3, window_bounds = array<i64: 1, 32>}, {pipeline_mode = #tpu.pipeline_mode<synchronous>, transform_indices = @transform_4, window_bounds = array<i64: 1, 32>}, {pipeline_mode = #tpu.pipeline_mode<synchronous>, transform_indices = @transform_5, window_bounds = array<i64: 32, 64>}, {pipeline_mode = #tpu.pipeline_mode<synchronous>, transform_indices = @transform_6, window_bounds = array<i64: 32, 64>}, {pipeline_mode = #tpu.pipeline_mode<synchronous>, transform_indices = @transform_7, window_bounds = array<i64: 1, 64>}, {pipeline_mode = #tpu.pipeline_mode<synchronous>, transform_indices = @transform_8, window_bounds = array<i64: 64, 8>}, {pipeline_mode = #tpu.pipeline_mode<synchronous>, transform_indices = @transform_9, window_bounds = array<i64: 1, 8>}, {pipeline_mode = #tpu.pipeline_mode<synchronous>, transform_indices = @transform_10, window_bounds = array<i64: 8, 64>}, {pipeline_mode = #tpu.pipeline_mode<synchronous>, transform_indices = @transform_11, window_bounds = array<i64: 1, 64>}, {pipeline_mode = #tpu.pipeline_mode<synchronous>, transform_indices = @transform_12, window_bounds = array<i64: 8, 64>}, {pipeline_mode = #tpu.pipeline_mode<synchronous>, transform_indices = @transform_13, window_bounds = array<i64: 1, 64>}, {pipeline_mode = #tpu.pipeline_mode<synchronous>, transform_indices = @transform_14, window_bounds = array<i64: 64, 32>}, {pipeline_mode = #tpu.pipeline_mode<synchronous>, transform_indices = @transform_15, window_bounds = array<i64: 1, 32>}, {pipeline_mode = #tpu.pipeline_mode<synchronous>, transform_indices = @transform_16, window_bounds = array<i64: 1, 32>}, {pipeline_mode = #tpu.pipeline_mode<synchronous>, transform_indices = @transform_17, window_bounds = array<i64: 1, 32>}, {pipeline_mode = #tpu.pipeline_mode<synchronous>, transform_indices = @transform_18, window_bounds = array<i64: 32, 64>}, {pipeline_mode = #tpu.pipeline_mode<synchronous>, transform_indices = @transform_19, window_bounds = array<i64: 1, 64>}, {pipeline_mode = #tpu.pipeline_mode<synchronous>, transform_indices = @transform_20, window_bounds = array<i64: 64, 32>}, {pipeline_mode = #tpu.pipeline_mode<synchronous>, transform_indices = @transform_21, window_bounds = array<i64: 1, 32>}, {transform_indices = @transform_22, window_bounds = array<i64: 512, 32>}]} {
    %c0 = arith.constant 0 : index
    %c0_0 = arith.constant 0 : index
    %0 = vector.load %arg1[%c0, %c0_0] : memref<512x32xf32, #tpu.memory_space<vmem>>, vector<512x32xf32>
    %c0_1 = arith.constant 0 : index
    %c0_2 = arith.constant 0 : index
    %1 = vector.load %arg4[%c0_1, %c0_2] : memref<1x32xf32, #tpu.memory_space<vmem>>, vector<1x32xf32>
    %c0_3 = arith.constant 0 : index
    %c0_4 = arith.constant 0 : index
    %2 = vector.load %arg5[%c0_3, %c0_4] : memref<1x32xf32, #tpu.memory_space<vmem>>, vector<1x32xf32>
    %cst = arith.constant dense<0.000000e+00> : vector<512xf32>
    %3 = vector.multi_reduction <add>, %0, %cst [1] : vector<512x32xf32> to vector<512xf32>
    %4 = vector.shape_cast %3 : vector<512xf32> to vector<512x1xf32>
    %cst_5 = arith.constant 3.200000e+01 : f32
    %5 = vector.broadcast %cst_5 : f32 to vector<512x1xf32>
    %6 = arith.divf %4, %5 : vector<512x1xf32>
    %7 = vector.broadcast %6 : vector<512x1xf32> to vector<512x32xf32>
    %8 = arith.subf %0, %7 : vector<512x32xf32>
    %9 = arith.mulf %8, %8 : vector<512x32xf32>
    %cst_6 = arith.constant dense<0.000000e+00> : vector<512xf32>
    %10 = vector.multi_reduction <add>, %9, %cst_6 [1] : vector<512x32xf32> to vector<512xf32>
    %11 = vector.shape_cast %10 : vector<512xf32> to vector<512x1xf32>
    %cst_7 = arith.constant 3.200000e+01 : f32
    %12 = vector.broadcast %cst_7 : f32 to vector<512x1xf32>
    %13 = arith.divf %11, %12 : vector<512x1xf32>
    %cst_8 = arith.constant 9.99999974E-6 : f32
    %14 = vector.broadcast %cst_8 : f32 to vector<512x1xf32>
    %15 = arith.addf %13, %14 : vector<512x1xf32>
    %16 = math.rsqrt %15 : vector<512x1xf32>
    %17 = vector.broadcast %16 : vector<512x1xf32> to vector<512x32xf32>
    %18 = arith.mulf %8, %17 : vector<512x32xf32>
    %19 = vector.broadcast %1 : vector<1x32xf32> to vector<512x32xf32>
    %20 = arith.mulf %18, %19 : vector<512x32xf32>
    %21 = vector.broadcast %2 : vector<1x32xf32> to vector<512x32xf32>
    %22 = arith.addf %20, %21 : vector<512x32xf32>
    %c0_9 = arith.constant 0 : index
    %c0_10 = arith.constant 0 : index
    %23 = vector.load %arg3[%c0_9, %c0_10] : memref<14x32xf32, #tpu.memory_space<vmem>>, vector<1x32xf32>
    %24 = vector.broadcast %23 : vector<1x32xf32> to vector<512x32xf32>
    %25 = arith.mulf %22, %24 : vector<512x32xf32>
    %c31_i32 = arith.constant 31 : i32
    %26 = tpu.dynamic_rotate %22 by %c31_i32 dim 0 : vector<512x32xf32>, i32 -> vector<512x32xf32>
    %c0_11 = arith.constant 0 : index
    %c1 = arith.constant 1 : index
    %27 = vector.load %arg2[%c0_11, %c1] : memref<512x14xf32, #tpu.memory_space<vmem>>, vector<512x1xf32>
    %28 = vector.broadcast %27 : vector<512x1xf32> to vector<512x32xf32>
    %29 = arith.mulf %26, %28 : vector<512x32xf32>
    %c1_12 = arith.constant 1 : index
    %c0_13 = arith.constant 0 : index
    %30 = vector.load %arg3[%c1_12, %c0_13] : memref<14x32xf32, #tpu.memory_space<vmem>>, vector<1x32xf32>
    %31 = vector.broadcast %30 : vector<1x32xf32> to vector<512x32xf32>
    %32 = arith.mulf %29, %31 : vector<512x32xf32>
    %33 = arith.addf %25, %32 : vector<512x32xf32>
    %c30_i32 = arith.constant 30 : i32
    %34 = tpu.dynamic_rotate %22 by %c30_i32 dim 0 : vector<512x32xf32>, i32 -> vector<512x32xf32>
    %c0_14 = arith.constant 0 : index
    %c2 = arith.constant 2 : index
    %35 = vector.load %arg2[%c0_14, %c2] : memref<512x14xf32, #tpu.memory_space<vmem>>, vector<512x1xf32>
    %36 = vector.broadcast %35 : vector<512x1xf32> to vector<512x32xf32>
    %37 = arith.mulf %34, %36 : vector<512x32xf32>
    %c2_15 = arith.constant 2 : index
    %c0_16 = arith.constant 0 : index
    %38 = vector.load %arg3[%c2_15, %c0_16] : memref<14x32xf32, #tpu.memory_space<vmem>>, vector<1x32xf32>
    %39 = vector.broadcast %38 : vector<1x32xf32> to vector<512x32xf32>
    %40 = arith.mulf %37, %39 : vector<512x32xf32>
    %41 = arith.addf %33, %40 : vector<512x32xf32>
    %c28_i32 = arith.constant 28 : i32
    %42 = tpu.dynamic_rotate %22 by %c28_i32 dim 0 : vector<512x32xf32>, i32 -> vector<512x32xf32>
    %c0_17 = arith.constant 0 : index
    %c3 = arith.constant 3 : index
    %43 = vector.load %arg2[%c0_17, %c3] : memref<512x14xf32, #tpu.memory_space<vmem>>, vector<512x1xf32>
    %44 = vector.broadcast %43 : vector<512x1xf32> to vector<512x32xf32>
    %45 = arith.mulf %42, %44 : vector<512x32xf32>
    %c3_18 = arith.constant 3 : index
    %c0_19 = arith.constant 0 : index
    %46 = vector.load %arg3[%c3_18, %c0_19] : memref<14x32xf32, #tpu.memory_space<vmem>>, vector<1x32xf32>
    %47 = vector.broadcast %46 : vector<1x32xf32> to vector<512x32xf32>
    %48 = arith.mulf %45, %47 : vector<512x32xf32>
    %49 = arith.addf %41, %48 : vector<512x32xf32>
    %c27_i32 = arith.constant 27 : i32
    %50 = tpu.dynamic_rotate %22 by %c27_i32 dim 0 : vector<512x32xf32>, i32 -> vector<512x32xf32>
    %c0_20 = arith.constant 0 : index
    %c4 = arith.constant 4 : index
    %51 = vector.load %arg2[%c0_20, %c4] : memref<512x14xf32, #tpu.memory_space<vmem>>, vector<512x1xf32>
    %52 = vector.broadcast %51 : vector<512x1xf32> to vector<512x32xf32>
    %53 = arith.mulf %50, %52 : vector<512x32xf32>
    %c4_21 = arith.constant 4 : index
    %c0_22 = arith.constant 0 : index
    %54 = vector.load %arg3[%c4_21, %c0_22] : memref<14x32xf32, #tpu.memory_space<vmem>>, vector<1x32xf32>
    %55 = vector.broadcast %54 : vector<1x32xf32> to vector<512x32xf32>
    %56 = arith.mulf %53, %55 : vector<512x32xf32>
    %57 = arith.addf %49, %56 : vector<512x32xf32>
    %c16_i32 = arith.constant 16 : i32
    %58 = tpu.dynamic_rotate %22 by %c16_i32 dim 0 : vector<512x32xf32>, i32 -> vector<512x32xf32>
    %c0_23 = arith.constant 0 : index
    %c5 = arith.constant 5 : index
    %59 = vector.load %arg2[%c0_23, %c5] : memref<512x14xf32, #tpu.memory_space<vmem>>, vector<512x1xf32>
    %60 = vector.broadcast %59 : vector<512x1xf32> to vector<512x32xf32>
    %61 = arith.mulf %58, %60 : vector<512x32xf32>
    %c5_24 = arith.constant 5 : index
    %c0_25 = arith.constant 0 : index
    %62 = vector.load %arg3[%c5_24, %c0_25] : memref<14x32xf32, #tpu.memory_space<vmem>>, vector<1x32xf32>
    %63 = vector.broadcast %62 : vector<1x32xf32> to vector<512x32xf32>
    %64 = arith.mulf %61, %63 : vector<512x32xf32>
    %65 = arith.addf %57, %64 : vector<512x32xf32>
    %c10_i32 = arith.constant 10 : i32
    %66 = tpu.dynamic_rotate %22 by %c10_i32 dim 0 : vector<512x32xf32>, i32 -> vector<512x32xf32>
    %c0_26 = arith.constant 0 : index
    %c6 = arith.constant 6 : index
    %67 = vector.load %arg2[%c0_26, %c6] : memref<512x14xf32, #tpu.memory_space<vmem>>, vector<512x1xf32>
    %68 = vector.broadcast %67 : vector<512x1xf32> to vector<512x32xf32>
    %69 = arith.mulf %66, %68 : vector<512x32xf32>
    %c6_27 = arith.constant 6 : index
    %c0_28 = arith.constant 0 : index
    %70 = vector.load %arg3[%c6_27, %c0_28] : memref<14x32xf32, #tpu.memory_space<vmem>>, vector<1x32xf32>
    %71 = vector.broadcast %70 : vector<1x32xf32> to vector<512x32xf32>
    %72 = arith.mulf %69, %71 : vector<512x32xf32>
    %73 = arith.addf %65, %72 : vector<512x32xf32>
    %c505_i32 = arith.constant 505 : i32
    %74 = tpu.dynamic_rotate %22 by %c505_i32 dim 0 : vector<512x32xf32>, i32 -> vector<512x32xf32>
    %c0_29 = arith.constant 0 : index
    %c7 = arith.constant 7 : index
    %75 = vector.load %arg2[%c0_29, %c7] : memref<512x14xf32, #tpu.memory_space<vmem>>, vector<512x1xf32>
    %76 = vector.broadcast %75 : vector<512x1xf32> to vector<512x32xf32>
    %77 = arith.mulf %74, %76 : vector<512x32xf32>
    %c7_30 = arith.constant 7 : index
    %c0_31 = arith.constant 0 : index
    %78 = vector.load %arg3[%c7_30, %c0_31] : memref<14x32xf32, #tpu.memory_space<vmem>>, vector<1x32xf32>
    %79 = vector.broadcast %78 : vector<1x32xf32> to vector<512x32xf32>
    %80 = arith.mulf %77, %79 : vector<512x32xf32>
    %81 = arith.addf %73, %80 : vector<512x32xf32>
    %c496_i32 = arith.constant 496 : i32
    %82 = tpu.dynamic_rotate %22 by %c496_i32 dim 0 : vector<512x32xf32>, i32 -> vector<512x32xf32>
    %c0_32 = arith.constant 0 : index
    %c8 = arith.constant 8 : index
    %83 = vector.load %arg2[%c0_32, %c8] : memref<512x14xf32, #tpu.memory_space<vmem>>, vector<512x1xf32>
    %84 = vector.broadcast %83 : vector<512x1xf32> to vector<512x32xf32>
    %85 = arith.mulf %82, %84 : vector<512x32xf32>
    %c8_33 = arith.constant 8 : index
    %c0_34 = arith.constant 0 : index
    %86 = vector.load %arg3[%c8_33, %c0_34] : memref<14x32xf32, #tpu.memory_space<vmem>>, vector<1x32xf32>
    %87 = vector.broadcast %86 : vector<1x32xf32> to vector<512x32xf32>
    %88 = arith.mulf %85, %87 : vector<512x32xf32>
    %89 = arith.addf %81, %88 : vector<512x32xf32>
    %c490_i32 = arith.constant 490 : i32
    %90 = tpu.dynamic_rotate %22 by %c490_i32 dim 0 : vector<512x32xf32>, i32 -> vector<512x32xf32>
    %c0_35 = arith.constant 0 : index
    %c9 = arith.constant 9 : index
    %91 = vector.load %arg2[%c0_35, %c9] : memref<512x14xf32, #tpu.memory_space<vmem>>, vector<512x1xf32>
    %92 = vector.broadcast %91 : vector<512x1xf32> to vector<512x32xf32>
    %93 = arith.mulf %90, %92 : vector<512x32xf32>
    %c9_36 = arith.constant 9 : index
    %c0_37 = arith.constant 0 : index
    %94 = vector.load %arg3[%c9_36, %c0_37] : memref<14x32xf32, #tpu.memory_space<vmem>>, vector<1x32xf32>
    %95 = vector.broadcast %94 : vector<1x32xf32> to vector<512x32xf32>
    %96 = arith.mulf %93, %95 : vector<512x32xf32>
    %97 = arith.addf %89, %96 : vector<512x32xf32>
    %c479_i32 = arith.constant 479 : i32
    %98 = tpu.dynamic_rotate %22 by %c479_i32 dim 0 : vector<512x32xf32>, i32 -> vector<512x32xf32>
    %c0_38 = arith.constant 0 : index
    %c10 = arith.constant 10 : index
    %99 = vector.load %arg2[%c0_38, %c10] : memref<512x14xf32, #tpu.memory_space<vmem>>, vector<512x1xf32>
    %100 = vector.broadcast %99 : vector<512x1xf32> to vector<512x32xf32>
    %101 = arith.mulf %98, %100 : vector<512x32xf32>
    %c10_39 = arith.constant 10 : index
    %c0_40 = arith.constant 0 : index
    %102 = vector.load %arg3[%c10_39, %c0_40] : memref<14x32xf32, #tpu.memory_space<vmem>>, vector<1x32xf32>
    %103 = vector.broadcast %102 : vector<1x32xf32> to vector<512x32xf32>
    %104 = arith.mulf %101, %103 : vector<512x32xf32>
    %105 = arith.addf %97, %104 : vector<512x32xf32>
    %c478_i32 = arith.constant 478 : i32
    %106 = tpu.dynamic_rotate %22 by %c478_i32 dim 0 : vector<512x32xf32>, i32 -> vector<512x32xf32>
    %c0_41 = arith.constant 0 : index
    %c11 = arith.constant 11 : index
    %107 = vector.load %arg2[%c0_41, %c11] : memref<512x14xf32, #tpu.memory_space<vmem>>, vector<512x1xf32>
    %108 = vector.broadcast %107 : vector<512x1xf32> to vector<512x32xf32>
    %109 = arith.mulf %106, %108 : vector<512x32xf32>
    %c11_42 = arith.constant 11 : index
    %c0_43 = arith.constant 0 : index
    %110 = vector.load %arg3[%c11_42, %c0_43] : memref<14x32xf32, #tpu.memory_space<vmem>>, vector<1x32xf32>
    %111 = vector.broadcast %110 : vector<1x32xf32> to vector<512x32xf32>
    %112 = arith.mulf %109, %111 : vector<512x32xf32>
    %113 = arith.addf %105, %112 : vector<512x32xf32>
    %c476_i32 = arith.constant 476 : i32
    %114 = tpu.dynamic_rotate %22 by %c476_i32 dim 0 : vector<512x32xf32>, i32 -> vector<512x32xf32>
    %c0_44 = arith.constant 0 : index
    %c12 = arith.constant 12 : index
    %115 = vector.load %arg2[%c0_44, %c12] : memref<512x14xf32, #tpu.memory_space<vmem>>, vector<512x1xf32>
    %116 = vector.broadcast %115 : vector<512x1xf32> to vector<512x32xf32>
    %117 = arith.mulf %114, %116 : vector<512x32xf32>
    %c12_45 = arith.constant 12 : index
    %c0_46 = arith.constant 0 : index
    %118 = vector.load %arg3[%c12_45, %c0_46] : memref<14x32xf32, #tpu.memory_space<vmem>>, vector<1x32xf32>
    %119 = vector.broadcast %118 : vector<1x32xf32> to vector<512x32xf32>
    %120 = arith.mulf %117, %119 : vector<512x32xf32>
    %121 = arith.addf %113, %120 : vector<512x32xf32>
    %c475_i32 = arith.constant 475 : i32
    %122 = tpu.dynamic_rotate %22 by %c475_i32 dim 0 : vector<512x32xf32>, i32 -> vector<512x32xf32>
    %c0_47 = arith.constant 0 : index
    %c13 = arith.constant 13 : index
    %123 = vector.load %arg2[%c0_47, %c13] : memref<512x14xf32, #tpu.memory_space<vmem>>, vector<512x1xf32>
    %124 = vector.broadcast %123 : vector<512x1xf32> to vector<512x32xf32>
    %125 = arith.mulf %122, %124 : vector<512x32xf32>
    %c13_48 = arith.constant 13 : index
    %c0_49 = arith.constant 0 : index
    %126 = vector.load %arg3[%c13_48, %c0_49] : memref<14x32xf32, #tpu.memory_space<vmem>>, vector<1x32xf32>
    %127 = vector.broadcast %126 : vector<1x32xf32> to vector<512x32xf32>
    %128 = arith.mulf %125, %127 : vector<512x32xf32>
    %129 = arith.addf %121, %128 : vector<512x32xf32>
    %130 = vector.extract_strided_slice %129 {offsets = [0, 0], sizes = [256, 32], strides = [1, 1]} : vector<512x32xf32> to vector<256x32xf32>
    %cst_50 = arith.constant dense<0.000000e+00> : vector<32xf32>
    %131 = vector.multi_reduction <add>, %130, %cst_50 [0] : vector<256x32xf32> to vector<32xf32>
    %132 = vector.shape_cast %131 : vector<32xf32> to vector<1x32xf32>
    %cst_51 = arith.constant 2.560000e+02 : f32
    %133 = vector.broadcast %cst_51 : f32 to vector<1x32xf32>
    %134 = arith.divf %132, %133 : vector<1x32xf32>
    %135 = vector.extract_strided_slice %22 {offsets = [0, 0], sizes = [256, 32], strides = [1, 1]} : vector<512x32xf32> to vector<256x32xf32>
    %cst_52 = arith.constant dense<0.000000e+00> : vector<32xf32>
    %136 = vector.multi_reduction <add>, %135, %cst_52 [0] : vector<256x32xf32> to vector<32xf32>
    %137 = vector.shape_cast %136 : vector<32xf32> to vector<1x32xf32>
    %cst_53 = arith.constant 2.560000e+02 : f32
    %138 = vector.broadcast %cst_53 : f32 to vector<1x32xf32>
    %139 = arith.divf %137, %138 : vector<1x32xf32>
    %140 = arith.truncf %134 : vector<1x32xf32> to vector<1x32xbf16>
    %c0_54 = arith.constant 0 : index
    %c0_55 = arith.constant 0 : index
    %141 = vector.load %arg6[%c0_54, %c0_55] : memref<32x64xbf16, #tpu.memory_space<vmem>>, vector<32x64xbf16>
    %cst_56 = arith.constant dense<0.000000e+00> : vector<1x64xf32>
    %142 = tpu.matmul %140, %141, %cst_56 {dimension_numbers = #tpu.dot_dimension_numbers<[1], [0], [0], [1], [0, 0, 1, 1], [], []>} : vector<1x32xbf16>, vector<32x64xbf16>, vector<1x64xf32> -> vector<1x64xf32>
    %143 = arith.truncf %139 : vector<1x32xf32> to vector<1x32xbf16>
    %c0_57 = arith.constant 0 : index
    %c0_58 = arith.constant 0 : index
    %144 = vector.load %arg7[%c0_57, %c0_58] : memref<32x64xbf16, #tpu.memory_space<vmem>>, vector<32x64xbf16>
    %cst_59 = arith.constant dense<0.000000e+00> : vector<1x64xf32>
    %145 = tpu.matmul %143, %144, %cst_59 {dimension_numbers = #tpu.dot_dimension_numbers<[1], [0], [0], [1], [0, 0, 1, 1], [], []>} : vector<1x32xbf16>, vector<32x64xbf16>, vector<1x64xf32> -> vector<1x64xf32>
    %146 = arith.addf %142, %145 : vector<1x64xf32>
    %c0_60 = arith.constant 0 : index
    %c0_61 = arith.constant 0 : index
    %147 = vector.load %arg8[%c0_60, %c0_61] : memref<1x64xf32, #tpu.memory_space<vmem>>, vector<1x64xf32>
    %148 = arith.addf %146, %147 : vector<1x64xf32>
    %149 = arith.truncf %148 : vector<1x64xf32> to vector<1x64xbf16>
    %c0_62 = arith.constant 0 : index
    %c0_63 = arith.constant 0 : index
    %150 = vector.load %arg9[%c0_62, %c0_63] : memref<64x8xbf16, #tpu.memory_space<vmem>>, vector<64x8xbf16>
    %cst_64 = arith.constant dense<0.000000e+00> : vector<1x8xf32>
    %151 = tpu.matmul %149, %150, %cst_64 {dimension_numbers = #tpu.dot_dimension_numbers<[1], [0], [0], [1], [0, 0, 1, 1], [], []>} : vector<1x64xbf16>, vector<64x8xbf16>, vector<1x8xf32> -> vector<1x8xf32>
    %c0_65 = arith.constant 0 : index
    %c0_66 = arith.constant 0 : index
    %152 = vector.load %arg10[%c0_65, %c0_66] : memref<1x8xf32, #tpu.memory_space<vmem>>, vector<1x8xf32>
    %153 = arith.addf %151, %152 : vector<1x8xf32>
    %cst_67 = arith.constant 5.000000e-01 : f32
    %154 = vector.broadcast %cst_67 : f32 to vector<1x8xf32>
    %155 = arith.mulf %154, %153 : vector<1x8xf32>
    %cst_68 = arith.constant 4.471500e-02 : f32
    %156 = vector.broadcast %cst_68 : f32 to vector<1x8xf32>
    %157 = arith.mulf %156, %153 : vector<1x8xf32>
    %158 = arith.mulf %157, %153 : vector<1x8xf32>
    %159 = arith.mulf %158, %153 : vector<1x8xf32>
    %160 = arith.addf %153, %159 : vector<1x8xf32>
    %cst_69 = arith.constant 0.797884583 : f32
    %161 = vector.broadcast %cst_69 : f32 to vector<1x8xf32>
    %162 = arith.mulf %161, %160 : vector<1x8xf32>
    %163 = math.tanh %162 : vector<1x8xf32>
    %cst_70 = arith.constant 1.000000e+00 : f32
    %164 = vector.broadcast %cst_70 : f32 to vector<1x8xf32>
    %165 = arith.addf %164, %163 : vector<1x8xf32>
    %166 = arith.mulf %155, %165 : vector<1x8xf32>
    %167 = arith.truncf %166 : vector<1x8xf32> to vector<1x8xbf16>
    %c0_71 = arith.constant 0 : index
    %c0_72 = arith.constant 0 : index
    %168 = vector.load %arg11[%c0_71, %c0_72] : memref<8x64xbf16, #tpu.memory_space<vmem>>, vector<8x64xbf16>
    %cst_73 = arith.constant dense<0.000000e+00> : vector<1x64xf32>
    %169 = tpu.matmul %167, %168, %cst_73 {dimension_numbers = #tpu.dot_dimension_numbers<[1], [0], [0], [1], [0, 0, 1, 1], [], []>} : vector<1x8xbf16>, vector<8x64xbf16>, vector<1x64xf32> -> vector<1x64xf32>
    %c0_74 = arith.constant 0 : index
    %c0_75 = arith.constant 0 : index
    %170 = vector.load %arg12[%c0_74, %c0_75] : memref<1x64xf32, #tpu.memory_space<vmem>>, vector<1x64xf32>
    %171 = arith.addf %169, %170 : vector<1x64xf32>
    %c0_76 = arith.constant 0 : index
    %c0_77 = arith.constant 0 : index
    %172 = vector.load %arg13[%c0_76, %c0_77] : memref<8x64xbf16, #tpu.memory_space<vmem>>, vector<8x64xbf16>
    %cst_78 = arith.constant dense<0.000000e+00> : vector<1x64xf32>
    %173 = tpu.matmul %167, %172, %cst_78 {dimension_numbers = #tpu.dot_dimension_numbers<[1], [0], [0], [1], [0, 0, 1, 1], [], []>} : vector<1x8xbf16>, vector<8x64xbf16>, vector<1x64xf32> -> vector<1x64xf32>
    %c0_79 = arith.constant 0 : index
    %c0_80 = arith.constant 0 : index
    %174 = vector.load %arg14[%c0_79, %c0_80] : memref<1x64xf32, #tpu.memory_space<vmem>>, vector<1x64xf32>
    %175 = arith.addf %173, %174 : vector<1x64xf32>
    %176 = arith.maximumf %171, %175 : vector<1x64xf32>
    %177 = arith.subf %171, %176 : vector<1x64xf32>
    %178 = math.exp %177 : vector<1x64xf32>
    %179 = arith.subf %175, %176 : vector<1x64xf32>
    %180 = math.exp %179 : vector<1x64xf32>
    %181 = arith.addf %178, %180 : vector<1x64xf32>
    %182 = tpu.reciprocal %181 {approx = true} : vector<1x64xf32> -> vector<1x64xf32>
    %183 = arith.mulf %178, %182 : vector<1x64xf32>
    %184 = vector.extract_strided_slice %129 {offsets = [256, 0], sizes = [256, 32], strides = [1, 1]} : vector<512x32xf32> to vector<256x32xf32>
    %cst_81 = arith.constant dense<0.000000e+00> : vector<32xf32>
    %185 = vector.multi_reduction <add>, %184, %cst_81 [0] : vector<256x32xf32> to vector<32xf32>
    %186 = vector.shape_cast %185 : vector<32xf32> to vector<1x32xf32>
    %cst_82 = arith.constant 2.560000e+02 : f32
    %187 = vector.broadcast %cst_82 : f32 to vector<1x32xf32>
    %188 = arith.divf %186, %187 : vector<1x32xf32>
    %189 = vector.extract_strided_slice %22 {offsets = [256, 0], sizes = [256, 32], strides = [1, 1]} : vector<512x32xf32> to vector<256x32xf32>
    %cst_83 = arith.constant dense<0.000000e+00> : vector<32xf32>
    %190 = vector.multi_reduction <add>, %189, %cst_83 [0] : vector<256x32xf32> to vector<32xf32>
    %191 = vector.shape_cast %190 : vector<32xf32> to vector<1x32xf32>
    %cst_84 = arith.constant 2.560000e+02 : f32
    %192 = vector.broadcast %cst_84 : f32 to vector<1x32xf32>
    %193 = arith.divf %191, %192 : vector<1x32xf32>
    %194 = arith.truncf %188 : vector<1x32xf32> to vector<1x32xbf16>
    %c0_85 = arith.constant 0 : index
    %c0_86 = arith.constant 0 : index
    %195 = vector.load %arg6[%c0_85, %c0_86] : memref<32x64xbf16, #tpu.memory_space<vmem>>, vector<32x64xbf16>
    %cst_87 = arith.constant dense<0.000000e+00> : vector<1x64xf32>
    %196 = tpu.matmul %194, %195, %cst_87 {dimension_numbers = #tpu.dot_dimension_numbers<[1], [0], [0], [1], [0, 0, 1, 1], [], []>} : vector<1x32xbf16>, vector<32x64xbf16>, vector<1x64xf32> -> vector<1x64xf32>
    %197 = arith.truncf %193 : vector<1x32xf32> to vector<1x32xbf16>
    %c0_88 = arith.constant 0 : index
    %c0_89 = arith.constant 0 : index
    %198 = vector.load %arg7[%c0_88, %c0_89] : memref<32x64xbf16, #tpu.memory_space<vmem>>, vector<32x64xbf16>
    %cst_90 = arith.constant dense<0.000000e+00> : vector<1x64xf32>
    %199 = tpu.matmul %197, %198, %cst_90 {dimension_numbers = #tpu.dot_dimension_numbers<[1], [0], [0], [1], [0, 0, 1, 1], [], []>} : vector<1x32xbf16>, vector<32x64xbf16>, vector<1x64xf32> -> vector<1x64xf32>
    %200 = arith.addf %196, %199 : vector<1x64xf32>
    %c0_91 = arith.constant 0 : index
    %c0_92 = arith.constant 0 : index
    %201 = vector.load %arg8[%c0_91, %c0_92] : memref<1x64xf32, #tpu.memory_space<vmem>>, vector<1x64xf32>
    %202 = arith.addf %200, %201 : vector<1x64xf32>
    %203 = arith.truncf %202 : vector<1x64xf32> to vector<1x64xbf16>
    %c0_93 = arith.constant 0 : index
    %c0_94 = arith.constant 0 : index
    %204 = vector.load %arg9[%c0_93, %c0_94] : memref<64x8xbf16, #tpu.memory_space<vmem>>, vector<64x8xbf16>
    %cst_95 = arith.constant dense<0.000000e+00> : vector<1x8xf32>
    %205 = tpu.matmul %203, %204, %cst_95 {dimension_numbers = #tpu.dot_dimension_numbers<[1], [0], [0], [1], [0, 0, 1, 1], [], []>} : vector<1x64xbf16>, vector<64x8xbf16>, vector<1x8xf32> -> vector<1x8xf32>
    %c0_96 = arith.constant 0 : index
    %c0_97 = arith.constant 0 : index
    %206 = vector.load %arg10[%c0_96, %c0_97] : memref<1x8xf32, #tpu.memory_space<vmem>>, vector<1x8xf32>
    %207 = arith.addf %205, %206 : vector<1x8xf32>
    %cst_98 = arith.constant 5.000000e-01 : f32
    %208 = vector.broadcast %cst_98 : f32 to vector<1x8xf32>
    %209 = arith.mulf %208, %207 : vector<1x8xf32>
    %cst_99 = arith.constant 4.471500e-02 : f32
    %210 = vector.broadcast %cst_99 : f32 to vector<1x8xf32>
    %211 = arith.mulf %210, %207 : vector<1x8xf32>
    %212 = arith.mulf %211, %207 : vector<1x8xf32>
    %213 = arith.mulf %212, %207 : vector<1x8xf32>
    %214 = arith.addf %207, %213 : vector<1x8xf32>
    %cst_100 = arith.constant 0.797884583 : f32
    %215 = vector.broadcast %cst_100 : f32 to vector<1x8xf32>
    %216 = arith.mulf %215, %214 : vector<1x8xf32>
    %217 = math.tanh %216 : vector<1x8xf32>
    %cst_101 = arith.constant 1.000000e+00 : f32
    %218 = vector.broadcast %cst_101 : f32 to vector<1x8xf32>
    %219 = arith.addf %218, %217 : vector<1x8xf32>
    %220 = arith.mulf %209, %219 : vector<1x8xf32>
    %221 = arith.truncf %220 : vector<1x8xf32> to vector<1x8xbf16>
    %c0_102 = arith.constant 0 : index
    %c0_103 = arith.constant 0 : index
    %222 = vector.load %arg11[%c0_102, %c0_103] : memref<8x64xbf16, #tpu.memory_space<vmem>>, vector<8x64xbf16>
    %cst_104 = arith.constant dense<0.000000e+00> : vector<1x64xf32>
    %223 = tpu.matmul %221, %222, %cst_104 {dimension_numbers = #tpu.dot_dimension_numbers<[1], [0], [0], [1], [0, 0, 1, 1], [], []>} : vector<1x8xbf16>, vector<8x64xbf16>, vector<1x64xf32> -> vector<1x64xf32>
    %c0_105 = arith.constant 0 : index
    %c0_106 = arith.constant 0 : index
    %224 = vector.load %arg12[%c0_105, %c0_106] : memref<1x64xf32, #tpu.memory_space<vmem>>, vector<1x64xf32>
    %225 = arith.addf %223, %224 : vector<1x64xf32>
    %c0_107 = arith.constant 0 : index
    %c0_108 = arith.constant 0 : index
    %226 = vector.load %arg13[%c0_107, %c0_108] : memref<8x64xbf16, #tpu.memory_space<vmem>>, vector<8x64xbf16>
    %cst_109 = arith.constant dense<0.000000e+00> : vector<1x64xf32>
    %227 = tpu.matmul %221, %226, %cst_109 {dimension_numbers = #tpu.dot_dimension_numbers<[1], [0], [0], [1], [0, 0, 1, 1], [], []>} : vector<1x8xbf16>, vector<8x64xbf16>, vector<1x64xf32> -> vector<1x64xf32>
    %c0_110 = arith.constant 0 : index
    %c0_111 = arith.constant 0 : index
    %228 = vector.load %arg14[%c0_110, %c0_111] : memref<1x64xf32, #tpu.memory_space<vmem>>, vector<1x64xf32>
    %229 = arith.addf %227, %228 : vector<1x64xf32>
    %230 = arith.maximumf %225, %229 : vector<1x64xf32>
    %231 = arith.subf %225, %230 : vector<1x64xf32>
    %232 = math.exp %231 : vector<1x64xf32>
    %233 = arith.subf %229, %230 : vector<1x64xf32>
    %234 = math.exp %233 : vector<1x64xf32>
    %235 = arith.addf %232, %234 : vector<1x64xf32>
    %236 = tpu.reciprocal %235 {approx = true} : vector<1x64xf32> -> vector<1x64xf32>
    %237 = arith.mulf %232, %236 : vector<1x64xf32>
    %238 = arith.truncf %129 : vector<512x32xf32> to vector<512x32xbf16>
    %c0_112 = arith.constant 0 : index
    %c0_113 = arith.constant 0 : index
    %239 = vector.load %arg6[%c0_112, %c0_113] : memref<32x64xbf16, #tpu.memory_space<vmem>>, vector<32x64xbf16>
    %cst_114 = arith.constant dense<0.000000e+00> : vector<512x64xf32>
    %240 = tpu.matmul %238, %239, %cst_114 {dimension_numbers = #tpu.dot_dimension_numbers<[1], [0], [0], [1], [0, 0, 1, 1], [], []>} : vector<512x32xbf16>, vector<32x64xbf16>, vector<512x64xf32> -> vector<512x64xf32>
    %241 = arith.truncf %22 : vector<512x32xf32> to vector<512x32xbf16>
    %c0_115 = arith.constant 0 : index
    %c0_116 = arith.constant 0 : index
    %242 = vector.load %arg7[%c0_115, %c0_116] : memref<32x64xbf16, #tpu.memory_space<vmem>>, vector<32x64xbf16>
    %cst_117 = arith.constant dense<0.000000e+00> : vector<512x64xf32>
    %243 = tpu.matmul %241, %242, %cst_117 {dimension_numbers = #tpu.dot_dimension_numbers<[1], [0], [0], [1], [0, 0, 1, 1], [], []>} : vector<512x32xbf16>, vector<32x64xbf16>, vector<512x64xf32> -> vector<512x64xf32>
    %244 = arith.addf %240, %243 : vector<512x64xf32>
    %c0_118 = arith.constant 0 : index
    %c0_119 = arith.constant 0 : index
    %245 = vector.load %arg8[%c0_118, %c0_119] : memref<1x64xf32, #tpu.memory_space<vmem>>, vector<1x64xf32>
    %246 = vector.broadcast %245 : vector<1x64xf32> to vector<512x64xf32>
    %247 = arith.addf %244, %246 : vector<512x64xf32>
    %248 = vector.extract_strided_slice %247 {offsets = [0, 0], sizes = [256, 64], strides = [1, 1]} : vector<512x64xf32> to vector<256x64xf32>
    %249 = vector.broadcast %183 : vector<1x64xf32> to vector<256x64xf32>
    %250 = arith.mulf %248, %249 : vector<256x64xf32>
    %251 = vector.extract_strided_slice %247 {offsets = [256, 0], sizes = [256, 64], strides = [1, 1]} : vector<512x64xf32> to vector<256x64xf32>
    %252 = vector.broadcast %237 : vector<1x64xf32> to vector<256x64xf32>
    %253 = arith.mulf %251, %252 : vector<256x64xf32>
    %254 = tpu.concatenate %250, %253 in 0 : vector<256x64xf32>, vector<256x64xf32> -> vector<512x64xf32>
    %255 = arith.truncf %254 : vector<512x64xf32> to vector<512x64xbf16>
    %c0_120 = arith.constant 0 : index
    %c0_121 = arith.constant 0 : index
    %256 = vector.load %arg15[%c0_120, %c0_121] : memref<64x32xbf16, #tpu.memory_space<vmem>>, vector<64x32xbf16>
    %cst_122 = arith.constant dense<0.000000e+00> : vector<512x32xf32>
    %257 = tpu.matmul %255, %256, %cst_122 {dimension_numbers = #tpu.dot_dimension_numbers<[1], [0], [0], [1], [0, 0, 1, 1], [], []>} : vector<512x64xbf16>, vector<64x32xbf16>, vector<512x32xf32> -> vector<512x32xf32>
    %c0_123 = arith.constant 0 : index
    %c0_124 = arith.constant 0 : index
    %258 = vector.load %arg16[%c0_123, %c0_124] : memref<1x32xf32, #tpu.memory_space<vmem>>, vector<1x32xf32>
    %259 = vector.broadcast %258 : vector<1x32xf32> to vector<512x32xf32>
    %260 = arith.addf %257, %259 : vector<512x32xf32>
    %c0_125 = arith.constant 0 : index
    %c0_126 = arith.constant 0 : index
    %261 = vector.load %arg1[%c0_125, %c0_126] : memref<512x32xf32, #tpu.memory_space<vmem>>, vector<512x32xf32>
    %cst_127 = arith.constant 5.000000e-01 : f32
    %262 = vector.broadcast %cst_127 : f32 to vector<512x32xf32>
    %263 = arith.mulf %260, %262 : vector<512x32xf32>
    %264 = arith.addf %261, %263 : vector<512x32xf32>
    %c0_128 = arith.constant 0 : index
    %c0_129 = arith.constant 0 : index
    %265 = vector.load %arg17[%c0_128, %c0_129] : memref<1x32xf32, #tpu.memory_space<vmem>>, vector<1x32xf32>
    %c0_130 = arith.constant 0 : index
    %c0_131 = arith.constant 0 : index
    %266 = vector.load %arg18[%c0_130, %c0_131] : memref<1x32xf32, #tpu.memory_space<vmem>>, vector<1x32xf32>
    %cst_132 = arith.constant dense<0.000000e+00> : vector<512xf32>
    %267 = vector.multi_reduction <add>, %264, %cst_132 [1] : vector<512x32xf32> to vector<512xf32>
    %268 = vector.shape_cast %267 : vector<512xf32> to vector<512x1xf32>
    %cst_133 = arith.constant 3.200000e+01 : f32
    %269 = vector.broadcast %cst_133 : f32 to vector<512x1xf32>
    %270 = arith.divf %268, %269 : vector<512x1xf32>
    %271 = vector.broadcast %270 : vector<512x1xf32> to vector<512x32xf32>
    %272 = arith.subf %264, %271 : vector<512x32xf32>
    %273 = arith.mulf %272, %272 : vector<512x32xf32>
    %cst_134 = arith.constant dense<0.000000e+00> : vector<512xf32>
    %274 = vector.multi_reduction <add>, %273, %cst_134 [1] : vector<512x32xf32> to vector<512xf32>
    %275 = vector.shape_cast %274 : vector<512xf32> to vector<512x1xf32>
    %cst_135 = arith.constant 3.200000e+01 : f32
    %276 = vector.broadcast %cst_135 : f32 to vector<512x1xf32>
    %277 = arith.divf %275, %276 : vector<512x1xf32>
    %cst_136 = arith.constant 9.99999974E-6 : f32
    %278 = vector.broadcast %cst_136 : f32 to vector<512x1xf32>
    %279 = arith.addf %277, %278 : vector<512x1xf32>
    %280 = math.rsqrt %279 : vector<512x1xf32>
    %281 = vector.broadcast %280 : vector<512x1xf32> to vector<512x32xf32>
    %282 = arith.mulf %272, %281 : vector<512x32xf32>
    %283 = vector.broadcast %265 : vector<1x32xf32> to vector<512x32xf32>
    %284 = arith.mulf %282, %283 : vector<512x32xf32>
    %285 = vector.broadcast %266 : vector<1x32xf32> to vector<512x32xf32>
    %286 = arith.addf %284, %285 : vector<512x32xf32>
    %287 = arith.truncf %286 : vector<512x32xf32> to vector<512x32xbf16>
    %c0_137 = arith.constant 0 : index
    %c0_138 = arith.constant 0 : index
    %288 = vector.load %arg19[%c0_137, %c0_138] : memref<32x64xbf16, #tpu.memory_space<vmem>>, vector<32x64xbf16>
    %cst_139 = arith.constant dense<0.000000e+00> : vector<512x64xf32>
    %289 = tpu.matmul %287, %288, %cst_139 {dimension_numbers = #tpu.dot_dimension_numbers<[1], [0], [0], [1], [0, 0, 1, 1], [], []>} : vector<512x32xbf16>, vector<32x64xbf16>, vector<512x64xf32> -> vector<512x64xf32>
    %c0_140 = arith.constant 0 : index
    %c0_141 = arith.constant 0 : index
    %290 = vector.load %arg20[%c0_140, %c0_141] : memref<1x64xf32, #tpu.memory_space<vmem>>, vector<1x64xf32>
    %291 = vector.broadcast %290 : vector<1x64xf32> to vector<512x64xf32>
    %292 = arith.addf %289, %291 : vector<512x64xf32>
    %cst_142 = arith.constant 5.000000e-01 : f32
    %293 = vector.broadcast %cst_142 : f32 to vector<512x64xf32>
    %294 = arith.mulf %293, %292 : vector<512x64xf32>
    %cst_143 = arith.constant 4.471500e-02 : f32
    %295 = vector.broadcast %cst_143 : f32 to vector<512x64xf32>
    %296 = arith.mulf %295, %292 : vector<512x64xf32>
    %297 = arith.mulf %296, %292 : vector<512x64xf32>
    %298 = arith.mulf %297, %292 : vector<512x64xf32>
    %299 = arith.addf %292, %298 : vector<512x64xf32>
    %cst_144 = arith.constant 0.797884583 : f32
    %300 = vector.broadcast %cst_144 : f32 to vector<512x64xf32>
    %301 = arith.mulf %300, %299 : vector<512x64xf32>
    %302 = math.tanh %301 : vector<512x64xf32>
    %cst_145 = arith.constant 1.000000e+00 : f32
    %303 = vector.broadcast %cst_145 : f32 to vector<512x64xf32>
    %304 = arith.addf %303, %302 : vector<512x64xf32>
    %305 = arith.mulf %294, %304 : vector<512x64xf32>
    %306 = arith.truncf %305 : vector<512x64xf32> to vector<512x64xbf16>
    %c0_146 = arith.constant 0 : index
    %c0_147 = arith.constant 0 : index
    %307 = vector.load %arg21[%c0_146, %c0_147] : memref<64x32xbf16, #tpu.memory_space<vmem>>, vector<64x32xbf16>
    %cst_148 = arith.constant dense<0.000000e+00> : vector<512x32xf32>
    %308 = tpu.matmul %306, %307, %cst_148 {dimension_numbers = #tpu.dot_dimension_numbers<[1], [0], [0], [1], [0, 0, 1, 1], [], []>} : vector<512x64xbf16>, vector<64x32xbf16>, vector<512x32xf32> -> vector<512x32xf32>
    %c0_149 = arith.constant 0 : index
    %c0_150 = arith.constant 0 : index
    %309 = vector.load %arg22[%c0_149, %c0_150] : memref<1x32xf32, #tpu.memory_space<vmem>>, vector<1x32xf32>
    %310 = vector.broadcast %309 : vector<1x32xf32> to vector<512x32xf32>
    %311 = arith.addf %308, %310 : vector<512x32xf32>
    %312 = arith.addf %311, %286 : vector<512x32xf32>
    %cst_151 = arith.constant 5.000000e-01 : f32
    %313 = vector.broadcast %cst_151 : f32 to vector<512x32xf32>
    %314 = arith.mulf %312, %313 : vector<512x32xf32>
    %315 = arith.addf %264, %314 : vector<512x32xf32>
    %c0_152 = arith.constant 0 : index
    %c0_153 = arith.constant 0 : index
    %316 = vector.load %arg23[%c0_152, %c0_153] : memref<512x32xf32, #tpu.memory_space<vmem>>, vector<512x32xf32>
    tpu.vector_store %arg23[%c0_152, %c0_153], %315 {strides = array<i32>} : memref<512x32xf32, #tpu.memory_space<vmem>>, vector<512x32xf32>,
    return
  }
  func.func @transform_0(%arg0: i32) -> (i32, i32) {
    %c0_i32 = arith.constant 0 : i32
    %c0_i32_0 = arith.constant 0 : i32
    return %arg0, %c0_i32 : i32, i32
  }
  func.func @transform_1(%arg0: i32) -> (i32, i32) {
    %c0_i32 = arith.constant 0 : i32
    %c0_i32_0 = arith.constant 0 : i32
    return %arg0, %c0_i32 : i32, i32
  }
  func.func @transform_2(%arg0: i32) -> (i32, i32) {
    %c0_i32 = arith.constant 0 : i32
    %c0_i32_0 = arith.constant 0 : i32
    %c0_i32_1 = arith.constant 0 : i32
    return %c0_i32, %c0_i32_0 : i32, i32
  }
  func.func @transform_3(%arg0: i32) -> (i32, i32) {
    %c0_i32 = arith.constant 0 : i32
    %c0_i32_0 = arith.constant 0 : i32
    %c0_i32_1 = arith.constant 0 : i32
    return %c0_i32, %c0_i32_0 : i32, i32
  }
  func.func @transform_4(%arg0: i32) -> (i32, i32) {
    %c0_i32 = arith.constant 0 : i32
    %c0_i32_0 = arith.constant 0 : i32
    %c0_i32_1 = arith.constant 0 : i32
    return %c0_i32, %c0_i32_0 : i32, i32
  }
  func.func @transform_5(%arg0: i32) -> (i32, i32) {
    %c0_i32 = arith.constant 0 : i32
    %c0_i32_0 = arith.constant 0 : i32
    %c0_i32_1 = arith.constant 0 : i32
    return %c0_i32, %c0_i32_0 : i32, i32
  }
  func.func @transform_6(%arg0: i32) -> (i32, i32) {
    %c0_i32 = arith.constant 0 : i32
    %c0_i32_0 = arith.constant 0 : i32
    %c0_i32_1 = arith.constant 0 : i32
    return %c0_i32, %c0_i32_0 : i32, i32
  }
  func.func @transform_7(%arg0: i32) -> (i32, i32) {
    %c0_i32 = arith.constant 0 : i32
    %c0_i32_0 = arith.constant 0 : i32
    %c0_i32_1 = arith.constant 0 : i32
    return %c0_i32, %c0_i32_0 : i32, i32
  }
  func.func @transform_8(%arg0: i32) -> (i32, i32) {
    %c0_i32 = arith.constant 0 : i32
    %c0_i32_0 = arith.constant 0 : i32
    %c0_i32_1 = arith.constant 0 : i32
    return %c0_i32, %c0_i32_0 : i32, i32
  }
  func.func @transform_9(%arg0: i32) -> (i32, i32) {
    %c0_i32 = arith.constant 0 : i32
    %c0_i32_0 = arith.constant 0 : i32
    %c0_i32_1 = arith.constant 0 : i32
    return %c0_i32, %c0_i32_0 : i32, i32
  }
  func.func @transform_10(%arg0: i32) -> (i32, i32) {
    %c0_i32 = arith.constant 0 : i32
    %c0_i32_0 = arith.constant 0 : i32
    %c0_i32_1 = arith.constant 0 : i32
    return %c0_i32, %c0_i32_0 : i32, i32
  }
  func.func @transform_11(%arg0: i32) -> (i32, i32) {
    %c0_i32 = arith.constant 0 : i32
    %c0_i32_0 = arith.constant 0 : i32
    %c0_i32_1 = arith.constant 0 : i32
    return %c0_i32, %c0_i32_0 : i32, i32
  }
  func.func @transform_12(%arg0: i32) -> (i32, i32) {
    %c0_i32 = arith.constant 0 : i32
    %c0_i32_0 = arith.constant 0 : i32
    %c0_i32_1 = arith.constant 0 : i32
    return %c0_i32, %c0_i32_0 : i32, i32
  }
  func.func @transform_13(%arg0: i32) -> (i32, i32) {
    %c0_i32 = arith.constant 0 : i32
    %c0_i32_0 = arith.constant 0 : i32
    %c0_i32_1 = arith.constant 0 : i32
    return %c0_i32, %c0_i32_0 : i32, i32
  }
  func.func @transform_14(%arg0: i32) -> (i32, i32) {
    %c0_i32 = arith.constant 0 : i32
    %c0_i32_0 = arith.constant 0 : i32
    %c0_i32_1 = arith.constant 0 : i32
    return %c0_i32, %c0_i32_0 : i32, i32
  }
  func.func @transform_15(%arg0: i32) -> (i32, i32) {
    %c0_i32 = arith.constant 0 : i32
    %c0_i32_0 = arith.constant 0 : i32
    %c0_i32_1 = arith.constant 0 : i32
    return %c0_i32, %c0_i32_0 : i32, i32
  }
  func.func @transform_16(%arg0: i32) -> (i32, i32) {
    %c0_i32 = arith.constant 0 : i32
    %c0_i32_0 = arith.constant 0 : i32
    %c0_i32_1 = arith.constant 0 : i32
    return %c0_i32, %c0_i32_0 : i32, i32
  }
  func.func @transform_17(%arg0: i32) -> (i32, i32) {
    %c0_i32 = arith.constant 0 : i32
    %c0_i32_0 = arith.constant 0 : i32
    %c0_i32_1 = arith.constant 0 : i32
    return %c0_i32, %c0_i32_0 : i32, i32
  }
  func.func @transform_18(%arg0: i32) -> (i32, i32) {
    %c0_i32 = arith.constant 0 : i32
    %c0_i32_0 = arith.constant 0 : i32
    %c0_i32_1 = arith.constant 0 : i32
    return %c0_i32, %c0_i32_0 : i32, i32
  }
  func.func @transform_19(%arg0: i32) -> (i32, i32) {
    %c0_i32 = arith.constant 0 : i32
    %c0_i32_0 = arith.constant 0 : i32
    %c0_i32_1 = arith.constant 0 : i32
    return %c0_i32, %c0_i32_0 : i32, i32
  }
  func.func @transform_20(%arg0: i32) -> (i32, i32) {
    %c0_i32 = arith.constant 0 : i32
    %c0_i32_0 = arith.constant 0 : i32
    %c0_i32_1 = arith.constant 0 : i32
    return %c0_i32, %c0_i32_0 : i32, i32
  }
  func.func @transform_21(%arg0: i32) -> (i32, i32) {
    %c0_i32 = arith.constant 0 : i32
    %c0_i32_0 = arith.constant 0 : i32
    %c0_i32_1 = arith.constant 0 : i32
    return %c0_i32, %c0_i32_0 : i32, i32
  }
  func.func @transform_22(%arg0: i32) -> (i32, i32) {
    %c0_i32 = arith.constant 0 : i32
    %c0_i32_0 = arith.constant 0 : i32
    return %arg0, %c0_i32 : i32, i32
  }
}

</mosaic_0001>

<llo_original>
// kernel: tpu_custom_call.1
$region0: #{tpu_custom_call.1}
  #allocation0 [shape = 'u32[]', space=smem, size = 0x4, offset = 0x4, fixed_abs, tag = 'smem constant byte address 0x4 - core index']
  #allocation1 [shape = 'u32[144,128]{1,0:T(1,128)}', space=vmem, size = 0x12000, scoped, tag = 'internal scratch']
  %s0 = inlined_call_operand.vmem [shape: f32[512,32], index: 0, kind: input, shape index: {}]
  %s1 = inlined_call_operand.vmem [shape: f32[512,14], index: 1, kind: input, shape index: {}]
  %s2 = inlined_call_operand.vmem [shape: f32[14,32], index: 2, kind: input, shape index: {}]
  %s3 = inlined_call_operand.vmem [shape: f32[1,32], index: 3, kind: input, shape index: {}]
  %s4 = inlined_call_operand.vmem [shape: f32[1,32], index: 4, kind: input, shape index: {}]
  %s5 = inlined_call_operand.vmem [shape: bf16[32,64], index: 5, kind: input, shape index: {}]
  %s6 = inlined_call_operand.vmem [shape: bf16[32,64], index: 6, kind: input, shape index: {}]
  %s7 = inlined_call_operand.vmem [shape: f32[1,64], index: 7, kind: input, shape index: {}]
  %s8 = inlined_call_operand.vmem [shape: bf16[64,8], index: 8, kind: input, shape index: {}]
  %s9 = inlined_call_operand.vmem [shape: f32[1,8], index: 9, kind: input, shape index: {}]
  %s10 = inlined_call_operand.vmem [shape: bf16[8,64], index: 10, kind: input, shape index: {}]
  %s11 = inlined_call_operand.vmem [shape: f32[1,64], index: 11, kind: input, shape index: {}]
  %s12 = inlined_call_operand.vmem [shape: bf16[8,64], index: 12, kind: input, shape index: {}]
  %s13 = inlined_call_operand.vmem [shape: f32[1,64], index: 13, kind: input, shape index: {}]
  %s14 = inlined_call_operand.vmem [shape: bf16[64,32], index: 14, kind: input, shape index: {}]
  %s15 = inlined_call_operand.vmem [shape: f32[1,32], index: 15, kind: input, shape index: {}]
  %s16 = inlined_call_operand.vmem [shape: f32[1,32], index: 16, kind: input, shape index: {}]
  %s17 = inlined_call_operand.vmem [shape: f32[1,32], index: 17, kind: input, shape index: {}]
  %s18 = inlined_call_operand.vmem [shape: bf16[32,64], index: 18, kind: input, shape index: {}]
  %s19 = inlined_call_operand.vmem [shape: f32[1,64], index: 19, kind: input, shape index: {}]
  %s20 = inlined_call_operand.vmem [shape: bf16[64,32], index: 20, kind: input, shape index: {}]
  %s21 = inlined_call_operand.vmem [shape: f32[1,32], index: 21, kind: input, shape index: {}]
  %s22 = inlined_call_operand.vmem [shape: f32[512,32], index: 22, kind: output, shape index: {}]
  %s23 = sld [smem:[#allocation0]]
  $region98: #{tpu_custom_call.1} parent=0
    _
  %s25 = ssub.s32 1, %s23
  %s26 = scalar_select 0, %s25, %s23
  // Predicated region
  $region2: #{tpu_custom_call.1} parent=0 // pred_check
    _
  $region3: #{tpu_custom_call.1} parent=0 // pred_check_branch
    %28 = sbr.rel (0) target = $region5
  $region4: #{tpu_custom_call.1} parent=0 // pred_region
    _
  $region5: #{tpu_custom_call.1} parent=0 // pred_fallthru
    _
  // Predicated region
  $region6: #{tpu_custom_call.1} parent=0 // pred_check
    _
  $region7: #{tpu_custom_call.1} parent=0 // pred_check_branch
    %30 = sbr.rel (0) target = $region9
  $region8: #{tpu_custom_call.1} parent=0 // pred_region
    _
  $region9: #{tpu_custom_call.1} parent=0 // pred_fallthru
    _
  // Predicated region
  $region10: #{tpu_custom_call.1} parent=0 // pred_check
    _
  $region11: #{tpu_custom_call.1} parent=0 // pred_check_branch
    %32 = sbr.rel (0) target = $region13
  $region12: #{tpu_custom_call.1} parent=0 // pred_region
    _
  $region13: #{tpu_custom_call.1} parent=0 // pred_fallthru
    _
  // Predicated region
  $region14: #{tpu_custom_call.1} parent=0 // pred_check
    _
  $region15: #{tpu_custom_call.1} parent=0 // pred_check_branch
    %34 = sbr.rel (0) target = $region17
  $region16: #{tpu_custom_call.1} parent=0 // pred_region
    _
  $region17: #{tpu_custom_call.1} parent=0 // pred_fallthru
    _
  // Predicated region
  $region18: #{tpu_custom_call.1} parent=0 // pred_check
    _
  $region19: #{tpu_custom_call.1} parent=0 // pred_check_branch
    %36 = sbr.rel (0) target = $region21
  $region20: #{tpu_custom_call.1} parent=0 // pred_region
    _
  $region21: #{tpu_custom_call.1} parent=0 // pred_fallthru
    _
  // Predicated region
  $region22: #{tpu_custom_call.1} parent=0 // pred_check
    _
  $region23: #{tpu_custom_call.1} parent=0 // pred_check_branch
    %38 = sbr.rel (0) target = $region25
  $region24: #{tpu_custom_call.1} parent=0 // pred_region
    _
  $region25: #{tpu_custom_call.1} parent=0 // pred_fallthru
    _
  // Predicated region
  $region26: #{tpu_custom_call.1} parent=0 // pred_check
    _
  $region27: #{tpu_custom_call.1} parent=0 // pred_check_branch
    %40 = sbr.rel (0) target = $region29
  $region28: #{tpu_custom_call.1} parent=0 // pred_region
    _
  $region29: #{tpu_custom_call.1} parent=0 // pred_fallthru
    _
  // Predicated region
  $region30: #{tpu_custom_call.1} parent=0 // pred_check
    _
  $region31: #{tpu_custom_call.1} parent=0 // pred_check_branch
    %42 = sbr.rel (0) target = $region33
  $region32: #{tpu_custom_call.1} parent=0 // pred_region
    _
  $region33: #{tpu_custom_call.1} parent=0 // pred_fallthru
    _
  // Predicated region
  $region34: #{tpu_custom_call.1} parent=0 // pred_check
    _
  $region35: #{tpu_custom_call.1} parent=0 // pred_check_branch
    %44 = sbr.rel (0) target = $region37
  $region36: #{tpu_custom_call.1} parent=0 // pred_region
    _
  $region37: #{tpu_custom_call.1} parent=0 // pred_fallthru
    _
  // Predicated region
  $region38: #{tpu_custom_call.1} parent=0 // pred_check
    _
  $region39: #{tpu_custom_call.1} parent=0 // pred_check_branch
    %46 = sbr.rel (0) target = $region41
  $region40: #{tpu_custom_call.1} parent=0 // pred_region
    _
  $region41: #{tpu_custom_call.1} parent=0 // pred_fallthru
    _
  // Predicated region
  $region42: #{tpu_custom_call.1} parent=0 // pred_check
    _
  $region43: #{tpu_custom_call.1} parent=0 // pred_check_branch
    %48 = sbr.rel (0) target = $region45
  $region44: #{tpu_custom_call.1} parent=0 // pred_region
    _
  $region45: #{tpu_custom_call.1} parent=0 // pred_fallthru
    _
  // Predicated region
  $region46: #{tpu_custom_call.1} parent=0 // pred_check
    _
  $region47: #{tpu_custom_call.1} parent=0 // pred_check_branch
    %50 = sbr.rel (0) target = $region49
  $region48: #{tpu_custom_call.1} parent=0 // pred_region
    _
  $region49: #{tpu_custom_call.1} parent=0 // pred_fallthru
    _
  // Predicated region
  $region50: #{tpu_custom_call.1} parent=0 // pred_check
    _
  $region51: #{tpu_custom_call.1} parent=0 // pred_check_branch
    %52 = sbr.rel (0) target = $region53
  $region52: #{tpu_custom_call.1} parent=0 // pred_region
    _
  $region53: #{tpu_custom_call.1} parent=0 // pred_fallthru
    _
  // Predicated region
  $region54: #{tpu_custom_call.1} parent=0 // pred_check
    _
  $region55: #{tpu_custom_call.1} parent=0 // pred_check_branch
    %54 = sbr.rel (0) target = $region57
  $region56: #{tpu_custom_call.1} parent=0 // pred_region
    _
  $region57: #{tpu_custom_call.1} parent=0 // pred_fallthru
    _
  // Predicated region
  $region58: #{tpu_custom_call.1} parent=0 // pred_check
    _
  $region59: #{tpu_custom_call.1} parent=0 // pred_check_branch
    %56 = sbr.rel (0) target = $region61
  $region60: #{tpu_custom_call.1} parent=0 // pred_region
    _
  $region61: #{tpu_custom_call.1} parent=0 // pred_fallthru
    _
  // Predicated region
  $region62: #{tpu_custom_call.1} parent=0 // pred_check
    _
  $region63: #{tpu_custom_call.1} parent=0 // pred_check_branch
    %58 = sbr.rel (0) target = $region65
  $region64: #{tpu_custom_call.1} parent=0 // pred_region
    _
  $region65: #{tpu_custom_call.1} parent=0 // pred_fallthru
    _
  // Predicated region
  $region66: #{tpu_custom_call.1} parent=0 // pred_check
    _
  $region67: #{tpu_custom_call.1} parent=0 // pred_check_branch
    %60 = sbr.rel (0) target = $region69
  $region68: #{tpu_custom_call.1} parent=0 // pred_region
    _
  $region69: #{tpu_custom_call.1} parent=0 // pred_fallthru
    _
  // Predicated region
  $region70: #{tpu_custom_call.1} parent=0 // pred_check
    _
  $region71: #{tpu_custom_call.1} parent=0 // pred_check_branch
    %62 = sbr.rel (0) target = $region73
  $region72: #{tpu_custom_call.1} parent=0 // pred_region
    _
  $region73: #{tpu_custom_call.1} parent=0 // pred_fallthru
    _
  // Predicated region
  $region74: #{tpu_custom_call.1} parent=0 // pred_check
    _
  $region75: #{tpu_custom_call.1} parent=0 // pred_check_branch
    %64 = sbr.rel (0) target = $region77
  $region76: #{tpu_custom_call.1} parent=0 // pred_region
    _
  $region77: #{tpu_custom_call.1} parent=0 // pred_fallthru
    _
  // Predicated region
  $region78: #{tpu_custom_call.1} parent=0 // pred_check
    _
  $region79: #{tpu_custom_call.1} parent=0 // pred_check_branch
    %66 = sbr.rel (0) target = $region81
  $region80: #{tpu_custom_call.1} parent=0 // pred_region
    _
  $region81: #{tpu_custom_call.1} parent=0 // pred_fallthru
    _
  // Predicated region
  $region82: #{tpu_custom_call.1} parent=0 // pred_check
    _
  $region83: #{tpu_custom_call.1} parent=0 // pred_check_branch
    %68 = sbr.rel (0) target = $region85
  $region84: #{tpu_custom_call.1} parent=0 // pred_region
    _
  $region85: #{tpu_custom_call.1} parent=0 // pred_fallthru
    _
  // Predicated region
  $region86: #{tpu_custom_call.1} parent=0 // pred_check
    _
  $region87: #{tpu_custom_call.1} parent=0 // pred_check_branch
    %70 = sbr.rel (0) target = $region89
  $region88: #{tpu_custom_call.1} parent=0 // pred_region
    _
  $region89: #{tpu_custom_call.1} parent=0 // pred_fallthru
    _
  %v72 = vld [vmem:[%s0] sm:$0xff]
  %v73 = vld [vmem:[%s0 + $0x8] sm:$0xff]
  %v74 = vld [vmem:[%s0 + $0x10] sm:$0xff]
  %v75 = vld [vmem:[%s0 + $0x18] sm:$0xff]
  %v76 = vld [vmem:[%s0 + $0x20] sm:$0xff]
  %v77 = vld [vmem:[%s0 + $0x28] sm:$0xff]
  %v78 = vld [vmem:[%s0 + $0x30] sm:$0xff]
  %v79 = vld [vmem:[%s0 + $0x38] sm:$0xff]
  %v80 = vld [vmem:[%s0 + $0x40] sm:$0xff]
  %v81 = vld [vmem:[%s0 + $0x48] sm:$0xff]
  %v82 = vld [vmem:[%s0 + $0x50] sm:$0xff]
  %v83 = vld [vmem:[%s0 + $0x58] sm:$0xff]
  %v84 = vld [vmem:[%s0 + $0x60] sm:$0xff]
  %v85 = vld [vmem:[%s0 + $0x68] sm:$0xff]
  %v86 = vld [vmem:[%s0 + $0x70] sm:$0xff]
  %v87 = vld [vmem:[%s0 + $0x78] sm:$0xff]
  %v88 = vld [vmem:[%s0 + $0x80] sm:$0xff]
  %v89 = vld [vmem:[%s0 + $0x88] sm:$0xff]
  %v90 = vld [vmem:[%s0 + $0x90] sm:$0xff]
  %v91 = vld [vmem:[%s0 + $0x98] sm:$0xff]
  %v92 = vld [vmem:[%s0 + $0xa0] sm:$0xff]
  %v93 = vld [vmem:[%s0 + $0xa8] sm:$0xff]
  %v94 = vld [vmem:[%s0 + $0xb0] sm:$0xff]
  %v95 = vld [vmem:[%s0 + $0xb8] sm:$0xff]
  %v96 = vld [vmem:[%s0 + $0xc0] sm:$0xff]
  %v97 = vld [vmem:[%s0 + $0xc8] sm:$0xff]
  %v98 = vld [vmem:[%s0 + $0xd0] sm:$0xff]
  %v99 = vld [vmem:[%s0 + $0xd8] sm:$0xff]
  %v100 = vld [vmem:[%s0 + $0xe0] sm:$0xff]
  %v101 = vld [vmem:[%s0 + $0xe8] sm:$0xff]
  %v102 = vld [vmem:[%s0 + $0xf0] sm:$0xff]
  %v103 = vld [vmem:[%s0 + $0xf8] sm:$0xff]
  %v104 = vld [vmem:[%s0 + $0x100] sm:$0xff]
  %v105 = vld [vmem:[%s0 + $0x108] sm:$0xff]
  %v106 = vld [vmem:[%s0 + $0x110] sm:$0xff]
  %v107 = vld [vmem:[%s0 + $0x118] sm:$0xff]
  %v108 = vld [vmem:[%s0 + $0x120] sm:$0xff]
  %v109 = vld [vmem:[%s0 + $0x128] sm:$0xff]
  %v110 = vld [vmem:[%s0 + $0x130] sm:$0xff]
  %v111 = vld [vmem:[%s0 + $0x138] sm:$0xff]
  %v112 = vld [vmem:[%s0 + $0x140] sm:$0xff]
  %v113 = vld [vmem:[%s0 + $0x148] sm:$0xff]
  %v114 = vld [vmem:[%s0 + $0x150] sm:$0xff]
  %v115 = vld [vmem:[%s0 + $0x158] sm:$0xff]
  %v116 = vld [vmem:[%s0 + $0x160] sm:$0xff]
  %v117 = vld [vmem:[%s0 + $0x168] sm:$0xff]
  %v118 = vld [vmem:[%s0 + $0x170] sm:$0xff]
  %v119 = vld [vmem:[%s0 + $0x178] sm:$0xff]
  %v120 = vld [vmem:[%s0 + $0x180] sm:$0xff]
  %v121 = vld [vmem:[%s0 + $0x188] sm:$0xff]
  %v122 = vld [vmem:[%s0 + $0x190] sm:$0xff]
  %v123 = vld [vmem:[%s0 + $0x198] sm:$0xff]
  %v124 = vld [vmem:[%s0 + $0x1a0] sm:$0xff]
  %v125 = vld [vmem:[%s0 + $0x1a8] sm:$0xff]
  %v126 = vld [vmem:[%s0 + $0x1b0] sm:$0xff]
  %v127 = vld [vmem:[%s0 + $0x1b8] sm:$0xff]
  %v128 = vld [vmem:[%s0 + $0x1c0] sm:$0xff]
  %v129 = vld [vmem:[%s0 + $0x1c8] sm:$0xff]
  %v130 = vld [vmem:[%s0 + $0x1d0] sm:$0xff]
  %v131 = vld [vmem:[%s0 + $0x1d8] sm:$0xff]
  %v132 = vld [vmem:[%s0 + $0x1e0] sm:$0xff]
  %v133 = vld [vmem:[%s0 + $0x1e8] sm:$0xff]
  %v134 = vld [vmem:[%s0 + $0x1f0] sm:$0xff]
  %v135 = vld [vmem:[%s0 + $0x1f8] sm:$0xff]
  %v136 = vld [vmem:[%s3] sm:$0x1]
  %v137 = vld [vmem:[%s4] sm:$0x1]
  %vm138 = vcmask 261120
  %v139 = vsel %vm138, %v72, 0.0
  %140 = vadd.xlane.f32.xlu0 %v139
  %v141 = vpop.xlane.xlu0 %140
  %v142 = vsel %vm138, %v73, 0.0
  %143 = vadd.xlane.f32.xlu0 %v142
  %v144 = vpop.xlane.xlu0 %143
  %v145 = vsel %vm138, %v74, 0.0
  %146 = vadd.xlane.f32.xlu0 %v145
  %v147 = vpop.xlane.xlu0 %146
  %v148 = vsel %vm138, %v75, 0.0
  %149 = vadd.xlane.f32.xlu0 %v148
  %v150 = vpop.xlane.xlu0 %149
  %v151 = vsel %vm138, %v76, 0.0
  %152 = vadd.xlane.f32.xlu0 %v151
  %v153 = vpop.xlane.xlu0 %152
  %v154 = vsel %vm138, %v77, 0.0
  %155 = vadd.xlane.f32.xlu0 %v154
  %v156 = vpop.xlane.xlu0 %155
  %v157 = vsel %vm138, %v78, 0.0
  %158 = vadd.xlane.f32.xlu0 %v157
  %v159 = vpop.xlane.xlu0 %158
  %v160 = vsel %vm138, %v79, 0.0
  %161 = vadd.xlane.f32.xlu0 %v160
  %v162 = vpop.xlane.xlu0 %161
  %v163 = vsel %vm138, %v80, 0.0
  %164 = vadd.xlane.f32.xlu0 %v163
  %v165 = vpop.xlane.xlu0 %164
  %v166 = vsel %vm138, %v81, 0.0
  %167 = vadd.xlane.f32.xlu0 %v166
  %v168 = vpop.xlane.xlu0 %167
  %v169 = vsel %vm138, %v82, 0.0
  %170 = vadd.xlane.f32.xlu0 %v169
  %v171 = vpop.xlane.xlu0 %170
  %v172 = vsel %vm138, %v83, 0.0
  %173 = vadd.xlane.f32.xlu0 %v172
  %v174 = vpop.xlane.xlu0 %173
  %v175 = vsel %vm138, %v84, 0.0
  %176 = vadd.xlane.f32.xlu0 %v175
  %v177 = vpop.xlane.xlu0 %176
  %v178 = vsel %vm138, %v85, 0.0
  %179 = vadd.xlane.f32.xlu0 %v178
  %v180 = vpop.xlane.xlu0 %179
  %v181 = vsel %vm138, %v86, 0.0
  %182 = vadd.xlane.f32.xlu0 %v181
  %v183 = vpop.xlane.xlu0 %182
  %v184 = vsel %vm138, %v87, 0.0
  %185 = vadd.xlane.f32.xlu0 %v184
  %v186 = vpop.xlane.xlu0 %185
  %v187 = vsel %vm138, %v88, 0.0
  %188 = vadd.xlane.f32.xlu0 %v187
  %v189 = vpop.xlane.xlu0 %188
  %v190 = vsel %vm138, %v89, 0.0
  %191 = vadd.xlane.f32.xlu0 %v190
  %v192 = vpop.xlane.xlu0 %191
  %v193 = vsel %vm138, %v90, 0.0
  %194 = vadd.xlane.f32.xlu0 %v193
  %v195 = vpop.xlane.xlu0 %194
  %v196 = vsel %vm138, %v91, 0.0
  %197 = vadd.xlane.f32.xlu0 %v196
  %v198 = vpop.xlane.xlu0 %197
  %v199 = vsel %vm138, %v92, 0.0
  %200 = vadd.xlane.f32.xlu0 %v199
  %v201 = vpop.xlane.xlu0 %200
  %v202 = vsel %vm138, %v93, 0.0
  %203 = vadd.xlane.f32.xlu0 %v202
  %v204 = vpop.xlane.xlu0 %203
  %v205 = vsel %vm138, %v94, 0.0
  %206 = vadd.xlane.f32.xlu0 %v205
  %v207 = vpop.xlane.xlu0 %206
  %v208 = vsel %vm138, %v95, 0.0
  %209 = vadd.xlane.f32.xlu0 %v208
  %v210 = vpop.xlane.xlu0 %209
  %v211 = vsel %vm138, %v96, 0.0
  %212 = vadd.xlane.f32.xlu0 %v211
  %v213 = vpop.xlane.xlu0 %212
  %v214 = vsel %vm138, %v97, 0.0
  %215 = vadd.xlane.f32.xlu0 %v214
  %v216 = vpop.xlane.xlu0 %215
  %v217 = vsel %vm138, %v98, 0.0
  %218 = vadd.xlane.f32.xlu0 %v217
  %v219 = vpop.xlane.xlu0 %218
  %v220 = vsel %vm138, %v99, 0.0
  %221 = vadd.xlane.f32.xlu0 %v220
  %v222 = vpop.xlane.xlu0 %221
  %v223 = vsel %vm138, %v100, 0.0
  %224 = vadd.xlane.f32.xlu0 %v223
  %v225 = vpop.xlane.xlu0 %224
  %v226 = vsel %vm138, %v101, 0.0
  %227 = vadd.xlane.f32.xlu0 %v226
  %v228 = vpop.xlane.xlu0 %227
  %v229 = vsel %vm138, %v102, 0.0
  %230 = vadd.xlane.f32.xlu0 %v229
  %v231 = vpop.xlane.xlu0 %230
  %v232 = vsel %vm138, %v103, 0.0
  %233 = vadd.xlane.f32.xlu0 %v232
  %v234 = vpop.xlane.xlu0 %233
  %v235 = vsel %vm138, %v104, 0.0
  %236 = vadd.xlane.f32.xlu0 %v235
  %v237 = vpop.xlane.xlu0 %236
  %v238 = vsel %vm138, %v105, 0.0
  %239 = vadd.xlane.f32.xlu0 %v238
  %v240 = vpop.xlane.xlu0 %239
  %v241 = vsel %vm138, %v106, 0.0
  %242 = vadd.xlane.f32.xlu0 %v241
  %v243 = vpop.xlane.xlu0 %242
  %v244 = vsel %vm138, %v107, 0.0
  %245 = vadd.xlane.f32.xlu0 %v244
  %v246 = vpop.xlane.xlu0 %245
  %v247 = vsel %vm138, %v108, 0.0
  %248 = vadd.xlane.f32.xlu0 %v247
  %v249 = vpop.xlane.xlu0 %248
  %v250 = vsel %vm138, %v109, 0.0
  %251 = vadd.xlane.f32.xlu0 %v250
  %v252 = vpop.xlane.xlu0 %251
  %v253 = vsel %vm138, %v110, 0.0
  %254 = vadd.xlane.f32.xlu0 %v253
  %v255 = vpop.xlane.xlu0 %254
  %v256 = vsel %vm138, %v111, 0.0
  %257 = vadd.xlane.f32.xlu0 %v256
  %v258 = vpop.xlane.xlu0 %257
  %v259 = vsel %vm138, %v112, 0.0
  %260 = vadd.xlane.f32.xlu0 %v259
  %v261 = vpop.xlane.xlu0 %260
  %v262 = vsel %vm138, %v113, 0.0
  %263 = vadd.xlane.f32.xlu0 %v262
  %v264 = vpop.xlane.xlu0 %263
  %v265 = vsel %vm138, %v114, 0.0
  %266 = vadd.xlane.f32.xlu0 %v265
  %v267 = vpop.xlane.xlu0 %266
  %v268 = vsel %vm138, %v115, 0.0
  %269 = vadd.xlane.f32.xlu0 %v268
  %v270 = vpop.xlane.xlu0 %269
  %v271 = vsel %vm138, %v116, 0.0
  %272 = vadd.xlane.f32.xlu0 %v271
  %v273 = vpop.xlane.xlu0 %272
  %v274 = vsel %vm138, %v117, 0.0
  %275 = vadd.xlane.f32.xlu0 %v274
  %v276 = vpop.xlane.xlu0 %275
  %v277 = vsel %vm138, %v118, 0.0
  %278 = vadd.xlane.f32.xlu0 %v277
  %v279 = vpop.xlane.xlu0 %278
  %v280 = vsel %vm138, %v119, 0.0
  %281 = vadd.xlane.f32.xlu0 %v280
  %v282 = vpop.xlane.xlu0 %281
  %v283 = vsel %vm138, %v120, 0.0
  %284 = vadd.xlane.f32.xlu0 %v283
  %v285 = vpop.xlane.xlu0 %284
  %v286 = vsel %vm138, %v121, 0.0
  %287 = vadd.xlane.f32.xlu0 %v286
  %v288 = vpop.xlane.xlu0 %287
  %v289 = vsel %vm138, %v122, 0.0
  %290 = vadd.xlane.f32.xlu0 %v289
  %v291 = vpop.xlane.xlu0 %290
  %v292 = vsel %vm138, %v123, 0.0
  %293 = vadd.xlane.f32.xlu0 %v292
  %v294 = vpop.xlane.xlu0 %293
  %v295 = vsel %vm138, %v124, 0.0
  %296 = vadd.xlane.f32.xlu0 %v295
  %v297 = vpop.xlane.xlu0 %296
  %v298 = vsel %vm138, %v125, 0.0
  %299 = vadd.xlane.f32.xlu0 %v298
  %v300 = vpop.xlane.xlu0 %299
  %v301 = vsel %vm138, %v126, 0.0
  %302 = vadd.xlane.f32.xlu0 %v301
  %v303 = vpop.xlane.xlu0 %302
  %v304 = vsel %vm138, %v127, 0.0
  %305 = vadd.xlane.f32.xlu0 %v304
  %v306 = vpop.xlane.xlu0 %305
  %v307 = vsel %vm138, %v128, 0.0
  %308 = vadd.xlane.f32.xlu0 %v307
  %v309 = vpop.xlane.xlu0 %308
  %v310 = vsel %vm138, %v129, 0.0
  %311 = vadd.xlane.f32.xlu0 %v310
  %v312 = vpop.xlane.xlu0 %311
  %v313 = vsel %vm138, %v130, 0.0
  %314 = vadd.xlane.f32.xlu0 %v313
  %v315 = vpop.xlane.xlu0 %314
  %v316 = vsel %vm138, %v131, 0.0
  %317 = vadd.xlane.f32.xlu0 %v316
  %v318 = vpop.xlane.xlu0 %317
  %v319 = vsel %vm138, %v132, 0.0
  %320 = vadd.xlane.f32.xlu0 %v319
  %v321 = vpop.xlane.xlu0 %320
  %v322 = vsel %vm138, %v133, 0.0
  %323 = vadd.xlane.f32.xlu0 %v322
  %v324 = vpop.xlane.xlu0 %323
  %v325 = vsel %vm138, %v134, 0.0
  %326 = vadd.xlane.f32.xlu0 %v325
  %v327 = vpop.xlane.xlu0 %326
  %v328 = vsel %vm138, %v135, 0.0
  %329 = vadd.xlane.f32.xlu0 %v328
  %v330 = vpop.xlane.xlu0 %329
  %v331 = vrcp.pop 32.0
  %v332 = vmul.f32 %v141, %v331
  %v333 = vmul.f32 %v144, %v331
  %v334 = vmul.f32 %v147, %v331
  %v335 = vmul.f32 %v150, %v331
  %v336 = vmul.f32 %v153, %v331
  %v337 = vmul.f32 %v156, %v331
  %v338 = vmul.f32 %v159, %v331
  %v339 = vmul.f32 %v162, %v331
  %v340 = vmul.f32 %v165, %v331
  %v341 = vmul.f32 %v168, %v331
  %v342 = vmul.f32 %v171, %v331
  %v343 = vmul.f32 %v174, %v331
  %v344 = vmul.f32 %v177, %v331
  %v345 = vmul.f32 %v180, %v331
  %v346 = vmul.f32 %v183, %v331
  %v347 = vmul.f32 %v186, %v331
  %v348 = vmul.f32 %v189, %v331
  %v349 = vmul.f32 %v192, %v331
  %v350 = vmul.f32 %v195, %v331
  %v351 = vmul.f32 %v198, %v331
  %v352 = vmul.f32 %v201, %v331
  %v353 = vmul.f32 %v204, %v331
  %v354 = vmul.f32 %v207, %v331
  %v355 = vmul.f32 %v210, %v331
  %v356 = vmul.f32 %v213, %v331
  %v357 = vmul.f32 %v216, %v331
  %v358 = vmul.f32 %v219, %v331
  %v359 = vmul.f32 %v222, %v331
  %v360 = vmul.f32 %v225, %v331
  %v361 = vmul.f32 %v228, %v331
  %v362 = vmul.f32 %v231, %v331
  %v363 = vmul.f32 %v234, %v331
  %v364 = vmul.f32 %v237, %v331
  %v365 = vmul.f32 %v240, %v331
  %v366 = vmul.f32 %v243, %v331
  %v367 = vmul.f32 %v246, %v331
  %v368 = vmul.f32 %v249, %v331
  %v369 = vmul.f32 %v252, %v331
  %v370 = vmul.f32 %v255, %v331
  %v371 = vmul.f32 %v258, %v331
  %v372 = vmul.f32 %v261, %v331
  %v373 = vmul.f32 %v264, %v331
  %v374 = vmul.f32 %v267, %v331
  %v375 = vmul.f32 %v270, %v331
  %v376 = vmul.f32 %v273, %v331
  %v377 = vmul.f32 %v276, %v331
  %v378 = vmul.f32 %v279, %v331
  %v379 = vmul.f32 %v282, %v331
  %v380 = vmul.f32 %v285, %v331
  %v381 = vmul.f32 %v288, %v331
  %v382 = vmul.f32 %v291, %v331
  %v383 = vmul.f32 %v294, %v331
  %v384 = vmul.f32 %v297, %v331
  %v385 = vmul.f32 %v300, %v331
  %v386 = vmul.f32 %v303, %v331
  %v387 = vmul.f32 %v306, %v331
  %v388 = vmul.f32 %v309, %v331
  %v389 = vmul.f32 %v312, %v331
  %v390 = vmul.f32 %v315, %v331
  %v391 = vmul.f32 %v318, %v331
  %v392 = vmul.f32 %v321, %v331
  %v393 = vmul.f32 %v324, %v331
  %v394 = vmul.f32 %v327, %v331
  %v395 = vmul.f32 %v330, %v331
  %v396 = vsub.f32 %v72, %v332
  %v397 = vsub.f32 %v73, %v333
  %v398 = vsub.f32 %v74, %v334
  %v399 = vsub.f32 %v75, %v335
  %v400 = vsub.f32 %v76, %v336
  %v401 = vsub.f32 %v77, %v337
  %v402 = vsub.f32 %v78, %v338
  %v403 = vsub.f32 %v79, %v339
  %v404 = vsub.f32 %v80, %v340
  %v405 = vsub.f32 %v81, %v341
  %v406 = vsub.f32 %v82, %v342
  %v407 = vsub.f32 %v83, %v343
  %v408 = vsub.f32 %v84, %v344
  %v409 = vsub.f32 %v85, %v345
  %v410 = vsub.f32 %v86, %v346
  %v411 = vsub.f32 %v87, %v347
  %v412 = vsub.f32 %v88, %v348
  %v413 = vsub.f32 %v89, %v349
  %v414 = vsub.f32 %v90, %v350
  %v415 = vsub.f32 %v91, %v351
  %v416 = vsub.f32 %v92, %v352
  %v417 = vsub.f32 %v93, %v353
  %v418 = vsub.f32 %v94, %v354
  %v419 = vsub.f32 %v95, %v355
  %v420 = vsub.f32 %v96, %v356
  %v421 = vsub.f32 %v97, %v357
  %v422 = vsub.f32 %v98, %v358
  %v423 = vsub.f32 %v99, %v359
  %v424 = vsub.f32 %v100, %v360
  %v425 = vsub.f32 %v101, %v361
  %v426 = vsub.f32 %v102, %v362
  %v427 = vsub.f32 %v103, %v363
  %v428 = vsub.f32 %v104, %v364
  %v429 = vsub.f32 %v105, %v365
  %v430 = vsub.f32 %v106, %v366
  %v431 = vsub.f32 %v107, %v367
  %v432 = vsub.f32 %v108, %v368
  %v433 = vsub.f32 %v109, %v369
  %v434 = vsub.f32 %v110, %v370
  %v435 = vsub.f32 %v111, %v371
  %v436 = vsub.f32 %v112, %v372
  %v437 = vsub.f32 %v113, %v373
  %v438 = vsub.f32 %v114, %v374
  %v439 = vsub.f32 %v115, %v375
  %v440 = vsub.f32 %v116, %v376
  %v441 = vsub.f32 %v117, %v377
  %v442 = vsub.f32 %v118, %v378
  %v443 = vsub.f32 %v119, %v379
  %v444 = vsub.f32 %v120, %v380
  %v445 = vsub.f32 %v121, %v381
  %v446 = vsub.f32 %v122, %v382
  %v447 = vsub.f32 %v123, %v383
  %v448 = vsub.f32 %v124, %v384
  %v449 = vsub.f32 %v125, %v385
  %v450 = vsub.f32 %v126, %v386
  %v451 = vsub.f32 %v127, %v387
  %v452 = vsub.f32 %v128, %v388
  %v453 = vsub.f32 %v129, %v389
  %v454 = vsub.f32 %v130, %v390
  %v455 = vsub.f32 %v131, %v391
  %v456 = vsub.f32 %v132, %v392
  %v457 = vsub.f32 %v133, %v393
  %v458 = vsub.f32 %v134, %v394
  %v459 = vsub.f32 %v135, %v395
  %v460 = vmul.f32 %v396, %v396
  %v461 = vmul.f32 %v397, %v397
  %v462 = vmul.f32 %v398, %v398
  %v463 = vmul.f32 %v399, %v399
  %v464 = vmul.f32 %v400, %v400
  %v465 = vmul.f32 %v401, %v401
  %v466 = vmul.f32 %v402, %v402
  %v467 = vmul.f32 %v403, %v403
  %v468 = vmul.f32 %v404, %v404
  %v469 = vmul.f32 %v405, %v405
  %v470 = vmul.f32 %v406, %v406
  %v471 = vmul.f32 %v407, %v407
  %v472 = vmul.f32 %v408, %v408
  %v473 = vmul.f32 %v409, %v409
  %v474 = vmul.f32 %v410, %v410
  %v475 = vmul.f32 %v411, %v411
  %v476 = vmul.f32 %v412, %v412
  %v477 = vmul.f32 %v413, %v413
  %v478 = vmul.f32 %v414, %v414
  %v479 = vmul.f32 %v415, %v415
  %v480 = vmul.f32 %v416, %v416
  %v481 = vmul.f32 %v417, %v417
  %v482 = vmul.f32 %v418, %v418
  %v483 = vmul.f32 %v419, %v419
  %v484 = vmul.f32 %v420, %v420
  %v485 = vmul.f32 %v421, %v421
  %v486 = vmul.f32 %v422, %v422
  %v487 = vmul.f32 %v423, %v423
  %v488 = vmul.f32 %v424, %v424
  %v489 = vmul.f32 %v425, %v425
  %v490 = vmul.f32 %v426, %v426
  %v491 = vmul.f32 %v427, %v427
  %v492 = vmul.f32 %v428, %v428
  %v493 = vmul.f32 %v429, %v429
  %v494 = vmul.f32 %v430, %v430
  %v495 = vmul.f32 %v431, %v431
  %v496 = vmul.f32 %v432, %v432
  %v497 = vmul.f32 %v433, %v433
  %v498 = vmul.f32 %v434, %v434
  %v499 = vmul.f32 %v435, %v435
  %v500 = vmul.f32 %v436, %v436
  %v501 = vmul.f32 %v437, %v437
  %v502 = vmul.f32 %v438, %v438
  %v503 = vmul.f32 %v439, %v439
  %v504 = vmul.f32 %v440, %v440
  %v505 = vmul.f32 %v441, %v441
  %v506 = vmul.f32 %v442, %v442
  %v507 = vmul.f32 %v443, %v443
  %v508 = vmul.f32 %v444, %v444
  %v509 = vmul.f32 %v445, %v445
  %v510 = vmul.f32 %v446, %v446
  %v511 = vmul.f32 %v447, %v447
  %v512 = vmul.f32 %v448, %v448
  %v513 = vmul.f32 %v449, %v449
  %v514 = vmul.f32 %v450, %v450
  %v515 = vmul.f32 %v451, %v451
  %v516 = vmul.f32 %v452, %v452
  %v517 = vmul.f32 %v453, %v453
  %v518 = vmul.f32 %v454, %v454
  %v519 = vmul.f32 %v455, %v455
  %v520 = vmul.f32 %v456, %v456
  %v521 = vmul.f32 %v457, %v457
  %v522 = vmul.f32 %v458, %v458
  %v523 = vmul.f32 %v459, %v459
  %v524 = vsel %vm138, %v460, 0.0
  %525 = vadd.xlane.f32.xlu0 %v524
  %v526 = vpop.xlane.xlu0 %525
  %v527 = vsel %vm138, %v461, 0.0
  %528 = vadd.xlane.f32.xlu0 %v527
  %v529 = vpop.xlane.xlu0 %528
  %v530 = vsel %vm138, %v462, 0.0
  %531 = vadd.xlane.f32.xlu0 %v530
  %v532 = vpop.xlane.xlu0 %531
  %v533 = vsel %vm138, %v463, 0.0
  %534 = vadd.xlane.f32.xlu0 %v533
  %v535 = vpop.xlane.xlu0 %534
  %v536 = vsel %vm138, %v464, 0.0
  %537 = vadd.xlane.f32.xlu0 %v536
  %v538 = vpop.xlane.xlu0 %537
  %v539 = vsel %vm138, %v465, 0.0
  %540 = vadd.xlane.f32.xlu0 %v539
  %v541 = vpop.xlane.xlu0 %540
  %v542 = vsel %vm138, %v466, 0.0
  %543 = vadd.xlane.f32.xlu0 %v542
  %v544 = vpop.xlane.xlu0 %543
  %v545 = vsel %vm138, %v467, 0.0
  %546 = vadd.xlane.f32.xlu0 %v545
  %v547 = vpop.xlane.xlu0 %546
  %v548 = vsel %vm138, %v468, 0.0
  %549 = vadd.xlane.f32.xlu0 %v548
  %v550 = vpop.xlane.xlu0 %549
  %v551 = vsel %vm138, %v469, 0.0
  %552 = vadd.xlane.f32.xlu0 %v551
  %v553 = vpop.xlane.xlu0 %552
  %v554 = vsel %vm138, %v470, 0.0
  %555 = vadd.xlane.f32.xlu0 %v554
  %v556 = vpop.xlane.xlu0 %555
  %v557 = vsel %vm138, %v471, 0.0
  %558 = vadd.xlane.f32.xlu0 %v557
  %v559 = vpop.xlane.xlu0 %558
  %v560 = vsel %vm138, %v472, 0.0
  %561 = vadd.xlane.f32.xlu0 %v560
  %v562 = vpop.xlane.xlu0 %561
  %v563 = vsel %vm138, %v473, 0.0
  %564 = vadd.xlane.f32.xlu0 %v563
  %v565 = vpop.xlane.xlu0 %564
  %v566 = vsel %vm138, %v474, 0.0
  %567 = vadd.xlane.f32.xlu0 %v566
  %v568 = vpop.xlane.xlu0 %567
  %v569 = vsel %vm138, %v475, 0.0
  %570 = vadd.xlane.f32.xlu0 %v569
  %v571 = vpop.xlane.xlu0 %570
  %v572 = vsel %vm138, %v476, 0.0
  %573 = vadd.xlane.f32.xlu0 %v572
  %v574 = vpop.xlane.xlu0 %573
  %v575 = vsel %vm138, %v477, 0.0
  %576 = vadd.xlane.f32.xlu0 %v575
  %v577 = vpop.xlane.xlu0 %576
  %v578 = vsel %vm138, %v478, 0.0
  %579 = vadd.xlane.f32.xlu0 %v578
  %v580 = vpop.xlane.xlu0 %579
  %v581 = vsel %vm138, %v479, 0.0
  %582 = vadd.xlane.f32.xlu0 %v581
  %v583 = vpop.xlane.xlu0 %582
  %v584 = vsel %vm138, %v480, 0.0
  %585 = vadd.xlane.f32.xlu0 %v584
  %v586 = vpop.xlane.xlu0 %585
  %v587 = vsel %vm138, %v481, 0.0
  %588 = vadd.xlane.f32.xlu0 %v587
  %v589 = vpop.xlane.xlu0 %588
  %v590 = vsel %vm138, %v482, 0.0
  %591 = vadd.xlane.f32.xlu0 %v590
  %v592 = vpop.xlane.xlu0 %591
  %v593 = vsel %vm138, %v483, 0.0
  %594 = vadd.xlane.f32.xlu0 %v593
  %v595 = vpop.xlane.xlu0 %594
  %v596 = vsel %vm138, %v484, 0.0
  %597 = vadd.xlane.f32.xlu0 %v596
  %v598 = vpop.xlane.xlu0 %597
  %v599 = vsel %vm138, %v485, 0.0
  %600 = vadd.xlane.f32.xlu0 %v599
  %v601 = vpop.xlane.xlu0 %600
  %v602 = vsel %vm138, %v486, 0.0
  %603 = vadd.xlane.f32.xlu0 %v602
  %v604 = vpop.xlane.xlu0 %603
  %v605 = vsel %vm138, %v487, 0.0
  %606 = vadd.xlane.f32.xlu0 %v605
  %v607 = vpop.xlane.xlu0 %606
  %v608 = vsel %vm138, %v488, 0.0
  %609 = vadd.xlane.f32.xlu0 %v608
  %v610 = vpop.xlane.xlu0 %609
  %v611 = vsel %vm138, %v489, 0.0
  %612 = vadd.xlane.f32.xlu0 %v611
  %v613 = vpop.xlane.xlu0 %612
  %v614 = vsel %vm138, %v490, 0.0
  %615 = vadd.xlane.f32.xlu0 %v614
  %v616 = vpop.xlane.xlu0 %615
  %v617 = vsel %vm138, %v491, 0.0
  %618 = vadd.xlane.f32.xlu0 %v617
  %v619 = vpop.xlane.xlu0 %618
  %v620 = vsel %vm138, %v492, 0.0
  %621 = vadd.xlane.f32.xlu0 %v620
  %v622 = vpop.xlane.xlu0 %621
  %v623 = vsel %vm138, %v493, 0.0
  %624 = vadd.xlane.f32.xlu0 %v623
  %v625 = vpop.xlane.xlu0 %624
  %v626 = vsel %vm138, %v494, 0.0
  %627 = vadd.xlane.f32.xlu0 %v626
  %v628 = vpop.xlane.xlu0 %627
  %v629 = vsel %vm138, %v495, 0.0
  %630 = vadd.xlane.f32.xlu0 %v629
  %v631 = vpop.xlane.xlu0 %630
  %v632 = vsel %vm138, %v496, 0.0
  %633 = vadd.xlane.f32.xlu0 %v632
  %v634 = vpop.xlane.xlu0 %633
  %v635 = vsel %vm138, %v497, 0.0
  %636 = vadd.xlane.f32.xlu0 %v635
  %v637 = vpop.xlane.xlu0 %636
  %v638 = vsel %vm138, %v498, 0.0
  %639 = vadd.xlane.f32.xlu0 %v638
  %v640 = vpop.xlane.xlu0 %639
  %v641 = vsel %vm138, %v499, 0.0
  %642 = vadd.xlane.f32.xlu0 %v641
  %v643 = vpop.xlane.xlu0 %642
  %v644 = vsel %vm138, %v500, 0.0
  %645 = vadd.xlane.f32.xlu0 %v644
  %v646 = vpop.xlane.xlu0 %645
  %v647 = vsel %vm138, %v501, 0.0
  %648 = vadd.xlane.f32.xlu0 %v647
  %v649 = vpop.xlane.xlu0 %648
  %v650 = vsel %vm138, %v502, 0.0
  %651 = vadd.xlane.f32.xlu0 %v650
  %v652 = vpop.xlane.xlu0 %651
  %v653 = vsel %vm138, %v503, 0.0
  %654 = vadd.xlane.f32.xlu0 %v653
  %v655 = vpop.xlane.xlu0 %654
  %v656 = vsel %vm138, %v504, 0.0
  %657 = vadd.xlane.f32.xlu0 %v656
  %v658 = vpop.xlane.xlu0 %657
  %v659 = vsel %vm138, %v505, 0.0
  %660 = vadd.xlane.f32.xlu0 %v659
  %v661 = vpop.xlane.xlu0 %660
  %v662 = vsel %vm138, %v506, 0.0
  %663 = vadd.xlane.f32.xlu0 %v662
  %v664 = vpop.xlane.xlu0 %663
  %v665 = vsel %vm138, %v507, 0.0
  %666 = vadd.xlane.f32.xlu0 %v665
  %v667 = vpop.xlane.xlu0 %666
  %v668 = vsel %vm138, %v508, 0.0
  %669 = vadd.xlane.f32.xlu0 %v668
  %v670 = vpop.xlane.xlu0 %669
  %v671 = vsel %vm138, %v509, 0.0
  %672 = vadd.xlane.f32.xlu0 %v671
  %v673 = vpop.xlane.xlu0 %672
  %v674 = vsel %vm138, %v510, 0.0
  %675 = vadd.xlane.f32.xlu0 %v674
  %v676 = vpop.xlane.xlu0 %675
  %v677 = vsel %vm138, %v511, 0.0
  %678 = vadd.xlane.f32.xlu0 %v677
  %v679 = vpop.xlane.xlu0 %678
  %v680 = vsel %vm138, %v512, 0.0
  %681 = vadd.xlane.f32.xlu0 %v680
  %v682 = vpop.xlane.xlu0 %681
  %v683 = vsel %vm138, %v513, 0.0
  %684 = vadd.xlane.f32.xlu0 %v683
  %v685 = vpop.xlane.xlu0 %684
  %v686 = vsel %vm138, %v514, 0.0
  %687 = vadd.xlane.f32.xlu0 %v686
  %v688 = vpop.xlane.xlu0 %687
  %v689 = vsel %vm138, %v515, 0.0
  %690 = vadd.xlane.f32.xlu0 %v689
  %v691 = vpop.xlane.xlu0 %690
  %v692 = vsel %vm138, %v516, 0.0
  %693 = vadd.xlane.f32.xlu0 %v692
  %v694 = vpop.xlane.xlu0 %693
  %v695 = vsel %vm138, %v517, 0.0
  %696 = vadd.xlane.f32.xlu0 %v695
  %v697 = vpop.xlane.xlu0 %696
  %v698 = vsel %vm138, %v518, 0.0
  %699 = vadd.xlane.f32.xlu0 %v698
  %v700 = vpop.xlane.xlu0 %699
  %v701 = vsel %vm138, %v519, 0.0
  %702 = vadd.xlane.f32.xlu0 %v701
  %v703 = vpop.xlane.xlu0 %702
  %v704 = vsel %vm138, %v520, 0.0
  %705 = vadd.xlane.f32.xlu0 %v704
  %v706 = vpop.xlane.xlu0 %705
  %v707 = vsel %vm138, %v521, 0.0
  %708 = vadd.xlane.f32.xlu0 %v707
  %v709 = vpop.xlane.xlu0 %708
  %v710 = vsel %vm138, %v522, 0.0
  %711 = vadd.xlane.f32.xlu0 %v710
  %v712 = vpop.xlane.xlu0 %711
  %v713 = vsel %vm138, %v523, 0.0
  %714 = vadd.xlane.f32.xlu0 %v713
  %v715 = vpop.xlane.xlu0 %714
  %v716 = vmul.f32 %v526, %v331
  %v717 = vmul.f32 %v529, %v331
  %v718 = vmul.f32 %v532, %v331
  %v719 = vmul.f32 %v535, %v331
  %v720 = vmul.f32 %v538, %v331
  %v721 = vmul.f32 %v541, %v331
  %v722 = vmul.f32 %v544, %v331
  %v723 = vmul.f32 %v547, %v331
  %v724 = vmul.f32 %v550, %v331
  %v725 = vmul.f32 %v553, %v331
  %v726 = vmul.f32 %v556, %v331
  %v727 = vmul.f32 %v559, %v331
  %v728 = vmul.f32 %v562, %v331
  %v729 = vmul.f32 %v565, %v331
  %v730 = vmul.f32 %v568, %v331
  %v731 = vmul.f32 %v571, %v331
  %v732 = vmul.f32 %v574, %v331
  %v733 = vmul.f32 %v577, %v331
  %v734 = vmul.f32 %v580, %v331
  %v735 = vmul.f32 %v583, %v331
  %v736 = vmul.f32 %v586, %v331
  %v737 = vmul.f32 %v589, %v331
  %v738 = vmul.f32 %v592, %v331
  %v739 = vmul.f32 %v595, %v331
  %v740 = vmul.f32 %v598, %v331
  %v741 = vmul.f32 %v601, %v331
  %v742 = vmul.f32 %v604, %v331
  %v743 = vmul.f32 %v607, %v331
  %v744 = vmul.f32 %v610, %v331
  %v745 = vmul.f32 %v613, %v331
  %v746 = vmul.f32 %v616, %v331
  %v747 = vmul.f32 %v619, %v331
  %v748 = vmul.f32 %v622, %v331
  %v749 = vmul.f32 %v625, %v331
  %v750 = vmul.f32 %v628, %v331
  %v751 = vmul.f32 %v631, %v331
  %v752 = vmul.f32 %v634, %v331
  %v753 = vmul.f32 %v637, %v331
  %v754 = vmul.f32 %v640, %v331
  %v755 = vmul.f32 %v643, %v331
  %v756 = vmul.f32 %v646, %v331
  %v757 = vmul.f32 %v649, %v331
  %v758 = vmul.f32 %v652, %v331
  %v759 = vmul.f32 %v655, %v331
  %v760 = vmul.f32 %v658, %v331
  %v761 = vmul.f32 %v661, %v331
  %v762 = vmul.f32 %v664, %v331
  %v763 = vmul.f32 %v667, %v331
  %v764 = vmul.f32 %v670, %v331
  %v765 = vmul.f32 %v673, %v331
  %v766 = vmul.f32 %v676, %v331
  %v767 = vmul.f32 %v679, %v331
  %v768 = vmul.f32 %v682, %v331
  %v769 = vmul.f32 %v685, %v331
  %v770 = vmul.f32 %v688, %v331
  %v771 = vmul.f32 %v691, %v331
  %v772 = vmul.f32 %v694, %v331
  %v773 = vmul.f32 %v697, %v331
  %v774 = vmul.f32 %v700, %v331
  %v775 = vmul.f32 %v703, %v331
  %v776 = vmul.f32 %v706, %v331
  %v777 = vmul.f32 %v709, %v331
  %v778 = vmul.f32 %v712, %v331
  %v779 = vmul.f32 %v715, %v331
  %v780 = vadd.f32 %v716, 1e-05
  %v781 = vadd.f32 %v717, 1e-05
  %v782 = vadd.f32 %v718, 1e-05
  %v783 = vadd.f32 %v719, 1e-05
  %v784 = vadd.f32 %v720, 1e-05
  %v785 = vadd.f32 %v721, 1e-05
  %v786 = vadd.f32 %v722, 1e-05
  %v787 = vadd.f32 %v723, 1e-05
  %v788 = vadd.f32 %v724, 1e-05
  %v789 = vadd.f32 %v725, 1e-05
  %v790 = vadd.f32 %v726, 1e-05
  %v791 = vadd.f32 %v727, 1e-05
  %v792 = vadd.f32 %v728, 1e-05
  %v793 = vadd.f32 %v729, 1e-05
  %v794 = vadd.f32 %v730, 1e-05
  %v795 = vadd.f32 %v731, 1e-05
  %v796 = vadd.f32 %v732, 1e-05
  %v797 = vadd.f32 %v733, 1e-05
  %v798 = vadd.f32 %v734, 1e-05
  %v799 = vadd.f32 %v735, 1e-05
  %v800 = vadd.f32 %v736, 1e-05
  %v801 = vadd.f32 %v737, 1e-05
  %v802 = vadd.f32 %v738, 1e-05
  %v803 = vadd.f32 %v739, 1e-05
  %v804 = vadd.f32 %v740, 1e-05
  %v805 = vadd.f32 %v741, 1e-05
  %v806 = vadd.f32 %v742, 1e-05
  %v807 = vadd.f32 %v743, 1e-05
  %v808 = vadd.f32 %v744, 1e-05
  %v809 = vadd.f32 %v745, 1e-05
  %v810 = vadd.f32 %v746, 1e-05
  %v811 = vadd.f32 %v747, 1e-05
  %v812 = vadd.f32 %v748, 1e-05
  %v813 = vadd.f32 %v749, 1e-05
  %v814 = vadd.f32 %v750, 1e-05
  %v815 = vadd.f32 %v751, 1e-05
  %v816 = vadd.f32 %v752, 1e-05
  %v817 = vadd.f32 %v753, 1e-05
  %v818 = vadd.f32 %v754, 1e-05
  %v819 = vadd.f32 %v755, 1e-05
  %v820 = vadd.f32 %v756, 1e-05
  %v821 = vadd.f32 %v757, 1e-05
  %v822 = vadd.f32 %v758, 1e-05
  %v823 = vadd.f32 %v759, 1e-05
  %v824 = vadd.f32 %v760, 1e-05
  %v825 = vadd.f32 %v761, 1e-05
  %v826 = vadd.f32 %v762, 1e-05
  %v827 = vadd.f32 %v763, 1e-05
  %v828 = vadd.f32 %v764, 1e-05
  %v829 = vadd.f32 %v765, 1e-05
  %v830 = vadd.f32 %v766, 1e-05
  %v831 = vadd.f32 %v767, 1e-05
  %v832 = vadd.f32 %v768, 1e-05
  %v833 = vadd.f32 %v769, 1e-05
  %v834 = vadd.f32 %v770, 1e-05
  %v835 = vadd.f32 %v771, 1e-05
  %v836 = vadd.f32 %v772, 1e-05
  %v837 = vadd.f32 %v773, 1e-05
  %v838 = vadd.f32 %v774, 1e-05
  %v839 = vadd.f32 %v775, 1e-05
  %v840 = vadd.f32 %v776, 1e-05
  %v841 = vadd.f32 %v777, 1e-05
  %v842 = vadd.f32 %v778, 1e-05
  %v843 = vadd.f32 %v779, 1e-05
  %v844 = vrsqrt.pop %v780
  %v845 = vrsqrt.pop %v781
  %v846 = vrsqrt.pop %v782
  %v847 = vrsqrt.pop %v783
  %v848 = vrsqrt.pop %v784
  %v849 = vrsqrt.pop %v785
  %v850 = vrsqrt.pop %v786
  %v851 = vrsqrt.pop %v787
  %v852 = vrsqrt.pop %v788
  %v853 = vrsqrt.pop %v789
  %v854 = vrsqrt.pop %v790
  %v855 = vrsqrt.pop %v791
  %v856 = vrsqrt.pop %v792
  %v857 = vrsqrt.pop %v793
  %v858 = vrsqrt.pop %v794
  %v859 = vrsqrt.pop %v795
  %v860 = vrsqrt.pop %v796
  %v861 = vrsqrt.pop %v797
  %v862 = vrsqrt.pop %v798
  %v863 = vrsqrt.pop %v799
  %v864 = vrsqrt.pop %v800
  %v865 = vrsqrt.pop %v801
  %v866 = vrsqrt.pop %v802
  %v867 = vrsqrt.pop %v803
  %v868 = vrsqrt.pop %v804
  %v869 = vrsqrt.pop %v805
  %v870 = vrsqrt.pop %v806
  %v871 = vrsqrt.pop %v807
  %v872 = vrsqrt.pop %v808
  %v873 = vrsqrt.pop %v809
  %v874 = vrsqrt.pop %v810
  %v875 = vrsqrt.pop %v811
  %v876 = vrsqrt.pop %v812
  %v877 = vrsqrt.pop %v813
  %v878 = vrsqrt.pop %v814
  %v879 = vrsqrt.pop %v815
  %v880 = vrsqrt.pop %v816
  %v881 = vrsqrt.pop %v817
  %v882 = vrsqrt.pop %v818
  %v883 = vrsqrt.pop %v819
  %v884 = vrsqrt.pop %v820
  %v885 = vrsqrt.pop %v821
  %v886 = vrsqrt.pop %v822
  %v887 = vrsqrt.pop %v823
  %v888 = vrsqrt.pop %v824
  %v889 = vrsqrt.pop %v825
  %v890 = vrsqrt.pop %v826
  %v891 = vrsqrt.pop %v827
  %v892 = vrsqrt.pop %v828
  %v893 = vrsqrt.pop %v829
  %v894 = vrsqrt.pop %v830
  %v895 = vrsqrt.pop %v831
  %v896 = vrsqrt.pop %v832
  %v897 = vrsqrt.pop %v833
  %v898 = vrsqrt.pop %v834
  %v899 = vrsqrt.pop %v835
  %v900 = vrsqrt.pop %v836
  %v901 = vrsqrt.pop %v837
  %v902 = vrsqrt.pop %v838
  %v903 = vrsqrt.pop %v839
  %v904 = vrsqrt.pop %v840
  %v905 = vrsqrt.pop %v841
  %v906 = vrsqrt.pop %v842
  %v907 = vrsqrt.pop %v843
  %v908 = vmul.f32 %v396, %v844
  %v909 = vmul.f32 %v397, %v845
  %v910 = vmul.f32 %v398, %v846
  %v911 = vmul.f32 %v399, %v847
  %v912 = vmul.f32 %v400, %v848
  %v913 = vmul.f32 %v401, %v849
  %v914 = vmul.f32 %v402, %v850
  %v915 = vmul.f32 %v403, %v851
  %v916 = vmul.f32 %v404, %v852
  %v917 = vmul.f32 %v405, %v853
  %v918 = vmul.f32 %v406, %v854
  %v919 = vmul.f32 %v407, %v855
  %v920 = vmul.f32 %v408, %v856
  %v921 = vmul.f32 %v409, %v857
  %v922 = vmul.f32 %v410, %v858
  %v923 = vmul.f32 %v411, %v859
  %v924 = vmul.f32 %v412, %v860
  %v925 = vmul.f32 %v413, %v861
  %v926 = vmul.f32 %v414, %v862
  %v927 = vmul.f32 %v415, %v863
  %v928 = vmul.f32 %v416, %v864
  %v929 = vmul.f32 %v417, %v865
  %v930 = vmul.f32 %v418, %v866
  %v931 = vmul.f32 %v419, %v867
  %v932 = vmul.f32 %v420, %v868
  %v933 = vmul.f32 %v421, %v869
  %v934 = vmul.f32 %v422, %v870
  %v935 = vmul.f32 %v423, %v871
  %v936 = vmul.f32 %v424, %v872
  %v937 = vmul.f32 %v425, %v873
  %v938 = vmul.f32 %v426, %v874
  %v939 = vmul.f32 %v427, %v875
  %v940 = vmul.f32 %v428, %v876
  %v941 = vmul.f32 %v429, %v877
  %v942 = vmul.f32 %v430, %v878
  %v943 = vmul.f32 %v431, %v879
  %v944 = vmul.f32 %v432, %v880
  %v945 = vmul.f32 %v433, %v881
  %v946 = vmul.f32 %v434, %v882
  %v947 = vmul.f32 %v435, %v883
  %v948 = vmul.f32 %v436, %v884
  %v949 = vmul.f32 %v437, %v885
  %v950 = vmul.f32 %v438, %v886
  %v951 = vmul.f32 %v439, %v887
  %v952 = vmul.f32 %v440, %v888
  %v953 = vmul.f32 %v441, %v889
  %v954 = vmul.f32 %v442, %v890
  %v955 = vmul.f32 %v443, %v891
  %v956 = vmul.f32 %v444, %v892
  %v957 = vmul.f32 %v445, %v893
  %v958 = vmul.f32 %v446, %v894
  %v959 = vmul.f32 %v447, %v895
  %v960 = vmul.f32 %v448, %v896
  %v961 = vmul.f32 %v449, %v897
  %v962 = vmul.f32 %v450, %v898
  %v963 = vmul.f32 %v451, %v899
  %v964 = vmul.f32 %v452, %v900
  %v965 = vmul.f32 %v453, %v901
  %v966 = vmul.f32 %v454, %v902
  %v967 = vmul.f32 %v455, %v903
  %v968 = vmul.f32 %v456, %v904
  %v969 = vmul.f32 %v457, %v905
  %v970 = vmul.f32 %v458, %v906
  %v971 = vmul.f32 %v459, %v907
  %v973 = vlaneseq
  %v974 = vshrl.u32 %v973, 7
  %v975 = vsub.s32 0, %v974
  %v976 = vrot.slane %v136, %v975
  %v978 = vmul.f32 %v908, %v976
  %v979 = vmul.f32 %v909, %v976
  %v980 = vmul.f32 %v910, %v976
  %v981 = vmul.f32 %v911, %v976
  %v982 = vmul.f32 %v912, %v976
  %v983 = vmul.f32 %v913, %v976
  %v984 = vmul.f32 %v914, %v976
  %v985 = vmul.f32 %v915, %v976
  %v986 = vmul.f32 %v916, %v976
  %v987 = vmul.f32 %v917, %v976
  %v988 = vmul.f32 %v918, %v976
  %v989 = vmul.f32 %v919, %v976
  %v990 = vmul.f32 %v920, %v976
  %v991 = vmul.f32 %v921, %v976
  %v992 = vmul.f32 %v922, %v976
  %v993 = vmul.f32 %v923, %v976
  %v994 = vmul.f32 %v924, %v976
  %v995 = vmul.f32 %v925, %v976
  %v996 = vmul.f32 %v926, %v976
  %v997 = vmul.f32 %v927, %v976
  %v998 = vmul.f32 %v928, %v976
  %v999 = vmul.f32 %v929, %v976
  %v1000 = vmul.f32 %v930, %v976
  %v1001 = vmul.f32 %v931, %v976
  %v1002 = vmul.f32 %v932, %v976
  %v1003 = vmul.f32 %v933, %v976
  %v1004 = vmul.f32 %v934, %v976
  %v1005 = vmul.f32 %v935, %v976
  %v1006 = vmul.f32 %v936, %v976
  %v1007 = vmul.f32 %v937, %v976
  %v1008 = vmul.f32 %v938, %v976
  %v1009 = vmul.f32 %v939, %v976
  %v1010 = vmul.f32 %v940, %v976
  %v1011 = vmul.f32 %v941, %v976
  %v1012 = vmul.f32 %v942, %v976
  %v1013 = vmul.f32 %v943, %v976
  %v1014 = vmul.f32 %v944, %v976
  %v1015 = vmul.f32 %v945, %v976
  %v1016 = vmul.f32 %v946, %v976
  %v1017 = vmul.f32 %v947, %v976
  %v1018 = vmul.f32 %v948, %v976
  %v1019 = vmul.f32 %v949, %v976
  %v1020 = vmul.f32 %v950, %v976
  %v1021 = vmul.f32 %v951, %v976
  %v1022 = vmul.f32 %v952, %v976
  %v1023 = vmul.f32 %v953, %v976
  %v1024 = vmul.f32 %v954, %v976
  %v1025 = vmul.f32 %v955, %v976
  %v1026 = vmul.f32 %v956, %v976
  %v1027 = vmul.f32 %v957, %v976
  %v1028 = vmul.f32 %v958, %v976
  %v1029 = vmul.f32 %v959, %v976
  %v1030 = vmul.f32 %v960, %v976
  %v1031 = vmul.f32 %v961, %v976
  %v1032 = vmul.f32 %v962, %v976
  %v1033 = vmul.f32 %v963, %v976
  %v1034 = vmul.f32 %v964, %v976
  %v1035 = vmul.f32 %v965, %v976
  %v1036 = vmul.f32 %v966, %v976
  %v1037 = vmul.f32 %v967, %v976
  %v1038 = vmul.f32 %v968, %v976
  %v1039 = vmul.f32 %v969, %v976
  %v1040 = vmul.f32 %v970, %v976
  %v1041 = vmul.f32 %v971, %v976
  %v1043 = vlaneseq
  %v1044 = vshrl.u32 %v1043, 7
  %v1045 = vsub.s32 0, %v1044
  %v1046 = vrot.slane %v137, %v1045
  %v1048 = vadd.f32 %v978, %v1046
  %v1049 = vadd.f32 %v979, %v1046
  %v1050 = vadd.f32 %v980, %v1046
  %v1051 = vadd.f32 %v981, %v1046
  %v1052 = vadd.f32 %v982, %v1046
  %v1053 = vadd.f32 %v983, %v1046
  %v1054 = vadd.f32 %v984, %v1046
  %v1055 = vadd.f32 %v985, %v1046
  %v1056 = vadd.f32 %v986, %v1046
  %v1057 = vadd.f32 %v987, %v1046
  %v1058 = vadd.f32 %v988, %v1046
  %v1059 = vadd.f32 %v989, %v1046
  %v1060 = vadd.f32 %v990, %v1046
  %v1061 = vadd.f32 %v991, %v1046
  %v1062 = vadd.f32 %v992, %v1046
  %v1063 = vadd.f32 %v993, %v1046
  %v1064 = vadd.f32 %v994, %v1046
  %v1065 = vadd.f32 %v995, %v1046
  %v1066 = vadd.f32 %v996, %v1046
  %v1067 = vadd.f32 %v997, %v1046
  %v1068 = vadd.f32 %v998, %v1046
  %v1069 = vadd.f32 %v999, %v1046
  %v1070 = vadd.f32 %v1000, %v1046
  %v1071 = vadd.f32 %v1001, %v1046
  %v1072 = vadd.f32 %v1002, %v1046
  %v1073 = vadd.f32 %v1003, %v1046
  %v1074 = vadd.f32 %v1004, %v1046
  %v1075 = vadd.f32 %v1005, %v1046
  %v1076 = vadd.f32 %v1006, %v1046
  %v1077 = vadd.f32 %v1007, %v1046
  %v1078 = vadd.f32 %v1008, %v1046
  %v1079 = vadd.f32 %v1009, %v1046
  %v1080 = vadd.f32 %v1010, %v1046
  %v1081 = vadd.f32 %v1011, %v1046
  %v1082 = vadd.f32 %v1012, %v1046
  %v1083 = vadd.f32 %v1013, %v1046
  %v1084 = vadd.f32 %v1014, %v1046
  %v1085 = vadd.f32 %v1015, %v1046
  %v1086 = vadd.f32 %v1016, %v1046
  %v1087 = vadd.f32 %v1017, %v1046
  %v1088 = vadd.f32 %v1018, %v1046
  %v1089 = vadd.f32 %v1019, %v1046
  %v1090 = vadd.f32 %v1020, %v1046
  %v1091 = vadd.f32 %v1021, %v1046
  %v1092 = vadd.f32 %v1022, %v1046
  %v1093 = vadd.f32 %v1023, %v1046
  %v1094 = vadd.f32 %v1024, %v1046
  %v1095 = vadd.f32 %v1025, %v1046
  %v1096 = vadd.f32 %v1026, %v1046
  %v1097 = vadd.f32 %v1027, %v1046
  %v1098 = vadd.f32 %v1028, %v1046
  %v1099 = vadd.f32 %v1029, %v1046
  %v1100 = vadd.f32 %v1030, %v1046
  %v1101 = vadd.f32 %v1031, %v1046
  %v1102 = vadd.f32 %v1032, %v1046
  %v1103 = vadd.f32 %v1033, %v1046
  %v1104 = vadd.f32 %v1034, %v1046
  %v1105 = vadd.f32 %v1035, %v1046
  %v1106 = vadd.f32 %v1036, %v1046
  %v1107 = vadd.f32 %v1037, %v1046
  %v1108 = vadd.f32 %v1038, %v1046
  %v1109 = vadd.f32 %v1039, %v1046
  %v1110 = vadd.f32 %v1040, %v1046
  %v1111 = vadd.f32 %v1041, %v1046
  %v1112 = vld [vmem:[%s2] sm:$0x1]
  %v1113 = vlaneseq
  %v1114 = vshrl.u32 %v1113, 7
  %v1115 = vsub.s32 0, %v1114
  %v1116 = vrot.slane %v1112, %v1115
  %v1117 = vmul.f32 %v1048, %v1116
  %v1118 = vmul.f32 %v1049, %v1116
  %v1119 = vmul.f32 %v1050, %v1116
  %v1120 = vmul.f32 %v1051, %v1116
  %v1121 = vmul.f32 %v1052, %v1116
  %v1122 = vmul.f32 %v1053, %v1116
  %v1123 = vmul.f32 %v1054, %v1116
  %v1124 = vmul.f32 %v1055, %v1116
  %v1125 = vmul.f32 %v1056, %v1116
  %v1126 = vmul.f32 %v1057, %v1116
  %v1127 = vmul.f32 %v1058, %v1116
  %v1128 = vmul.f32 %v1059, %v1116
  %v1129 = vmul.f32 %v1060, %v1116
  %v1130 = vmul.f32 %v1061, %v1116
  %v1131 = vmul.f32 %v1062, %v1116
  %v1132 = vmul.f32 %v1063, %v1116
  %v1133 = vmul.f32 %v1064, %v1116
  %v1134 = vmul.f32 %v1065, %v1116
  %v1135 = vmul.f32 %v1066, %v1116
  %v1136 = vmul.f32 %v1067, %v1116
  %v1137 = vmul.f32 %v1068, %v1116
  %v1138 = vmul.f32 %v1069, %v1116
  %v1139 = vmul.f32 %v1070, %v1116
  %v1140 = vmul.f32 %v1071, %v1116
  %v1141 = vmul.f32 %v1072, %v1116
  %v1142 = vmul.f32 %v1073, %v1116
  %v1143 = vmul.f32 %v1074, %v1116
  %v1144 = vmul.f32 %v1075, %v1116
  %v1145 = vmul.f32 %v1076, %v1116
  %v1146 = vmul.f32 %v1077, %v1116
  %v1147 = vmul.f32 %v1078, %v1116
  %v1148 = vmul.f32 %v1079, %v1116
  %v1149 = vmul.f32 %v1080, %v1116
  %v1150 = vmul.f32 %v1081, %v1116
  %v1151 = vmul.f32 %v1082, %v1116
  %v1152 = vmul.f32 %v1083, %v1116
  %v1153 = vmul.f32 %v1084, %v1116
  %v1154 = vmul.f32 %v1085, %v1116
  %v1155 = vmul.f32 %v1086, %v1116
  %v1156 = vmul.f32 %v1087, %v1116
  %v1157 = vmul.f32 %v1088, %v1116
  %v1158 = vmul.f32 %v1089, %v1116
  %v1159 = vmul.f32 %v1090, %v1116
  %v1160 = vmul.f32 %v1091, %v1116
  %v1161 = vmul.f32 %v1092, %v1116
  %v1162 = vmul.f32 %v1093, %v1116
  %v1163 = vmul.f32 %v1094, %v1116
  %v1164 = vmul.f32 %v1095, %v1116
  %v1165 = vmul.f32 %v1096, %v1116
  %v1166 = vmul.f32 %v1097, %v1116
  %v1167 = vmul.f32 %v1098, %v1116
  %v1168 = vmul.f32 %v1099, %v1116
  %v1169 = vmul.f32 %v1100, %v1116
  %v1170 = vmul.f32 %v1101, %v1116
  %v1171 = vmul.f32 %v1102, %v1116
  %v1172 = vmul.f32 %v1103, %v1116
  %v1173 = vmul.f32 %v1104, %v1116
  %v1174 = vmul.f32 %v1105, %v1116
  %v1175 = vmul.f32 %v1106, %v1116
  %v1176 = vmul.f32 %v1107, %v1116
  %v1177 = vmul.f32 %v1108, %v1116
  %v1178 = vmul.f32 %v1109, %v1116
  %v1179 = vmul.f32 %v1110, %v1116
  %v1180 = vmul.f32 %v1111, %v1116
  %v1181 = vrot.slane %v1048, 1
  %v1182 = vrot.slane %v1049, 1
  %v1183 = vrot.slane %v1050, 1
  %v1184 = vrot.slane %v1051, 1
  %v1185 = vrot.slane %v1052, 1
  %v1186 = vrot.slane %v1053, 1
  %v1187 = vrot.slane %v1054, 1
  %v1188 = vrot.slane %v1055, 1
  %v1189 = vrot.slane %v1056, 1
  %v1190 = vrot.slane %v1057, 1
  %v1191 = vrot.slane %v1058, 1
  %v1192 = vrot.slane %v1059, 1
  %v1193 = vrot.slane %v1060, 1
  %v1194 = vrot.slane %v1061, 1
  %v1195 = vrot.slane %v1062, 1
  %v1196 = vrot.slane %v1063, 1
  %v1197 = vrot.slane %v1064, 1
  %v1198 = vrot.slane %v1065, 1
  %v1199 = vrot.slane %v1066, 1
  %v1200 = vrot.slane %v1067, 1
  %v1201 = vrot.slane %v1068, 1
  %v1202 = vrot.slane %v1069, 1
  %v1203 = vrot.slane %v1070, 1
  %v1204 = vrot.slane %v1071, 1
  %v1205 = vrot.slane %v1072, 1
  %v1206 = vrot.slane %v1073, 1
  %v1207 = vrot.slane %v1074, 1
  %v1208 = vrot.slane %v1075, 1
  %v1209 = vrot.slane %v1076, 1
  %v1210 = vrot.slane %v1077, 1
  %v1211 = vrot.slane %v1078, 1
  %v1212 = vrot.slane %v1079, 1
  %v1213 = vrot.slane %v1080, 1
  %v1214 = vrot.slane %v1081, 1
  %v1215 = vrot.slane %v1082, 1
  %v1216 = vrot.slane %v1083, 1
  %v1217 = vrot.slane %v1084, 1
  %v1218 = vrot.slane %v1085, 1
  %v1219 = vrot.slane %v1086, 1
  %v1220 = vrot.slane %v1087, 1
  %v1221 = vrot.slane %v1088, 1
  %v1222 = vrot.slane %v1089, 1
  %v1223 = vrot.slane %v1090, 1
  %v1224 = vrot.slane %v1091, 1
  %v1225 = vrot.slane %v1092, 1
  %v1226 = vrot.slane %v1093, 1
  %v1227 = vrot.slane %v1094, 1
  %v1228 = vrot.slane %v1095, 1
  %v1229 = vrot.slane %v1096, 1
  %v1230 = vrot.slane %v1097, 1
  %v1231 = vrot.slane %v1098, 1
  %v1232 = vrot.slane %v1099, 1
  %v1233 = vrot.slane %v1100, 1
  %v1234 = vrot.slane %v1101, 1
  %v1235 = vrot.slane %v1102, 1
  %v1236 = vrot.slane %v1103, 1
  %v1237 = vrot.slane %v1104, 1
  %v1238 = vrot.slane %v1105, 1
  %v1239 = vrot.slane %v1106, 1
  %v1240 = vrot.slane %v1107, 1
  %v1241 = vrot.slane %v1108, 1
  %v1242 = vrot.slane %v1109, 1
  %v1243 = vrot.slane %v1110, 1
  %v1244 = vrot.slane %v1111, 1
  %v1245 = vlaneseq
  %v1246 = vshrl.u32 %v1245, 7
  %vm1247 = vcmp.lt.s32.totalorder %v1246, 7
  %v1248 = vsel %vm1247, %v1243, %v1244
  %v1249 = vsel %vm1247, %v1242, %v1243
  %v1250 = vsel %vm1247, %v1241, %v1242
  %v1251 = vsel %vm1247, %v1240, %v1241
  %v1252 = vsel %vm1247, %v1239, %v1240
  %v1253 = vsel %vm1247, %v1238, %v1239
  %v1254 = vsel %vm1247, %v1237, %v1238
  %v1255 = vsel %vm1247, %v1236, %v1237
  %v1256 = vsel %vm1247, %v1235, %v1236
  %v1257 = vsel %vm1247, %v1234, %v1235
  %v1258 = vsel %vm1247, %v1233, %v1234
  %v1259 = vsel %vm1247, %v1232, %v1233
  %v1260 = vsel %vm1247, %v1231, %v1232
  %v1261 = vsel %vm1247, %v1230, %v1231
  %v1262 = vsel %vm1247, %v1229, %v1230
  %v1263 = vsel %vm1247, %v1228, %v1229
  %v1264 = vsel %vm1247, %v1227, %v1228
  %v1265 = vsel %vm1247, %v1226, %v1227
  %v1266 = vsel %vm1247, %v1225, %v1226
  %v1267 = vsel %vm1247, %v1224, %v1225
  %v1268 = vsel %vm1247, %v1223, %v1224
  %v1269 = vsel %vm1247, %v1222, %v1223
  %v1270 = vsel %vm1247, %v1221, %v1222
  %v1271 = vsel %vm1247, %v1220, %v1221
  %v1272 = vsel %vm1247, %v1219, %v1220
  %v1273 = vsel %vm1247, %v1218, %v1219
  %v1274 = vsel %vm1247, %v1217, %v1218
  %v1275 = vsel %vm1247, %v1216, %v1217
  %v1276 = vsel %vm1247, %v1215, %v1216
  %v1277 = vsel %vm1247, %v1214, %v1215
  %v1278 = vsel %vm1247, %v1213, %v1214
  %v1279 = vsel %vm1247, %v1212, %v1213
  %v1280 = vsel %vm1247, %v1211, %v1212
  %v1281 = vsel %vm1247, %v1210, %v1211
  %v1282 = vsel %vm1247, %v1209, %v1210
  %v1283 = vsel %vm1247, %v1208, %v1209
  %v1284 = vsel %vm1247, %v1207, %v1208
  %v1285 = vsel %vm1247, %v1206, %v1207
  %v1286 = vsel %vm1247, %v1205, %v1206
  %v1287 = vsel %vm1247, %v1204, %v1205
  %v1288 = vsel %vm1247, %v1203, %v1204
  %v1289 = vsel %vm1247, %v1202, %v1203
  %v1290 = vsel %vm1247, %v1201, %v1202
  %v1291 = vsel %vm1247, %v1200, %v1201
  %v1292 = vsel %vm1247, %v1199, %v1200
  %v1293 = vsel %vm1247, %v1198, %v1199
  %v1294 = vsel %vm1247, %v1197, %v1198
  %v1295 = vsel %vm1247, %v1196, %v1197
  %v1296 = vsel %vm1247, %v1195, %v1196
  %v1297 = vsel %vm1247, %v1194, %v1195
  %v1298 = vsel %vm1247, %v1193, %v1194
  %v1299 = vsel %vm1247, %v1192, %v1193
  %v1300 = vsel %vm1247, %v1191, %v1192
  %v1301 = vsel %vm1247, %v1190, %v1191
  %v1302 = vsel %vm1247, %v1189, %v1190
  %v1303 = vsel %vm1247, %v1188, %v1189
  %v1304 = vsel %vm1247, %v1187, %v1188
  %v1305 = vsel %vm1247, %v1186, %v1187
  %v1306 = vsel %vm1247, %v1185, %v1186
  %v1307 = vsel %vm1247, %v1184, %v1185
  %v1308 = vsel %vm1247, %v1183, %v1184
  %v1309 = vsel %vm1247, %v1182, %v1183
  %v1310 = vsel %vm1247, %v1181, %v1182
  %v1311 = vsel %vm1247, %v1244, %v1181
  %v1312 = vld [vmem:[%s1] sm:$0xff]
  %v1313 = vld [vmem:[%s1 + $0x8] sm:$0xff]
  %v1314 = vld [vmem:[%s1 + $0x10] sm:$0xff]
  %v1315 = vld [vmem:[%s1 + $0x18] sm:$0xff]
  %v1316 = vld [vmem:[%s1 + $0x20] sm:$0xff]
  %v1317 = vld [vmem:[%s1 + $0x28] sm:$0xff]
  %v1318 = vld [vmem:[%s1 + $0x30] sm:$0xff]
  %v1319 = vld [vmem:[%s1 + $0x38] sm:$0xff]
  %v1320 = vld [vmem:[%s1 + $0x40] sm:$0xff]
  %v1321 = vld [vmem:[%s1 + $0x48] sm:$0xff]
  %v1322 = vld [vmem:[%s1 + $0x50] sm:$0xff]
  %v1323 = vld [vmem:[%s1 + $0x58] sm:$0xff]
  %v1324 = vld [vmem:[%s1 + $0x60] sm:$0xff]
  %v1325 = vld [vmem:[%s1 + $0x68] sm:$0xff]
  %v1326 = vld [vmem:[%s1 + $0x70] sm:$0xff]
  %v1327 = vld [vmem:[%s1 + $0x78] sm:$0xff]
  %v1328 = vld [vmem:[%s1 + $0x80] sm:$0xff]
  %v1329 = vld [vmem:[%s1 + $0x88] sm:$0xff]
  %v1330 = vld [vmem:[%s1 + $0x90] sm:$0xff]
  %v1331 = vld [vmem:[%s1 + $0x98] sm:$0xff]
  %v1332 = vld [vmem:[%s1 + $0xa0] sm:$0xff]
  %v1333 = vld [vmem:[%s1 + $0xa8] sm:$0xff]
  %v1334 = vld [vmem:[%s1 + $0xb0] sm:$0xff]
  %v1335 = vld [vmem:[%s1 + $0xb8] sm:$0xff]
  %v1336 = vld [vmem:[%s1 + $0xc0] sm:$0xff]
  %v1337 = vld [vmem:[%s1 + $0xc8] sm:$0xff]
  %v1338 = vld [vmem:[%s1 + $0xd0] sm:$0xff]
  %v1339 = vld [vmem:[%s1 + $0xd8] sm:$0xff]
  %v1340 = vld [vmem:[%s1 + $0xe0] sm:$0xff]
  %v1341 = vld [vmem:[%s1 + $0xe8] sm:$0xff]
  %v1342 = vld [vmem:[%s1 + $0xf0] sm:$0xff]
  %v1343 = vld [vmem:[%s1 + $0xf8] sm:$0xff]
  %v1344 = vld [vmem:[%s1 + $0x100] sm:$0xff]
  %v1345 = vld [vmem:[%s1 + $0x108] sm:$0xff]
  %v1346 = vld [vmem:[%s1 + $0x110] sm:$0xff]
  %v1347 = vld [vmem:[%s1 + $0x118] sm:$0xff]
  %v1348 = vld [vmem:[%s1 + $0x120] sm:$0xff]
  %v1349 = vld [vmem:[%s1 + $0x128] sm:$0xff]
  %v1350 = vld [vmem:[%s1 + $0x130] sm:$0xff]
  %v1351 = vld [vmem:[%s1 + $0x138] sm:$0xff]
  %v1352 = vld [vmem:[%s1 + $0x140] sm:$0xff]
  %v1353 = vld [vmem:[%s1 + $0x148] sm:$0xff]
  %v1354 = vld [vmem:[%s1 + $0x150] sm:$0xff]
  %v1355 = vld [vmem:[%s1 + $0x158] sm:$0xff]
  %v1356 = vld [vmem:[%s1 + $0x160] sm:$0xff]
  %v1357 = vld [vmem:[%s1 + $0x168] sm:$0xff]
  %v1358 = vld [vmem:[%s1 + $0x170] sm:$0xff]
  %v1359 = vld [vmem:[%s1 + $0x178] sm:$0xff]
  %v1360 = vld [vmem:[%s1 + $0x180] sm:$0xff]
  %v1361 = vld [vmem:[%s1 + $0x188] sm:$0xff]
  %v1362 = vld [vmem:[%s1 + $0x190] sm:$0xff]
  %v1363 = vld [vmem:[%s1 + $0x198] sm:$0xff]
  %v1364 = vld [vmem:[%s1 + $0x1a0] sm:$0xff]
  %v1365 = vld [vmem:[%s1 + $0x1a8] sm:$0xff]
  %v1366 = vld [vmem:[%s1 + $0x1b0] sm:$0xff]
  %v1367 = vld [vmem:[%s1 + $0x1b8] sm:$0xff]
  %v1368 = vld [vmem:[%s1 + $0x1c0] sm:$0xff]
  %v1369 = vld [vmem:[%s1 + $0x1c8] sm:$0xff]
  %v1370 = vld [vmem:[%s1 + $0x1d0] sm:$0xff]
  %v1371 = vld [vmem:[%s1 + $0x1d8] sm:$0xff]
  %v1372 = vld [vmem:[%s1 + $0x1e0] sm:$0xff]
  %v1373 = vld [vmem:[%s1 + $0x1e8] sm:$0xff]
  %v1374 = vld [vmem:[%s1 + $0x1f0] sm:$0xff]
  %v1375 = vld [vmem:[%s1 + $0x1f8] sm:$0xff]
  %1377 = vset.pattern.permute.xlu0 1
  %1378 = vperm.xlu0 %1377, %v1312
  %v1379 = vpop.permute.xlu0 %1378
  %1382 = vset.pattern.permute.xlu0 1
  %1383 = vperm.xlu0 %1382, %v1313
  %v1384 = vpop.permute.xlu0 %1383
  %1387 = vset.pattern.permute.xlu0 1
  %1388 = vperm.xlu0 %1387, %v1314
  %v1389 = vpop.permute.xlu0 %1388
  %1392 = vset.pattern.permute.xlu0 1
  %1393 = vperm.xlu0 %1392, %v1315
  %v1394 = vpop.permute.xlu0 %1393
  %1397 = vset.pattern.permute.xlu0 1
  %1398 = vperm.xlu0 %1397, %v1316
  %v1399 = vpop.permute.xlu0 %1398
  %1402 = vset.pattern.permute.xlu0 1
  %1403 = vperm.xlu0 %1402, %v1317
  %v1404 = vpop.permute.xlu0 %1403
  %1407 = vset.pattern.permute.xlu0 1
  %1408 = vperm.xlu0 %1407, %v1318
  %v1409 = vpop.permute.xlu0 %1408
  %1412 = vset.pattern.permute.xlu0 1
  %1413 = vperm.xlu0 %1412, %v1319
  %v1414 = vpop.permute.xlu0 %1413
  %1417 = vset.pattern.permute.xlu0 1
  %1418 = vperm.xlu0 %1417, %v1320
  %v1419 = vpop.permute.xlu0 %1418
  %1422 = vset.pattern.permute.xlu0 1
  %1423 = vperm.xlu0 %1422, %v1321
  %v1424 = vpop.permute.xlu0 %1423
  %1427 = vset.pattern.permute.xlu0 1
  %1428 = vperm.xlu0 %1427, %v1322
  %v1429 = vpop.permute.xlu0 %1428
  %1432 = vset.pattern.permute.xlu0 1
  %1433 = vperm.xlu0 %1432, %v1323
  %v1434 = vpop.permute.xlu0 %1433
  %1437 = vset.pattern.permute.xlu0 1
  %1438 = vperm.xlu0 %1437, %v1324
  %v1439 = vpop.permute.xlu0 %1438
  %1442 = vset.pattern.permute.xlu0 1
  %1443 = vperm.xlu0 %1442, %v1325
  %v1444 = vpop.permute.xlu0 %1443
  %1447 = vset.pattern.permute.xlu0 1
  %1448 = vperm.xlu0 %1447, %v1326
  %v1449 = vpop.permute.xlu0 %1448
  %1452 = vset.pattern.permute.xlu0 1
  %1453 = vperm.xlu0 %1452, %v1327
  %v1454 = vpop.permute.xlu0 %1453
  %1457 = vset.pattern.permute.xlu0 1
  %1458 = vperm.xlu0 %1457, %v1328
  %v1459 = vpop.permute.xlu0 %1458
  %1462 = vset.pattern.permute.xlu0 1
  %1463 = vperm.xlu0 %1462, %v1329
  %v1464 = vpop.permute.xlu0 %1463
  %1467 = vset.pattern.permute.xlu0 1
  %1468 = vperm.xlu0 %1467, %v1330
  %v1469 = vpop.permute.xlu0 %1468
  %1472 = vset.pattern.permute.xlu0 1
  %1473 = vperm.xlu0 %1472, %v1331
  %v1474 = vpop.permute.xlu0 %1473
  %1477 = vset.pattern.permute.xlu0 1
  %1478 = vperm.xlu0 %1477, %v1332
  %v1479 = vpop.permute.xlu0 %1478
  %1482 = vset.pattern.permute.xlu0 1
  %1483 = vperm.xlu0 %1482, %v1333
  %v1484 = vpop.permute.xlu0 %1483
  %1487 = vset.pattern.permute.xlu0 1
  %1488 = vperm.xlu0 %1487, %v1334
  %v1489 = vpop.permute.xlu0 %1488
  %1492 = vset.pattern.permute.xlu0 1
  %1493 = vperm.xlu0 %1492, %v1335
  %v1494 = vpop.permute.xlu0 %1493
  %1497 = vset.pattern.permute.xlu0 1
  %1498 = vperm.xlu0 %1497, %v1336
  %v1499 = vpop.permute.xlu0 %1498
  %1502 = vset.pattern.permute.xlu0 1
  %1503 = vperm.xlu0 %1502, %v1337
  %v1504 = vpop.permute.xlu0 %1503
  %1507 = vset.pattern.permute.xlu0 1
  %1508 = vperm.xlu0 %1507, %v1338
  %v1509 = vpop.permute.xlu0 %1508
  %1512 = vset.pattern.permute.xlu0 1
  %1513 = vperm.xlu0 %1512, %v1339
  %v1514 = vpop.permute.xlu0 %1513
  %1517 = vset.pattern.permute.xlu0 1
  %1518 = vperm.xlu0 %1517, %v1340
  %v1519 = vpop.permute.xlu0 %1518
  %1522 = vset.pattern.permute.xlu0 1
  %1523 = vperm.xlu0 %1522, %v1341
  %v1524 = vpop.permute.xlu0 %1523
  %1527 = vset.pattern.permute.xlu0 1
  %1528 = vperm.xlu0 %1527, %v1342
  %v1529 = vpop.permute.xlu0 %1528
  %1532 = vset.pattern.permute.xlu0 1
  %1533 = vperm.xlu0 %1532, %v1343
  %v1534 = vpop.permute.xlu0 %1533
  %1537 = vset.pattern.permute.xlu0 1
  %1538 = vperm.xlu0 %1537, %v1344
  %v1539 = vpop.permute.xlu0 %1538
  %1542 = vset.pattern.permute.xlu0 1
  %1543 = vperm.xlu0 %1542, %v1345
  %v1544 = vpop.permute.xlu0 %1543
  %1547 = vset.pattern.permute.xlu0 1
  %1548 = vperm.xlu0 %1547, %v1346
  %v1549 = vpop.permute.xlu0 %1548
  %1552 = vset.pattern.permute.xlu0 1
  %1553 = vperm.xlu0 %1552, %v1347
  %v1554 = vpop.permute.xlu0 %1553
  %1557 = vset.pattern.permute.xlu0 1
  %1558 = vperm.xlu0 %1557, %v1348
  %v1559 = vpop.permute.xlu0 %1558
  %1562 = vset.pattern.permute.xlu0 1
  %1563 = vperm.xlu0 %1562, %v1349
  %v1564 = vpop.permute.xlu0 %1563
  %1567 = vset.pattern.permute.xlu0 1
  %1568 = vperm.xlu0 %1567, %v1350
  %v1569 = vpop.permute.xlu0 %1568
  %1572 = vset.pattern.permute.xlu0 1
  %1573 = vperm.xlu0 %1572, %v1351
  %v1574 = vpop.permute.xlu0 %1573
  %1577 = vset.pattern.permute.xlu0 1
  %1578 = vperm.xlu0 %1577, %v1352
  %v1579 = vpop.permute.xlu0 %1578
  %1582 = vset.pattern.permute.xlu0 1
  %1583 = vperm.xlu0 %1582, %v1353
  %v1584 = vpop.permute.xlu0 %1583
  %1587 = vset.pattern.permute.xlu0 1
  %1588 = vperm.xlu0 %1587, %v1354
  %v1589 = vpop.permute.xlu0 %1588
  %1592 = vset.pattern.permute.xlu0 1
  %1593 = vperm.xlu0 %1592, %v1355
  %v1594 = vpop.permute.xlu0 %1593
  %1597 = vset.pattern.permute.xlu0 1
  %1598 = vperm.xlu0 %1597, %v1356
  %v1599 = vpop.permute.xlu0 %1598
  %1602 = vset.pattern.permute.xlu0 1
  %1603 = vperm.xlu0 %1602, %v1357
  %v1604 = vpop.permute.xlu0 %1603
  %1607 = vset.pattern.permute.xlu0 1
  %1608 = vperm.xlu0 %1607, %v1358
  %v1609 = vpop.permute.xlu0 %1608
  %1612 = vset.pattern.permute.xlu0 1
  %1613 = vperm.xlu0 %1612, %v1359
  %v1614 = vpop.permute.xlu0 %1613
  %1617 = vset.pattern.permute.xlu0 1
  %1618 = vperm.xlu0 %1617, %v1360
  %v1619 = vpop.permute.xlu0 %1618
  %1622 = vset.pattern.permute.xlu0 1
  %1623 = vperm.xlu0 %1622, %v1361
  %v1624 = vpop.permute.xlu0 %1623
  %1627 = vset.pattern.permute.xlu0 1
  %1628 = vperm.xlu0 %1627, %v1362
  %v1629 = vpop.permute.xlu0 %1628
  %1632 = vset.pattern.permute.xlu0 1
  %1633 = vperm.xlu0 %1632, %v1363
  %v1634 = vpop.permute.xlu0 %1633
  %1637 = vset.pattern.permute.xlu0 1
  %1638 = vperm.xlu0 %1637, %v1364
  %v1639 = vpop.permute.xlu0 %1638
  %1642 = vset.pattern.permute.xlu0 1
  %1643 = vperm.xlu0 %1642, %v1365
  %v1644 = vpop.permute.xlu0 %1643
  %1647 = vset.pattern.permute.xlu0 1
  %1648 = vperm.xlu0 %1647, %v1366
  %v1649 = vpop.permute.xlu0 %1648
  %1652 = vset.pattern.permute.xlu0 1
  %1653 = vperm.xlu0 %1652, %v1367
  %v1654 = vpop.permute.xlu0 %1653
  %1657 = vset.pattern.permute.xlu0 1
  %1658 = vperm.xlu0 %1657, %v1368
  %v1659 = vpop.permute.xlu0 %1658
  %1662 = vset.pattern.permute.xlu0 1
  %1663 = vperm.xlu0 %1662, %v1369
  %v1664 = vpop.permute.xlu0 %1663
  %1667 = vset.pattern.permute.xlu0 1
  %1668 = vperm.xlu0 %1667, %v1370
  %v1669 = vpop.permute.xlu0 %1668
  %1672 = vset.pattern.permute.xlu0 1
  %1673 = vperm.xlu0 %1672, %v1371
  %v1674 = vpop.permute.xlu0 %1673
  %1677 = vset.pattern.permute.xlu0 1
  %1678 = vperm.xlu0 %1677, %v1372
  %v1679 = vpop.permute.xlu0 %1678
  %1682 = vset.pattern.permute.xlu0 1
  %1683 = vperm.xlu0 %1682, %v1373
  %v1684 = vpop.permute.xlu0 %1683
  %1687 = vset.pattern.permute.xlu0 1
  %1688 = vperm.xlu0 %1687, %v1374
  %v1689 = vpop.permute.xlu0 %1688
  %1692 = vset.pattern.permute.xlu0 1
  %1693 = vperm.xlu0 %1692, %v1375
  %v1694 = vpop.permute.xlu0 %1693
  %v1696 = vmul.f32 %v1250, %v1379
  %v1697 = vmul.f32 %v1249, %v1384
  %v1698 = vmul.f32 %v1248, %v1389
  %v1699 = vmul.f32 %v1311, %v1394
  %v1700 = vmul.f32 %v1310, %v1399
  %v1701 = vmul.f32 %v1309, %v1404
  %v1702 = vmul.f32 %v1308, %v1409
  %v1703 = vmul.f32 %v1307, %v1414
  %v1704 = vmul.f32 %v1306, %v1419
  %v1705 = vmul.f32 %v1305, %v1424
  %v1706 = vmul.f32 %v1304, %v1429
  %v1707 = vmul.f32 %v1303, %v1434
  %v1708 = vmul.f32 %v1302, %v1439
  %v1709 = vmul.f32 %v1301, %v1444
  %v1710 = vmul.f32 %v1300, %v1449
  %v1711 = vmul.f32 %v1299, %v1454
  %v1712 = vmul.f32 %v1298, %v1459
  %v1713 = vmul.f32 %v1297, %v1464
  %v1714 = vmul.f32 %v1296, %v1469
  %v1715 = vmul.f32 %v1295, %v1474
  %v1716 = vmul.f32 %v1294, %v1479
  %v1717 = vmul.f32 %v1293, %v1484
  %v1718 = vmul.f32 %v1292, %v1489
  %v1719 = vmul.f32 %v1291, %v1494
  %v1720 = vmul.f32 %v1290, %v1499
  %v1721 = vmul.f32 %v1289, %v1504
  %v1722 = vmul.f32 %v1288, %v1509
  %v1723 = vmul.f32 %v1287, %v1514
  %v1724 = vmul.f32 %v1286, %v1519
  %v1725 = vmul.f32 %v1285, %v1524
  %v1726 = vmul.f32 %v1284, %v1529
  %v1727 = vmul.f32 %v1283, %v1534
  %v1728 = vmul.f32 %v1282, %v1539
  %v1729 = vmul.f32 %v1281, %v1544
  %v1730 = vmul.f32 %v1280, %v1549
  %v1731 = vmul.f32 %v1279, %v1554
  %v1732 = vmul.f32 %v1278, %v1559
  %v1733 = vmul.f32 %v1277, %v1564
  %v1734 = vmul.f32 %v1276, %v1569
  %v1735 = vmul.f32 %v1275, %v1574
  %v1736 = vmul.f32 %v1274, %v1579
  %v1737 = vmul.f32 %v1273, %v1584
  %v1738 = vmul.f32 %v1272, %v1589
  %v1739 = vmul.f32 %v1271, %v1594
  %v1740 = vmul.f32 %v1270, %v1599
  %v1741 = vmul.f32 %v1269, %v1604
  %v1742 = vmul.f32 %v1268, %v1609
  %v1743 = vmul.f32 %v1267, %v1614
  %v1744 = vmul.f32 %v1266, %v1619
  %v1745 = vmul.f32 %v1265, %v1624
  %v1746 = vmul.f32 %v1264, %v1629
  %v1747 = vmul.f32 %v1263, %v1634
  %v1748 = vmul.f32 %v1262, %v1639
  %v1749 = vmul.f32 %v1261, %v1644
  %v1750 = vmul.f32 %v1260, %v1649
  %v1751 = vmul.f32 %v1259, %v1654
  %v1752 = vmul.f32 %v1258, %v1659
  %v1753 = vmul.f32 %v1257, %v1664
  %v1754 = vmul.f32 %v1256, %v1669
  %v1755 = vmul.f32 %v1255, %v1674
  %v1756 = vmul.f32 %v1254, %v1679
  %v1757 = vmul.f32 %v1253, %v1684
  %v1758 = vmul.f32 %v1252, %v1689
  %v1759 = vmul.f32 %v1251, %v1694
  %v1760 = vld [vmem:[%s2 + $0x1] sm:$0x1]
  %v1761 = vlaneseq
  %v1762 = vshrl.u32 %v1761, 7
  %v1763 = vsub.s32 0, %v1762
  %v1764 = vrot.slane %v1760, %v1763
  %v1765 = vmul.f32 %v1696, %v1764
  %v1766 = vmul.f32 %v1697, %v1764
  %v1767 = vmul.f32 %v1698, %v1764
  %v1768 = vmul.f32 %v1699, %v1764
  %v1769 = vmul.f32 %v1700, %v1764
  %v1770 = vmul.f32 %v1701, %v1764
  %v1771 = vmul.f32 %v1702, %v1764
  %v1772 = vmul.f32 %v1703, %v1764
  %v1773 = vmul.f32 %v1704, %v1764
  %v1774 = vmul.f32 %v1705, %v1764
  %v1775 = vmul.f32 %v1706, %v1764
  %v1776 = vmul.f32 %v1707, %v1764
  %v1777 = vmul.f32 %v1708, %v1764
  %v1778 = vmul.f32 %v1709, %v1764
  %v1779 = vmul.f32 %v1710, %v1764
  %v1780 = vmul.f32 %v1711, %v1764
  %v1781 = vmul.f32 %v1712, %v1764
  %v1782 = vmul.f32 %v1713, %v1764
  %v1783 = vmul.f32 %v1714, %v1764
  %v1784 = vmul.f32 %v1715, %v1764
  %v1785 = vmul.f32 %v1716, %v1764
  %v1786 = vmul.f32 %v1717, %v1764
  %v1787 = vmul.f32 %v1718, %v1764
  %v1788 = vmul.f32 %v1719, %v1764
  %v1789 = vmul.f32 %v1720, %v1764
  %v1790 = vmul.f32 %v1721, %v1764
  %v1791 = vmul.f32 %v1722, %v1764
  %v1792 = vmul.f32 %v1723, %v1764
  %v1793 = vmul.f32 %v1724, %v1764
  %v1794 = vmul.f32 %v1725, %v1764
  %v1795 = vmul.f32 %v1726, %v1764
  %v1796 = vmul.f32 %v1727, %v1764
  %v1797 = vmul.f32 %v1728, %v1764
  %v1798 = vmul.f32 %v1729, %v1764
  %v1799 = vmul.f32 %v1730, %v1764
  %v1800 = vmul.f32 %v1731, %v1764
  %v1801 = vmul.f32 %v1732, %v1764
  %v1802 = vmul.f32 %v1733, %v1764
  %v1803 = vmul.f32 %v1734, %v1764
  %v1804 = vmul.f32 %v1735, %v1764
  %v1805 = vmul.f32 %v1736, %v1764
  %v1806 = vmul.f32 %v1737, %v1764
  %v1807 = vmul.f32 %v1738, %v1764
  %v1808 = vmul.f32 %v1739, %v1764
  %v1809 = vmul.f32 %v1740, %v1764
  %v1810 = vmul.f32 %v1741, %v1764
  %v1811 = vmul.f32 %v1742, %v1764
  %v1812 = vmul.f32 %v1743, %v1764
  %v1813 = vmul.f32 %v1744, %v1764
  %v1814 = vmul.f32 %v1745, %v1764
  %v1815 = vmul.f32 %v1746, %v1764
  %v1816 = vmul.f32 %v1747, %v1764
  %v1817 = vmul.f32 %v1748, %v1764
  %v1818 = vmul.f32 %v1749, %v1764
  %v1819 = vmul.f32 %v1750, %v1764
  %v1820 = vmul.f32 %v1751, %v1764
  %v1821 = vmul.f32 %v1752, %v1764
  %v1822 = vmul.f32 %v1753, %v1764
  %v1823 = vmul.f32 %v1754, %v1764
  %v1824 = vmul.f32 %v1755, %v1764
  %v1825 = vmul.f32 %v1756, %v1764
  %v1826 = vmul.f32 %v1757, %v1764
  %v1827 = vmul.f32 %v1758, %v1764
  %v1828 = vmul.f32 %v1759, %v1764
  %v1829 = vadd.f32 %v1117, %v1765
  %v1830 = vadd.f32 %v1118, %v1766
  %v1831 = vadd.f32 %v1119, %v1767
  %v1832 = vadd.f32 %v1120, %v1768
  %v1833 = vadd.f32 %v1121, %v1769
  %v1834 = vadd.f32 %v1122, %v1770
  %v1835 = vadd.f32 %v1123, %v1771
  %v1836 = vadd.f32 %v1124, %v1772
  %v1837 = vadd.f32 %v1125, %v1773
  %v1838 = vadd.f32 %v1126, %v1774
  %v1839 = vadd.f32 %v1127, %v1775
  %v1840 = vadd.f32 %v1128, %v1776
  %v1841 = vadd.f32 %v1129, %v1777
  %v1842 = vadd.f32 %v1130, %v1778
  %v1843 = vadd.f32 %v1131, %v1779
  %v1844 = vadd.f32 %v1132, %v1780
  %v1845 = vadd.f32 %v1133, %v1781
  %v1846 = vadd.f32 %v1134, %v1782
  %v1847 = vadd.f32 %v1135, %v1783
  %v1848 = vadd.f32 %v1136, %v1784
  %v1849 = vadd.f32 %v1137, %v1785
  %v1850 = vadd.f32 %v1138, %v1786
  %v1851 = vadd.f32 %v1139, %v1787
  %v1852 = vadd.f32 %v1140, %v1788
  %v1853 = vadd.f32 %v1141, %v1789
  %v1854 = vadd.f32 %v1142, %v1790
  %v1855 = vadd.f32 %v1143, %v1791
  %v1856 = vadd.f32 %v1144, %v1792
  %v1857 = vadd.f32 %v1145, %v1793
  %v1858 = vadd.f32 %v1146, %v1794
  %v1859 = vadd.f32 %v1147, %v1795
  %v1860 = vadd.f32 %v1148, %v1796
  %v1861 = vadd.f32 %v1149, %v1797
  %v1862 = vadd.f32 %v1150, %v1798
  %v1863 = vadd.f32 %v1151, %v1799
  %v1864 = vadd.f32 %v1152, %v1800
  %v1865 = vadd.f32 %v1153, %v1801
  %v1866 = vadd.f32 %v1154, %v1802
  %v1867 = vadd.f32 %v1155, %v1803
  %v1868 = vadd.f32 %v1156, %v1804
  %v1869 = vadd.f32 %v1157, %v1805
  %v1870 = vadd.f32 %v1158, %v1806
  %v1871 = vadd.f32 %v1159, %v1807
  %v1872 = vadd.f32 %v1160, %v1808
  %v1873 = vadd.f32 %v1161, %v1809
  %v1874 = vadd.f32 %v1162, %v1810
  %v1875 = vadd.f32 %v1163, %v1811
  %v1876 = vadd.f32 %v1164, %v1812
  %v1877 = vadd.f32 %v1165, %v1813
  %v1878 = vadd.f32 %v1166, %v1814
  %v1879 = vadd.f32 %v1167, %v1815
  %v1880 = vadd.f32 %v1168, %v1816
  %v1881 = vadd.f32 %v1169, %v1817
  %v1882 = vadd.f32 %v1170, %v1818
  %v1883 = vadd.f32 %v1171, %v1819
  %v1884 = vadd.f32 %v1172, %v1820
  %v1885 = vadd.f32 %v1173, %v1821
  %v1886 = vadd.f32 %v1174, %v1822
  %v1887 = vadd.f32 %v1175, %v1823
  %v1888 = vadd.f32 %v1176, %v1824
  %v1889 = vadd.f32 %v1177, %v1825
  %v1890 = vadd.f32 %v1178, %v1826
  %v1891 = vadd.f32 %v1179, %v1827
  %v1892 = vadd.f32 %v1180, %v1828
  %v1893 = vrot.slane %v1048, 2
  %v1894 = vrot.slane %v1049, 2
  %v1895 = vrot.slane %v1050, 2
  %v1896 = vrot.slane %v1051, 2
  %v1897 = vrot.slane %v1052, 2
  %v1898 = vrot.slane %v1053, 2
  %v1899 = vrot.slane %v1054, 2
  %v1900 = vrot.slane %v1055, 2
  %v1901 = vrot.slane %v1056, 2
  %v1902 = vrot.slane %v1057, 2
  %v1903 = vrot.slane %v1058, 2
  %v1904 = vrot.slane %v1059, 2
  %v1905 = vrot.slane %v1060, 2
  %v1906 = vrot.slane %v1061, 2
  %v1907 = vrot.slane %v1062, 2
  %v1908 = vrot.slane %v1063, 2
  %v1909 = vrot.slane %v1064, 2
  %v1910 = vrot.slane %v1065, 2
  %v1911 = vrot.slane %v1066, 2
  %v1912 = vrot.slane %v1067, 2
  %v1913 = vrot.slane %v1068, 2
  %v1914 = vrot.slane %v1069, 2
  %v1915 = vrot.slane %v1070, 2
  %v1916 = vrot.slane %v1071, 2
  %v1917 = vrot.slane %v1072, 2
  %v1918 = vrot.slane %v1073, 2
  %v1919 = vrot.slane %v1074, 2
  %v1920 = vrot.slane %v1075, 2
  %v1921 = vrot.slane %v1076, 2
  %v1922 = vrot.slane %v1077, 2
  %v1923 = vrot.slane %v1078, 2
  %v1924 = vrot.slane %v1079, 2
  %v1925 = vrot.slane %v1080, 2
  %v1926 = vrot.slane %v1081, 2
  %v1927 = vrot.slane %v1082, 2
  %v1928 = vrot.slane %v1083, 2
  %v1929 = vrot.slane %v1084, 2
  %v1930 = vrot.slane %v1085, 2
  %v1931 = vrot.slane %v1086, 2
  %v1932 = vrot.slane %v1087, 2
  %v1933 = vrot.slane %v1088, 2
  %v1934 = vrot.slane %v1089, 2
  %v1935 = vrot.slane %v1090, 2
  %v1936 = vrot.slane %v1091, 2
  %v1937 = vrot.slane %v1092, 2
  %v1938 = vrot.slane %v1093, 2
  %v1939 = vrot.slane %v1094, 2
  %v1940 = vrot.slane %v1095, 2
  %v1941 = vrot.slane %v1096, 2
  %v1942 = vrot.slane %v1097, 2
  %v1943 = vrot.slane %v1098, 2
  %v1944 = vrot.slane %v1099, 2
  %v1945 = vrot.slane %v1100, 2
  %v1946 = vrot.slane %v1101, 2
  %v1947 = vrot.slane %v1102, 2
  %v1948 = vrot.slane %v1103, 2
  %v1949 = vrot.slane %v1104, 2
  %v1950 = vrot.slane %v1105, 2
  %v1951 = vrot.slane %v1106, 2
  %v1952 = vrot.slane %v1107, 2
  %v1953 = vrot.slane %v1108, 2
  %v1954 = vrot.slane %v1109, 2
  %v1955 = vrot.slane %v1110, 2
  %v1956 = vrot.slane %v1111, 2
  %vm1957 = vcmp.lt.s32.totalorder %v1246, 6
  %v1958 = vsel %vm1957, %v1955, %v1956
  %v1959 = vsel %vm1957, %v1954, %v1955
  %v1960 = vsel %vm1957, %v1953, %v1954
  %v1961 = vsel %vm1957, %v1952, %v1953
  %v1962 = vsel %vm1957, %v1951, %v1952
  %v1963 = vsel %vm1957, %v1950, %v1951
  %v1964 = vsel %vm1957, %v1949, %v1950
  %v1965 = vsel %vm1957, %v1948, %v1949
  %v1966 = vsel %vm1957, %v1947, %v1948
  %v1967 = vsel %vm1957, %v1946, %v1947
  %v1968 = vsel %vm1957, %v1945, %v1946
  %v1969 = vsel %vm1957, %v1944, %v1945
  %v1970 = vsel %vm1957, %v1943, %v1944
  %v1971 = vsel %vm1957, %v1942, %v1943
  %v1972 = vsel %vm1957, %v1941, %v1942
  %v1973 = vsel %vm1957, %v1940, %v1941
  %v1974 = vsel %vm1957, %v1939, %v1940
  %v1975 = vsel %vm1957, %v1938, %v1939
  %v1976 = vsel %vm1957, %v1937, %v1938
  %v1977 = vsel %vm1957, %v1936, %v1937
  %v1978 = vsel %vm1957, %v1935, %v1936
  %v1979 = vsel %vm1957, %v1934, %v1935
  %v1980 = vsel %vm1957, %v1933, %v1934
  %v1981 = vsel %vm1957, %v1932, %v1933
  %v1982 = vsel %vm1957, %v1931, %v1932
  %v1983 = vsel %vm1957, %v1930, %v1931
  %v1984 = vsel %vm1957, %v1929, %v1930
  %v1985 = vsel %vm1957, %v1928, %v1929
  %v1986 = vsel %vm1957, %v1927, %v1928
  %v1987 = vsel %vm1957, %v1926, %v1927
  %v1988 = vsel %vm1957, %v1925, %v1926
  %v1989 = vsel %vm1957, %v1924, %v1925
  %v1990 = vsel %vm1957, %v1923, %v1924
  %v1991 = vsel %vm1957, %v1922, %v1923
  %v1992 = vsel %vm1957, %v1921, %v1922
  %v1993 = vsel %vm1957, %v1920, %v1921
  %v1994 = vsel %vm1957, %v1919, %v1920
  %v1995 = vsel %vm1957, %v1918, %v1919
  %v1996 = vsel %vm1957, %v1917, %v1918
  %v1997 = vsel %vm1957, %v1916, %v1917
  %v1998 = vsel %vm1957, %v1915, %v1916
  %v1999 = vsel %vm1957, %v1914, %v1915
  %v2000 = vsel %vm1957, %v1913, %v1914
  %v2001 = vsel %vm1957, %v1912, %v1913
  %v2002 = vsel %vm1957, %v1911, %v1912
  %v2003 = vsel %vm1957, %v1910, %v1911
  %v2004 = vsel %vm1957, %v1909, %v1910
  %v2005 = vsel %vm1957, %v1908, %v1909
  %v2006 = vsel %vm1957, %v1907, %v1908
  %v2007 = vsel %vm1957, %v1906, %v1907
  %v2008 = vsel %vm1957, %v1905, %v1906
  %v2009 = vsel %vm1957, %v1904, %v1905
  %v2010 = vsel %vm1957, %v1903, %v1904
  %v2011 = vsel %vm1957, %v1902, %v1903
  %v2012 = vsel %vm1957, %v1901, %v1902
  %v2013 = vsel %vm1957, %v1900, %v1901
  %v2014 = vsel %vm1957, %v1899, %v1900
  %v2015 = vsel %vm1957, %v1898, %v1899
  %v2016 = vsel %vm1957, %v1897, %v1898
  %v2017 = vsel %vm1957, %v1896, %v1897
  %v2018 = vsel %vm1957, %v1895, %v1896
  %v2019 = vsel %vm1957, %v1894, %v1895
  %v2020 = vsel %vm1957, %v1893, %v1894
  %v2021 = vsel %vm1957, %v1956, %v1893
  %2022 = vset.pattern.permute.xlu0 2
  %2023 = vperm.xlu0 %2022, %v1312
  %v2024 = vpop.permute.xlu0 %2023
  %2026 = vset.pattern.permute.xlu0 2
  %2027 = vperm.xlu0 %2026, %v1313
  %v2028 = vpop.permute.xlu0 %2027
  %2030 = vset.pattern.permute.xlu0 2
  %2031 = vperm.xlu0 %2030, %v1314
  %v2032 = vpop.permute.xlu0 %2031
  %2034 = vset.pattern.permute.xlu0 2
  %2035 = vperm.xlu0 %2034, %v1315
  %v2036 = vpop.permute.xlu0 %2035
  %2038 = vset.pattern.permute.xlu0 2
  %2039 = vperm.xlu0 %2038, %v1316
  %v2040 = vpop.permute.xlu0 %2039
  %2042 = vset.pattern.permute.xlu0 2
  %2043 = vperm.xlu0 %2042, %v1317
  %v2044 = vpop.permute.xlu0 %2043
  %2046 = vset.pattern.permute.xlu0 2
  %2047 = vperm.xlu0 %2046, %v1318
  %v2048 = vpop.permute.xlu0 %2047
  %2050 = vset.pattern.permute.xlu0 2
  %2051 = vperm.xlu0 %2050, %v1319
  %v2052 = vpop.permute.xlu0 %2051
  %2054 = vset.pattern.permute.xlu0 2
  %2055 = vperm.xlu0 %2054, %v1320
  %v2056 = vpop.permute.xlu0 %2055
  %2058 = vset.pattern.permute.xlu0 2
  %2059 = vperm.xlu0 %2058, %v1321
  %v2060 = vpop.permute.xlu0 %2059
  %2062 = vset.pattern.permute.xlu0 2
  %2063 = vperm.xlu0 %2062, %v1322
  %v2064 = vpop.permute.xlu0 %2063
  %2066 = vset.pattern.permute.xlu0 2
  %2067 = vperm.xlu0 %2066, %v1323
  %v2068 = vpop.permute.xlu0 %2067
  %2070 = vset.pattern.permute.xlu0 2
  %2071 = vperm.xlu0 %2070, %v1324
  %v2072 = vpop.permute.xlu0 %2071
  %2074 = vset.pattern.permute.xlu0 2
  %2075 = vperm.xlu0 %2074, %v1325
  %v2076 = vpop.permute.xlu0 %2075
  %2078 = vset.pattern.permute.xlu0 2
  %2079 = vperm.xlu0 %2078, %v1326
  %v2080 = vpop.permute.xlu0 %2079
  %2082 = vset.pattern.permute.xlu0 2
  %2083 = vperm.xlu0 %2082, %v1327
  %v2084 = vpop.permute.xlu0 %2083
  %2086 = vset.pattern.permute.xlu0 2
  %2087 = vperm.xlu0 %2086, %v1328
  %v2088 = vpop.permute.xlu0 %2087
  %2090 = vset.pattern.permute.xlu0 2
  %2091 = vperm.xlu0 %2090, %v1329
  %v2092 = vpop.permute.xlu0 %2091
  %2094 = vset.pattern.permute.xlu0 2
  %2095 = vperm.xlu0 %2094, %v1330
  %v2096 = vpop.permute.xlu0 %2095
  %2098 = vset.pattern.permute.xlu0 2
  %2099 = vperm.xlu0 %2098, %v1331
  %v2100 = vpop.permute.xlu0 %2099
  %2102 = vset.pattern.permute.xlu0 2
  %2103 = vperm.xlu0 %2102, %v1332
  %v2104 = vpop.permute.xlu0 %2103
  %2106 = vset.pattern.permute.xlu0 2
  %2107 = vperm.xlu0 %2106, %v1333
  %v2108 = vpop.permute.xlu0 %2107
  %2110 = vset.pattern.permute.xlu0 2
  %2111 = vperm.xlu0 %2110, %v1334
  %v2112 = vpop.permute.xlu0 %2111
  %2114 = vset.pattern.permute.xlu0 2
  %2115 = vperm.xlu0 %2114, %v1335
  %v2116 = vpop.permute.xlu0 %2115
  %2118 = vset.pattern.permute.xlu0 2
  %2119 = vperm.xlu0 %2118, %v1336
  %v2120 = vpop.permute.xlu0 %2119
  %2122 = vset.pattern.permute.xlu0 2
  %2123 = vperm.xlu0 %2122, %v1337
  %v2124 = vpop.permute.xlu0 %2123
  %2126 = vset.pattern.permute.xlu0 2
  %2127 = vperm.xlu0 %2126, %v1338
  %v2128 = vpop.permute.xlu0 %2127
  %2130 = vset.pattern.permute.xlu0 2
  %2131 = vperm.xlu0 %2130, %v1339
  %v2132 = vpop.permute.xlu0 %2131
  %2134 = vset.pattern.permute.xlu0 2
  %2135 = vperm.xlu0 %2134, %v1340
  %v2136 = vpop.permute.xlu0 %2135
  %2138 = vset.pattern.permute.xlu0 2
  %2139 = vperm.xlu0 %2138, %v1341
  %v2140 = vpop.permute.xlu0 %2139
  %2142 = vset.pattern.permute.xlu0 2
  %2143 = vperm.xlu0 %2142, %v1342
  %v2144 = vpop.permute.xlu0 %2143
  %2146 = vset.pattern.permute.xlu0 2
  %2147 = vperm.xlu0 %2146, %v1343
  %v2148 = vpop.permute.xlu0 %2147
  %2150 = vset.pattern.permute.xlu0 2
  %2151 = vperm.xlu0 %2150, %v1344
  %v2152 = vpop.permute.xlu0 %2151
  %2154 = vset.pattern.permute.xlu0 2
  %2155 = vperm.xlu0 %2154, %v1345
  %v2156 = vpop.permute.xlu0 %2155
  %2158 = vset.pattern.permute.xlu0 2
  %2159 = vperm.xlu0 %2158, %v1346
  %v2160 = vpop.permute.xlu0 %2159
  %2162 = vset.pattern.permute.xlu0 2
  %2163 = vperm.xlu0 %2162, %v1347
  %v2164 = vpop.permute.xlu0 %2163
  %2166 = vset.pattern.permute.xlu0 2
  %2167 = vperm.xlu0 %2166, %v1348
  %v2168 = vpop.permute.xlu0 %2167
  %2170 = vset.pattern.permute.xlu0 2
  %2171 = vperm.xlu0 %2170, %v1349
  %v2172 = vpop.permute.xlu0 %2171
  %2174 = vset.pattern.permute.xlu0 2
  %2175 = vperm.xlu0 %2174, %v1350
  %v2176 = vpop.permute.xlu0 %2175
  %2178 = vset.pattern.permute.xlu0 2
  %2179 = vperm.xlu0 %2178, %v1351
  %v2180 = vpop.permute.xlu0 %2179
  %2182 = vset.pattern.permute.xlu0 2
  %2183 = vperm.xlu0 %2182, %v1352
  %v2184 = vpop.permute.xlu0 %2183
  %2186 = vset.pattern.permute.xlu0 2
  %2187 = vperm.xlu0 %2186, %v1353
  %v2188 = vpop.permute.xlu0 %2187
  %2190 = vset.pattern.permute.xlu0 2
  %2191 = vperm.xlu0 %2190, %v1354
  %v2192 = vpop.permute.xlu0 %2191
  %2194 = vset.pattern.permute.xlu0 2
  %2195 = vperm.xlu0 %2194, %v1355
  %v2196 = vpop.permute.xlu0 %2195
  %2198 = vset.pattern.permute.xlu0 2
  %2199 = vperm.xlu0 %2198, %v1356
  %v2200 = vpop.permute.xlu0 %2199
  %2202 = vset.pattern.permute.xlu0 2
  %2203 = vperm.xlu0 %2202, %v1357
  %v2204 = vpop.permute.xlu0 %2203
  %2206 = vset.pattern.permute.xlu0 2
  %2207 = vperm.xlu0 %2206, %v1358
  %v2208 = vpop.permute.xlu0 %2207
  %2210 = vset.pattern.permute.xlu0 2
  %2211 = vperm.xlu0 %2210, %v1359
  %v2212 = vpop.permute.xlu0 %2211
  %2214 = vset.pattern.permute.xlu0 2
  %2215 = vperm.xlu0 %2214, %v1360
  %v2216 = vpop.permute.xlu0 %2215
  %2218 = vset.pattern.permute.xlu0 2
  %2219 = vperm.xlu0 %2218, %v1361
  %v2220 = vpop.permute.xlu0 %2219
  %2222 = vset.pattern.permute.xlu0 2
  %2223 = vperm.xlu0 %2222, %v1362
  %v2224 = vpop.permute.xlu0 %2223
  %2226 = vset.pattern.permute.xlu0 2
  %2227 = vperm.xlu0 %2226, %v1363
  %v2228 = vpop.permute.xlu0 %2227
  %2230 = vset.pattern.permute.xlu0 2
  %2231 = vperm.xlu0 %2230, %v1364
  %v2232 = vpop.permute.xlu0 %2231
  %2234 = vset.pattern.permute.xlu0 2
  %2235 = vperm.xlu0 %2234, %v1365
  %v2236 = vpop.permute.xlu0 %2235
  %2238 = vset.pattern.permute.xlu0 2
  %2239 = vperm.xlu0 %2238, %v1366
  %v2240 = vpop.permute.xlu0 %2239
  %2242 = vset.pattern.permute.xlu0 2
  %2243 = vperm.xlu0 %2242, %v1367
  %v2244 = vpop.permute.xlu0 %2243
  %2246 = vset.pattern.permute.xlu0 2
  %2247 = vperm.xlu0 %2246, %v1368
  %v2248 = vpop.permute.xlu0 %2247
  %2250 = vset.pattern.permute.xlu0 2
  %2251 = vperm.xlu0 %2250, %v1369
  %v2252 = vpop.permute.xlu0 %2251
  %2254 = vset.pattern.permute.xlu0 2
  %2255 = vperm.xlu0 %2254, %v1370
  %v2256 = vpop.permute.xlu0 %2255
  %2258 = vset.pattern.permute.xlu0 2
  %2259 = vperm.xlu0 %2258, %v1371
  %v2260 = vpop.permute.xlu0 %2259
  %2262 = vset.pattern.permute.xlu0 2
  %2263 = vperm.xlu0 %2262, %v1372
  %v2264 = vpop.permute.xlu0 %2263
  %2266 = vset.pattern.permute.xlu0 2
  %2267 = vperm.xlu0 %2266, %v1373
  %v2268 = vpop.permute.xlu0 %2267
  %2270 = vset.pattern.permute.xlu0 2
  %2271 = vperm.xlu0 %2270, %v1374
  %v2272 = vpop.permute.xlu0 %2271
  %2274 = vset.pattern.permute.xlu0 2
  %2275 = vperm.xlu0 %2274, %v1375
  %v2276 = vpop.permute.xlu0 %2275
  %v2278 = vmul.f32 %v1960, %v2024
  %v2279 = vmul.f32 %v1959, %v2028
  %v2280 = vmul.f32 %v1958, %v2032
  %v2281 = vmul.f32 %v2021, %v2036
  %v2282 = vmul.f32 %v2020, %v2040
  %v2283 = vmul.f32 %v2019, %v2044
  %v2284 = vmul.f32 %v2018, %v2048
  %v2285 = vmul.f32 %v2017, %v2052
  %v2286 = vmul.f32 %v2016, %v2056
  %v2287 = vmul.f32 %v2015, %v2060
  %v2288 = vmul.f32 %v2014, %v2064
  %v2289 = vmul.f32 %v2013, %v2068
  %v2290 = vmul.f32 %v2012, %v2072
  %v2291 = vmul.f32 %v2011, %v2076
  %v2292 = vmul.f32 %v2010, %v2080
  %v2293 = vmul.f32 %v2009, %v2084
  %v2294 = vmul.f32 %v2008, %v2088
  %v2295 = vmul.f32 %v2007, %v2092
  %v2296 = vmul.f32 %v2006, %v2096
  %v2297 = vmul.f32 %v2005, %v2100
  %v2298 = vmul.f32 %v2004, %v2104
  %v2299 = vmul.f32 %v2003, %v2108
  %v2300 = vmul.f32 %v2002, %v2112
  %v2301 = vmul.f32 %v2001, %v2116
  %v2302 = vmul.f32 %v2000, %v2120
  %v2303 = vmul.f32 %v1999, %v2124
  %v2304 = vmul.f32 %v1998, %v2128
  %v2305 = vmul.f32 %v1997, %v2132
  %v2306 = vmul.f32 %v1996, %v2136
  %v2307 = vmul.f32 %v1995, %v2140
  %v2308 = vmul.f32 %v1994, %v2144
  %v2309 = vmul.f32 %v1993, %v2148
  %v2310 = vmul.f32 %v1992, %v2152
  %v2311 = vmul.f32 %v1991, %v2156
  %v2312 = vmul.f32 %v1990, %v2160
  %v2313 = vmul.f32 %v1989, %v2164
  %v2314 = vmul.f32 %v1988, %v2168
  %v2315 = vmul.f32 %v1987, %v2172
  %v2316 = vmul.f32 %v1986, %v2176
  %v2317 = vmul.f32 %v1985, %v2180
  %v2318 = vmul.f32 %v1984, %v2184
  %v2319 = vmul.f32 %v1983, %v2188
  %v2320 = vmul.f32 %v1982, %v2192
  %v2321 = vmul.f32 %v1981, %v2196
  %v2322 = vmul.f32 %v1980, %v2200
  %v2323 = vmul.f32 %v1979, %v2204
  %v2324 = vmul.f32 %v1978, %v2208
  %v2325 = vmul.f32 %v1977, %v2212
  %v2326 = vmul.f32 %v1976, %v2216
  %v2327 = vmul.f32 %v1975, %v2220
  %v2328 = vmul.f32 %v1974, %v2224
  %v2329 = vmul.f32 %v1973, %v2228
  %v2330 = vmul.f32 %v1972, %v2232
  %v2331 = vmul.f32 %v1971, %v2236
  %v2332 = vmul.f32 %v1970, %v2240
  %v2333 = vmul.f32 %v1969, %v2244
  %v2334 = vmul.f32 %v1968, %v2248
  %v2335 = vmul.f32 %v1967, %v2252
  %v2336 = vmul.f32 %v1966, %v2256
  %v2337 = vmul.f32 %v1965, %v2260
  %v2338 = vmul.f32 %v1964, %v2264
  %v2339 = vmul.f32 %v1963, %v2268
  %v2340 = vmul.f32 %v1962, %v2272
  %v2341 = vmul.f32 %v1961, %v2276
  %v2342 = vld [vmem:[%s2 + $0x2] sm:$0x1]
  %v2343 = vlaneseq
  %v2344 = vshrl.u32 %v2343, 7
  %v2345 = vsub.s32 0, %v2344
  %v2346 = vrot.slane %v2342, %v2345
  %v2347 = vmul.f32 %v2278, %v2346
  %v2348 = vmul.f32 %v2279, %v2346
  %v2349 = vmul.f32 %v2280, %v2346
  %v2350 = vmul.f32 %v2281, %v2346
  %v2351 = vmul.f32 %v2282, %v2346
  %v2352 = vmul.f32 %v2283, %v2346
  %v2353 = vmul.f32 %v2284, %v2346
  %v2354 = vmul.f32 %v2285, %v2346
  %v2355 = vmul.f32 %v2286, %v2346
  %v2356 = vmul.f32 %v2287, %v2346
  %v2357 = vmul.f32 %v2288, %v2346
  %v2358 = vmul.f32 %v2289, %v2346
  %v2359 = vmul.f32 %v2290, %v2346
  %v2360 = vmul.f32 %v2291, %v2346
  %v2361 = vmul.f32 %v2292, %v2346
  %v2362 = vmul.f32 %v2293, %v2346
  %v2363 = vmul.f32 %v2294, %v2346
  %v2364 = vmul.f32 %v2295, %v2346
  %v2365 = vmul.f32 %v2296, %v2346
  %v2366 = vmul.f32 %v2297, %v2346
  %v2367 = vmul.f32 %v2298, %v2346
  %v2368 = vmul.f32 %v2299, %v2346
  %v2369 = vmul.f32 %v2300, %v2346
  %v2370 = vmul.f32 %v2301, %v2346
  %v2371 = vmul.f32 %v2302, %v2346
  %v2372 = vmul.f32 %v2303, %v2346
  %v2373 = vmul.f32 %v2304, %v2346
  %v2374 = vmul.f32 %v2305, %v2346
  %v2375 = vmul.f32 %v2306, %v2346
  %v2376 = vmul.f32 %v2307, %v2346
  %v2377 = vmul.f32 %v2308, %v2346
  %v2378 = vmul.f32 %v2309, %v2346
  %v2379 = vmul.f32 %v2310, %v2346
  %v2380 = vmul.f32 %v2311, %v2346
  %v2381 = vmul.f32 %v2312, %v2346
  %v2382 = vmul.f32 %v2313, %v2346
  %v2383 = vmul.f32 %v2314, %v2346
  %v2384 = vmul.f32 %v2315, %v2346
  %v2385 = vmul.f32 %v2316, %v2346
  %v2386 = vmul.f32 %v2317, %v2346
  %v2387 = vmul.f32 %v2318, %v2346
  %v2388 = vmul.f32 %v2319, %v2346
  %v2389 = vmul.f32 %v2320, %v2346
  %v2390 = vmul.f32 %v2321, %v2346
  %v2391 = vmul.f32 %v2322, %v2346
  %v2392 = vmul.f32 %v2323, %v2346
  %v2393 = vmul.f32 %v2324, %v2346
  %v2394 = vmul.f32 %v2325, %v2346
  %v2395 = vmul.f32 %v2326, %v2346
  %v2396 = vmul.f32 %v2327, %v2346
  %v2397 = vmul.f32 %v2328, %v2346
  %v2398 = vmul.f32 %v2329, %v2346
  %v2399 = vmul.f32 %v2330, %v2346
  %v2400 = vmul.f32 %v2331, %v2346
  %v2401 = vmul.f32 %v2332, %v2346
  %v2402 = vmul.f32 %v2333, %v2346
  %v2403 = vmul.f32 %v2334, %v2346
  %v2404 = vmul.f32 %v2335, %v2346
  %v2405 = vmul.f32 %v2336, %v2346
  %v2406 = vmul.f32 %v2337, %v2346
  %v2407 = vmul.f32 %v2338, %v2346
  %v2408 = vmul.f32 %v2339, %v2346
  %v2409 = vmul.f32 %v2340, %v2346
  %v2410 = vmul.f32 %v2341, %v2346
  %v2411 = vadd.f32 %v1829, %v2347
  %v2412 = vadd.f32 %v1830, %v2348
  %v2413 = vadd.f32 %v1831, %v2349
  %v2414 = vadd.f32 %v1832, %v2350
  %v2415 = vadd.f32 %v1833, %v2351
  %v2416 = vadd.f32 %v1834, %v2352
  %v2417 = vadd.f32 %v1835, %v2353
  %v2418 = vadd.f32 %v1836, %v2354
  %v2419 = vadd.f32 %v1837, %v2355
  %v2420 = vadd.f32 %v1838, %v2356
  %v2421 = vadd.f32 %v1839, %v2357
  %v2422 = vadd.f32 %v1840, %v2358
  %v2423 = vadd.f32 %v1841, %v2359
  %v2424 = vadd.f32 %v1842, %v2360
  %v2425 = vadd.f32 %v1843, %v2361
  %v2426 = vadd.f32 %v1844, %v2362
  %v2427 = vadd.f32 %v1845, %v2363
  %v2428 = vadd.f32 %v1846, %v2364
  %v2429 = vadd.f32 %v1847, %v2365
  %v2430 = vadd.f32 %v1848, %v2366
  %v2431 = vadd.f32 %v1849, %v2367
  %v2432 = vadd.f32 %v1850, %v2368
  %v2433 = vadd.f32 %v1851, %v2369
  %v2434 = vadd.f32 %v1852, %v2370
  %v2435 = vadd.f32 %v1853, %v2371
  %v2436 = vadd.f32 %v1854, %v2372
  %v2437 = vadd.f32 %v1855, %v2373
  %v2438 = vadd.f32 %v1856, %v2374
  %v2439 = vadd.f32 %v1857, %v2375
  %v2440 = vadd.f32 %v1858, %v2376
  %v2441 = vadd.f32 %v1859, %v2377
  %v2442 = vadd.f32 %v1860, %v2378
  %v2443 = vadd.f32 %v1861, %v2379
  %v2444 = vadd.f32 %v1862, %v2380
  %v2445 = vadd.f32 %v1863, %v2381
  %v2446 = vadd.f32 %v1864, %v2382
  %v2447 = vadd.f32 %v1865, %v2383
  %v2448 = vadd.f32 %v1866, %v2384
  %v2449 = vadd.f32 %v1867, %v2385
  %v2450 = vadd.f32 %v1868, %v2386
  %v2451 = vadd.f32 %v1869, %v2387
  %v2452 = vadd.f32 %v1870, %v2388
  %v2453 = vadd.f32 %v1871, %v2389
  %v2454 = vadd.f32 %v1872, %v2390
  %v2455 = vadd.f32 %v1873, %v2391
  %v2456 = vadd.f32 %v1874, %v2392
  %v2457 = vadd.f32 %v1875, %v2393
  %v2458 = vadd.f32 %v1876, %v2394
  %v2459 = vadd.f32 %v1877, %v2395
  %v2460 = vadd.f32 %v1878, %v2396
  %v2461 = vadd.f32 %v1879, %v2397
  %v2462 = vadd.f32 %v1880, %v2398
  %v2463 = vadd.f32 %v1881, %v2399
  %v2464 = vadd.f32 %v1882, %v2400
  %v2465 = vadd.f32 %v1883, %v2401
  %v2466 = vadd.f32 %v1884, %v2402
  %v2467 = vadd.f32 %v1885, %v2403
  %v2468 = vadd.f32 %v1886, %v2404
  %v2469 = vadd.f32 %v1887, %v2405
  %v2470 = vadd.f32 %v1888, %v2406
  %v2471 = vadd.f32 %v1889, %v2407
  %v2472 = vadd.f32 %v1890, %v2408
  %v2473 = vadd.f32 %v1891, %v2409
  %v2474 = vadd.f32 %v1892, %v2410
  %v2475 = vrot.slane %v1048, 4
  %v2476 = vrot.slane %v1049, 4
  %v2477 = vrot.slane %v1050, 4
  %v2478 = vrot.slane %v1051, 4
  %v2479 = vrot.slane %v1052, 4
  %v2480 = vrot.slane %v1053, 4
  %v2481 = vrot.slane %v1054, 4
  %v2482 = vrot.slane %v1055, 4
  %v2483 = vrot.slane %v1056, 4
  %v2484 = vrot.slane %v1057, 4
  %v2485 = vrot.slane %v1058, 4
  %v2486 = vrot.slane %v1059, 4
  %v2487 = vrot.slane %v1060, 4
  %v2488 = vrot.slane %v1061, 4
  %v2489 = vrot.slane %v1062, 4
  %v2490 = vrot.slane %v1063, 4
  %v2491 = vrot.slane %v1064, 4
  %v2492 = vrot.slane %v1065, 4
  %v2493 = vrot.slane %v1066, 4
  %v2494 = vrot.slane %v1067, 4
  %v2495 = vrot.slane %v1068, 4
  %v2496 = vrot.slane %v1069, 4
  %v2497 = vrot.slane %v1070, 4
  %v2498 = vrot.slane %v1071, 4
  %v2499 = vrot.slane %v1072, 4
  %v2500 = vrot.slane %v1073, 4
  %v2501 = vrot.slane %v1074, 4
  %v2502 = vrot.slane %v1075, 4
  %v2503 = vrot.slane %v1076, 4
  %v2504 = vrot.slane %v1077, 4
  %v2505 = vrot.slane %v1078, 4
  %v2506 = vrot.slane %v1079, 4
  %v2507 = vrot.slane %v1080, 4
  %v2508 = vrot.slane %v1081, 4
  %v2509 = vrot.slane %v1082, 4
  %v2510 = vrot.slane %v1083, 4
  %v2511 = vrot.slane %v1084, 4
  %v2512 = vrot.slane %v1085, 4
  %v2513 = vrot.slane %v1086, 4
  %v2514 = vrot.slane %v1087, 4
  %v2515 = vrot.slane %v1088, 4
  %v2516 = vrot.slane %v1089, 4
  %v2517 = vrot.slane %v1090, 4
  %v2518 = vrot.slane %v1091, 4
  %v2519 = vrot.slane %v1092, 4
  %v2520 = vrot.slane %v1093, 4
  %v2521 = vrot.slane %v1094, 4
  %v2522 = vrot.slane %v1095, 4
  %v2523 = vrot.slane %v1096, 4
  %v2524 = vrot.slane %v1097, 4
  %v2525 = vrot.slane %v1098, 4
  %v2526 = vrot.slane %v1099, 4
  %v2527 = vrot.slane %v1100, 4
  %v2528 = vrot.slane %v1101, 4
  %v2529 = vrot.slane %v1102, 4
  %v2530 = vrot.slane %v1103, 4
  %v2531 = vrot.slane %v1104, 4
  %v2532 = vrot.slane %v1105, 4
  %v2533 = vrot.slane %v1106, 4
  %v2534 = vrot.slane %v1107, 4
  %v2535 = vrot.slane %v1108, 4
  %v2536 = vrot.slane %v1109, 4
  %v2537 = vrot.slane %v1110, 4
  %v2538 = vrot.slane %v1111, 4
  %vm2539 = vcmp.lt.s32.totalorder %v1246, 4
  %v2540 = vsel %vm2539, %v2537, %v2538
  %v2541 = vsel %vm2539, %v2536, %v2537
  %v2542 = vsel %vm2539, %v2535, %v2536
  %v2543 = vsel %vm2539, %v2534, %v2535
  %v2544 = vsel %vm2539, %v2533, %v2534
  %v2545 = vsel %vm2539, %v2532, %v2533
  %v2546 = vsel %vm2539, %v2531, %v2532
  %v2547 = vsel %vm2539, %v2530, %v2531
  %v2548 = vsel %vm2539, %v2529, %v2530
  %v2549 = vsel %vm2539, %v2528, %v2529
  %v2550 = vsel %vm2539, %v2527, %v2528
  %v2551 = vsel %vm2539, %v2526, %v2527
  %v2552 = vsel %vm2539, %v2525, %v2526
  %v2553 = vsel %vm2539, %v2524, %v2525
  %v2554 = vsel %vm2539, %v2523, %v2524
  %v2555 = vsel %vm2539, %v2522, %v2523
  %v2556 = vsel %vm2539, %v2521, %v2522
  %v2557 = vsel %vm2539, %v2520, %v2521
  %v2558 = vsel %vm2539, %v2519, %v2520
  %v2559 = vsel %vm2539, %v2518, %v2519
  %v2560 = vsel %vm2539, %v2517, %v2518
  %v2561 = vsel %vm2539, %v2516, %v2517
  %v2562 = vsel %vm2539, %v2515, %v2516
  %v2563 = vsel %vm2539, %v2514, %v2515
  %v2564 = vsel %vm2539, %v2513, %v2514
  %v2565 = vsel %vm2539, %v2512, %v2513
  %v2566 = vsel %vm2539, %v2511, %v2512
  %v2567 = vsel %vm2539, %v2510, %v2511
  %v2568 = vsel %vm2539, %v2509, %v2510
  %v2569 = vsel %vm2539, %v2508, %v2509
  %v2570 = vsel %vm2539, %v2507, %v2508
  %v2571 = vsel %vm2539, %v2506, %v2507
  %v2572 = vsel %vm2539, %v2505, %v2506
  %v2573 = vsel %vm2539, %v2504, %v2505
  %v2574 = vsel %vm2539, %v2503, %v2504
  %v2575 = vsel %vm2539, %v2502, %v2503
  %v2576 = vsel %vm2539, %v2501, %v2502
  %v2577 = vsel %vm2539, %v2500, %v2501
  %v2578 = vsel %vm2539, %v2499, %v2500
  %v2579 = vsel %vm2539, %v2498, %v2499
  %v2580 = vsel %vm2539, %v2497, %v2498
  %v2581 = vsel %vm2539, %v2496, %v2497
  %v2582 = vsel %vm2539, %v2495, %v2496
  %v2583 = vsel %vm2539, %v2494, %v2495
  %v2584 = vsel %vm2539, %v2493, %v2494
  %v2585 = vsel %vm2539, %v2492, %v2493
  %v2586 = vsel %vm2539, %v2491, %v2492
  %v2587 = vsel %vm2539, %v2490, %v2491
  %v2588 = vsel %vm2539, %v2489, %v2490
  %v2589 = vsel %vm2539, %v2488, %v2489
  %v2590 = vsel %vm2539, %v2487, %v2488
  %v2591 = vsel %vm2539, %v2486, %v2487
  %v2592 = vsel %vm2539, %v2485, %v2486
  %v2593 = vsel %vm2539, %v2484, %v2485
  %v2594 = vsel %vm2539, %v2483, %v2484
  %v2595 = vsel %vm2539, %v2482, %v2483
  %v2596 = vsel %vm2539, %v2481, %v2482
  %v2597 = vsel %vm2539, %v2480, %v2481
  %v2598 = vsel %vm2539, %v2479, %v2480
  %v2599 = vsel %vm2539, %v2478, %v2479
  %v2600 = vsel %vm2539, %v2477, %v2478
  %v2601 = vsel %vm2539, %v2476, %v2477
  %v2602 = vsel %vm2539, %v2475, %v2476
  %v2603 = vsel %vm2539, %v2538, %v2475
  %2604 = vset.pattern.permute.xlu0 3
  %2605 = vperm.xlu0 %2604, %v1312
  %v2606 = vpop.permute.xlu0 %2605
  %2608 = vset.pattern.permute.xlu0 3
  %2609 = vperm.xlu0 %2608, %v1313
  %v2610 = vpop.permute.xlu0 %2609
  %2612 = vset.pattern.permute.xlu0 3
  %2613 = vperm.xlu0 %2612, %v1314
  %v2614 = vpop.permute.xlu0 %2613
  %2616 = vset.pattern.permute.xlu0 3
  %2617 = vperm.xlu0 %2616, %v1315
  %v2618 = vpop.permute.xlu0 %2617
  %2620 = vset.pattern.permute.xlu0 3
  %2621 = vperm.xlu0 %2620, %v1316
  %v2622 = vpop.permute.xlu0 %2621
  %2624 = vset.pattern.permute.xlu0 3
  %2625 = vperm.xlu0 %2624, %v1317
  %v2626 = vpop.permute.xlu0 %2625
  %2628 = vset.pattern.permute.xlu0 3
  %2629 = vperm.xlu0 %2628, %v1318
  %v2630 = vpop.permute.xlu0 %2629
  %2632 = vset.pattern.permute.xlu0 3
  %2633 = vperm.xlu0 %2632, %v1319
  %v2634 = vpop.permute.xlu0 %2633
  %2636 = vset.pattern.permute.xlu0 3
  %2637 = vperm.xlu0 %2636, %v1320
  %v2638 = vpop.permute.xlu0 %2637
  %2640 = vset.pattern.permute.xlu0 3
  %2641 = vperm.xlu0 %2640, %v1321
  %v2642 = vpop.permute.xlu0 %2641
  %2644 = vset.pattern.permute.xlu0 3
  %2645 = vperm.xlu0 %2644, %v1322
  %v2646 = vpop.permute.xlu0 %2645
  %2648 = vset.pattern.permute.xlu0 3
  %2649 = vperm.xlu0 %2648, %v1323
  %v2650 = vpop.permute.xlu0 %2649
  %2652 = vset.pattern.permute.xlu0 3
  %2653 = vperm.xlu0 %2652, %v1324
  %v2654 = vpop.permute.xlu0 %2653
  %2656 = vset.pattern.permute.xlu0 3
  %2657 = vperm.xlu0 %2656, %v1325
  %v2658 = vpop.permute.xlu0 %2657
  %2660 = vset.pattern.permute.xlu0 3
  %2661 = vperm.xlu0 %2660, %v1326
  %v2662 = vpop.permute.xlu0 %2661
  %2664 = vset.pattern.permute.xlu0 3
  %2665 = vperm.xlu0 %2664, %v1327
  %v2666 = vpop.permute.xlu0 %2665
  %2668 = vset.pattern.permute.xlu0 3
  %2669 = vperm.xlu0 %2668, %v1328
  %v2670 = vpop.permute.xlu0 %2669
  %2672 = vset.pattern.permute.xlu0 3
  %2673 = vperm.xlu0 %2672, %v1329
  %v2674 = vpop.permute.xlu0 %2673
  %2676 = vset.pattern.permute.xlu0 3
  %2677 = vperm.xlu0 %2676, %v1330
  %v2678 = vpop.permute.xlu0 %2677
  %2680 = vset.pattern.permute.xlu0 3
  %2681 = vperm.xlu0 %2680, %v1331
  %v2682 = vpop.permute.xlu0 %2681
  %2684 = vset.pattern.permute.xlu0 3
  %2685 = vperm.xlu0 %2684, %v1332
  %v2686 = vpop.permute.xlu0 %2685
  %2688 = vset.pattern.permute.xlu0 3
  %2689 = vperm.xlu0 %2688, %v1333
  %v2690 = vpop.permute.xlu0 %2689
  %2692 = vset.pattern.permute.xlu0 3
  %2693 = vperm.xlu0 %2692, %v1334
  %v2694 = vpop.permute.xlu0 %2693
  %2696 = vset.pattern.permute.xlu0 3
  %2697 = vperm.xlu0 %2696, %v1335
  %v2698 = vpop.permute.xlu0 %2697
  %2700 = vset.pattern.permute.xlu0 3
  %2701 = vperm.xlu0 %2700, %v1336
  %v2702 = vpop.permute.xlu0 %2701
  %2704 = vset.pattern.permute.xlu0 3
  %2705 = vperm.xlu0 %2704, %v1337
  %v2706 = vpop.permute.xlu0 %2705
  %2708 = vset.pattern.permute.xlu0 3
  %2709 = vperm.xlu0 %2708, %v1338
  %v2710 = vpop.permute.xlu0 %2709
  %2712 = vset.pattern.permute.xlu0 3
  %2713 = vperm.xlu0 %2712, %v1339
  %v2714 = vpop.permute.xlu0 %2713
  %2716 = vset.pattern.permute.xlu0 3
  %2717 = vperm.xlu0 %2716, %v1340
  %v2718 = vpop.permute.xlu0 %2717
  %2720 = vset.pattern.permute.xlu0 3
  %2721 = vperm.xlu0 %2720, %v1341
  %v2722 = vpop.permute.xlu0 %2721
  %2724 = vset.pattern.permute.xlu0 3
  %2725 = vperm.xlu0 %2724, %v1342
  %v2726 = vpop.permute.xlu0 %2725
  %2728 = vset.pattern.permute.xlu0 3
  %2729 = vperm.xlu0 %2728, %v1343
  %v2730 = vpop.permute.xlu0 %2729
  %2732 = vset.pattern.permute.xlu0 3
  %2733 = vperm.xlu0 %2732, %v1344
  %v2734 = vpop.permute.xlu0 %2733
  %2736 = vset.pattern.permute.xlu0 3
  %2737 = vperm.xlu0 %2736, %v1345
  %v2738 = vpop.permute.xlu0 %2737
  %2740 = vset.pattern.permute.xlu0 3
  %2741 = vperm.xlu0 %2740, %v1346
  %v2742 = vpop.permute.xlu0 %2741
  %2744 = vset.pattern.permute.xlu0 3
  %2745 = vperm.xlu0 %2744, %v1347
  %v2746 = vpop.permute.xlu0 %2745
  %2748 = vset.pattern.permute.xlu0 3
  %2749 = vperm.xlu0 %2748, %v1348
  %v2750 = vpop.permute.xlu0 %2749
  %2752 = vset.pattern.permute.xlu0 3
  %2753 = vperm.xlu0 %2752, %v1349
  %v2754 = vpop.permute.xlu0 %2753
  %2756 = vset.pattern.permute.xlu0 3
  %2757 = vperm.xlu0 %2756, %v1350
  %v2758 = vpop.permute.xlu0 %2757
  %2760 = vset.pattern.permute.xlu0 3
  %2761 = vperm.xlu0 %2760, %v1351
  %v2762 = vpop.permute.xlu0 %2761
  %2764 = vset.pattern.permute.xlu0 3
  %2765 = vperm.xlu0 %2764, %v1352
  %v2766 = vpop.permute.xlu0 %2765
  %2768 = vset.pattern.permute.xlu0 3
  %2769 = vperm.xlu0 %2768, %v1353
  %v2770 = vpop.permute.xlu0 %2769
  %2772 = vset.pattern.permute.xlu0 3
  %2773 = vperm.xlu0 %2772, %v1354
  %v2774 = vpop.permute.xlu0 %2773
  %2776 = vset.pattern.permute.xlu0 3
  %2777 = vperm.xlu0 %2776, %v1355
  %v2778 = vpop.permute.xlu0 %2777
  %2780 = vset.pattern.permute.xlu0 3
  %2781 = vperm.xlu0 %2780, %v1356
  %v2782 = vpop.permute.xlu0 %2781
  %2784 = vset.pattern.permute.xlu0 3
  %2785 = vperm.xlu0 %2784, %v1357
  %v2786 = vpop.permute.xlu0 %2785
  %2788 = vset.pattern.permute.xlu0 3
  %2789 = vperm.xlu0 %2788, %v1358
  %v2790 = vpop.permute.xlu0 %2789
  %2792 = vset.pattern.permute.xlu0 3
  %2793 = vperm.xlu0 %2792, %v1359
  %v2794 = vpop.permute.xlu0 %2793
  %2796 = vset.pattern.permute.xlu0 3
  %2797 = vperm.xlu0 %2796, %v1360
  %v2798 = vpop.permute.xlu0 %2797
  %2800 = vset.pattern.permute.xlu0 3
  %2801 = vperm.xlu0 %2800, %v1361
  %v2802 = vpop.permute.xlu0 %2801
  %2804 = vset.pattern.permute.xlu0 3
  %2805 = vperm.xlu0 %2804, %v1362
  %v2806 = vpop.permute.xlu0 %2805
  %2808 = vset.pattern.permute.xlu0 3
  %2809 = vperm.xlu0 %2808, %v1363
  %v2810 = vpop.permute.xlu0 %2809
  %2812 = vset.pattern.permute.xlu0 3
  %2813 = vperm.xlu0 %2812, %v1364
  %v2814 = vpop.permute.xlu0 %2813
  %2816 = vset.pattern.permute.xlu0 3
  %2817 = vperm.xlu0 %2816, %v1365
  %v2818 = vpop.permute.xlu0 %2817
  %2820 = vset.pattern.permute.xlu0 3
  %2821 = vperm.xlu0 %2820, %v1366
  %v2822 = vpop.permute.xlu0 %2821
  %2824 = vset.pattern.permute.xlu0 3
  %2825 = vperm.xlu0 %2824, %v1367
  %v2826 = vpop.permute.xlu0 %2825
  %2828 = vset.pattern.permute.xlu0 3
  %2829 = vperm.xlu0 %2828, %v1368
  %v2830 = vpop.permute.xlu0 %2829
  %2832 = vset.pattern.permute.xlu0 3
  %2833 = vperm.xlu0 %2832, %v1369
  %v2834 = vpop.permute.xlu0 %2833
  %2836 = vset.pattern.permute.xlu0 3
  %2837 = vperm.xlu0 %2836, %v1370
  %v2838 = vpop.permute.xlu0 %2837
  %2840 = vset.pattern.permute.xlu0 3
  %2841 = vperm.xlu0 %2840, %v1371
  %v2842 = vpop.permute.xlu0 %2841
  %2844 = vset.pattern.permute.xlu0 3
  %2845 = vperm.xlu0 %2844, %v1372
  %v2846 = vpop.permute.xlu0 %2845
  %2848 = vset.pattern.permute.xlu0 3
  %2849 = vperm.xlu0 %2848, %v1373
  %v2850 = vpop.permute.xlu0 %2849
  %2852 = vset.pattern.permute.xlu0 3
  %2853 = vperm.xlu0 %2852, %v1374
  %v2854 = vpop.permute.xlu0 %2853
  %2856 = vset.pattern.permute.xlu0 3
  %2857 = vperm.xlu0 %2856, %v1375
  %v2858 = vpop.permute.xlu0 %2857
  %v2860 = vmul.f32 %v2542, %v2606
  %v2861 = vmul.f32 %v2541, %v2610
  %v2862 = vmul.f32 %v2540, %v2614
  %v2863 = vmul.f32 %v2603, %v2618
  %v2864 = vmul.f32 %v2602, %v2622
  %v2865 = vmul.f32 %v2601, %v2626
  %v2866 = vmul.f32 %v2600, %v2630
  %v2867 = vmul.f32 %v2599, %v2634
  %v2868 = vmul.f32 %v2598, %v2638
  %v2869 = vmul.f32 %v2597, %v2642
  %v2870 = vmul.f32 %v2596, %v2646
  %v2871 = vmul.f32 %v2595, %v2650
  %v2872 = vmul.f32 %v2594, %v2654
  %v2873 = vmul.f32 %v2593, %v2658
  %v2874 = vmul.f32 %v2592, %v2662
  %v2875 = vmul.f32 %v2591, %v2666
  %v2876 = vmul.f32 %v2590, %v2670
  %v2877 = vmul.f32 %v2589, %v2674
  %v2878 = vmul.f32 %v2588, %v2678
  %v2879 = vmul.f32 %v2587, %v2682
  %v2880 = vmul.f32 %v2586, %v2686
  %v2881 = vmul.f32 %v2585, %v2690
  %v2882 = vmul.f32 %v2584, %v2694
  %v2883 = vmul.f32 %v2583, %v2698
  %v2884 = vmul.f32 %v2582, %v2702
  %v2885 = vmul.f32 %v2581, %v2706
  %v2886 = vmul.f32 %v2580, %v2710
  %v2887 = vmul.f32 %v2579, %v2714
  %v2888 = vmul.f32 %v2578, %v2718
  %v2889 = vmul.f32 %v2577, %v2722
  %v2890 = vmul.f32 %v2576, %v2726
  %v2891 = vmul.f32 %v2575, %v2730
  %v2892 = vmul.f32 %v2574, %v2734
  %v2893 = vmul.f32 %v2573, %v2738
  %v2894 = vmul.f32 %v2572, %v2742
  %v2895 = vmul.f32 %v2571, %v2746
  %v2896 = vmul.f32 %v2570, %v2750
  %v2897 = vmul.f32 %v2569, %v2754
  %v2898 = vmul.f32 %v2568, %v2758
  %v2899 = vmul.f32 %v2567, %v2762
  %v2900 = vmul.f32 %v2566, %v2766
  %v2901 = vmul.f32 %v2565, %v2770
  %v2902 = vmul.f32 %v2564, %v2774
  %v2903 = vmul.f32 %v2563, %v2778
  %v2904 = vmul.f32 %v2562, %v2782
  %v2905 = vmul.f32 %v2561, %v2786
  %v2906 = vmul.f32 %v2560, %v2790
  %v2907 = vmul.f32 %v2559, %v2794
  %v2908 = vmul.f32 %v2558, %v2798
  %v2909 = vmul.f32 %v2557, %v2802
  %v2910 = vmul.f32 %v2556, %v2806
  %v2911 = vmul.f32 %v2555, %v2810
  %v2912 = vmul.f32 %v2554, %v2814
  %v2913 = vmul.f32 %v2553, %v2818
  %v2914 = vmul.f32 %v2552, %v2822
  %v2915 = vmul.f32 %v2551, %v2826
  %v2916 = vmul.f32 %v2550, %v2830
  %v2917 = vmul.f32 %v2549, %v2834
  %v2918 = vmul.f32 %v2548, %v2838
  %v2919 = vmul.f32 %v2547, %v2842
  %v2920 = vmul.f32 %v2546, %v2846
  %v2921 = vmul.f32 %v2545, %v2850
  %v2922 = vmul.f32 %v2544, %v2854
  %v2923 = vmul.f32 %v2543, %v2858
  %v2924 = vld [vmem:[%s2 + $0x3] sm:$0x1]
  %v2925 = vlaneseq
  %v2926 = vshrl.u32 %v2925, 7
  %v2927 = vsub.s32 0, %v2926
  %v2928 = vrot.slane %v2924, %v2927
  %v2929 = vmul.f32 %v2860, %v2928
  %v2930 = vmul.f32 %v2861, %v2928
  %v2931 = vmul.f32 %v2862, %v2928
  %v2932 = vmul.f32 %v2863, %v2928
  %v2933 = vmul.f32 %v2864, %v2928
  %v2934 = vmul.f32 %v2865, %v2928
  %v2935 = vmul.f32 %v2866, %v2928
  %v2936 = vmul.f32 %v2867, %v2928
  %v2937 = vmul.f32 %v2868, %v2928
  %v2938 = vmul.f32 %v2869, %v2928
  %v2939 = vmul.f32 %v2870, %v2928
  %v2940 = vmul.f32 %v2871, %v2928
  %v2941 = vmul.f32 %v2872, %v2928
  %v2942 = vmul.f32 %v2873, %v2928
  %v2943 = vmul.f32 %v2874, %v2928
  %v2944 = vmul.f32 %v2875, %v2928
  %v2945 = vmul.f32 %v2876, %v2928
  %v2946 = vmul.f32 %v2877, %v2928
  %v2947 = vmul.f32 %v2878, %v2928
  %v2948 = vmul.f32 %v2879, %v2928
  %v2949 = vmul.f32 %v2880, %v2928
  %v2950 = vmul.f32 %v2881, %v2928
  %v2951 = vmul.f32 %v2882, %v2928
  %v2952 = vmul.f32 %v2883, %v2928
  %v2953 = vmul.f32 %v2884, %v2928
  %v2954 = vmul.f32 %v2885, %v2928
  %v2955 = vmul.f32 %v2886, %v2928
  %v2956 = vmul.f32 %v2887, %v2928
  %v2957 = vmul.f32 %v2888, %v2928
  %v2958 = vmul.f32 %v2889, %v2928
  %v2959 = vmul.f32 %v2890, %v2928
  %v2960 = vmul.f32 %v2891, %v2928
  %v2961 = vmul.f32 %v2892, %v2928
  %v2962 = vmul.f32 %v2893, %v2928
  %v2963 = vmul.f32 %v2894, %v2928
  %v2964 = vmul.f32 %v2895, %v2928
  %v2965 = vmul.f32 %v2896, %v2928
  %v2966 = vmul.f32 %v2897, %v2928
  %v2967 = vmul.f32 %v2898, %v2928
  %v2968 = vmul.f32 %v2899, %v2928
  %v2969 = vmul.f32 %v2900, %v2928
  %v2970 = vmul.f32 %v2901, %v2928
  %v2971 = vmul.f32 %v2902, %v2928
  %v2972 = vmul.f32 %v2903, %v2928
  %v2973 = vmul.f32 %v2904, %v2928
  %v2974 = vmul.f32 %v2905, %v2928
  %v2975 = vmul.f32 %v2906, %v2928
  %v2976 = vmul.f32 %v2907, %v2928
  %v2977 = vmul.f32 %v2908, %v2928
  %v2978 = vmul.f32 %v2909, %v2928
  %v2979 = vmul.f32 %v2910, %v2928
  %v2980 = vmul.f32 %v2911, %v2928
  %v2981 = vmul.f32 %v2912, %v2928
  %v2982 = vmul.f32 %v2913, %v2928
  %v2983 = vmul.f32 %v2914, %v2928
  %v2984 = vmul.f32 %v2915, %v2928
  %v2985 = vmul.f32 %v2916, %v2928
  %v2986 = vmul.f32 %v2917, %v2928
  %v2987 = vmul.f32 %v2918, %v2928
  %v2988 = vmul.f32 %v2919, %v2928
  %v2989 = vmul.f32 %v2920, %v2928
  %v2990 = vmul.f32 %v2921, %v2928
  %v2991 = vmul.f32 %v2922, %v2928
  %v2992 = vmul.f32 %v2923, %v2928
  %v2993 = vadd.f32 %v2411, %v2929
  %v2994 = vadd.f32 %v2412, %v2930
  %v2995 = vadd.f32 %v2413, %v2931
  %v2996 = vadd.f32 %v2414, %v2932
  %v2997 = vadd.f32 %v2415, %v2933
  %v2998 = vadd.f32 %v2416, %v2934
  %v2999 = vadd.f32 %v2417, %v2935
  %v3000 = vadd.f32 %v2418, %v2936
  %v3001 = vadd.f32 %v2419, %v2937
  %v3002 = vadd.f32 %v2420, %v2938
  %v3003 = vadd.f32 %v2421, %v2939
  %v3004 = vadd.f32 %v2422, %v2940
  %v3005 = vadd.f32 %v2423, %v2941
  %v3006 = vadd.f32 %v2424, %v2942
  %v3007 = vadd.f32 %v2425, %v2943
  %v3008 = vadd.f32 %v2426, %v2944
  %v3009 = vadd.f32 %v2427, %v2945
  %v3010 = vadd.f32 %v2428, %v2946
  %v3011 = vadd.f32 %v2429, %v2947
  %v3012 = vadd.f32 %v2430, %v2948
  %v3013 = vadd.f32 %v2431, %v2949
  %v3014 = vadd.f32 %v2432, %v2950
  %v3015 = vadd.f32 %v2433, %v2951
  %v3016 = vadd.f32 %v2434, %v2952
  %v3017 = vadd.f32 %v2435, %v2953
  %v3018 = vadd.f32 %v2436, %v2954
  %v3019 = vadd.f32 %v2437, %v2955
  %v3020 = vadd.f32 %v2438, %v2956
  %v3021 = vadd.f32 %v2439, %v2957
  %v3022 = vadd.f32 %v2440, %v2958
  %v3023 = vadd.f32 %v2441, %v2959
  %v3024 = vadd.f32 %v2442, %v2960
  %v3025 = vadd.f32 %v2443, %v2961
  %v3026 = vadd.f32 %v2444, %v2962
  %v3027 = vadd.f32 %v2445, %v2963
  %v3028 = vadd.f32 %v2446, %v2964
  %v3029 = vadd.f32 %v2447, %v2965
  %v3030 = vadd.f32 %v2448, %v2966
  %v3031 = vadd.f32 %v2449, %v2967
  %v3032 = vadd.f32 %v2450, %v2968
  %v3033 = vadd.f32 %v2451, %v2969
  %v3034 = vadd.f32 %v2452, %v2970
  %v3035 = vadd.f32 %v2453, %v2971
  %v3036 = vadd.f32 %v2454, %v2972
  %v3037 = vadd.f32 %v2455, %v2973
  %v3038 = vadd.f32 %v2456, %v2974
  %v3039 = vadd.f32 %v2457, %v2975
  %v3040 = vadd.f32 %v2458, %v2976
  %v3041 = vadd.f32 %v2459, %v2977
  %v3042 = vadd.f32 %v2460, %v2978
  %v3043 = vadd.f32 %v2461, %v2979
  %v3044 = vadd.f32 %v2462, %v2980
  %v3045 = vadd.f32 %v2463, %v2981
  %v3046 = vadd.f32 %v2464, %v2982
  %v3047 = vadd.f32 %v2465, %v2983
  %v3048 = vadd.f32 %v2466, %v2984
  %v3049 = vadd.f32 %v2467, %v2985
  %v3050 = vadd.f32 %v2468, %v2986
  %v3051 = vadd.f32 %v2469, %v2987
  %v3052 = vadd.f32 %v2470, %v2988
  %v3053 = vadd.f32 %v2471, %v2989
  %v3054 = vadd.f32 %v2472, %v2990
  %v3055 = vadd.f32 %v2473, %v2991
  %v3056 = vadd.f32 %v2474, %v2992
  %v3057 = vrot.slane %v1048, 5
  %v3058 = vrot.slane %v1049, 5
  %v3059 = vrot.slane %v1050, 5
  %v3060 = vrot.slane %v1051, 5
  %v3061 = vrot.slane %v1052, 5
  %v3062 = vrot.slane %v1053, 5
  %v3063 = vrot.slane %v1054, 5
  %v3064 = vrot.slane %v1055, 5
  %v3065 = vrot.slane %v1056, 5
  %v3066 = vrot.slane %v1057, 5
  %v3067 = vrot.slane %v1058, 5
  %v3068 = vrot.slane %v1059, 5
  %v3069 = vrot.slane %v1060, 5
  %v3070 = vrot.slane %v1061, 5
  %v3071 = vrot.slane %v1062, 5
  %v3072 = vrot.slane %v1063, 5
  %v3073 = vrot.slane %v1064, 5
  %v3074 = vrot.slane %v1065, 5
  %v3075 = vrot.slane %v1066, 5
  %v3076 = vrot.slane %v1067, 5
  %v3077 = vrot.slane %v1068, 5
  %v3078 = vrot.slane %v1069, 5
  %v3079 = vrot.slane %v1070, 5
  %v3080 = vrot.slane %v1071, 5
  %v3081 = vrot.slane %v1072, 5
  %v3082 = vrot.slane %v1073, 5
  %v3083 = vrot.slane %v1074, 5
  %v3084 = vrot.slane %v1075, 5
  %v3085 = vrot.slane %v1076, 5
  %v3086 = vrot.slane %v1077, 5
  %v3087 = vrot.slane %v1078, 5
  %v3088 = vrot.slane %v1079, 5
  %v3089 = vrot.slane %v1080, 5
  %v3090 = vrot.slane %v1081, 5
  %v3091 = vrot.slane %v1082, 5
  %v3092 = vrot.slane %v1083, 5
  %v3093 = vrot.slane %v1084, 5
  %v3094 = vrot.slane %v1085, 5
  %v3095 = vrot.slane %v1086, 5
  %v3096 = vrot.slane %v1087, 5
  %v3097 = vrot.slane %v1088, 5
  %v3098 = vrot.slane %v1089, 5
  %v3099 = vrot.slane %v1090, 5
  %v3100 = vrot.slane %v1091, 5
  %v3101 = vrot.slane %v1092, 5
  %v3102 = vrot.slane %v1093, 5
  %v3103 = vrot.slane %v1094, 5
  %v3104 = vrot.slane %v1095, 5
  %v3105 = vrot.slane %v1096, 5
  %v3106 = vrot.slane %v1097, 5
  %v3107 = vrot.slane %v1098, 5
  %v3108 = vrot.slane %v1099, 5
  %v3109 = vrot.slane %v1100, 5
  %v3110 = vrot.slane %v1101, 5
  %v3111 = vrot.slane %v1102, 5
  %v3112 = vrot.slane %v1103, 5
  %v3113 = vrot.slane %v1104, 5
  %v3114 = vrot.slane %v1105, 5
  %v3115 = vrot.slane %v1106, 5
  %v3116 = vrot.slane %v1107, 5
  %v3117 = vrot.slane %v1108, 5
  %v3118 = vrot.slane %v1109, 5
  %v3119 = vrot.slane %v1110, 5
  %v3120 = vrot.slane %v1111, 5
  %vm3121 = vcmp.lt.s32.totalorder %v1246, 3
  %v3122 = vsel %vm3121, %v3119, %v3120
  %v3123 = vsel %vm3121, %v3118, %v3119
  %v3124 = vsel %vm3121, %v3117, %v3118
  %v3125 = vsel %vm3121, %v3116, %v3117
  %v3126 = vsel %vm3121, %v3115, %v3116
  %v3127 = vsel %vm3121, %v3114, %v3115
  %v3128 = vsel %vm3121, %v3113, %v3114
  %v3129 = vsel %vm3121, %v3112, %v3113
  %v3130 = vsel %vm3121, %v3111, %v3112
  %v3131 = vsel %vm3121, %v3110, %v3111
  %v3132 = vsel %vm3121, %v3109, %v3110
  %v3133 = vsel %vm3121, %v3108, %v3109
  %v3134 = vsel %vm3121, %v3107, %v3108
  %v3135 = vsel %vm3121, %v3106, %v3107
  %v3136 = vsel %vm3121, %v3105, %v3106
  %v3137 = vsel %vm3121, %v3104, %v3105
  %v3138 = vsel %vm3121, %v3103, %v3104
  %v3139 = vsel %vm3121, %v3102, %v3103
  %v3140 = vsel %vm3121, %v3101, %v3102
  %v3141 = vsel %vm3121, %v3100, %v3101
  %v3142 = vsel %vm3121, %v3099, %v3100
  %v3143 = vsel %vm3121, %v3098, %v3099
  %v3144 = vsel %vm3121, %v3097, %v3098
  %v3145 = vsel %vm3121, %v3096, %v3097
  %v3146 = vsel %vm3121, %v3095, %v3096
  %v3147 = vsel %vm3121, %v3094, %v3095
  %v3148 = vsel %vm3121, %v3093, %v3094
  %v3149 = vsel %vm3121, %v3092, %v3093
  %v3150 = vsel %vm3121, %v3091, %v3092
  %v3151 = vsel %vm3121, %v3090, %v3091
  %v3152 = vsel %vm3121, %v3089, %v3090
  %v3153 = vsel %vm3121, %v3088, %v3089
  %v3154 = vsel %vm3121, %v3087, %v3088
  %v3155 = vsel %vm3121, %v3086, %v3087
  %v3156 = vsel %vm3121, %v3085, %v3086
  %v3157 = vsel %vm3121, %v3084, %v3085
  %v3158 = vsel %vm3121, %v3083, %v3084
  %v3159 = vsel %vm3121, %v3082, %v3083
  %v3160 = vsel %vm3121, %v3081, %v3082
  %v3161 = vsel %vm3121, %v3080, %v3081
  %v3162 = vsel %vm3121, %v3079, %v3080
  %v3163 = vsel %vm3121, %v3078, %v3079
  %v3164 = vsel %vm3121, %v3077, %v3078
  %v3165 = vsel %vm3121, %v3076, %v3077
  %v3166 = vsel %vm3121, %v3075, %v3076
  %v3167 = vsel %vm3121, %v3074, %v3075
  %v3168 = vsel %vm3121, %v3073, %v3074
  %v3169 = vsel %vm3121, %v3072, %v3073
  %v3170 = vsel %vm3121, %v3071, %v3072
  %v3171 = vsel %vm3121, %v3070, %v3071
  %v3172 = vsel %vm3121, %v3069, %v3070
  %v3173 = vsel %vm3121, %v3068, %v3069
  %v3174 = vsel %vm3121, %v3067, %v3068
  %v3175 = vsel %vm3121, %v3066, %v3067
  %v3176 = vsel %vm3121, %v3065, %v3066
  %v3177 = vsel %vm3121, %v3064, %v3065
  %v3178 = vsel %vm3121, %v3063, %v3064
  %v3179 = vsel %vm3121, %v3062, %v3063
  %v3180 = vsel %vm3121, %v3061, %v3062
  %v3181 = vsel %vm3121, %v3060, %v3061
  %v3182 = vsel %vm3121, %v3059, %v3060
  %v3183 = vsel %vm3121, %v3058, %v3059
  %v3184 = vsel %vm3121, %v3057, %v3058
  %v3185 = vsel %vm3121, %v3120, %v3057
  %3186 = vset.pattern.permute.xlu0 4
  %3187 = vperm.xlu0 %3186, %v1312
  %v3188 = vpop.permute.xlu0 %3187
  %3190 = vset.pattern.permute.xlu0 4
  %3191 = vperm.xlu0 %3190, %v1313
  %v3192 = vpop.permute.xlu0 %3191
  %3194 = vset.pattern.permute.xlu0 4
  %3195 = vperm.xlu0 %3194, %v1314
  %v3196 = vpop.permute.xlu0 %3195
  %3198 = vset.pattern.permute.xlu0 4
  %3199 = vperm.xlu0 %3198, %v1315
  %v3200 = vpop.permute.xlu0 %3199
  %3202 = vset.pattern.permute.xlu0 4
  %3203 = vperm.xlu0 %3202, %v1316
  %v3204 = vpop.permute.xlu0 %3203
  %3206 = vset.pattern.permute.xlu0 4
  %3207 = vperm.xlu0 %3206, %v1317
  %v3208 = vpop.permute.xlu0 %3207
  %3210 = vset.pattern.permute.xlu0 4
  %3211 = vperm.xlu0 %3210, %v1318
  %v3212 = vpop.permute.xlu0 %3211
  %3214 = vset.pattern.permute.xlu0 4
  %3215 = vperm.xlu0 %3214, %v1319
  %v3216 = vpop.permute.xlu0 %3215
  %3218 = vset.pattern.permute.xlu0 4
  %3219 = vperm.xlu0 %3218, %v1320
  %v3220 = vpop.permute.xlu0 %3219
  %3222 = vset.pattern.permute.xlu0 4
  %3223 = vperm.xlu0 %3222, %v1321
  %v3224 = vpop.permute.xlu0 %3223
  %3226 = vset.pattern.permute.xlu0 4
  %3227 = vperm.xlu0 %3226, %v1322
  %v3228 = vpop.permute.xlu0 %3227
  %3230 = vset.pattern.permute.xlu0 4
  %3231 = vperm.xlu0 %3230, %v1323
  %v3232 = vpop.permute.xlu0 %3231
  %3234 = vset.pattern.permute.xlu0 4
  %3235 = vperm.xlu0 %3234, %v1324
  %v3236 = vpop.permute.xlu0 %3235
  %3238 = vset.pattern.permute.xlu0 4
  %3239 = vperm.xlu0 %3238, %v1325
  %v3240 = vpop.permute.xlu0 %3239
  %3242 = vset.pattern.permute.xlu0 4
  %3243 = vperm.xlu0 %3242, %v1326
  %v3244 = vpop.permute.xlu0 %3243
  %3246 = vset.pattern.permute.xlu0 4
  %3247 = vperm.xlu0 %3246, %v1327
  %v3248 = vpop.permute.xlu0 %3247
  %3250 = vset.pattern.permute.xlu0 4
  %3251 = vperm.xlu0 %3250, %v1328
  %v3252 = vpop.permute.xlu0 %3251
  %3254 = vset.pattern.permute.xlu0 4
  %3255 = vperm.xlu0 %3254, %v1329
  %v3256 = vpop.permute.xlu0 %3255
  %3258 = vset.pattern.permute.xlu0 4
  %3259 = vperm.xlu0 %3258, %v1330
  %v3260 = vpop.permute.xlu0 %3259
  %3262 = vset.pattern.permute.xlu0 4
  %3263 = vperm.xlu0 %3262, %v1331
  %v3264 = vpop.permute.xlu0 %3263
  %3266 = vset.pattern.permute.xlu0 4
  %3267 = vperm.xlu0 %3266, %v1332
  %v3268 = vpop.permute.xlu0 %3267
  %3270 = vset.pattern.permute.xlu0 4
  %3271 = vperm.xlu0 %3270, %v1333
  %v3272 = vpop.permute.xlu0 %3271
  %3274 = vset.pattern.permute.xlu0 4
  %3275 = vperm.xlu0 %3274, %v1334
  %v3276 = vpop.permute.xlu0 %3275
  %3278 = vset.pattern.permute.xlu0 4
  %3279 = vperm.xlu0 %3278, %v1335
  %v3280 = vpop.permute.xlu0 %3279
  %3282 = vset.pattern.permute.xlu0 4
  %3283 = vperm.xlu0 %3282, %v1336
  %v3284 = vpop.permute.xlu0 %3283
  %3286 = vset.pattern.permute.xlu0 4
  %3287 = vperm.xlu0 %3286, %v1337
  %v3288 = vpop.permute.xlu0 %3287
  %3290 = vset.pattern.permute.xlu0 4
  %3291 = vperm.xlu0 %3290, %v1338
  %v3292 = vpop.permute.xlu0 %3291
  %3294 = vset.pattern.permute.xlu0 4
  %3295 = vperm.xlu0 %3294, %v1339
  %v3296 = vpop.permute.xlu0 %3295
  %3298 = vset.pattern.permute.xlu0 4
  %3299 = vperm.xlu0 %3298, %v1340
  %v3300 = vpop.permute.xlu0 %3299
  %3302 = vset.pattern.permute.xlu0 4
  %3303 = vperm.xlu0 %3302, %v1341
  %v3304 = vpop.permute.xlu0 %3303
  %3306 = vset.pattern.permute.xlu0 4
  %3307 = vperm.xlu0 %3306, %v1342
  %v3308 = vpop.permute.xlu0 %3307
  %3310 = vset.pattern.permute.xlu0 4
  %3311 = vperm.xlu0 %3310, %v1343
  %v3312 = vpop.permute.xlu0 %3311
  %3314 = vset.pattern.permute.xlu0 4
  %3315 = vperm.xlu0 %3314, %v1344
  %v3316 = vpop.permute.xlu0 %3315
  %3318 = vset.pattern.permute.xlu0 4
  %3319 = vperm.xlu0 %3318, %v1345
  %v3320 = vpop.permute.xlu0 %3319
  %3322 = vset.pattern.permute.xlu0 4
  %3323 = vperm.xlu0 %3322, %v1346
  %v3324 = vpop.permute.xlu0 %3323
  %3326 = vset.pattern.permute.xlu0 4
  %3327 = vperm.xlu0 %3326, %v1347
  %v3328 = vpop.permute.xlu0 %3327
  %3330 = vset.pattern.permute.xlu0 4
  %3331 = vperm.xlu0 %3330, %v1348
  %v3332 = vpop.permute.xlu0 %3331
  %3334 = vset.pattern.permute.xlu0 4
  %3335 = vperm.xlu0 %3334, %v1349
  %v3336 = vpop.permute.xlu0 %3335
  %3338 = vset.pattern.permute.xlu0 4
  %3339 = vperm.xlu0 %3338, %v1350
  %v3340 = vpop.permute.xlu0 %3339
  %3342 = vset.pattern.permute.xlu0 4
  %3343 = vperm.xlu0 %3342, %v1351
  %v3344 = vpop.permute.xlu0 %3343
  %3346 = vset.pattern.permute.xlu0 4
  %3347 = vperm.xlu0 %3346, %v1352
  %v3348 = vpop.permute.xlu0 %3347
  %3350 = vset.pattern.permute.xlu0 4
  %3351 = vperm.xlu0 %3350, %v1353
  %v3352 = vpop.permute.xlu0 %3351
  %3354 = vset.pattern.permute.xlu0 4
  %3355 = vperm.xlu0 %3354, %v1354
  %v3356 = vpop.permute.xlu0 %3355
  %3358 = vset.pattern.permute.xlu0 4
  %3359 = vperm.xlu0 %3358, %v1355
  %v3360 = vpop.permute.xlu0 %3359
  %3362 = vset.pattern.permute.xlu0 4
  %3363 = vperm.xlu0 %3362, %v1356
  %v3364 = vpop.permute.xlu0 %3363
  %3366 = vset.pattern.permute.xlu0 4
  %3367 = vperm.xlu0 %3366, %v1357
  %v3368 = vpop.permute.xlu0 %3367
  %3370 = vset.pattern.permute.xlu0 4
  %3371 = vperm.xlu0 %3370, %v1358
  %v3372 = vpop.permute.xlu0 %3371
  %3374 = vset.pattern.permute.xlu0 4
  %3375 = vperm.xlu0 %3374, %v1359
  %v3376 = vpop.permute.xlu0 %3375
  %3378 = vset.pattern.permute.xlu0 4
  %3379 = vperm.xlu0 %3378, %v1360
  %v3380 = vpop.permute.xlu0 %3379
  %3382 = vset.pattern.permute.xlu0 4
  %3383 = vperm.xlu0 %3382, %v1361
  %v3384 = vpop.permute.xlu0 %3383
  %3386 = vset.pattern.permute.xlu0 4
  %3387 = vperm.xlu0 %3386, %v1362
  %v3388 = vpop.permute.xlu0 %3387
  %3390 = vset.pattern.permute.xlu0 4
  %3391 = vperm.xlu0 %3390, %v1363
  %v3392 = vpop.permute.xlu0 %3391
  %3394 = vset.pattern.permute.xlu0 4
  %3395 = vperm.xlu0 %3394, %v1364
  %v3396 = vpop.permute.xlu0 %3395
  %3398 = vset.pattern.permute.xlu0 4
  %3399 = vperm.xlu0 %3398, %v1365
  %v3400 = vpop.permute.xlu0 %3399
  %3402 = vset.pattern.permute.xlu0 4
  %3403 = vperm.xlu0 %3402, %v1366
  %v3404 = vpop.permute.xlu0 %3403
  %3406 = vset.pattern.permute.xlu0 4
  %3407 = vperm.xlu0 %3406, %v1367
  %v3408 = vpop.permute.xlu0 %3407
  %3410 = vset.pattern.permute.xlu0 4
  %3411 = vperm.xlu0 %3410, %v1368
  %v3412 = vpop.permute.xlu0 %3411
  %3414 = vset.pattern.permute.xlu0 4
  %3415 = vperm.xlu0 %3414, %v1369
  %v3416 = vpop.permute.xlu0 %3415
  %3418 = vset.pattern.permute.xlu0 4
  %3419 = vperm.xlu0 %3418, %v1370
  %v3420 = vpop.permute.xlu0 %3419
  %3422 = vset.pattern.permute.xlu0 4
  %3423 = vperm.xlu0 %3422, %v1371
  %v3424 = vpop.permute.xlu0 %3423
  %3426 = vset.pattern.permute.xlu0 4
  %3427 = vperm.xlu0 %3426, %v1372
  %v3428 = vpop.permute.xlu0 %3427
  %3430 = vset.pattern.permute.xlu0 4
  %3431 = vperm.xlu0 %3430, %v1373
  %v3432 = vpop.permute.xlu0 %3431
  %3434 = vset.pattern.permute.xlu0 4
  %3435 = vperm.xlu0 %3434, %v1374
  %v3436 = vpop.permute.xlu0 %3435
  %3438 = vset.pattern.permute.xlu0 4
  %3439 = vperm.xlu0 %3438, %v1375
  %v3440 = vpop.permute.xlu0 %3439
  %v3442 = vmul.f32 %v3124, %v3188
  %v3443 = vmul.f32 %v3123, %v3192
  %v3444 = vmul.f32 %v3122, %v3196
  %v3445 = vmul.f32 %v3185, %v3200
  %v3446 = vmul.f32 %v3184, %v3204
  %v3447 = vmul.f32 %v3183, %v3208
  %v3448 = vmul.f32 %v3182, %v3212
  %v3449 = vmul.f32 %v3181, %v3216
  %v3450 = vmul.f32 %v3180, %v3220
  %v3451 = vmul.f32 %v3179, %v3224
  %v3452 = vmul.f32 %v3178, %v3228
  %v3453 = vmul.f32 %v3177, %v3232
  %v3454 = vmul.f32 %v3176, %v3236
  %v3455 = vmul.f32 %v3175, %v3240
  %v3456 = vmul.f32 %v3174, %v3244
  %v3457 = vmul.f32 %v3173, %v3248
  %v3458 = vmul.f32 %v3172, %v3252
  %v3459 = vmul.f32 %v3171, %v3256
  %v3460 = vmul.f32 %v3170, %v3260
  %v3461 = vmul.f32 %v3169, %v3264
  %v3462 = vmul.f32 %v3168, %v3268
  %v3463 = vmul.f32 %v3167, %v3272
  %v3464 = vmul.f32 %v3166, %v3276
  %v3465 = vmul.f32 %v3165, %v3280
  %v3466 = vmul.f32 %v3164, %v3284
  %v3467 = vmul.f32 %v3163, %v3288
  %v3468 = vmul.f32 %v3162, %v3292
  %v3469 = vmul.f32 %v3161, %v3296
  %v3470 = vmul.f32 %v3160, %v3300
  %v3471 = vmul.f32 %v3159, %v3304
  %v3472 = vmul.f32 %v3158, %v3308
  %v3473 = vmul.f32 %v3157, %v3312
  %v3474 = vmul.f32 %v3156, %v3316
  %v3475 = vmul.f32 %v3155, %v3320
  %v3476 = vmul.f32 %v3154, %v3324
  %v3477 = vmul.f32 %v3153, %v3328
  %v3478 = vmul.f32 %v3152, %v3332
  %v3479 = vmul.f32 %v3151, %v3336
  %v3480 = vmul.f32 %v3150, %v3340
  %v3481 = vmul.f32 %v3149, %v3344
  %v3482 = vmul.f32 %v3148, %v3348
  %v3483 = vmul.f32 %v3147, %v3352
  %v3484 = vmul.f32 %v3146, %v3356
  %v3485 = vmul.f32 %v3145, %v3360
  %v3486 = vmul.f32 %v3144, %v3364
  %v3487 = vmul.f32 %v3143, %v3368
  %v3488 = vmul.f32 %v3142, %v3372
  %v3489 = vmul.f32 %v3141, %v3376
  %v3490 = vmul.f32 %v3140, %v3380
  %v3491 = vmul.f32 %v3139, %v3384
  %v3492 = vmul.f32 %v3138, %v3388
  %v3493 = vmul.f32 %v3137, %v3392
  %v3494 = vmul.f32 %v3136, %v3396
  %v3495 = vmul.f32 %v3135, %v3400
  %v3496 = vmul.f32 %v3134, %v3404
  %v3497 = vmul.f32 %v3133, %v3408
  %v3498 = vmul.f32 %v3132, %v3412
  %v3499 = vmul.f32 %v3131, %v3416
  %v3500 = vmul.f32 %v3130, %v3420
  %v3501 = vmul.f32 %v3129, %v3424
  %v3502 = vmul.f32 %v3128, %v3428
  %v3503 = vmul.f32 %v3127, %v3432
  %v3504 = vmul.f32 %v3126, %v3436
  %v3505 = vmul.f32 %v3125, %v3440
  %v3506 = vld [vmem:[%s2 + $0x4] sm:$0x1]
  %v3507 = vlaneseq
  %v3508 = vshrl.u32 %v3507, 7
  %v3509 = vsub.s32 0, %v3508
  %v3510 = vrot.slane %v3506, %v3509
  %v3511 = vmul.f32 %v3442, %v3510
  %v3512 = vmul.f32 %v3443, %v3510
  %v3513 = vmul.f32 %v3444, %v3510
  %v3514 = vmul.f32 %v3445, %v3510
  %v3515 = vmul.f32 %v3446, %v3510
  %v3516 = vmul.f32 %v3447, %v3510
  %v3517 = vmul.f32 %v3448, %v3510
  %v3518 = vmul.f32 %v3449, %v3510
  %v3519 = vmul.f32 %v3450, %v3510
  %v3520 = vmul.f32 %v3451, %v3510
  %v3521 = vmul.f32 %v3452, %v3510
  %v3522 = vmul.f32 %v3453, %v3510
  %v3523 = vmul.f32 %v3454, %v3510
  %v3524 = vmul.f32 %v3455, %v3510
  %v3525 = vmul.f32 %v3456, %v3510
  %v3526 = vmul.f32 %v3457, %v3510
  %v3527 = vmul.f32 %v3458, %v3510
  %v3528 = vmul.f32 %v3459, %v3510
  %v3529 = vmul.f32 %v3460, %v3510
  %v3530 = vmul.f32 %v3461, %v3510
  %v3531 = vmul.f32 %v3462, %v3510
  %v3532 = vmul.f32 %v3463, %v3510
  %v3533 = vmul.f32 %v3464, %v3510
  %v3534 = vmul.f32 %v3465, %v3510
  %v3535 = vmul.f32 %v3466, %v3510
  %v3536 = vmul.f32 %v3467, %v3510
  %v3537 = vmul.f32 %v3468, %v3510
  %v3538 = vmul.f32 %v3469, %v3510
  %v3539 = vmul.f32 %v3470, %v3510
  %v3540 = vmul.f32 %v3471, %v3510
  %v3541 = vmul.f32 %v3472, %v3510
  %v3542 = vmul.f32 %v3473, %v3510
  %v3543 = vmul.f32 %v3474, %v3510
  %v3544 = vmul.f32 %v3475, %v3510
  %v3545 = vmul.f32 %v3476, %v3510
  %v3546 = vmul.f32 %v3477, %v3510
  %v3547 = vmul.f32 %v3478, %v3510
  %v3548 = vmul.f32 %v3479, %v3510
  %v3549 = vmul.f32 %v3480, %v3510
  %v3550 = vmul.f32 %v3481, %v3510
  %v3551 = vmul.f32 %v3482, %v3510
  %v3552 = vmul.f32 %v3483, %v3510
  %v3553 = vmul.f32 %v3484, %v3510
  %v3554 = vmul.f32 %v3485, %v3510
  %v3555 = vmul.f32 %v3486, %v3510
  %v3556 = vmul.f32 %v3487, %v3510
  %v3557 = vmul.f32 %v3488, %v3510
  %v3558 = vmul.f32 %v3489, %v3510
  %v3559 = vmul.f32 %v3490, %v3510
  %v3560 = vmul.f32 %v3491, %v3510
  %v3561 = vmul.f32 %v3492, %v3510
  %v3562 = vmul.f32 %v3493, %v3510
  %v3563 = vmul.f32 %v3494, %v3510
  %v3564 = vmul.f32 %v3495, %v3510
  %v3565 = vmul.f32 %v3496, %v3510
  %v3566 = vmul.f32 %v3497, %v3510
  %v3567 = vmul.f32 %v3498, %v3510
  %v3568 = vmul.f32 %v3499, %v3510
  %v3569 = vmul.f32 %v3500, %v3510
  %v3570 = vmul.f32 %v3501, %v3510
  %v3571 = vmul.f32 %v3502, %v3510
  %v3572 = vmul.f32 %v3503, %v3510
  %v3573 = vmul.f32 %v3504, %v3510
  %v3574 = vmul.f32 %v3505, %v3510
  %v3575 = vadd.f32 %v2993, %v3511
  %v3576 = vadd.f32 %v2994, %v3512
  %v3577 = vadd.f32 %v2995, %v3513
  %v3578 = vadd.f32 %v2996, %v3514
  %v3579 = vadd.f32 %v2997, %v3515
  %v3580 = vadd.f32 %v2998, %v3516
  %v3581 = vadd.f32 %v2999, %v3517
  %v3582 = vadd.f32 %v3000, %v3518
  %v3583 = vadd.f32 %v3001, %v3519
  %v3584 = vadd.f32 %v3002, %v3520
  %v3585 = vadd.f32 %v3003, %v3521
  %v3586 = vadd.f32 %v3004, %v3522
  %v3587 = vadd.f32 %v3005, %v3523
  %v3588 = vadd.f32 %v3006, %v3524
  %v3589 = vadd.f32 %v3007, %v3525
  %v3590 = vadd.f32 %v3008, %v3526
  %v3591 = vadd.f32 %v3009, %v3527
  %v3592 = vadd.f32 %v3010, %v3528
  %v3593 = vadd.f32 %v3011, %v3529
  %v3594 = vadd.f32 %v3012, %v3530
  %v3595 = vadd.f32 %v3013, %v3531
  %v3596 = vadd.f32 %v3014, %v3532
  %v3597 = vadd.f32 %v3015, %v3533
  %v3598 = vadd.f32 %v3016, %v3534
  %v3599 = vadd.f32 %v3017, %v3535
  %v3600 = vadd.f32 %v3018, %v3536
  %v3601 = vadd.f32 %v3019, %v3537
  %v3602 = vadd.f32 %v3020, %v3538
  %v3603 = vadd.f32 %v3021, %v3539
  %v3604 = vadd.f32 %v3022, %v3540
  %v3605 = vadd.f32 %v3023, %v3541
  %v3606 = vadd.f32 %v3024, %v3542
  %v3607 = vadd.f32 %v3025, %v3543
  %v3608 = vadd.f32 %v3026, %v3544
  %v3609 = vadd.f32 %v3027, %v3545
  %v3610 = vadd.f32 %v3028, %v3546
  %v3611 = vadd.f32 %v3029, %v3547
  %v3612 = vadd.f32 %v3030, %v3548
  %v3613 = vadd.f32 %v3031, %v3549
  %v3614 = vadd.f32 %v3032, %v3550
  %v3615 = vadd.f32 %v3033, %v3551
  %v3616 = vadd.f32 %v3034, %v3552
  %v3617 = vadd.f32 %v3035, %v3553
  %v3618 = vadd.f32 %v3036, %v3554
  %v3619 = vadd.f32 %v3037, %v3555
  %v3620 = vadd.f32 %v3038, %v3556
  %v3621 = vadd.f32 %v3039, %v3557
  %v3622 = vadd.f32 %v3040, %v3558
  %v3623 = vadd.f32 %v3041, %v3559
  %v3624 = vadd.f32 %v3042, %v3560
  %v3625 = vadd.f32 %v3043, %v3561
  %v3626 = vadd.f32 %v3044, %v3562
  %v3627 = vadd.f32 %v3045, %v3563
  %v3628 = vadd.f32 %v3046, %v3564
  %v3629 = vadd.f32 %v3047, %v3565
  %v3630 = vadd.f32 %v3048, %v3566
  %v3631 = vadd.f32 %v3049, %v3567
  %v3632 = vadd.f32 %v3050, %v3568
  %v3633 = vadd.f32 %v3051, %v3569
  %v3634 = vadd.f32 %v3052, %v3570
  %v3635 = vadd.f32 %v3053, %v3571
  %v3636 = vadd.f32 %v3054, %v3572
  %v3637 = vadd.f32 %v3055, %v3573
  %v3638 = vadd.f32 %v3056, %v3574
  %3639 = vset.pattern.permute.xlu0 5
  %3640 = vperm.xlu0 %3639, %v1312
  %v3641 = vpop.permute.xlu0 %3640
  %3643 = vset.pattern.permute.xlu0 5
  %3644 = vperm.xlu0 %3643, %v1313
  %v3645 = vpop.permute.xlu0 %3644
  %3647 = vset.pattern.permute.xlu0 5
  %3648 = vperm.xlu0 %3647, %v1314
  %v3649 = vpop.permute.xlu0 %3648
  %3651 = vset.pattern.permute.xlu0 5
  %3652 = vperm.xlu0 %3651, %v1315
  %v3653 = vpop.permute.xlu0 %3652
  %3655 = vset.pattern.permute.xlu0 5
  %3656 = vperm.xlu0 %3655, %v1316
  %v3657 = vpop.permute.xlu0 %3656
  %3659 = vset.pattern.permute.xlu0 5
  %3660 = vperm.xlu0 %3659, %v1317
  %v3661 = vpop.permute.xlu0 %3660
  %3663 = vset.pattern.permute.xlu0 5
  %3664 = vperm.xlu0 %3663, %v1318
  %v3665 = vpop.permute.xlu0 %3664
  %3667 = vset.pattern.permute.xlu0 5
  %3668 = vperm.xlu0 %3667, %v1319
  %v3669 = vpop.permute.xlu0 %3668
  %3671 = vset.pattern.permute.xlu0 5
  %3672 = vperm.xlu0 %3671, %v1320
  %v3673 = vpop.permute.xlu0 %3672
  %3675 = vset.pattern.permute.xlu0 5
  %3676 = vperm.xlu0 %3675, %v1321
  %v3677 = vpop.permute.xlu0 %3676
  %3679 = vset.pattern.permute.xlu0 5
  %3680 = vperm.xlu0 %3679, %v1322
  %v3681 = vpop.permute.xlu0 %3680
  %3683 = vset.pattern.permute.xlu0 5
  %3684 = vperm.xlu0 %3683, %v1323
  %v3685 = vpop.permute.xlu0 %3684
  %3687 = vset.pattern.permute.xlu0 5
  %3688 = vperm.xlu0 %3687, %v1324
  %v3689 = vpop.permute.xlu0 %3688
  %3691 = vset.pattern.permute.xlu0 5
  %3692 = vperm.xlu0 %3691, %v1325
  %v3693 = vpop.permute.xlu0 %3692
  %3695 = vset.pattern.permute.xlu0 5
  %3696 = vperm.xlu0 %3695, %v1326
  %v3697 = vpop.permute.xlu0 %3696
  %3699 = vset.pattern.permute.xlu0 5
  %3700 = vperm.xlu0 %3699, %v1327
  %v3701 = vpop.permute.xlu0 %3700
  %3703 = vset.pattern.permute.xlu0 5
  %3704 = vperm.xlu0 %3703, %v1328
  %v3705 = vpop.permute.xlu0 %3704
  %3707 = vset.pattern.permute.xlu0 5
  %3708 = vperm.xlu0 %3707, %v1329
  %v3709 = vpop.permute.xlu0 %3708
  %3711 = vset.pattern.permute.xlu0 5
  %3712 = vperm.xlu0 %3711, %v1330
  %v3713 = vpop.permute.xlu0 %3712
  %3715 = vset.pattern.permute.xlu0 5
  %3716 = vperm.xlu0 %3715, %v1331
  %v3717 = vpop.permute.xlu0 %3716
  %3719 = vset.pattern.permute.xlu0 5
  %3720 = vperm.xlu0 %3719, %v1332
  %v3721 = vpop.permute.xlu0 %3720
  %3723 = vset.pattern.permute.xlu0 5
  %3724 = vperm.xlu0 %3723, %v1333
  %v3725 = vpop.permute.xlu0 %3724
  %3727 = vset.pattern.permute.xlu0 5
  %3728 = vperm.xlu0 %3727, %v1334
  %v3729 = vpop.permute.xlu0 %3728
  %3731 = vset.pattern.permute.xlu0 5
  %3732 = vperm.xlu0 %3731, %v1335
  %v3733 = vpop.permute.xlu0 %3732
  %3735 = vset.pattern.permute.xlu0 5
  %3736 = vperm.xlu0 %3735, %v1336
  %v3737 = vpop.permute.xlu0 %3736
  %3739 = vset.pattern.permute.xlu0 5
  %3740 = vperm.xlu0 %3739, %v1337
  %v3741 = vpop.permute.xlu0 %3740
  %3743 = vset.pattern.permute.xlu0 5
  %3744 = vperm.xlu0 %3743, %v1338
  %v3745 = vpop.permute.xlu0 %3744
  %3747 = vset.pattern.permute.xlu0 5
  %3748 = vperm.xlu0 %3747, %v1339
  %v3749 = vpop.permute.xlu0 %3748
  %3751 = vset.pattern.permute.xlu0 5
  %3752 = vperm.xlu0 %3751, %v1340
  %v3753 = vpop.permute.xlu0 %3752
  %3755 = vset.pattern.permute.xlu0 5
  %3756 = vperm.xlu0 %3755, %v1341
  %v3757 = vpop.permute.xlu0 %3756
  %3759 = vset.pattern.permute.xlu0 5
  %3760 = vperm.xlu0 %3759, %v1342
  %v3761 = vpop.permute.xlu0 %3760
  %3763 = vset.pattern.permute.xlu0 5
  %3764 = vperm.xlu0 %3763, %v1343
  %v3765 = vpop.permute.xlu0 %3764
  %3767 = vset.pattern.permute.xlu0 5
  %3768 = vperm.xlu0 %3767, %v1344
  %v3769 = vpop.permute.xlu0 %3768
  %3771 = vset.pattern.permute.xlu0 5
  %3772 = vperm.xlu0 %3771, %v1345
  %v3773 = vpop.permute.xlu0 %3772
  %3775 = vset.pattern.permute.xlu0 5
  %3776 = vperm.xlu0 %3775, %v1346
  %v3777 = vpop.permute.xlu0 %3776
  %3779 = vset.pattern.permute.xlu0 5
  %3780 = vperm.xlu0 %3779, %v1347
  %v3781 = vpop.permute.xlu0 %3780
  %3783 = vset.pattern.permute.xlu0 5
  %3784 = vperm.xlu0 %3783, %v1348
  %v3785 = vpop.permute.xlu0 %3784
  %3787 = vset.pattern.permute.xlu0 5
  %3788 = vperm.xlu0 %3787, %v1349
  %v3789 = vpop.permute.xlu0 %3788
  %3791 = vset.pattern.permute.xlu0 5
  %3792 = vperm.xlu0 %3791, %v1350
  %v3793 = vpop.permute.xlu0 %3792
  %3795 = vset.pattern.permute.xlu0 5
  %3796 = vperm.xlu0 %3795, %v1351
  %v3797 = vpop.permute.xlu0 %3796
  %3799 = vset.pattern.permute.xlu0 5
  %3800 = vperm.xlu0 %3799, %v1352
  %v3801 = vpop.permute.xlu0 %3800
  %3803 = vset.pattern.permute.xlu0 5
  %3804 = vperm.xlu0 %3803, %v1353
  %v3805 = vpop.permute.xlu0 %3804
  %3807 = vset.pattern.permute.xlu0 5
  %3808 = vperm.xlu0 %3807, %v1354
  %v3809 = vpop.permute.xlu0 %3808
  %3811 = vset.pattern.permute.xlu0 5
  %3812 = vperm.xlu0 %3811, %v1355
  %v3813 = vpop.permute.xlu0 %3812
  %3815 = vset.pattern.permute.xlu0 5
  %3816 = vperm.xlu0 %3815, %v1356
  %v3817 = vpop.permute.xlu0 %3816
  %3819 = vset.pattern.permute.xlu0 5
  %3820 = vperm.xlu0 %3819, %v1357
  %v3821 = vpop.permute.xlu0 %3820
  %3823 = vset.pattern.permute.xlu0 5
  %3824 = vperm.xlu0 %3823, %v1358
  %v3825 = vpop.permute.xlu0 %3824
  %3827 = vset.pattern.permute.xlu0 5
  %3828 = vperm.xlu0 %3827, %v1359
  %v3829 = vpop.permute.xlu0 %3828
  %3831 = vset.pattern.permute.xlu0 5
  %3832 = vperm.xlu0 %3831, %v1360
  %v3833 = vpop.permute.xlu0 %3832
  %3835 = vset.pattern.permute.xlu0 5
  %3836 = vperm.xlu0 %3835, %v1361
  %v3837 = vpop.permute.xlu0 %3836
  %3839 = vset.pattern.permute.xlu0 5
  %3840 = vperm.xlu0 %3839, %v1362
  %v3841 = vpop.permute.xlu0 %3840
  %3843 = vset.pattern.permute.xlu0 5
  %3844 = vperm.xlu0 %3843, %v1363
  %v3845 = vpop.permute.xlu0 %3844
  %3847 = vset.pattern.permute.xlu0 5
  %3848 = vperm.xlu0 %3847, %v1364
  %v3849 = vpop.permute.xlu0 %3848
  %3851 = vset.pattern.permute.xlu0 5
  %3852 = vperm.xlu0 %3851, %v1365
  %v3853 = vpop.permute.xlu0 %3852
  %3855 = vset.pattern.permute.xlu0 5
  %3856 = vperm.xlu0 %3855, %v1366
  %v3857 = vpop.permute.xlu0 %3856
  %3859 = vset.pattern.permute.xlu0 5
  %3860 = vperm.xlu0 %3859, %v1367
  %v3861 = vpop.permute.xlu0 %3860
  %3863 = vset.pattern.permute.xlu0 5
  %3864 = vperm.xlu0 %3863, %v1368
  %v3865 = vpop.permute.xlu0 %3864
  %3867 = vset.pattern.permute.xlu0 5
  %3868 = vperm.xlu0 %3867, %v1369
  %v3869 = vpop.permute.xlu0 %3868
  %3871 = vset.pattern.permute.xlu0 5
  %3872 = vperm.xlu0 %3871, %v1370
  %v3873 = vpop.permute.xlu0 %3872
  %3875 = vset.pattern.permute.xlu0 5
  %3876 = vperm.xlu0 %3875, %v1371
  %v3877 = vpop.permute.xlu0 %3876
  %3879 = vset.pattern.permute.xlu0 5
  %3880 = vperm.xlu0 %3879, %v1372
  %v3881 = vpop.permute.xlu0 %3880
  %3883 = vset.pattern.permute.xlu0 5
  %3884 = vperm.xlu0 %3883, %v1373
  %v3885 = vpop.permute.xlu0 %3884
  %3887 = vset.pattern.permute.xlu0 5
  %3888 = vperm.xlu0 %3887, %v1374
  %v3889 = vpop.permute.xlu0 %3888
  %3891 = vset.pattern.permute.xlu0 5
  %3892 = vperm.xlu0 %3891, %v1375
  %v3893 = vpop.permute.xlu0 %3892
  %v3895 = vmul.f32 %v1110, %v3641
  %v3896 = vmul.f32 %v1111, %v3645
  %v3897 = vmul.f32 %v1048, %v3649
  %v3898 = vmul.f32 %v1049, %v3653
  %v3899 = vmul.f32 %v1050, %v3657
  %v3900 = vmul.f32 %v1051, %v3661
  %v3901 = vmul.f32 %v1052, %v3665
  %v3902 = vmul.f32 %v1053, %v3669
  %v3903 = vmul.f32 %v1054, %v3673
  %v3904 = vmul.f32 %v1055, %v3677
  %v3905 = vmul.f32 %v1056, %v3681
  %v3906 = vmul.f32 %v1057, %v3685
  %v3907 = vmul.f32 %v1058, %v3689
  %v3908 = vmul.f32 %v1059, %v3693
  %v3909 = vmul.f32 %v1060, %v3697
  %v3910 = vmul.f32 %v1061, %v3701
  %v3911 = vmul.f32 %v1062, %v3705
  %v3912 = vmul.f32 %v1063, %v3709
  %v3913 = vmul.f32 %v1064, %v3713
  %v3914 = vmul.f32 %v1065, %v3717
  %v3915 = vmul.f32 %v1066, %v3721
  %v3916 = vmul.f32 %v1067, %v3725
  %v3917 = vmul.f32 %v1068, %v3729
  %v3918 = vmul.f32 %v1069, %v3733
  %v3919 = vmul.f32 %v1070, %v3737
  %v3920 = vmul.f32 %v1071, %v3741
  %v3921 = vmul.f32 %v1072, %v3745
  %v3922 = vmul.f32 %v1073, %v3749
  %v3923 = vmul.f32 %v1074, %v3753
  %v3924 = vmul.f32 %v1075, %v3757
  %v3925 = vmul.f32 %v1076, %v3761
  %v3926 = vmul.f32 %v1077, %v3765
  %v3927 = vmul.f32 %v1078, %v3769
  %v3928 = vmul.f32 %v1079, %v3773
  %v3929 = vmul.f32 %v1080, %v3777
  %v3930 = vmul.f32 %v1081, %v3781
  %v3931 = vmul.f32 %v1082, %v3785
  %v3932 = vmul.f32 %v1083, %v3789
  %v3933 = vmul.f32 %v1084, %v3793
  %v3934 = vmul.f32 %v1085, %v3797
  %v3935 = vmul.f32 %v1086, %v3801
  %v3936 = vmul.f32 %v1087, %v3805
  %v3937 = vmul.f32 %v1088, %v3809
  %v3938 = vmul.f32 %v1089, %v3813
  %v3939 = vmul.f32 %v1090, %v3817
  %v3940 = vmul.f32 %v1091, %v3821
  %v3941 = vmul.f32 %v1092, %v3825
  %v3942 = vmul.f32 %v1093, %v3829
  %v3943 = vmul.f32 %v1094, %v3833
  %v3944 = vmul.f32 %v1095, %v3837
  %v3945 = vmul.f32 %v1096, %v3841
  %v3946 = vmul.f32 %v1097, %v3845
  %v3947 = vmul.f32 %v1098, %v3849
  %v3948 = vmul.f32 %v1099, %v3853
  %v3949 = vmul.f32 %v1100, %v3857
  %v3950 = vmul.f32 %v1101, %v3861
  %v3951 = vmul.f32 %v1102, %v3865
  %v3952 = vmul.f32 %v1103, %v3869
  %v3953 = vmul.f32 %v1104, %v3873
  %v3954 = vmul.f32 %v1105, %v3877
  %v3955 = vmul.f32 %v1106, %v3881
  %v3956 = vmul.f32 %v1107, %v3885
  %v3957 = vmul.f32 %v1108, %v3889
  %v3958 = vmul.f32 %v1109, %v3893
  %v3959 = vld [vmem:[%s2 + $0x5] sm:$0x1]
  %v3960 = vlaneseq
  %v3961 = vshrl.u32 %v3960, 7
  %v3962 = vsub.s32 0, %v3961
  %v3963 = vrot.slane %v3959, %v3962
  %v3964 = vmul.f32 %v3895, %v3963
  %v3965 = vmul.f32 %v3896, %v3963
  %v3966 = vmul.f32 %v3897, %v3963
  %v3967 = vmul.f32 %v3898, %v3963
  %v3968 = vmul.f32 %v3899, %v3963
  %v3969 = vmul.f32 %v3900, %v3963
  %v3970 = vmul.f32 %v3901, %v3963
  %v3971 = vmul.f32 %v3902, %v3963
  %v3972 = vmul.f32 %v3903, %v3963
  %v3973 = vmul.f32 %v3904, %v3963
  %v3974 = vmul.f32 %v3905, %v3963
  %v3975 = vmul.f32 %v3906, %v3963
  %v3976 = vmul.f32 %v3907, %v3963
  %v3977 = vmul.f32 %v3908, %v3963
  %v3978 = vmul.f32 %v3909, %v3963
  %v3979 = vmul.f32 %v3910, %v3963
  %v3980 = vmul.f32 %v3911, %v3963
  %v3981 = vmul.f32 %v3912, %v3963
  %v3982 = vmul.f32 %v3913, %v3963
  %v3983 = vmul.f32 %v3914, %v3963
  %v3984 = vmul.f32 %v3915, %v3963
  %v3985 = vmul.f32 %v3916, %v3963
  %v3986 = vmul.f32 %v3917, %v3963
  %v3987 = vmul.f32 %v3918, %v3963
  %v3988 = vmul.f32 %v3919, %v3963
  %v3989 = vmul.f32 %v3920, %v3963
  %v3990 = vmul.f32 %v3921, %v3963
  %v3991 = vmul.f32 %v3922, %v3963
  %v3992 = vmul.f32 %v3923, %v3963
  %v3993 = vmul.f32 %v3924, %v3963
  %v3994 = vmul.f32 %v3925, %v3963
  %v3995 = vmul.f32 %v3926, %v3963
  %v3996 = vmul.f32 %v3927, %v3963
  %v3997 = vmul.f32 %v3928, %v3963
  %v3998 = vmul.f32 %v3929, %v3963
  %v3999 = vmul.f32 %v3930, %v3963
  %v4000 = vmul.f32 %v3931, %v3963
  %v4001 = vmul.f32 %v3932, %v3963
  %v4002 = vmul.f32 %v3933, %v3963
  %v4003 = vmul.f32 %v3934, %v3963
  %v4004 = vmul.f32 %v3935, %v3963
  %v4005 = vmul.f32 %v3936, %v3963
  %v4006 = vmul.f32 %v3937, %v3963
  %v4007 = vmul.f32 %v3938, %v3963
  %v4008 = vmul.f32 %v3939, %v3963
  %v4009 = vmul.f32 %v3940, %v3963
  %v4010 = vmul.f32 %v3941, %v3963
  %v4011 = vmul.f32 %v3942, %v3963
  %v4012 = vmul.f32 %v3943, %v3963
  %v4013 = vmul.f32 %v3944, %v3963
  %v4014 = vmul.f32 %v3945, %v3963
  %v4015 = vmul.f32 %v3946, %v3963
  %v4016 = vmul.f32 %v3947, %v3963
  %v4017 = vmul.f32 %v3948, %v3963
  %v4018 = vmul.f32 %v3949, %v3963
  %v4019 = vmul.f32 %v3950, %v3963
  %v4020 = vmul.f32 %v3951, %v3963
  %v4021 = vmul.f32 %v3952, %v3963
  %v4022 = vmul.f32 %v3953, %v3963
  %v4023 = vmul.f32 %v3954, %v3963
  %v4024 = vmul.f32 %v3955, %v3963
  %v4025 = vmul.f32 %v3956, %v3963
  %v4026 = vmul.f32 %v3957, %v3963
  %v4027 = vmul.f32 %v3958, %v3963
  %v4028 = vadd.f32 %v3575, %v3964
  %v4029 = vadd.f32 %v3576, %v3965
  %v4030 = vadd.f32 %v3577, %v3966
  %v4031 = vadd.f32 %v3578, %v3967
  %v4032 = vadd.f32 %v3579, %v3968
  %v4033 = vadd.f32 %v3580, %v3969
  %v4034 = vadd.f32 %v3581, %v3970
  %v4035 = vadd.f32 %v3582, %v3971
  %v4036 = vadd.f32 %v3583, %v3972
  %v4037 = vadd.f32 %v3584, %v3973
  %v4038 = vadd.f32 %v3585, %v3974
  %v4039 = vadd.f32 %v3586, %v3975
  %v4040 = vadd.f32 %v3587, %v3976
  %v4041 = vadd.f32 %v3588, %v3977
  %v4042 = vadd.f32 %v3589, %v3978
  %v4043 = vadd.f32 %v3590, %v3979
  %v4044 = vadd.f32 %v3591, %v3980
  %v4045 = vadd.f32 %v3592, %v3981
  %v4046 = vadd.f32 %v3593, %v3982
  %v4047 = vadd.f32 %v3594, %v3983
  %v4048 = vadd.f32 %v3595, %v3984
  %v4049 = vadd.f32 %v3596, %v3985
  %v4050 = vadd.f32 %v3597, %v3986
  %v4051 = vadd.f32 %v3598, %v3987
  %v4052 = vadd.f32 %v3599, %v3988
  %v4053 = vadd.f32 %v3600, %v3989
  %v4054 = vadd.f32 %v3601, %v3990
  %v4055 = vadd.f32 %v3602, %v3991
  %v4056 = vadd.f32 %v3603, %v3992
  %v4057 = vadd.f32 %v3604, %v3993
  %v4058 = vadd.f32 %v3605, %v3994
  %v4059 = vadd.f32 %v3606, %v3995
  %v4060 = vadd.f32 %v3607, %v3996
  %v4061 = vadd.f32 %v3608, %v3997
  %v4062 = vadd.f32 %v3609, %v3998
  %v4063 = vadd.f32 %v3610, %v3999
  %v4064 = vadd.f32 %v3611, %v4000
  %v4065 = vadd.f32 %v3612, %v4001
  %v4066 = vadd.f32 %v3613, %v4002
  %v4067 = vadd.f32 %v3614, %v4003
  %v4068 = vadd.f32 %v3615, %v4004
  %v4069 = vadd.f32 %v3616, %v4005
  %v4070 = vadd.f32 %v3617, %v4006
  %v4071 = vadd.f32 %v3618, %v4007
  %v4072 = vadd.f32 %v3619, %v4008
  %v4073 = vadd.f32 %v3620, %v4009
  %v4074 = vadd.f32 %v3621, %v4010
  %v4075 = vadd.f32 %v3622, %v4011
  %v4076 = vadd.f32 %v3623, %v4012
  %v4077 = vadd.f32 %v3624, %v4013
  %v4078 = vadd.f32 %v3625, %v4014
  %v4079 = vadd.f32 %v3626, %v4015
  %v4080 = vadd.f32 %v3627, %v4016
  %v4081 = vadd.f32 %v3628, %v4017
  %v4082 = vadd.f32 %v3629, %v4018
  %v4083 = vadd.f32 %v3630, %v4019
  %v4084 = vadd.f32 %v3631, %v4020
  %v4085 = vadd.f32 %v3632, %v4021
  %v4086 = vadd.f32 %v3633, %v4022
  %v4087 = vadd.f32 %v3634, %v4023
  %v4088 = vadd.f32 %v3635, %v4024
  %v4089 = vadd.f32 %v3636, %v4025
  %v4090 = vadd.f32 %v3637, %v4026
  %v4091 = vadd.f32 %v3638, %v4027
  %v4092 = vrot.slane %v1048, 6
  %v4093 = vrot.slane %v1049, 6
  %v4094 = vrot.slane %v1050, 6
  %v4095 = vrot.slane %v1051, 6
  %v4096 = vrot.slane %v1052, 6
  %v4097 = vrot.slane %v1053, 6
  %v4098 = vrot.slane %v1054, 6
  %v4099 = vrot.slane %v1055, 6
  %v4100 = vrot.slane %v1056, 6
  %v4101 = vrot.slane %v1057, 6
  %v4102 = vrot.slane %v1058, 6
  %v4103 = vrot.slane %v1059, 6
  %v4104 = vrot.slane %v1060, 6
  %v4105 = vrot.slane %v1061, 6
  %v4106 = vrot.slane %v1062, 6
  %v4107 = vrot.slane %v1063, 6
  %v4108 = vrot.slane %v1064, 6
  %v4109 = vrot.slane %v1065, 6
  %v4110 = vrot.slane %v1066, 6
  %v4111 = vrot.slane %v1067, 6
  %v4112 = vrot.slane %v1068, 6
  %v4113 = vrot.slane %v1069, 6
  %v4114 = vrot.slane %v1070, 6
  %v4115 = vrot.slane %v1071, 6
  %v4116 = vrot.slane %v1072, 6
  %v4117 = vrot.slane %v1073, 6
  %v4118 = vrot.slane %v1074, 6
  %v4119 = vrot.slane %v1075, 6
  %v4120 = vrot.slane %v1076, 6
  %v4121 = vrot.slane %v1077, 6
  %v4122 = vrot.slane %v1078, 6
  %v4123 = vrot.slane %v1079, 6
  %v4124 = vrot.slane %v1080, 6
  %v4125 = vrot.slane %v1081, 6
  %v4126 = vrot.slane %v1082, 6
  %v4127 = vrot.slane %v1083, 6
  %v4128 = vrot.slane %v1084, 6
  %v4129 = vrot.slane %v1085, 6
  %v4130 = vrot.slane %v1086, 6
  %v4131 = vrot.slane %v1087, 6
  %v4132 = vrot.slane %v1088, 6
  %v4133 = vrot.slane %v1089, 6
  %v4134 = vrot.slane %v1090, 6
  %v4135 = vrot.slane %v1091, 6
  %v4136 = vrot.slane %v1092, 6
  %v4137 = vrot.slane %v1093, 6
  %v4138 = vrot.slane %v1094, 6
  %v4139 = vrot.slane %v1095, 6
  %v4140 = vrot.slane %v1096, 6
  %v4141 = vrot.slane %v1097, 6
  %v4142 = vrot.slane %v1098, 6
  %v4143 = vrot.slane %v1099, 6
  %v4144 = vrot.slane %v1100, 6
  %v4145 = vrot.slane %v1101, 6
  %v4146 = vrot.slane %v1102, 6
  %v4147 = vrot.slane %v1103, 6
  %v4148 = vrot.slane %v1104, 6
  %v4149 = vrot.slane %v1105, 6
  %v4150 = vrot.slane %v1106, 6
  %v4151 = vrot.slane %v1107, 6
  %v4152 = vrot.slane %v1108, 6
  %v4153 = vrot.slane %v1109, 6
  %v4154 = vrot.slane %v1110, 6
  %v4155 = vrot.slane %v1111, 6
  %vm4156 = vcmp.lt.s32.totalorder %v1246, 2
  %v4157 = vsel %vm4156, %v4154, %v4155
  %v4158 = vsel %vm4156, %v4153, %v4154
  %v4159 = vsel %vm4156, %v4152, %v4153
  %v4160 = vsel %vm4156, %v4151, %v4152
  %v4161 = vsel %vm4156, %v4150, %v4151
  %v4162 = vsel %vm4156, %v4149, %v4150
  %v4163 = vsel %vm4156, %v4148, %v4149
  %v4164 = vsel %vm4156, %v4147, %v4148
  %v4165 = vsel %vm4156, %v4146, %v4147
  %v4166 = vsel %vm4156, %v4145, %v4146
  %v4167 = vsel %vm4156, %v4144, %v4145
  %v4168 = vsel %vm4156, %v4143, %v4144
  %v4169 = vsel %vm4156, %v4142, %v4143
  %v4170 = vsel %vm4156, %v4141, %v4142
  %v4171 = vsel %vm4156, %v4140, %v4141
  %v4172 = vsel %vm4156, %v4139, %v4140
  %v4173 = vsel %vm4156, %v4138, %v4139
  %v4174 = vsel %vm4156, %v4137, %v4138
  %v4175 = vsel %vm4156, %v4136, %v4137
  %v4176 = vsel %vm4156, %v4135, %v4136
  %v4177 = vsel %vm4156, %v4134, %v4135
  %v4178 = vsel %vm4156, %v4133, %v4134
  %v4179 = vsel %vm4156, %v4132, %v4133
  %v4180 = vsel %vm4156, %v4131, %v4132
  %v4181 = vsel %vm4156, %v4130, %v4131
  %v4182 = vsel %vm4156, %v4129, %v4130
  %v4183 = vsel %vm4156, %v4128, %v4129
  %v4184 = vsel %vm4156, %v4127, %v4128
  %v4185 = vsel %vm4156, %v4126, %v4127
  %v4186 = vsel %vm4156, %v4125, %v4126
  %v4187 = vsel %vm4156, %v4124, %v4125
  %v4188 = vsel %vm4156, %v4123, %v4124
  %v4189 = vsel %vm4156, %v4122, %v4123
  %v4190 = vsel %vm4156, %v4121, %v4122
  %v4191 = vsel %vm4156, %v4120, %v4121
  %v4192 = vsel %vm4156, %v4119, %v4120
  %v4193 = vsel %vm4156, %v4118, %v4119
  %v4194 = vsel %vm4156, %v4117, %v4118
  %v4195 = vsel %vm4156, %v4116, %v4117
  %v4196 = vsel %vm4156, %v4115, %v4116
  %v4197 = vsel %vm4156, %v4114, %v4115
  %v4198 = vsel %vm4156, %v4113, %v4114
  %v4199 = vsel %vm4156, %v4112, %v4113
  %v4200 = vsel %vm4156, %v4111, %v4112
  %v4201 = vsel %vm4156, %v4110, %v4111
  %v4202 = vsel %vm4156, %v4109, %v4110
  %v4203 = vsel %vm4156, %v4108, %v4109
  %v4204 = vsel %vm4156, %v4107, %v4108
  %v4205 = vsel %vm4156, %v4106, %v4107
  %v4206 = vsel %vm4156, %v4105, %v4106
  %v4207 = vsel %vm4156, %v4104, %v4105
  %v4208 = vsel %vm4156, %v4103, %v4104
  %v4209 = vsel %vm4156, %v4102, %v4103
  %v4210 = vsel %vm4156, %v4101, %v4102
  %v4211 = vsel %vm4156, %v4100, %v4101
  %v4212 = vsel %vm4156, %v4099, %v4100
  %v4213 = vsel %vm4156, %v4098, %v4099
  %v4214 = vsel %vm4156, %v4097, %v4098
  %v4215 = vsel %vm4156, %v4096, %v4097
  %v4216 = vsel %vm4156, %v4095, %v4096
  %v4217 = vsel %vm4156, %v4094, %v4095
  %v4218 = vsel %vm4156, %v4093, %v4094
  %v4219 = vsel %vm4156, %v4092, %v4093
  %v4220 = vsel %vm4156, %v4155, %v4092
  %4221 = vset.pattern.permute.xlu0 6
  %4222 = vperm.xlu0 %4221, %v1312
  %v4223 = vpop.permute.xlu0 %4222
  %4225 = vset.pattern.permute.xlu0 6
  %4226 = vperm.xlu0 %4225, %v1313
  %v4227 = vpop.permute.xlu0 %4226
  %4229 = vset.pattern.permute.xlu0 6
  %4230 = vperm.xlu0 %4229, %v1314
  %v4231 = vpop.permute.xlu0 %4230
  %4233 = vset.pattern.permute.xlu0 6
  %4234 = vperm.xlu0 %4233, %v1315
  %v4235 = vpop.permute.xlu0 %4234
  %4237 = vset.pattern.permute.xlu0 6
  %4238 = vperm.xlu0 %4237, %v1316
  %v4239 = vpop.permute.xlu0 %4238
  %4241 = vset.pattern.permute.xlu0 6
  %4242 = vperm.xlu0 %4241, %v1317
  %v4243 = vpop.permute.xlu0 %4242
  %4245 = vset.pattern.permute.xlu0 6
  %4246 = vperm.xlu0 %4245, %v1318
  %v4247 = vpop.permute.xlu0 %4246
  %4249 = vset.pattern.permute.xlu0 6
  %4250 = vperm.xlu0 %4249, %v1319
  %v4251 = vpop.permute.xlu0 %4250
  %4253 = vset.pattern.permute.xlu0 6
  %4254 = vperm.xlu0 %4253, %v1320
  %v4255 = vpop.permute.xlu0 %4254
  %4257 = vset.pattern.permute.xlu0 6
  %4258 = vperm.xlu0 %4257, %v1321
  %v4259 = vpop.permute.xlu0 %4258
  %4261 = vset.pattern.permute.xlu0 6
  %4262 = vperm.xlu0 %4261, %v1322
  %v4263 = vpop.permute.xlu0 %4262
  %4265 = vset.pattern.permute.xlu0 6
  %4266 = vperm.xlu0 %4265, %v1323
  %v4267 = vpop.permute.xlu0 %4266
  %4269 = vset.pattern.permute.xlu0 6
  %4270 = vperm.xlu0 %4269, %v1324
  %v4271 = vpop.permute.xlu0 %4270
  %4273 = vset.pattern.permute.xlu0 6
  %4274 = vperm.xlu0 %4273, %v1325
  %v4275 = vpop.permute.xlu0 %4274
  %4277 = vset.pattern.permute.xlu0 6
  %4278 = vperm.xlu0 %4277, %v1326
  %v4279 = vpop.permute.xlu0 %4278
  %4281 = vset.pattern.permute.xlu0 6
  %4282 = vperm.xlu0 %4281, %v1327
  %v4283 = vpop.permute.xlu0 %4282
  %4285 = vset.pattern.permute.xlu0 6
  %4286 = vperm.xlu0 %4285, %v1328
  %v4287 = vpop.permute.xlu0 %4286
  %4289 = vset.pattern.permute.xlu0 6
  %4290 = vperm.xlu0 %4289, %v1329
  %v4291 = vpop.permute.xlu0 %4290
  %4293 = vset.pattern.permute.xlu0 6
  %4294 = vperm.xlu0 %4293, %v1330
  %v4295 = vpop.permute.xlu0 %4294
  %4297 = vset.pattern.permute.xlu0 6
  %4298 = vperm.xlu0 %4297, %v1331
  %v4299 = vpop.permute.xlu0 %4298
  %4301 = vset.pattern.permute.xlu0 6
  %4302 = vperm.xlu0 %4301, %v1332
  %v4303 = vpop.permute.xlu0 %4302
  %4305 = vset.pattern.permute.xlu0 6
  %4306 = vperm.xlu0 %4305, %v1333
  %v4307 = vpop.permute.xlu0 %4306
  %4309 = vset.pattern.permute.xlu0 6
  %4310 = vperm.xlu0 %4309, %v1334
  %v4311 = vpop.permute.xlu0 %4310
  %4313 = vset.pattern.permute.xlu0 6
  %4314 = vperm.xlu0 %4313, %v1335
  %v4315 = vpop.permute.xlu0 %4314
  %4317 = vset.pattern.permute.xlu0 6
  %4318 = vperm.xlu0 %4317, %v1336
  %v4319 = vpop.permute.xlu0 %4318
  %4321 = vset.pattern.permute.xlu0 6
  %4322 = vperm.xlu0 %4321, %v1337
  %v4323 = vpop.permute.xlu0 %4322
  %4325 = vset.pattern.permute.xlu0 6
  %4326 = vperm.xlu0 %4325, %v1338
  %v4327 = vpop.permute.xlu0 %4326
  %4329 = vset.pattern.permute.xlu0 6
  %4330 = vperm.xlu0 %4329, %v1339
  %v4331 = vpop.permute.xlu0 %4330
  %4333 = vset.pattern.permute.xlu0 6
  %4334 = vperm.xlu0 %4333, %v1340
  %v4335 = vpop.permute.xlu0 %4334
  %4337 = vset.pattern.permute.xlu0 6
  %4338 = vperm.xlu0 %4337, %v1341
  %v4339 = vpop.permute.xlu0 %4338
  %4341 = vset.pattern.permute.xlu0 6
  %4342 = vperm.xlu0 %4341, %v1342
  %v4343 = vpop.permute.xlu0 %4342
  %4345 = vset.pattern.permute.xlu0 6
  %4346 = vperm.xlu0 %4345, %v1343
  %v4347 = vpop.permute.xlu0 %4346
  %4349 = vset.pattern.permute.xlu0 6
  %4350 = vperm.xlu0 %4349, %v1344
  %v4351 = vpop.permute.xlu0 %4350
  %4353 = vset.pattern.permute.xlu0 6
  %4354 = vperm.xlu0 %4353, %v1345
  %v4355 = vpop.permute.xlu0 %4354
  %4357 = vset.pattern.permute.xlu0 6
  %4358 = vperm.xlu0 %4357, %v1346
  %v4359 = vpop.permute.xlu0 %4358
  %4361 = vset.pattern.permute.xlu0 6
  %4362 = vperm.xlu0 %4361, %v1347
  %v4363 = vpop.permute.xlu0 %4362
  %4365 = vset.pattern.permute.xlu0 6
  %4366 = vperm.xlu0 %4365, %v1348
  %v4367 = vpop.permute.xlu0 %4366
  %4369 = vset.pattern.permute.xlu0 6
  %4370 = vperm.xlu0 %4369, %v1349
  %v4371 = vpop.permute.xlu0 %4370
  %4373 = vset.pattern.permute.xlu0 6
  %4374 = vperm.xlu0 %4373, %v1350
  %v4375 = vpop.permute.xlu0 %4374
  %4377 = vset.pattern.permute.xlu0 6
  %4378 = vperm.xlu0 %4377, %v1351
  %v4379 = vpop.permute.xlu0 %4378
  %4381 = vset.pattern.permute.xlu0 6
  %4382 = vperm.xlu0 %4381, %v1352
  %v4383 = vpop.permute.xlu0 %4382
  %4385 = vset.pattern.permute.xlu0 6
  %4386 = vperm.xlu0 %4385, %v1353
  %v4387 = vpop.permute.xlu0 %4386
  %4389 = vset.pattern.permute.xlu0 6
  %4390 = vperm.xlu0 %4389, %v1354
  %v4391 = vpop.permute.xlu0 %4390
  %4393 = vset.pattern.permute.xlu0 6
  %4394 = vperm.xlu0 %4393, %v1355
  %v4395 = vpop.permute.xlu0 %4394
  %4397 = vset.pattern.permute.xlu0 6
  %4398 = vperm.xlu0 %4397, %v1356
  %v4399 = vpop.permute.xlu0 %4398
  %4401 = vset.pattern.permute.xlu0 6
  %4402 = vperm.xlu0 %4401, %v1357
  %v4403 = vpop.permute.xlu0 %4402
  %4405 = vset.pattern.permute.xlu0 6
  %4406 = vperm.xlu0 %4405, %v1358
  %v4407 = vpop.permute.xlu0 %4406
  %4409 = vset.pattern.permute.xlu0 6
  %4410 = vperm.xlu0 %4409, %v1359
  %v4411 = vpop.permute.xlu0 %4410
  %4413 = vset.pattern.permute.xlu0 6
  %4414 = vperm.xlu0 %4413, %v1360
  %v4415 = vpop.permute.xlu0 %4414
  %4417 = vset.pattern.permute.xlu0 6
  %4418 = vperm.xlu0 %4417, %v1361
  %v4419 = vpop.permute.xlu0 %4418
  %4421 = vset.pattern.permute.xlu0 6
  %4422 = vperm.xlu0 %4421, %v1362
  %v4423 = vpop.permute.xlu0 %4422
  %4425 = vset.pattern.permute.xlu0 6
  %4426 = vperm.xlu0 %4425, %v1363
  %v4427 = vpop.permute.xlu0 %4426
  %4429 = vset.pattern.permute.xlu0 6
  %4430 = vperm.xlu0 %4429, %v1364
  %v4431 = vpop.permute.xlu0 %4430
  %4433 = vset.pattern.permute.xlu0 6
  %4434 = vperm.xlu0 %4433, %v1365
  %v4435 = vpop.permute.xlu0 %4434
  %4437 = vset.pattern.permute.xlu0 6
  %4438 = vperm.xlu0 %4437, %v1366
  %v4439 = vpop.permute.xlu0 %4438
  %4441 = vset.pattern.permute.xlu0 6
  %4442 = vperm.xlu0 %4441, %v1367
  %v4443 = vpop.permute.xlu0 %4442
  %4445 = vset.pattern.permute.xlu0 6
  %4446 = vperm.xlu0 %4445, %v1368
  %v4447 = vpop.permute.xlu0 %4446
  %4449 = vset.pattern.permute.xlu0 6
  %4450 = vperm.xlu0 %4449, %v1369
  %v4451 = vpop.permute.xlu0 %4450
  %4453 = vset.pattern.permute.xlu0 6
  %4454 = vperm.xlu0 %4453, %v1370
  %v4455 = vpop.permute.xlu0 %4454
  %4457 = vset.pattern.permute.xlu0 6
  %4458 = vperm.xlu0 %4457, %v1371
  %v4459 = vpop.permute.xlu0 %4458
  %4461 = vset.pattern.permute.xlu0 6
  %4462 = vperm.xlu0 %4461, %v1372
  %v4463 = vpop.permute.xlu0 %4462
  %4465 = vset.pattern.permute.xlu0 6
  %4466 = vperm.xlu0 %4465, %v1373
  %v4467 = vpop.permute.xlu0 %4466
  %4469 = vset.pattern.permute.xlu0 6
  %4470 = vperm.xlu0 %4469, %v1374
  %v4471 = vpop.permute.xlu0 %4470
  %4473 = vset.pattern.permute.xlu0 6
  %4474 = vperm.xlu0 %4473, %v1375
  %v4475 = vpop.permute.xlu0 %4474
  %v4477 = vmul.f32 %v4157, %v4223
  %v4478 = vmul.f32 %v4220, %v4227
  %v4479 = vmul.f32 %v4219, %v4231
  %v4480 = vmul.f32 %v4218, %v4235
  %v4481 = vmul.f32 %v4217, %v4239
  %v4482 = vmul.f32 %v4216, %v4243
  %v4483 = vmul.f32 %v4215, %v4247
  %v4484 = vmul.f32 %v4214, %v4251
  %v4485 = vmul.f32 %v4213, %v4255
  %v4486 = vmul.f32 %v4212, %v4259
  %v4487 = vmul.f32 %v4211, %v4263
  %v4488 = vmul.f32 %v4210, %v4267
  %v4489 = vmul.f32 %v4209, %v4271
  %v4490 = vmul.f32 %v4208, %v4275
  %v4491 = vmul.f32 %v4207, %v4279
  %v4492 = vmul.f32 %v4206, %v4283
  %v4493 = vmul.f32 %v4205, %v4287
  %v4494 = vmul.f32 %v4204, %v4291
  %v4495 = vmul.f32 %v4203, %v4295
  %v4496 = vmul.f32 %v4202, %v4299
  %v4497 = vmul.f32 %v4201, %v4303
  %v4498 = vmul.f32 %v4200, %v4307
  %v4499 = vmul.f32 %v4199, %v4311
  %v4500 = vmul.f32 %v4198, %v4315
  %v4501 = vmul.f32 %v4197, %v4319
  %v4502 = vmul.f32 %v4196, %v4323
  %v4503 = vmul.f32 %v4195, %v4327
  %v4504 = vmul.f32 %v4194, %v4331
  %v4505 = vmul.f32 %v4193, %v4335
  %v4506 = vmul.f32 %v4192, %v4339
  %v4507 = vmul.f32 %v4191, %v4343
  %v4508 = vmul.f32 %v4190, %v4347
  %v4509 = vmul.f32 %v4189, %v4351
  %v4510 = vmul.f32 %v4188, %v4355
  %v4511 = vmul.f32 %v4187, %v4359
  %v4512 = vmul.f32 %v4186, %v4363
  %v4513 = vmul.f32 %v4185, %v4367
  %v4514 = vmul.f32 %v4184, %v4371
  %v4515 = vmul.f32 %v4183, %v4375
  %v4516 = vmul.f32 %v4182, %v4379
  %v4517 = vmul.f32 %v4181, %v4383
  %v4518 = vmul.f32 %v4180, %v4387
  %v4519 = vmul.f32 %v4179, %v4391
  %v4520 = vmul.f32 %v4178, %v4395
  %v4521 = vmul.f32 %v4177, %v4399
  %v4522 = vmul.f32 %v4176, %v4403
  %v4523 = vmul.f32 %v4175, %v4407
  %v4524 = vmul.f32 %v4174, %v4411
  %v4525 = vmul.f32 %v4173, %v4415
  %v4526 = vmul.f32 %v4172, %v4419
  %v4527 = vmul.f32 %v4171, %v4423
  %v4528 = vmul.f32 %v4170, %v4427
  %v4529 = vmul.f32 %v4169, %v4431
  %v4530 = vmul.f32 %v4168, %v4435
  %v4531 = vmul.f32 %v4167, %v4439
  %v4532 = vmul.f32 %v4166, %v4443
  %v4533 = vmul.f32 %v4165, %v4447
  %v4534 = vmul.f32 %v4164, %v4451
  %v4535 = vmul.f32 %v4163, %v4455
  %v4536 = vmul.f32 %v4162, %v4459
  %v4537 = vmul.f32 %v4161, %v4463
  %v4538 = vmul.f32 %v4160, %v4467
  %v4539 = vmul.f32 %v4159, %v4471
  %v4540 = vmul.f32 %v4158, %v4475
  %v4541 = vld [vmem:[%s2 + $0x6] sm:$0x1]
  %v4542 = vlaneseq
  %v4543 = vshrl.u32 %v4542, 7
  %v4544 = vsub.s32 0, %v4543
  %v4545 = vrot.slane %v4541, %v4544
  %v4546 = vmul.f32 %v4477, %v4545
  %v4547 = vmul.f32 %v4478, %v4545
  %v4548 = vmul.f32 %v4479, %v4545
  %v4549 = vmul.f32 %v4480, %v4545
  %v4550 = vmul.f32 %v4481, %v4545
  %v4551 = vmul.f32 %v4482, %v4545
  %v4552 = vmul.f32 %v4483, %v4545
  %v4553 = vmul.f32 %v4484, %v4545
  %v4554 = vmul.f32 %v4485, %v4545
  %v4555 = vmul.f32 %v4486, %v4545
  %v4556 = vmul.f32 %v4487, %v4545
  %v4557 = vmul.f32 %v4488, %v4545
  %v4558 = vmul.f32 %v4489, %v4545
  %v4559 = vmul.f32 %v4490, %v4545
  %v4560 = vmul.f32 %v4491, %v4545
  %v4561 = vmul.f32 %v4492, %v4545
  %v4562 = vmul.f32 %v4493, %v4545
  %v4563 = vmul.f32 %v4494, %v4545
  %v4564 = vmul.f32 %v4495, %v4545
  %v4565 = vmul.f32 %v4496, %v4545
  %v4566 = vmul.f32 %v4497, %v4545
  %v4567 = vmul.f32 %v4498, %v4545
  %v4568 = vmul.f32 %v4499, %v4545
  %v4569 = vmul.f32 %v4500, %v4545
  %v4570 = vmul.f32 %v4501, %v4545
  %v4571 = vmul.f32 %v4502, %v4545
  %v4572 = vmul.f32 %v4503, %v4545
  %v4573 = vmul.f32 %v4504, %v4545
  %v4574 = vmul.f32 %v4505, %v4545
  %v4575 = vmul.f32 %v4506, %v4545
  %v4576 = vmul.f32 %v4507, %v4545
  %v4577 = vmul.f32 %v4508, %v4545
  %v4578 = vmul.f32 %v4509, %v4545
  %v4579 = vmul.f32 %v4510, %v4545
  %v4580 = vmul.f32 %v4511, %v4545
  %v4581 = vmul.f32 %v4512, %v4545
  %v4582 = vmul.f32 %v4513, %v4545
  %v4583 = vmul.f32 %v4514, %v4545
  %v4584 = vmul.f32 %v4515, %v4545
  %v4585 = vmul.f32 %v4516, %v4545
  %v4586 = vmul.f32 %v4517, %v4545
  %v4587 = vmul.f32 %v4518, %v4545
  %v4588 = vmul.f32 %v4519, %v4545
  %v4589 = vmul.f32 %v4520, %v4545
  %v4590 = vmul.f32 %v4521, %v4545
  %v4591 = vmul.f32 %v4522, %v4545
  %v4592 = vmul.f32 %v4523, %v4545
  %v4593 = vmul.f32 %v4524, %v4545
  %v4594 = vmul.f32 %v4525, %v4545
  %v4595 = vmul.f32 %v4526, %v4545
  %v4596 = vmul.f32 %v4527, %v4545
  %v4597 = vmul.f32 %v4528, %v4545
  %v4598 = vmul.f32 %v4529, %v4545
  %v4599 = vmul.f32 %v4530, %v4545
  %v4600 = vmul.f32 %v4531, %v4545
  %v4601 = vmul.f32 %v4532, %v4545
  %v4602 = vmul.f32 %v4533, %v4545
  %v4603 = vmul.f32 %v4534, %v4545
  %v4604 = vmul.f32 %v4535, %v4545
  %v4605 = vmul.f32 %v4536, %v4545
  %v4606 = vmul.f32 %v4537, %v4545
  %v4607 = vmul.f32 %v4538, %v4545
  %v4608 = vmul.f32 %v4539, %v4545
  %v4609 = vmul.f32 %v4540, %v4545
  %v4610 = vadd.f32 %v4028, %v4546
  %v4611 = vadd.f32 %v4029, %v4547
  %v4612 = vadd.f32 %v4030, %v4548
  %v4613 = vadd.f32 %v4031, %v4549
  %v4614 = vadd.f32 %v4032, %v4550
  %v4615 = vadd.f32 %v4033, %v4551
  %v4616 = vadd.f32 %v4034, %v4552
  %v4617 = vadd.f32 %v4035, %v4553
  %v4618 = vadd.f32 %v4036, %v4554
  %v4619 = vadd.f32 %v4037, %v4555
  %v4620 = vadd.f32 %v4038, %v4556
  %v4621 = vadd.f32 %v4039, %v4557
  %v4622 = vadd.f32 %v4040, %v4558
  %v4623 = vadd.f32 %v4041, %v4559
  %v4624 = vadd.f32 %v4042, %v4560
  %v4625 = vadd.f32 %v4043, %v4561
  %v4626 = vadd.f32 %v4044, %v4562
  %v4627 = vadd.f32 %v4045, %v4563
  %v4628 = vadd.f32 %v4046, %v4564
  %v4629 = vadd.f32 %v4047, %v4565
  %v4630 = vadd.f32 %v4048, %v4566
  %v4631 = vadd.f32 %v4049, %v4567
  %v4632 = vadd.f32 %v4050, %v4568
  %v4633 = vadd.f32 %v4051, %v4569
  %v4634 = vadd.f32 %v4052, %v4570
  %v4635 = vadd.f32 %v4053, %v4571
  %v4636 = vadd.f32 %v4054, %v4572
  %v4637 = vadd.f32 %v4055, %v4573
  %v4638 = vadd.f32 %v4056, %v4574
  %v4639 = vadd.f32 %v4057, %v4575
  %v4640 = vadd.f32 %v4058, %v4576
  %v4641 = vadd.f32 %v4059, %v4577
  %v4642 = vadd.f32 %v4060, %v4578
  %v4643 = vadd.f32 %v4061, %v4579
  %v4644 = vadd.f32 %v4062, %v4580
  %v4645 = vadd.f32 %v4063, %v4581
  %v4646 = vadd.f32 %v4064, %v4582
  %v4647 = vadd.f32 %v4065, %v4583
  %v4648 = vadd.f32 %v4066, %v4584
  %v4649 = vadd.f32 %v4067, %v4585
  %v4650 = vadd.f32 %v4068, %v4586
  %v4651 = vadd.f32 %v4069, %v4587
  %v4652 = vadd.f32 %v4070, %v4588
  %v4653 = vadd.f32 %v4071, %v4589
  %v4654 = vadd.f32 %v4072, %v4590
  %v4655 = vadd.f32 %v4073, %v4591
  %v4656 = vadd.f32 %v4074, %v4592
  %v4657 = vadd.f32 %v4075, %v4593
  %v4658 = vadd.f32 %v4076, %v4594
  %v4659 = vadd.f32 %v4077, %v4595
  %v4660 = vadd.f32 %v4078, %v4596
  %v4661 = vadd.f32 %v4079, %v4597
  %v4662 = vadd.f32 %v4080, %v4598
  %v4663 = vadd.f32 %v4081, %v4599
  %v4664 = vadd.f32 %v4082, %v4600
  %v4665 = vadd.f32 %v4083, %v4601
  %v4666 = vadd.f32 %v4084, %v4602
  %v4667 = vadd.f32 %v4085, %v4603
  %v4668 = vadd.f32 %v4086, %v4604
  %v4669 = vadd.f32 %v4087, %v4605
  %v4670 = vadd.f32 %v4088, %v4606
  %v4671 = vadd.f32 %v4089, %v4607
  %v4672 = vadd.f32 %v4090, %v4608
  %v4673 = vadd.f32 %v4091, %v4609
  %v4674 = vrot.slane %v1048, 7
  %v4675 = vrot.slane %v1049, 7
  %v4676 = vrot.slane %v1050, 7
  %v4677 = vrot.slane %v1051, 7
  %v4678 = vrot.slane %v1052, 7
  %v4679 = vrot.slane %v1053, 7
  %v4680 = vrot.slane %v1054, 7
  %v4681 = vrot.slane %v1055, 7
  %v4682 = vrot.slane %v1056, 7
  %v4683 = vrot.slane %v1057, 7
  %v4684 = vrot.slane %v1058, 7
  %v4685 = vrot.slane %v1059, 7
  %v4686 = vrot.slane %v1060, 7
  %v4687 = vrot.slane %v1061, 7
  %v4688 = vrot.slane %v1062, 7
  %v4689 = vrot.slane %v1063, 7
  %v4690 = vrot.slane %v1064, 7
  %v4691 = vrot.slane %v1065, 7
  %v4692 = vrot.slane %v1066, 7
  %v4693 = vrot.slane %v1067, 7
  %v4694 = vrot.slane %v1068, 7
  %v4695 = vrot.slane %v1069, 7
  %v4696 = vrot.slane %v1070, 7
  %v4697 = vrot.slane %v1071, 7
  %v4698 = vrot.slane %v1072, 7
  %v4699 = vrot.slane %v1073, 7
  %v4700 = vrot.slane %v1074, 7
  %v4701 = vrot.slane %v1075, 7
  %v4702 = vrot.slane %v1076, 7
  %v4703 = vrot.slane %v1077, 7
  %v4704 = vrot.slane %v1078, 7
  %v4705 = vrot.slane %v1079, 7
  %v4706 = vrot.slane %v1080, 7
  %v4707 = vrot.slane %v1081, 7
  %v4708 = vrot.slane %v1082, 7
  %v4709 = vrot.slane %v1083, 7
  %v4710 = vrot.slane %v1084, 7
  %v4711 = vrot.slane %v1085, 7
  %v4712 = vrot.slane %v1086, 7
  %v4713 = vrot.slane %v1087, 7
  %v4714 = vrot.slane %v1088, 7
  %v4715 = vrot.slane %v1089, 7
  %v4716 = vrot.slane %v1090, 7
  %v4717 = vrot.slane %v1091, 7
  %v4718 = vrot.slane %v1092, 7
  %v4719 = vrot.slane %v1093, 7
  %v4720 = vrot.slane %v1094, 7
  %v4721 = vrot.slane %v1095, 7
  %v4722 = vrot.slane %v1096, 7
  %v4723 = vrot.slane %v1097, 7
  %v4724 = vrot.slane %v1098, 7
  %v4725 = vrot.slane %v1099, 7
  %v4726 = vrot.slane %v1100, 7
  %v4727 = vrot.slane %v1101, 7
  %v4728 = vrot.slane %v1102, 7
  %v4729 = vrot.slane %v1103, 7
  %v4730 = vrot.slane %v1104, 7
  %v4731 = vrot.slane %v1105, 7
  %v4732 = vrot.slane %v1106, 7
  %v4733 = vrot.slane %v1107, 7
  %v4734 = vrot.slane %v1108, 7
  %v4735 = vrot.slane %v1109, 7
  %v4736 = vrot.slane %v1110, 7
  %v4737 = vrot.slane %v1111, 7
  %vm4738 = vcmp.lt.s32.totalorder %v1246, 1
  %v4739 = vsel %vm4738, %v4736, %v4737
  %v4740 = vsel %vm4738, %v4735, %v4736
  %v4741 = vsel %vm4738, %v4734, %v4735
  %v4742 = vsel %vm4738, %v4733, %v4734
  %v4743 = vsel %vm4738, %v4732, %v4733
  %v4744 = vsel %vm4738, %v4731, %v4732
  %v4745 = vsel %vm4738, %v4730, %v4731
  %v4746 = vsel %vm4738, %v4729, %v4730
  %v4747 = vsel %vm4738, %v4728, %v4729
  %v4748 = vsel %vm4738, %v4727, %v4728
  %v4749 = vsel %vm4738, %v4726, %v4727
  %v4750 = vsel %vm4738, %v4725, %v4726
  %v4751 = vsel %vm4738, %v4724, %v4725
  %v4752 = vsel %vm4738, %v4723, %v4724
  %v4753 = vsel %vm4738, %v4722, %v4723
  %v4754 = vsel %vm4738, %v4721, %v4722
  %v4755 = vsel %vm4738, %v4720, %v4721
  %v4756 = vsel %vm4738, %v4719, %v4720
  %v4757 = vsel %vm4738, %v4718, %v4719
  %v4758 = vsel %vm4738, %v4717, %v4718
  %v4759 = vsel %vm4738, %v4716, %v4717
  %v4760 = vsel %vm4738, %v4715, %v4716
  %v4761 = vsel %vm4738, %v4714, %v4715
  %v4762 = vsel %vm4738, %v4713, %v4714
  %v4763 = vsel %vm4738, %v4712, %v4713
  %v4764 = vsel %vm4738, %v4711, %v4712
  %v4765 = vsel %vm4738, %v4710, %v4711
  %v4766 = vsel %vm4738, %v4709, %v4710
  %v4767 = vsel %vm4738, %v4708, %v4709
  %v4768 = vsel %vm4738, %v4707, %v4708
  %v4769 = vsel %vm4738, %v4706, %v4707
  %v4770 = vsel %vm4738, %v4705, %v4706
  %v4771 = vsel %vm4738, %v4704, %v4705
  %v4772 = vsel %vm4738, %v4703, %v4704
  %v4773 = vsel %vm4738, %v4702, %v4703
  %v4774 = vsel %vm4738, %v4701, %v4702
  %v4775 = vsel %vm4738, %v4700, %v4701
  %v4776 = vsel %vm4738, %v4699, %v4700
  %v4777 = vsel %vm4738, %v4698, %v4699
  %v4778 = vsel %vm4738, %v4697, %v4698
  %v4779 = vsel %vm4738, %v4696, %v4697
  %v4780 = vsel %vm4738, %v4695, %v4696
  %v4781 = vsel %vm4738, %v4694, %v4695
  %v4782 = vsel %vm4738, %v4693, %v4694
  %v4783 = vsel %vm4738, %v4692, %v4693
  %v4784 = vsel %vm4738, %v4691, %v4692
  %v4785 = vsel %vm4738, %v4690, %v4691
  %v4786 = vsel %vm4738, %v4689, %v4690
  %v4787 = vsel %vm4738, %v4688, %v4689
  %v4788 = vsel %vm4738, %v4687, %v4688
  %v4789 = vsel %vm4738, %v4686, %v4687
  %v4790 = vsel %vm4738, %v4685, %v4686
  %v4791 = vsel %vm4738, %v4684, %v4685
  %v4792 = vsel %vm4738, %v4683, %v4684
  %v4793 = vsel %vm4738, %v4682, %v4683
  %v4794 = vsel %vm4738, %v4681, %v4682
  %v4795 = vsel %vm4738, %v4680, %v4681
  %v4796 = vsel %vm4738, %v4679, %v4680
  %v4797 = vsel %vm4738, %v4678, %v4679
  %v4798 = vsel %vm4738, %v4677, %v4678
  %v4799 = vsel %vm4738, %v4676, %v4677
  %v4800 = vsel %vm4738, %v4675, %v4676
  %v4801 = vsel %vm4738, %v4674, %v4675
  %v4802 = vsel %vm4738, %v4737, %v4674
  %4803 = vset.pattern.permute.xlu0 7
  %4804 = vperm.xlu0 %4803, %v1312
  %v4805 = vpop.permute.xlu0 %4804
  %4807 = vset.pattern.permute.xlu0 7
  %4808 = vperm.xlu0 %4807, %v1313
  %v4809 = vpop.permute.xlu0 %4808
  %4811 = vset.pattern.permute.xlu0 7
  %4812 = vperm.xlu0 %4811, %v1314
  %v4813 = vpop.permute.xlu0 %4812
  %4815 = vset.pattern.permute.xlu0 7
  %4816 = vperm.xlu0 %4815, %v1315
  %v4817 = vpop.permute.xlu0 %4816
  %4819 = vset.pattern.permute.xlu0 7
  %4820 = vperm.xlu0 %4819, %v1316
  %v4821 = vpop.permute.xlu0 %4820
  %4823 = vset.pattern.permute.xlu0 7
  %4824 = vperm.xlu0 %4823, %v1317
  %v4825 = vpop.permute.xlu0 %4824
  %4827 = vset.pattern.permute.xlu0 7
  %4828 = vperm.xlu0 %4827, %v1318
  %v4829 = vpop.permute.xlu0 %4828
  %4831 = vset.pattern.permute.xlu0 7
  %4832 = vperm.xlu0 %4831, %v1319
  %v4833 = vpop.permute.xlu0 %4832
  %4835 = vset.pattern.permute.xlu0 7
  %4836 = vperm.xlu0 %4835, %v1320
  %v4837 = vpop.permute.xlu0 %4836
  %4839 = vset.pattern.permute.xlu0 7
  %4840 = vperm.xlu0 %4839, %v1321
  %v4841 = vpop.permute.xlu0 %4840
  %4843 = vset.pattern.permute.xlu0 7
  %4844 = vperm.xlu0 %4843, %v1322
  %v4845 = vpop.permute.xlu0 %4844
  %4847 = vset.pattern.permute.xlu0 7
  %4848 = vperm.xlu0 %4847, %v1323
  %v4849 = vpop.permute.xlu0 %4848
  %4851 = vset.pattern.permute.xlu0 7
  %4852 = vperm.xlu0 %4851, %v1324
  %v4853 = vpop.permute.xlu0 %4852
  %4855 = vset.pattern.permute.xlu0 7
  %4856 = vperm.xlu0 %4855, %v1325
  %v4857 = vpop.permute.xlu0 %4856
  %4859 = vset.pattern.permute.xlu0 7
  %4860 = vperm.xlu0 %4859, %v1326
  %v4861 = vpop.permute.xlu0 %4860
  %4863 = vset.pattern.permute.xlu0 7
  %4864 = vperm.xlu0 %4863, %v1327
  %v4865 = vpop.permute.xlu0 %4864
  %4867 = vset.pattern.permute.xlu0 7
  %4868 = vperm.xlu0 %4867, %v1328
  %v4869 = vpop.permute.xlu0 %4868
  %4871 = vset.pattern.permute.xlu0 7
  %4872 = vperm.xlu0 %4871, %v1329
  %v4873 = vpop.permute.xlu0 %4872
  %4875 = vset.pattern.permute.xlu0 7
  %4876 = vperm.xlu0 %4875, %v1330
  %v4877 = vpop.permute.xlu0 %4876
  %4879 = vset.pattern.permute.xlu0 7
  %4880 = vperm.xlu0 %4879, %v1331
  %v4881 = vpop.permute.xlu0 %4880
  %4883 = vset.pattern.permute.xlu0 7
  %4884 = vperm.xlu0 %4883, %v1332
  %v4885 = vpop.permute.xlu0 %4884
  %4887 = vset.pattern.permute.xlu0 7
  %4888 = vperm.xlu0 %4887, %v1333
  %v4889 = vpop.permute.xlu0 %4888
  %4891 = vset.pattern.permute.xlu0 7
  %4892 = vperm.xlu0 %4891, %v1334
  %v4893 = vpop.permute.xlu0 %4892
  %4895 = vset.pattern.permute.xlu0 7
  %4896 = vperm.xlu0 %4895, %v1335
  %v4897 = vpop.permute.xlu0 %4896
  %4899 = vset.pattern.permute.xlu0 7
  %4900 = vperm.xlu0 %4899, %v1336
  %v4901 = vpop.permute.xlu0 %4900
  %4903 = vset.pattern.permute.xlu0 7
  %4904 = vperm.xlu0 %4903, %v1337
  %v4905 = vpop.permute.xlu0 %4904
  %4907 = vset.pattern.permute.xlu0 7
  %4908 = vperm.xlu0 %4907, %v1338
  %v4909 = vpop.permute.xlu0 %4908
  %4911 = vset.pattern.permute.xlu0 7
  %4912 = vperm.xlu0 %4911, %v1339
  %v4913 = vpop.permute.xlu0 %4912
  %4915 = vset.pattern.permute.xlu0 7
  %4916 = vperm.xlu0 %4915, %v1340
  %v4917 = vpop.permute.xlu0 %4916
  %4919 = vset.pattern.permute.xlu0 7
  %4920 = vperm.xlu0 %4919, %v1341
  %v4921 = vpop.permute.xlu0 %4920
  %4923 = vset.pattern.permute.xlu0 7
  %4924 = vperm.xlu0 %4923, %v1342
  %v4925 = vpop.permute.xlu0 %4924
  %4927 = vset.pattern.permute.xlu0 7
  %4928 = vperm.xlu0 %4927, %v1343
  %v4929 = vpop.permute.xlu0 %4928
  %4931 = vset.pattern.permute.xlu0 7
  %4932 = vperm.xlu0 %4931, %v1344
  %v4933 = vpop.permute.xlu0 %4932
  %4935 = vset.pattern.permute.xlu0 7
  %4936 = vperm.xlu0 %4935, %v1345
  %v4937 = vpop.permute.xlu0 %4936
  %4939 = vset.pattern.permute.xlu0 7
  %4940 = vperm.xlu0 %4939, %v1346
  %v4941 = vpop.permute.xlu0 %4940
  %4943 = vset.pattern.permute.xlu0 7
  %4944 = vperm.xlu0 %4943, %v1347
  %v4945 = vpop.permute.xlu0 %4944
  %4947 = vset.pattern.permute.xlu0 7
  %4948 = vperm.xlu0 %4947, %v1348
  %v4949 = vpop.permute.xlu0 %4948
  %4951 = vset.pattern.permute.xlu0 7
  %4952 = vperm.xlu0 %4951, %v1349
  %v4953 = vpop.permute.xlu0 %4952
  %4955 = vset.pattern.permute.xlu0 7
  %4956 = vperm.xlu0 %4955, %v1350
  %v4957 = vpop.permute.xlu0 %4956
  %4959 = vset.pattern.permute.xlu0 7
  %4960 = vperm.xlu0 %4959, %v1351
  %v4961 = vpop.permute.xlu0 %4960
  %4963 = vset.pattern.permute.xlu0 7
  %4964 = vperm.xlu0 %4963, %v1352
  %v4965 = vpop.permute.xlu0 %4964
  %4967 = vset.pattern.permute.xlu0 7
  %4968 = vperm.xlu0 %4967, %v1353
  %v4969 = vpop.permute.xlu0 %4968
  %4971 = vset.pattern.permute.xlu0 7
  %4972 = vperm.xlu0 %4971, %v1354
  %v4973 = vpop.permute.xlu0 %4972
  %4975 = vset.pattern.permute.xlu0 7
  %4976 = vperm.xlu0 %4975, %v1355
  %v4977 = vpop.permute.xlu0 %4976
  %4979 = vset.pattern.permute.xlu0 7
  %4980 = vperm.xlu0 %4979, %v1356
  %v4981 = vpop.permute.xlu0 %4980
  %4983 = vset.pattern.permute.xlu0 7
  %4984 = vperm.xlu0 %4983, %v1357
  %v4985 = vpop.permute.xlu0 %4984
  %4987 = vset.pattern.permute.xlu0 7
  %4988 = vperm.xlu0 %4987, %v1358
  %v4989 = vpop.permute.xlu0 %4988
  %4991 = vset.pattern.permute.xlu0 7
  %4992 = vperm.xlu0 %4991, %v1359
  %v4993 = vpop.permute.xlu0 %4992
  %4995 = vset.pattern.permute.xlu0 7
  %4996 = vperm.xlu0 %4995, %v1360
  %v4997 = vpop.permute.xlu0 %4996
  %4999 = vset.pattern.permute.xlu0 7
  %5000 = vperm.xlu0 %4999, %v1361
  %v5001 = vpop.permute.xlu0 %5000
  %5003 = vset.pattern.permute.xlu0 7
  %5004 = vperm.xlu0 %5003, %v1362
  %v5005 = vpop.permute.xlu0 %5004
  %5007 = vset.pattern.permute.xlu0 7
  %5008 = vperm.xlu0 %5007, %v1363
  %v5009 = vpop.permute.xlu0 %5008
  %5011 = vset.pattern.permute.xlu0 7
  %5012 = vperm.xlu0 %5011, %v1364
  %v5013 = vpop.permute.xlu0 %5012
  %5015 = vset.pattern.permute.xlu0 7
  %5016 = vperm.xlu0 %5015, %v1365
  %v5017 = vpop.permute.xlu0 %5016
  %5019 = vset.pattern.permute.xlu0 7
  %5020 = vperm.xlu0 %5019, %v1366
  %v5021 = vpop.permute.xlu0 %5020
  %5023 = vset.pattern.permute.xlu0 7
  %5024 = vperm.xlu0 %5023, %v1367
  %v5025 = vpop.permute.xlu0 %5024
  %5027 = vset.pattern.permute.xlu0 7
  %5028 = vperm.xlu0 %5027, %v1368
  %v5029 = vpop.permute.xlu0 %5028
  %5031 = vset.pattern.permute.xlu0 7
  %5032 = vperm.xlu0 %5031, %v1369
  %v5033 = vpop.permute.xlu0 %5032
  %5035 = vset.pattern.permute.xlu0 7
  %5036 = vperm.xlu0 %5035, %v1370
  %v5037 = vpop.permute.xlu0 %5036
  %5039 = vset.pattern.permute.xlu0 7
  %5040 = vperm.xlu0 %5039, %v1371
  %v5041 = vpop.permute.xlu0 %5040
  %5043 = vset.pattern.permute.xlu0 7
  %5044 = vperm.xlu0 %5043, %v1372
  %v5045 = vpop.permute.xlu0 %5044
  %5047 = vset.pattern.permute.xlu0 7
  %5048 = vperm.xlu0 %5047, %v1373
  %v5049 = vpop.permute.xlu0 %5048
  %5051 = vset.pattern.permute.xlu0 7
  %5052 = vperm.xlu0 %5051, %v1374
  %v5053 = vpop.permute.xlu0 %5052
  %5055 = vset.pattern.permute.xlu0 7
  %5056 = vperm.xlu0 %5055, %v1375
  %v5057 = vpop.permute.xlu0 %5056
  %v5059 = vmul.f32 %v4801, %v4805
  %v5060 = vmul.f32 %v4800, %v4809
  %v5061 = vmul.f32 %v4799, %v4813
  %v5062 = vmul.f32 %v4798, %v4817
  %v5063 = vmul.f32 %v4797, %v4821
  %v5064 = vmul.f32 %v4796, %v4825
  %v5065 = vmul.f32 %v4795, %v4829
  %v5066 = vmul.f32 %v4794, %v4833
  %v5067 = vmul.f32 %v4793, %v4837
  %v5068 = vmul.f32 %v4792, %v4841
  %v5069 = vmul.f32 %v4791, %v4845
  %v5070 = vmul.f32 %v4790, %v4849
  %v5071 = vmul.f32 %v4789, %v4853
  %v5072 = vmul.f32 %v4788, %v4857
  %v5073 = vmul.f32 %v4787, %v4861
  %v5074 = vmul.f32 %v4786, %v4865
  %v5075 = vmul.f32 %v4785, %v4869
  %v5076 = vmul.f32 %v4784, %v4873
  %v5077 = vmul.f32 %v4783, %v4877
  %v5078 = vmul.f32 %v4782, %v4881
  %v5079 = vmul.f32 %v4781, %v4885
  %v5080 = vmul.f32 %v4780, %v4889
  %v5081 = vmul.f32 %v4779, %v4893
  %v5082 = vmul.f32 %v4778, %v4897
  %v5083 = vmul.f32 %v4777, %v4901
  %v5084 = vmul.f32 %v4776, %v4905
  %v5085 = vmul.f32 %v4775, %v4909
  %v5086 = vmul.f32 %v4774, %v4913
  %v5087 = vmul.f32 %v4773, %v4917
  %v5088 = vmul.f32 %v4772, %v4921
  %v5089 = vmul.f32 %v4771, %v4925
  %v5090 = vmul.f32 %v4770, %v4929
  %v5091 = vmul.f32 %v4769, %v4933
  %v5092 = vmul.f32 %v4768, %v4937
  %v5093 = vmul.f32 %v4767, %v4941
  %v5094 = vmul.f32 %v4766, %v4945
  %v5095 = vmul.f32 %v4765, %v4949
  %v5096 = vmul.f32 %v4764, %v4953
  %v5097 = vmul.f32 %v4763, %v4957
  %v5098 = vmul.f32 %v4762, %v4961
  %v5099 = vmul.f32 %v4761, %v4965
  %v5100 = vmul.f32 %v4760, %v4969
  %v5101 = vmul.f32 %v4759, %v4973
  %v5102 = vmul.f32 %v4758, %v4977
  %v5103 = vmul.f32 %v4757, %v4981
  %v5104 = vmul.f32 %v4756, %v4985
  %v5105 = vmul.f32 %v4755, %v4989
  %v5106 = vmul.f32 %v4754, %v4993
  %v5107 = vmul.f32 %v4753, %v4997
  %v5108 = vmul.f32 %v4752, %v5001
  %v5109 = vmul.f32 %v4751, %v5005
  %v5110 = vmul.f32 %v4750, %v5009
  %v5111 = vmul.f32 %v4749, %v5013
  %v5112 = vmul.f32 %v4748, %v5017
  %v5113 = vmul.f32 %v4747, %v5021
  %v5114 = vmul.f32 %v4746, %v5025
  %v5115 = vmul.f32 %v4745, %v5029
  %v5116 = vmul.f32 %v4744, %v5033
  %v5117 = vmul.f32 %v4743, %v5037
  %v5118 = vmul.f32 %v4742, %v5041
  %v5119 = vmul.f32 %v4741, %v5045
  %v5120 = vmul.f32 %v4740, %v5049
  %v5121 = vmul.f32 %v4739, %v5053
  %v5122 = vmul.f32 %v4802, %v5057
  %v5123 = vld [vmem:[%s2 + $0x7] sm:$0x1]
  %v5124 = vlaneseq
  %v5125 = vshrl.u32 %v5124, 7
  %v5126 = vsub.s32 0, %v5125
  %v5127 = vrot.slane %v5123, %v5126
  %v5128 = vmul.f32 %v5059, %v5127
  %v5129 = vmul.f32 %v5060, %v5127
  %v5130 = vmul.f32 %v5061, %v5127
  %v5131 = vmul.f32 %v5062, %v5127
  %v5132 = vmul.f32 %v5063, %v5127
  %v5133 = vmul.f32 %v5064, %v5127
  %v5134 = vmul.f32 %v5065, %v5127
  %v5135 = vmul.f32 %v5066, %v5127
  %v5136 = vmul.f32 %v5067, %v5127
  %v5137 = vmul.f32 %v5068, %v5127
  %v5138 = vmul.f32 %v5069, %v5127
  %v5139 = vmul.f32 %v5070, %v5127
  %v5140 = vmul.f32 %v5071, %v5127
  %v5141 = vmul.f32 %v5072, %v5127
  %v5142 = vmul.f32 %v5073, %v5127
  %v5143 = vmul.f32 %v5074, %v5127
  %v5144 = vmul.f32 %v5075, %v5127
  %v5145 = vmul.f32 %v5076, %v5127
  %v5146 = vmul.f32 %v5077, %v5127
  %v5147 = vmul.f32 %v5078, %v5127
  %v5148 = vmul.f32 %v5079, %v5127
  %v5149 = vmul.f32 %v5080, %v5127
  %v5150 = vmul.f32 %v5081, %v5127
  %v5151 = vmul.f32 %v5082, %v5127
  %v5152 = vmul.f32 %v5083, %v5127
  %v5153 = vmul.f32 %v5084, %v5127
  %v5154 = vmul.f32 %v5085, %v5127
  %v5155 = vmul.f32 %v5086, %v5127
  %v5156 = vmul.f32 %v5087, %v5127
  %v5157 = vmul.f32 %v5088, %v5127
  %v5158 = vmul.f32 %v5089, %v5127
  %v5159 = vmul.f32 %v5090, %v5127
  %v5160 = vmul.f32 %v5091, %v5127
  %v5161 = vmul.f32 %v5092, %v5127
  %v5162 = vmul.f32 %v5093, %v5127
  %v5163 = vmul.f32 %v5094, %v5127
  %v5164 = vmul.f32 %v5095, %v5127
  %v5165 = vmul.f32 %v5096, %v5127
  %v5166 = vmul.f32 %v5097, %v5127
  %v5167 = vmul.f32 %v5098, %v5127
  %v5168 = vmul.f32 %v5099, %v5127
  %v5169 = vmul.f32 %v5100, %v5127
  %v5170 = vmul.f32 %v5101, %v5127
  %v5171 = vmul.f32 %v5102, %v5127
  %v5172 = vmul.f32 %v5103, %v5127
  %v5173 = vmul.f32 %v5104, %v5127
  %v5174 = vmul.f32 %v5105, %v5127
  %v5175 = vmul.f32 %v5106, %v5127
  %v5176 = vmul.f32 %v5107, %v5127
  %v5177 = vmul.f32 %v5108, %v5127
  %v5178 = vmul.f32 %v5109, %v5127
  %v5179 = vmul.f32 %v5110, %v5127
  %v5180 = vmul.f32 %v5111, %v5127
  %v5181 = vmul.f32 %v5112, %v5127
  %v5182 = vmul.f32 %v5113, %v5127
  %v5183 = vmul.f32 %v5114, %v5127
  %v5184 = vmul.f32 %v5115, %v5127
  %v5185 = vmul.f32 %v5116, %v5127
  %v5186 = vmul.f32 %v5117, %v5127
  %v5187 = vmul.f32 %v5118, %v5127
  %v5188 = vmul.f32 %v5119, %v5127
  %v5189 = vmul.f32 %v5120, %v5127
  %v5190 = vmul.f32 %v5121, %v5127
  %v5191 = vmul.f32 %v5122, %v5127
  %v5192 = vadd.f32 %v4610, %v5128
  %v5193 = vadd.f32 %v4611, %v5129
  %v5194 = vadd.f32 %v4612, %v5130
  %v5195 = vadd.f32 %v4613, %v5131
  %v5196 = vadd.f32 %v4614, %v5132
  %v5197 = vadd.f32 %v4615, %v5133
  %v5198 = vadd.f32 %v4616, %v5134
  %v5199 = vadd.f32 %v4617, %v5135
  %v5200 = vadd.f32 %v4618, %v5136
  %v5201 = vadd.f32 %v4619, %v5137
  %v5202 = vadd.f32 %v4620, %v5138
  %v5203 = vadd.f32 %v4621, %v5139
  %v5204 = vadd.f32 %v4622, %v5140
  %v5205 = vadd.f32 %v4623, %v5141
  %v5206 = vadd.f32 %v4624, %v5142
  %v5207 = vadd.f32 %v4625, %v5143
  %v5208 = vadd.f32 %v4626, %v5144
  %v5209 = vadd.f32 %v4627, %v5145
  %v5210 = vadd.f32 %v4628, %v5146
  %v5211 = vadd.f32 %v4629, %v5147
  %v5212 = vadd.f32 %v4630, %v5148
  %v5213 = vadd.f32 %v4631, %v5149
  %v5214 = vadd.f32 %v4632, %v5150
  %v5215 = vadd.f32 %v4633, %v5151
  %v5216 = vadd.f32 %v4634, %v5152
  %v5217 = vadd.f32 %v4635, %v5153
  %v5218 = vadd.f32 %v4636, %v5154
  %v5219 = vadd.f32 %v4637, %v5155
  %v5220 = vadd.f32 %v4638, %v5156
  %v5221 = vadd.f32 %v4639, %v5157
  %v5222 = vadd.f32 %v4640, %v5158
  %v5223 = vadd.f32 %v4641, %v5159
  %v5224 = vadd.f32 %v4642, %v5160
  %v5225 = vadd.f32 %v4643, %v5161
  %v5226 = vadd.f32 %v4644, %v5162
  %v5227 = vadd.f32 %v4645, %v5163
  %v5228 = vadd.f32 %v4646, %v5164
  %v5229 = vadd.f32 %v4647, %v5165
  %v5230 = vadd.f32 %v4648, %v5166
  %v5231 = vadd.f32 %v4649, %v5167
  %v5232 = vadd.f32 %v4650, %v5168
  %v5233 = vadd.f32 %v4651, %v5169
  %v5234 = vadd.f32 %v4652, %v5170
  %v5235 = vadd.f32 %v4653, %v5171
  %v5236 = vadd.f32 %v4654, %v5172
  %v5237 = vadd.f32 %v4655, %v5173
  %v5238 = vadd.f32 %v4656, %v5174
  %v5239 = vadd.f32 %v4657, %v5175
  %v5240 = vadd.f32 %v4658, %v5176
  %v5241 = vadd.f32 %v4659, %v5177
  %v5242 = vadd.f32 %v4660, %v5178
  %v5243 = vadd.f32 %v4661, %v5179
  %v5244 = vadd.f32 %v4662, %v5180
  %v5245 = vadd.f32 %v4663, %v5181
  %v5246 = vadd.f32 %v4664, %v5182
  %v5247 = vadd.f32 %v4665, %v5183
  %v5248 = vadd.f32 %v4666, %v5184
  %v5249 = vadd.f32 %v4667, %v5185
  %v5250 = vadd.f32 %v4668, %v5186
  %v5251 = vadd.f32 %v4669, %v5187
  %v5252 = vadd.f32 %v4670, %v5188
  %v5253 = vadd.f32 %v4671, %v5189
  %v5254 = vadd.f32 %v4672, %v5190
  %v5255 = vadd.f32 %v4673, %v5191
  %5256 = vset.pattern.permute.xlu0 8
  %5257 = vperm.xlu0 %5256, %v1312
  %v5258 = vpop.permute.xlu0 %5257
  %5260 = vset.pattern.permute.xlu0 8
  %5261 = vperm.xlu0 %5260, %v1313
  %v5262 = vpop.permute.xlu0 %5261
  %5264 = vset.pattern.permute.xlu0 8
  %5265 = vperm.xlu0 %5264, %v1314
  %v5266 = vpop.permute.xlu0 %5265
  %5268 = vset.pattern.permute.xlu0 8
  %5269 = vperm.xlu0 %5268, %v1315
  %v5270 = vpop.permute.xlu0 %5269
  %5272 = vset.pattern.permute.xlu0 8
  %5273 = vperm.xlu0 %5272, %v1316
  %v5274 = vpop.permute.xlu0 %5273
  %5276 = vset.pattern.permute.xlu0 8
  %5277 = vperm.xlu0 %5276, %v1317
  %v5278 = vpop.permute.xlu0 %5277
  %5280 = vset.pattern.permute.xlu0 8
  %5281 = vperm.xlu0 %5280, %v1318
  %v5282 = vpop.permute.xlu0 %5281
  %5284 = vset.pattern.permute.xlu0 8
  %5285 = vperm.xlu0 %5284, %v1319
  %v5286 = vpop.permute.xlu0 %5285
  %5288 = vset.pattern.permute.xlu0 8
  %5289 = vperm.xlu0 %5288, %v1320
  %v5290 = vpop.permute.xlu0 %5289
  %5292 = vset.pattern.permute.xlu0 8
  %5293 = vperm.xlu0 %5292, %v1321
  %v5294 = vpop.permute.xlu0 %5293
  %5296 = vset.pattern.permute.xlu0 8
  %5297 = vperm.xlu0 %5296, %v1322
  %v5298 = vpop.permute.xlu0 %5297
  %5300 = vset.pattern.permute.xlu0 8
  %5301 = vperm.xlu0 %5300, %v1323
  %v5302 = vpop.permute.xlu0 %5301
  %5304 = vset.pattern.permute.xlu0 8
  %5305 = vperm.xlu0 %5304, %v1324
  %v5306 = vpop.permute.xlu0 %5305
  %5308 = vset.pattern.permute.xlu0 8
  %5309 = vperm.xlu0 %5308, %v1325
  %v5310 = vpop.permute.xlu0 %5309
  %5312 = vset.pattern.permute.xlu0 8
  %5313 = vperm.xlu0 %5312, %v1326
  %v5314 = vpop.permute.xlu0 %5313
  %5316 = vset.pattern.permute.xlu0 8
  %5317 = vperm.xlu0 %5316, %v1327
  %v5318 = vpop.permute.xlu0 %5317
  %5320 = vset.pattern.permute.xlu0 8
  %5321 = vperm.xlu0 %5320, %v1328
  %v5322 = vpop.permute.xlu0 %5321
  %5324 = vset.pattern.permute.xlu0 8
  %5325 = vperm.xlu0 %5324, %v1329
  %v5326 = vpop.permute.xlu0 %5325
  %5328 = vset.pattern.permute.xlu0 8
  %5329 = vperm.xlu0 %5328, %v1330
  %v5330 = vpop.permute.xlu0 %5329
  %5332 = vset.pattern.permute.xlu0 8
  %5333 = vperm.xlu0 %5332, %v1331
  %v5334 = vpop.permute.xlu0 %5333
  %5336 = vset.pattern.permute.xlu0 8
  %5337 = vperm.xlu0 %5336, %v1332
  %v5338 = vpop.permute.xlu0 %5337
  %5340 = vset.pattern.permute.xlu0 8
  %5341 = vperm.xlu0 %5340, %v1333
  %v5342 = vpop.permute.xlu0 %5341
  %5344 = vset.pattern.permute.xlu0 8
  %5345 = vperm.xlu0 %5344, %v1334
  %v5346 = vpop.permute.xlu0 %5345
  %5348 = vset.pattern.permute.xlu0 8
  %5349 = vperm.xlu0 %5348, %v1335
  %v5350 = vpop.permute.xlu0 %5349
  %5352 = vset.pattern.permute.xlu0 8
  %5353 = vperm.xlu0 %5352, %v1336
  %v5354 = vpop.permute.xlu0 %5353
  %5356 = vset.pattern.permute.xlu0 8
  %5357 = vperm.xlu0 %5356, %v1337
  %v5358 = vpop.permute.xlu0 %5357
  %5360 = vset.pattern.permute.xlu0 8
  %5361 = vperm.xlu0 %5360, %v1338
  %v5362 = vpop.permute.xlu0 %5361
  %5364 = vset.pattern.permute.xlu0 8
  %5365 = vperm.xlu0 %5364, %v1339
  %v5366 = vpop.permute.xlu0 %5365
  %5368 = vset.pattern.permute.xlu0 8
  %5369 = vperm.xlu0 %5368, %v1340
  %v5370 = vpop.permute.xlu0 %5369
  %5372 = vset.pattern.permute.xlu0 8
  %5373 = vperm.xlu0 %5372, %v1341
  %v5374 = vpop.permute.xlu0 %5373
  %5376 = vset.pattern.permute.xlu0 8
  %5377 = vperm.xlu0 %5376, %v1342
  %v5378 = vpop.permute.xlu0 %5377
  %5380 = vset.pattern.permute.xlu0 8
  %5381 = vperm.xlu0 %5380, %v1343
  %v5382 = vpop.permute.xlu0 %5381
  %5384 = vset.pattern.permute.xlu0 8
  %5385 = vperm.xlu0 %5384, %v1344
  %v5386 = vpop.permute.xlu0 %5385
  %5388 = vset.pattern.permute.xlu0 8
  %5389 = vperm.xlu0 %5388, %v1345
  %v5390 = vpop.permute.xlu0 %5389
  %5392 = vset.pattern.permute.xlu0 8
  %5393 = vperm.xlu0 %5392, %v1346
  %v5394 = vpop.permute.xlu0 %5393
  %5396 = vset.pattern.permute.xlu0 8
  %5397 = vperm.xlu0 %5396, %v1347
  %v5398 = vpop.permute.xlu0 %5397
  %5400 = vset.pattern.permute.xlu0 8
  %5401 = vperm.xlu0 %5400, %v1348
  %v5402 = vpop.permute.xlu0 %5401
  %5404 = vset.pattern.permute.xlu0 8
  %5405 = vperm.xlu0 %5404, %v1349
  %v5406 = vpop.permute.xlu0 %5405
  %5408 = vset.pattern.permute.xlu0 8
  %5409 = vperm.xlu0 %5408, %v1350
  %v5410 = vpop.permute.xlu0 %5409
  %5412 = vset.pattern.permute.xlu0 8
  %5413 = vperm.xlu0 %5412, %v1351
  %v5414 = vpop.permute.xlu0 %5413
  %5416 = vset.pattern.permute.xlu0 8
  %5417 = vperm.xlu0 %5416, %v1352
  %v5418 = vpop.permute.xlu0 %5417
  %5420 = vset.pattern.permute.xlu0 8
  %5421 = vperm.xlu0 %5420, %v1353
  %v5422 = vpop.permute.xlu0 %5421
  %5424 = vset.pattern.permute.xlu0 8
  %5425 = vperm.xlu0 %5424, %v1354
  %v5426 = vpop.permute.xlu0 %5425
  %5428 = vset.pattern.permute.xlu0 8
  %5429 = vperm.xlu0 %5428, %v1355
  %v5430 = vpop.permute.xlu0 %5429
  %5432 = vset.pattern.permute.xlu0 8
  %5433 = vperm.xlu0 %5432, %v1356
  %v5434 = vpop.permute.xlu0 %5433
  %5436 = vset.pattern.permute.xlu0 8
  %5437 = vperm.xlu0 %5436, %v1357
  %v5438 = vpop.permute.xlu0 %5437
  %5440 = vset.pattern.permute.xlu0 8
  %5441 = vperm.xlu0 %5440, %v1358
  %v5442 = vpop.permute.xlu0 %5441
  %5444 = vset.pattern.permute.xlu0 8
  %5445 = vperm.xlu0 %5444, %v1359
  %v5446 = vpop.permute.xlu0 %5445
  %5448 = vset.pattern.permute.xlu0 8
  %5449 = vperm.xlu0 %5448, %v1360
  %v5450 = vpop.permute.xlu0 %5449
  %5452 = vset.pattern.permute.xlu0 8
  %5453 = vperm.xlu0 %5452, %v1361
  %v5454 = vpop.permute.xlu0 %5453
  %5456 = vset.pattern.permute.xlu0 8
  %5457 = vperm.xlu0 %5456, %v1362
  %v5458 = vpop.permute.xlu0 %5457
  %5460 = vset.pattern.permute.xlu0 8
  %5461 = vperm.xlu0 %5460, %v1363
  %v5462 = vpop.permute.xlu0 %5461
  %5464 = vset.pattern.permute.xlu0 8
  %5465 = vperm.xlu0 %5464, %v1364
  %v5466 = vpop.permute.xlu0 %5465
  %5468 = vset.pattern.permute.xlu0 8
  %5469 = vperm.xlu0 %5468, %v1365
  %v5470 = vpop.permute.xlu0 %5469
  %5472 = vset.pattern.permute.xlu0 8
  %5473 = vperm.xlu0 %5472, %v1366
  %v5474 = vpop.permute.xlu0 %5473
  %5476 = vset.pattern.permute.xlu0 8
  %5477 = vperm.xlu0 %5476, %v1367
  %v5478 = vpop.permute.xlu0 %5477
  %5480 = vset.pattern.permute.xlu0 8
  %5481 = vperm.xlu0 %5480, %v1368
  %v5482 = vpop.permute.xlu0 %5481
  %5484 = vset.pattern.permute.xlu0 8
  %5485 = vperm.xlu0 %5484, %v1369
  %v5486 = vpop.permute.xlu0 %5485
  %5488 = vset.pattern.permute.xlu0 8
  %5489 = vperm.xlu0 %5488, %v1370
  %v5490 = vpop.permute.xlu0 %5489
  %5492 = vset.pattern.permute.xlu0 8
  %5493 = vperm.xlu0 %5492, %v1371
  %v5494 = vpop.permute.xlu0 %5493
  %5496 = vset.pattern.permute.xlu0 8
  %5497 = vperm.xlu0 %5496, %v1372
  %v5498 = vpop.permute.xlu0 %5497
  %5500 = vset.pattern.permute.xlu0 8
  %5501 = vperm.xlu0 %5500, %v1373
  %v5502 = vpop.permute.xlu0 %5501
  %5504 = vset.pattern.permute.xlu0 8
  %5505 = vperm.xlu0 %5504, %v1374
  %v5506 = vpop.permute.xlu0 %5505
  %5508 = vset.pattern.permute.xlu0 8
  %5509 = vperm.xlu0 %5508, %v1375
  %v5510 = vpop.permute.xlu0 %5509
  %v5512 = vmul.f32 %v1050, %v5258
  %v5513 = vmul.f32 %v1051, %v5262
  %v5514 = vmul.f32 %v1052, %v5266
  %v5515 = vmul.f32 %v1053, %v5270
  %v5516 = vmul.f32 %v1054, %v5274
  %v5517 = vmul.f32 %v1055, %v5278
  %v5518 = vmul.f32 %v1056, %v5282
  %v5519 = vmul.f32 %v1057, %v5286
  %v5520 = vmul.f32 %v1058, %v5290
  %v5521 = vmul.f32 %v1059, %v5294
  %v5522 = vmul.f32 %v1060, %v5298
  %v5523 = vmul.f32 %v1061, %v5302
  %v5524 = vmul.f32 %v1062, %v5306
  %v5525 = vmul.f32 %v1063, %v5310
  %v5526 = vmul.f32 %v1064, %v5314
  %v5527 = vmul.f32 %v1065, %v5318
  %v5528 = vmul.f32 %v1066, %v5322
  %v5529 = vmul.f32 %v1067, %v5326
  %v5530 = vmul.f32 %v1068, %v5330
  %v5531 = vmul.f32 %v1069, %v5334
  %v5532 = vmul.f32 %v1070, %v5338
  %v5533 = vmul.f32 %v1071, %v5342
  %v5534 = vmul.f32 %v1072, %v5346
  %v5535 = vmul.f32 %v1073, %v5350
  %v5536 = vmul.f32 %v1074, %v5354
  %v5537 = vmul.f32 %v1075, %v5358
  %v5538 = vmul.f32 %v1076, %v5362
  %v5539 = vmul.f32 %v1077, %v5366
  %v5540 = vmul.f32 %v1078, %v5370
  %v5541 = vmul.f32 %v1079, %v5374
  %v5542 = vmul.f32 %v1080, %v5378
  %v5543 = vmul.f32 %v1081, %v5382
  %v5544 = vmul.f32 %v1082, %v5386
  %v5545 = vmul.f32 %v1083, %v5390
  %v5546 = vmul.f32 %v1084, %v5394
  %v5547 = vmul.f32 %v1085, %v5398
  %v5548 = vmul.f32 %v1086, %v5402
  %v5549 = vmul.f32 %v1087, %v5406
  %v5550 = vmul.f32 %v1088, %v5410
  %v5551 = vmul.f32 %v1089, %v5414
  %v5552 = vmul.f32 %v1090, %v5418
  %v5553 = vmul.f32 %v1091, %v5422
  %v5554 = vmul.f32 %v1092, %v5426
  %v5555 = vmul.f32 %v1093, %v5430
  %v5556 = vmul.f32 %v1094, %v5434
  %v5557 = vmul.f32 %v1095, %v5438
  %v5558 = vmul.f32 %v1096, %v5442
  %v5559 = vmul.f32 %v1097, %v5446
  %v5560 = vmul.f32 %v1098, %v5450
  %v5561 = vmul.f32 %v1099, %v5454
  %v5562 = vmul.f32 %v1100, %v5458
  %v5563 = vmul.f32 %v1101, %v5462
  %v5564 = vmul.f32 %v1102, %v5466
  %v5565 = vmul.f32 %v1103, %v5470
  %v5566 = vmul.f32 %v1104, %v5474
  %v5567 = vmul.f32 %v1105, %v5478
  %v5568 = vmul.f32 %v1106, %v5482
  %v5569 = vmul.f32 %v1107, %v5486
  %v5570 = vmul.f32 %v1108, %v5490
  %v5571 = vmul.f32 %v1109, %v5494
  %v5572 = vmul.f32 %v1110, %v5498
  %v5573 = vmul.f32 %v1111, %v5502
  %v5574 = vmul.f32 %v1048, %v5506
  %v5575 = vmul.f32 %v1049, %v5510
  %v5576 = vld [vmem:[%s2 + $0x8] sm:$0x1]
  %v5577 = vlaneseq
  %v5578 = vshrl.u32 %v5577, 7
  %v5579 = vsub.s32 0, %v5578
  %v5580 = vrot.slane %v5576, %v5579
  %v5581 = vmul.f32 %v5512, %v5580
  %v5582 = vmul.f32 %v5513, %v5580
  %v5583 = vmul.f32 %v5514, %v5580
  %v5584 = vmul.f32 %v5515, %v5580
  %v5585 = vmul.f32 %v5516, %v5580
  %v5586 = vmul.f32 %v5517, %v5580
  %v5587 = vmul.f32 %v5518, %v5580
  %v5588 = vmul.f32 %v5519, %v5580
  %v5589 = vmul.f32 %v5520, %v5580
  %v5590 = vmul.f32 %v5521, %v5580
  %v5591 = vmul.f32 %v5522, %v5580
  %v5592 = vmul.f32 %v5523, %v5580
  %v5593 = vmul.f32 %v5524, %v5580
  %v5594 = vmul.f32 %v5525, %v5580
  %v5595 = vmul.f32 %v5526, %v5580
  %v5596 = vmul.f32 %v5527, %v5580
  %v5597 = vmul.f32 %v5528, %v5580
  %v5598 = vmul.f32 %v5529, %v5580
  %v5599 = vmul.f32 %v5530, %v5580
  %v5600 = vmul.f32 %v5531, %v5580
  %v5601 = vmul.f32 %v5532, %v5580
  %v5602 = vmul.f32 %v5533, %v5580
  %v5603 = vmul.f32 %v5534, %v5580
  %v5604 = vmul.f32 %v5535, %v5580
  %v5605 = vmul.f32 %v5536, %v5580
  %v5606 = vmul.f32 %v5537, %v5580
  %v5607 = vmul.f32 %v5538, %v5580
  %v5608 = vmul.f32 %v5539, %v5580
  %v5609 = vmul.f32 %v5540, %v5580
  %v5610 = vmul.f32 %v5541, %v5580
  %v5611 = vmul.f32 %v5542, %v5580
  %v5612 = vmul.f32 %v5543, %v5580
  %v5613 = vmul.f32 %v5544, %v5580
  %v5614 = vmul.f32 %v5545, %v5580
  %v5615 = vmul.f32 %v5546, %v5580
  %v5616 = vmul.f32 %v5547, %v5580
  %v5617 = vmul.f32 %v5548, %v5580
  %v5618 = vmul.f32 %v5549, %v5580
  %v5619 = vmul.f32 %v5550, %v5580
  %v5620 = vmul.f32 %v5551, %v5580
  %v5621 = vmul.f32 %v5552, %v5580
  %v5622 = vmul.f32 %v5553, %v5580
  %v5623 = vmul.f32 %v5554, %v5580
  %v5624 = vmul.f32 %v5555, %v5580
  %v5625 = vmul.f32 %v5556, %v5580
  %v5626 = vmul.f32 %v5557, %v5580
  %v5627 = vmul.f32 %v5558, %v5580
  %v5628 = vmul.f32 %v5559, %v5580
  %v5629 = vmul.f32 %v5560, %v5580
  %v5630 = vmul.f32 %v5561, %v5580
  %v5631 = vmul.f32 %v5562, %v5580
  %v5632 = vmul.f32 %v5563, %v5580
  %v5633 = vmul.f32 %v5564, %v5580
  %v5634 = vmul.f32 %v5565, %v5580
  %v5635 = vmul.f32 %v5566, %v5580
  %v5636 = vmul.f32 %v5567, %v5580
  %v5637 = vmul.f32 %v5568, %v5580
  %v5638 = vmul.f32 %v5569, %v5580
  %v5639 = vmul.f32 %v5570, %v5580
  %v5640 = vmul.f32 %v5571, %v5580
  %v5641 = vmul.f32 %v5572, %v5580
  %v5642 = vmul.f32 %v5573, %v5580
  %v5643 = vmul.f32 %v5574, %v5580
  %v5644 = vmul.f32 %v5575, %v5580
  %v5645 = vadd.f32 %v5192, %v5581
  %v5646 = vadd.f32 %v5193, %v5582
  %v5647 = vadd.f32 %v5194, %v5583
  %v5648 = vadd.f32 %v5195, %v5584
  %v5649 = vadd.f32 %v5196, %v5585
  %v5650 = vadd.f32 %v5197, %v5586
  %v5651 = vadd.f32 %v5198, %v5587
  %v5652 = vadd.f32 %v5199, %v5588
  %v5653 = vadd.f32 %v5200, %v5589
  %v5654 = vadd.f32 %v5201, %v5590
  %v5655 = vadd.f32 %v5202, %v5591
  %v5656 = vadd.f32 %v5203, %v5592
  %v5657 = vadd.f32 %v5204, %v5593
  %v5658 = vadd.f32 %v5205, %v5594
  %v5659 = vadd.f32 %v5206, %v5595
  %v5660 = vadd.f32 %v5207, %v5596
  %v5661 = vadd.f32 %v5208, %v5597
  %v5662 = vadd.f32 %v5209, %v5598
  %v5663 = vadd.f32 %v5210, %v5599
  %v5664 = vadd.f32 %v5211, %v5600
  %v5665 = vadd.f32 %v5212, %v5601
  %v5666 = vadd.f32 %v5213, %v5602
  %v5667 = vadd.f32 %v5214, %v5603
  %v5668 = vadd.f32 %v5215, %v5604
  %v5669 = vadd.f32 %v5216, %v5605
  %v5670 = vadd.f32 %v5217, %v5606
  %v5671 = vadd.f32 %v5218, %v5607
  %v5672 = vadd.f32 %v5219, %v5608
  %v5673 = vadd.f32 %v5220, %v5609
  %v5674 = vadd.f32 %v5221, %v5610
  %v5675 = vadd.f32 %v5222, %v5611
  %v5676 = vadd.f32 %v5223, %v5612
  %v5677 = vadd.f32 %v5224, %v5613
  %v5678 = vadd.f32 %v5225, %v5614
  %v5679 = vadd.f32 %v5226, %v5615
  %v5680 = vadd.f32 %v5227, %v5616
  %v5681 = vadd.f32 %v5228, %v5617
  %v5682 = vadd.f32 %v5229, %v5618
  %v5683 = vadd.f32 %v5230, %v5619
  %v5684 = vadd.f32 %v5231, %v5620
  %v5685 = vadd.f32 %v5232, %v5621
  %v5686 = vadd.f32 %v5233, %v5622
  %v5687 = vadd.f32 %v5234, %v5623
  %v5688 = vadd.f32 %v5235, %v5624
  %v5689 = vadd.f32 %v5236, %v5625
  %v5690 = vadd.f32 %v5237, %v5626
  %v5691 = vadd.f32 %v5238, %v5627
  %v5692 = vadd.f32 %v5239, %v5628
  %v5693 = vadd.f32 %v5240, %v5629
  %v5694 = vadd.f32 %v5241, %v5630
  %v5695 = vadd.f32 %v5242, %v5631
  %v5696 = vadd.f32 %v5243, %v5632
  %v5697 = vadd.f32 %v5244, %v5633
  %v5698 = vadd.f32 %v5245, %v5634
  %v5699 = vadd.f32 %v5246, %v5635
  %v5700 = vadd.f32 %v5247, %v5636
  %v5701 = vadd.f32 %v5248, %v5637
  %v5702 = vadd.f32 %v5249, %v5638
  %v5703 = vadd.f32 %v5250, %v5639
  %v5704 = vadd.f32 %v5251, %v5640
  %v5705 = vadd.f32 %v5252, %v5641
  %v5706 = vadd.f32 %v5253, %v5642
  %v5707 = vadd.f32 %v5254, %v5643
  %v5708 = vadd.f32 %v5255, %v5644
  %5709 = vset.pattern.permute.xlu0 9
  %5710 = vperm.xlu0 %5709, %v1312
  %v5711 = vpop.permute.xlu0 %5710
  %5713 = vset.pattern.permute.xlu0 9
  %5714 = vperm.xlu0 %5713, %v1313
  %v5715 = vpop.permute.xlu0 %5714
  %5717 = vset.pattern.permute.xlu0 9
  %5718 = vperm.xlu0 %5717, %v1314
  %v5719 = vpop.permute.xlu0 %5718
  %5721 = vset.pattern.permute.xlu0 9
  %5722 = vperm.xlu0 %5721, %v1315
  %v5723 = vpop.permute.xlu0 %5722
  %5725 = vset.pattern.permute.xlu0 9
  %5726 = vperm.xlu0 %5725, %v1316
  %v5727 = vpop.permute.xlu0 %5726
  %5729 = vset.pattern.permute.xlu0 9
  %5730 = vperm.xlu0 %5729, %v1317
  %v5731 = vpop.permute.xlu0 %5730
  %5733 = vset.pattern.permute.xlu0 9
  %5734 = vperm.xlu0 %5733, %v1318
  %v5735 = vpop.permute.xlu0 %5734
  %5737 = vset.pattern.permute.xlu0 9
  %5738 = vperm.xlu0 %5737, %v1319
  %v5739 = vpop.permute.xlu0 %5738
  %5741 = vset.pattern.permute.xlu0 9
  %5742 = vperm.xlu0 %5741, %v1320
  %v5743 = vpop.permute.xlu0 %5742
  %5745 = vset.pattern.permute.xlu0 9
  %5746 = vperm.xlu0 %5745, %v1321
  %v5747 = vpop.permute.xlu0 %5746
  %5749 = vset.pattern.permute.xlu0 9
  %5750 = vperm.xlu0 %5749, %v1322
  %v5751 = vpop.permute.xlu0 %5750
  %5753 = vset.pattern.permute.xlu0 9
  %5754 = vperm.xlu0 %5753, %v1323
  %v5755 = vpop.permute.xlu0 %5754
  %5757 = vset.pattern.permute.xlu0 9
  %5758 = vperm.xlu0 %5757, %v1324
  %v5759 = vpop.permute.xlu0 %5758
  %5761 = vset.pattern.permute.xlu0 9
  %5762 = vperm.xlu0 %5761, %v1325
  %v5763 = vpop.permute.xlu0 %5762
  %5765 = vset.pattern.permute.xlu0 9
  %5766 = vperm.xlu0 %5765, %v1326
  %v5767 = vpop.permute.xlu0 %5766
  %5769 = vset.pattern.permute.xlu0 9
  %5770 = vperm.xlu0 %5769, %v1327
  %v5771 = vpop.permute.xlu0 %5770
  %5773 = vset.pattern.permute.xlu0 9
  %5774 = vperm.xlu0 %5773, %v1328
  %v5775 = vpop.permute.xlu0 %5774
  %5777 = vset.pattern.permute.xlu0 9
  %5778 = vperm.xlu0 %5777, %v1329
  %v5779 = vpop.permute.xlu0 %5778
  %5781 = vset.pattern.permute.xlu0 9
  %5782 = vperm.xlu0 %5781, %v1330
  %v5783 = vpop.permute.xlu0 %5782
  %5785 = vset.pattern.permute.xlu0 9
  %5786 = vperm.xlu0 %5785, %v1331
  %v5787 = vpop.permute.xlu0 %5786
  %5789 = vset.pattern.permute.xlu0 9
  %5790 = vperm.xlu0 %5789, %v1332
  %v5791 = vpop.permute.xlu0 %5790
  %5793 = vset.pattern.permute.xlu0 9
  %5794 = vperm.xlu0 %5793, %v1333
  %v5795 = vpop.permute.xlu0 %5794
  %5797 = vset.pattern.permute.xlu0 9
  %5798 = vperm.xlu0 %5797, %v1334
  %v5799 = vpop.permute.xlu0 %5798
  %5801 = vset.pattern.permute.xlu0 9
  %5802 = vperm.xlu0 %5801, %v1335
  %v5803 = vpop.permute.xlu0 %5802
  %5805 = vset.pattern.permute.xlu0 9
  %5806 = vperm.xlu0 %5805, %v1336
  %v5807 = vpop.permute.xlu0 %5806
  %5809 = vset.pattern.permute.xlu0 9
  %5810 = vperm.xlu0 %5809, %v1337
  %v5811 = vpop.permute.xlu0 %5810
  %5813 = vset.pattern.permute.xlu0 9
  %5814 = vperm.xlu0 %5813, %v1338
  %v5815 = vpop.permute.xlu0 %5814
  %5817 = vset.pattern.permute.xlu0 9
  %5818 = vperm.xlu0 %5817, %v1339
  %v5819 = vpop.permute.xlu0 %5818
  %5821 = vset.pattern.permute.xlu0 9
  %5822 = vperm.xlu0 %5821, %v1340
  %v5823 = vpop.permute.xlu0 %5822
  %5825 = vset.pattern.permute.xlu0 9
  %5826 = vperm.xlu0 %5825, %v1341
  %v5827 = vpop.permute.xlu0 %5826
  %5829 = vset.pattern.permute.xlu0 9
  %5830 = vperm.xlu0 %5829, %v1342
  %v5831 = vpop.permute.xlu0 %5830
  %5833 = vset.pattern.permute.xlu0 9
  %5834 = vperm.xlu0 %5833, %v1343
  %v5835 = vpop.permute.xlu0 %5834
  %5837 = vset.pattern.permute.xlu0 9
  %5838 = vperm.xlu0 %5837, %v1344
  %v5839 = vpop.permute.xlu0 %5838
  %5841 = vset.pattern.permute.xlu0 9
  %5842 = vperm.xlu0 %5841, %v1345
  %v5843 = vpop.permute.xlu0 %5842
  %5845 = vset.pattern.permute.xlu0 9
  %5846 = vperm.xlu0 %5845, %v1346
  %v5847 = vpop.permute.xlu0 %5846
  %5849 = vset.pattern.permute.xlu0 9
  %5850 = vperm.xlu0 %5849, %v1347
  %v5851 = vpop.permute.xlu0 %5850
  %5853 = vset.pattern.permute.xlu0 9
  %5854 = vperm.xlu0 %5853, %v1348
  %v5855 = vpop.permute.xlu0 %5854
  %5857 = vset.pattern.permute.xlu0 9
  %5858 = vperm.xlu0 %5857, %v1349
  %v5859 = vpop.permute.xlu0 %5858
  %5861 = vset.pattern.permute.xlu0 9
  %5862 = vperm.xlu0 %5861, %v1350
  %v5863 = vpop.permute.xlu0 %5862
  %5865 = vset.pattern.permute.xlu0 9
  %5866 = vperm.xlu0 %5865, %v1351
  %v5867 = vpop.permute.xlu0 %5866
  %5869 = vset.pattern.permute.xlu0 9
  %5870 = vperm.xlu0 %5869, %v1352
  %v5871 = vpop.permute.xlu0 %5870
  %5873 = vset.pattern.permute.xlu0 9
  %5874 = vperm.xlu0 %5873, %v1353
  %v5875 = vpop.permute.xlu0 %5874
  %5877 = vset.pattern.permute.xlu0 9
  %5878 = vperm.xlu0 %5877, %v1354
  %v5879 = vpop.permute.xlu0 %5878
  %5881 = vset.pattern.permute.xlu0 9
  %5882 = vperm.xlu0 %5881, %v1355
  %v5883 = vpop.permute.xlu0 %5882
  %5885 = vset.pattern.permute.xlu0 9
  %5886 = vperm.xlu0 %5885, %v1356
  %v5887 = vpop.permute.xlu0 %5886
  %5889 = vset.pattern.permute.xlu0 9
  %5890 = vperm.xlu0 %5889, %v1357
  %v5891 = vpop.permute.xlu0 %5890
  %5893 = vset.pattern.permute.xlu0 9
  %5894 = vperm.xlu0 %5893, %v1358
  %v5895 = vpop.permute.xlu0 %5894
  %5897 = vset.pattern.permute.xlu0 9
  %5898 = vperm.xlu0 %5897, %v1359
  %v5899 = vpop.permute.xlu0 %5898
  %5901 = vset.pattern.permute.xlu0 9
  %5902 = vperm.xlu0 %5901, %v1360
  %v5903 = vpop.permute.xlu0 %5902
  %5905 = vset.pattern.permute.xlu0 9
  %5906 = vperm.xlu0 %5905, %v1361
  %v5907 = vpop.permute.xlu0 %5906
  %5909 = vset.pattern.permute.xlu0 9
  %5910 = vperm.xlu0 %5909, %v1362
  %v5911 = vpop.permute.xlu0 %5910
  %5913 = vset.pattern.permute.xlu0 9
  %5914 = vperm.xlu0 %5913, %v1363
  %v5915 = vpop.permute.xlu0 %5914
  %5917 = vset.pattern.permute.xlu0 9
  %5918 = vperm.xlu0 %5917, %v1364
  %v5919 = vpop.permute.xlu0 %5918
  %5921 = vset.pattern.permute.xlu0 9
  %5922 = vperm.xlu0 %5921, %v1365
  %v5923 = vpop.permute.xlu0 %5922
  %5925 = vset.pattern.permute.xlu0 9
  %5926 = vperm.xlu0 %5925, %v1366
  %v5927 = vpop.permute.xlu0 %5926
  %5929 = vset.pattern.permute.xlu0 9
  %5930 = vperm.xlu0 %5929, %v1367
  %v5931 = vpop.permute.xlu0 %5930
  %5933 = vset.pattern.permute.xlu0 9
  %5934 = vperm.xlu0 %5933, %v1368
  %v5935 = vpop.permute.xlu0 %5934
  %5937 = vset.pattern.permute.xlu0 9
  %5938 = vperm.xlu0 %5937, %v1369
  %v5939 = vpop.permute.xlu0 %5938
  %5941 = vset.pattern.permute.xlu0 9
  %5942 = vperm.xlu0 %5941, %v1370
  %v5943 = vpop.permute.xlu0 %5942
  %5945 = vset.pattern.permute.xlu0 9
  %5946 = vperm.xlu0 %5945, %v1371
  %v5947 = vpop.permute.xlu0 %5946
  %5949 = vset.pattern.permute.xlu0 9
  %5950 = vperm.xlu0 %5949, %v1372
  %v5951 = vpop.permute.xlu0 %5950
  %5953 = vset.pattern.permute.xlu0 9
  %5954 = vperm.xlu0 %5953, %v1373
  %v5955 = vpop.permute.xlu0 %5954
  %5957 = vset.pattern.permute.xlu0 9
  %5958 = vperm.xlu0 %5957, %v1374
  %v5959 = vpop.permute.xlu0 %5958
  %5961 = vset.pattern.permute.xlu0 9
  %5962 = vperm.xlu0 %5961, %v1375
  %v5963 = vpop.permute.xlu0 %5962
  %v5965 = vmul.f32 %v4217, %v5711
  %v5966 = vmul.f32 %v4216, %v5715
  %v5967 = vmul.f32 %v4215, %v5719
  %v5968 = vmul.f32 %v4214, %v5723
  %v5969 = vmul.f32 %v4213, %v5727
  %v5970 = vmul.f32 %v4212, %v5731
  %v5971 = vmul.f32 %v4211, %v5735
  %v5972 = vmul.f32 %v4210, %v5739
  %v5973 = vmul.f32 %v4209, %v5743
  %v5974 = vmul.f32 %v4208, %v5747
  %v5975 = vmul.f32 %v4207, %v5751
  %v5976 = vmul.f32 %v4206, %v5755
  %v5977 = vmul.f32 %v4205, %v5759
  %v5978 = vmul.f32 %v4204, %v5763
  %v5979 = vmul.f32 %v4203, %v5767
  %v5980 = vmul.f32 %v4202, %v5771
  %v5981 = vmul.f32 %v4201, %v5775
  %v5982 = vmul.f32 %v4200, %v5779
  %v5983 = vmul.f32 %v4199, %v5783
  %v5984 = vmul.f32 %v4198, %v5787
  %v5985 = vmul.f32 %v4197, %v5791
  %v5986 = vmul.f32 %v4196, %v5795
  %v5987 = vmul.f32 %v4195, %v5799
  %v5988 = vmul.f32 %v4194, %v5803
  %v5989 = vmul.f32 %v4193, %v5807
  %v5990 = vmul.f32 %v4192, %v5811
  %v5991 = vmul.f32 %v4191, %v5815
  %v5992 = vmul.f32 %v4190, %v5819
  %v5993 = vmul.f32 %v4189, %v5823
  %v5994 = vmul.f32 %v4188, %v5827
  %v5995 = vmul.f32 %v4187, %v5831
  %v5996 = vmul.f32 %v4186, %v5835
  %v5997 = vmul.f32 %v4185, %v5839
  %v5998 = vmul.f32 %v4184, %v5843
  %v5999 = vmul.f32 %v4183, %v5847
  %v6000 = vmul.f32 %v4182, %v5851
  %v6001 = vmul.f32 %v4181, %v5855
  %v6002 = vmul.f32 %v4180, %v5859
  %v6003 = vmul.f32 %v4179, %v5863
  %v6004 = vmul.f32 %v4178, %v5867
  %v6005 = vmul.f32 %v4177, %v5871
  %v6006 = vmul.f32 %v4176, %v5875
  %v6007 = vmul.f32 %v4175, %v5879
  %v6008 = vmul.f32 %v4174, %v5883
  %v6009 = vmul.f32 %v4173, %v5887
  %v6010 = vmul.f32 %v4172, %v5891
  %v6011 = vmul.f32 %v4171, %v5895
  %v6012 = vmul.f32 %v4170, %v5899
  %v6013 = vmul.f32 %v4169, %v5903
  %v6014 = vmul.f32 %v4168, %v5907
  %v6015 = vmul.f32 %v4167, %v5911
  %v6016 = vmul.f32 %v4166, %v5915
  %v6017 = vmul.f32 %v4165, %v5919
  %v6018 = vmul.f32 %v4164, %v5923
  %v6019 = vmul.f32 %v4163, %v5927
  %v6020 = vmul.f32 %v4162, %v5931
  %v6021 = vmul.f32 %v4161, %v5935
  %v6022 = vmul.f32 %v4160, %v5939
  %v6023 = vmul.f32 %v4159, %v5943
  %v6024 = vmul.f32 %v4158, %v5947
  %v6025 = vmul.f32 %v4157, %v5951
  %v6026 = vmul.f32 %v4220, %v5955
  %v6027 = vmul.f32 %v4219, %v5959
  %v6028 = vmul.f32 %v4218, %v5963
  %v6029 = vld [vmem:[%s2 + $0x9] sm:$0x1]
  %v6030 = vlaneseq
  %v6031 = vshrl.u32 %v6030, 7
  %v6032 = vsub.s32 0, %v6031
  %v6033 = vrot.slane %v6029, %v6032
  %v6034 = vmul.f32 %v5965, %v6033
  %v6035 = vmul.f32 %v5966, %v6033
  %v6036 = vmul.f32 %v5967, %v6033
  %v6037 = vmul.f32 %v5968, %v6033
  %v6038 = vmul.f32 %v5969, %v6033
  %v6039 = vmul.f32 %v5970, %v6033
  %v6040 = vmul.f32 %v5971, %v6033
  %v6041 = vmul.f32 %v5972, %v6033
  %v6042 = vmul.f32 %v5973, %v6033
  %v6043 = vmul.f32 %v5974, %v6033
  %v6044 = vmul.f32 %v5975, %v6033
  %v6045 = vmul.f32 %v5976, %v6033
  %v6046 = vmul.f32 %v5977, %v6033
  %v6047 = vmul.f32 %v5978, %v6033
  %v6048 = vmul.f32 %v5979, %v6033
  %v6049 = vmul.f32 %v5980, %v6033
  %v6050 = vmul.f32 %v5981, %v6033
  %v6051 = vmul.f32 %v5982, %v6033
  %v6052 = vmul.f32 %v5983, %v6033
  %v6053 = vmul.f32 %v5984, %v6033
  %v6054 = vmul.f32 %v5985, %v6033
  %v6055 = vmul.f32 %v5986, %v6033
  %v6056 = vmul.f32 %v5987, %v6033
  %v6057 = vmul.f32 %v5988, %v6033
  %v6058 = vmul.f32 %v5989, %v6033
  %v6059 = vmul.f32 %v5990, %v6033
  %v6060 = vmul.f32 %v5991, %v6033
  %v6061 = vmul.f32 %v5992, %v6033
  %v6062 = vmul.f32 %v5993, %v6033
  %v6063 = vmul.f32 %v5994, %v6033
  %v6064 = vmul.f32 %v5995, %v6033
  %v6065 = vmul.f32 %v5996, %v6033
  %v6066 = vmul.f32 %v5997, %v6033
  %v6067 = vmul.f32 %v5998, %v6033
  %v6068 = vmul.f32 %v5999, %v6033
  %v6069 = vmul.f32 %v6000, %v6033
  %v6070 = vmul.f32 %v6001, %v6033
  %v6071 = vmul.f32 %v6002, %v6033
  %v6072 = vmul.f32 %v6003, %v6033
  %v6073 = vmul.f32 %v6004, %v6033
  %v6074 = vmul.f32 %v6005, %v6033
  %v6075 = vmul.f32 %v6006, %v6033
  %v6076 = vmul.f32 %v6007, %v6033
  %v6077 = vmul.f32 %v6008, %v6033
  %v6078 = vmul.f32 %v6009, %v6033
  %v6079 = vmul.f32 %v6010, %v6033
  %v6080 = vmul.f32 %v6011, %v6033
  %v6081 = vmul.f32 %v6012, %v6033
  %v6082 = vmul.f32 %v6013, %v6033
  %v6083 = vmul.f32 %v6014, %v6033
  %v6084 = vmul.f32 %v6015, %v6033
  %v6085 = vmul.f32 %v6016, %v6033
  %v6086 = vmul.f32 %v6017, %v6033
  %v6087 = vmul.f32 %v6018, %v6033
  %v6088 = vmul.f32 %v6019, %v6033
  %v6089 = vmul.f32 %v6020, %v6033
  %v6090 = vmul.f32 %v6021, %v6033
  %v6091 = vmul.f32 %v6022, %v6033
  %v6092 = vmul.f32 %v6023, %v6033
  %v6093 = vmul.f32 %v6024, %v6033
  %v6094 = vmul.f32 %v6025, %v6033
  %v6095 = vmul.f32 %v6026, %v6033
  %v6096 = vmul.f32 %v6027, %v6033
  %v6097 = vmul.f32 %v6028, %v6033
  %v6098 = vadd.f32 %v5645, %v6034
  %v6099 = vadd.f32 %v5646, %v6035
  %v6100 = vadd.f32 %v5647, %v6036
  %v6101 = vadd.f32 %v5648, %v6037
  %v6102 = vadd.f32 %v5649, %v6038
  %v6103 = vadd.f32 %v5650, %v6039
  %v6104 = vadd.f32 %v5651, %v6040
  %v6105 = vadd.f32 %v5652, %v6041
  %v6106 = vadd.f32 %v5653, %v6042
  %v6107 = vadd.f32 %v5654, %v6043
  %v6108 = vadd.f32 %v5655, %v6044
  %v6109 = vadd.f32 %v5656, %v6045
  %v6110 = vadd.f32 %v5657, %v6046
  %v6111 = vadd.f32 %v5658, %v6047
  %v6112 = vadd.f32 %v5659, %v6048
  %v6113 = vadd.f32 %v5660, %v6049
  %v6114 = vadd.f32 %v5661, %v6050
  %v6115 = vadd.f32 %v5662, %v6051
  %v6116 = vadd.f32 %v5663, %v6052
  %v6117 = vadd.f32 %v5664, %v6053
  %v6118 = vadd.f32 %v5665, %v6054
  %v6119 = vadd.f32 %v5666, %v6055
  %v6120 = vadd.f32 %v5667, %v6056
  %v6121 = vadd.f32 %v5668, %v6057
  %v6122 = vadd.f32 %v5669, %v6058
  %v6123 = vadd.f32 %v5670, %v6059
  %v6124 = vadd.f32 %v5671, %v6060
  %v6125 = vadd.f32 %v5672, %v6061
  %v6126 = vadd.f32 %v5673, %v6062
  %v6127 = vadd.f32 %v5674, %v6063
  %v6128 = vadd.f32 %v5675, %v6064
  %v6129 = vadd.f32 %v5676, %v6065
  %v6130 = vadd.f32 %v5677, %v6066
  %v6131 = vadd.f32 %v5678, %v6067
  %v6132 = vadd.f32 %v5679, %v6068
  %v6133 = vadd.f32 %v5680, %v6069
  %v6134 = vadd.f32 %v5681, %v6070
  %v6135 = vadd.f32 %v5682, %v6071
  %v6136 = vadd.f32 %v5683, %v6072
  %v6137 = vadd.f32 %v5684, %v6073
  %v6138 = vadd.f32 %v5685, %v6074
  %v6139 = vadd.f32 %v5686, %v6075
  %v6140 = vadd.f32 %v5687, %v6076
  %v6141 = vadd.f32 %v5688, %v6077
  %v6142 = vadd.f32 %v5689, %v6078
  %v6143 = vadd.f32 %v5690, %v6079
  %v6144 = vadd.f32 %v5691, %v6080
  %v6145 = vadd.f32 %v5692, %v6081
  %v6146 = vadd.f32 %v5693, %v6082
  %v6147 = vadd.f32 %v5694, %v6083
  %v6148 = vadd.f32 %v5695, %v6084
  %v6149 = vadd.f32 %v5696, %v6085
  %v6150 = vadd.f32 %v5697, %v6086
  %v6151 = vadd.f32 %v5698, %v6087
  %v6152 = vadd.f32 %v5699, %v6088
  %v6153 = vadd.f32 %v5700, %v6089
  %v6154 = vadd.f32 %v5701, %v6090
  %v6155 = vadd.f32 %v5702, %v6091
  %v6156 = vadd.f32 %v5703, %v6092
  %v6157 = vadd.f32 %v5704, %v6093
  %v6158 = vadd.f32 %v5705, %v6094
  %v6159 = vadd.f32 %v5706, %v6095
  %v6160 = vadd.f32 %v5707, %v6096
  %v6161 = vadd.f32 %v5708, %v6097
  %6162 = vset.pattern.permute.xlu0 10
  %6163 = vperm.xlu0 %6162, %v1312
  %v6164 = vpop.permute.xlu0 %6163
  %6166 = vset.pattern.permute.xlu0 10
  %6167 = vperm.xlu0 %6166, %v1313
  %v6168 = vpop.permute.xlu0 %6167
  %6170 = vset.pattern.permute.xlu0 10
  %6171 = vperm.xlu0 %6170, %v1314
  %v6172 = vpop.permute.xlu0 %6171
  %6174 = vset.pattern.permute.xlu0 10
  %6175 = vperm.xlu0 %6174, %v1315
  %v6176 = vpop.permute.xlu0 %6175
  %6178 = vset.pattern.permute.xlu0 10
  %6179 = vperm.xlu0 %6178, %v1316
  %v6180 = vpop.permute.xlu0 %6179
  %6182 = vset.pattern.permute.xlu0 10
  %6183 = vperm.xlu0 %6182, %v1317
  %v6184 = vpop.permute.xlu0 %6183
  %6186 = vset.pattern.permute.xlu0 10
  %6187 = vperm.xlu0 %6186, %v1318
  %v6188 = vpop.permute.xlu0 %6187
  %6190 = vset.pattern.permute.xlu0 10
  %6191 = vperm.xlu0 %6190, %v1319
  %v6192 = vpop.permute.xlu0 %6191
  %6194 = vset.pattern.permute.xlu0 10
  %6195 = vperm.xlu0 %6194, %v1320
  %v6196 = vpop.permute.xlu0 %6195
  %6198 = vset.pattern.permute.xlu0 10
  %6199 = vperm.xlu0 %6198, %v1321
  %v6200 = vpop.permute.xlu0 %6199
  %6202 = vset.pattern.permute.xlu0 10
  %6203 = vperm.xlu0 %6202, %v1322
  %v6204 = vpop.permute.xlu0 %6203
  %6206 = vset.pattern.permute.xlu0 10
  %6207 = vperm.xlu0 %6206, %v1323
  %v6208 = vpop.permute.xlu0 %6207
  %6210 = vset.pattern.permute.xlu0 10
  %6211 = vperm.xlu0 %6210, %v1324
  %v6212 = vpop.permute.xlu0 %6211
  %6214 = vset.pattern.permute.xlu0 10
  %6215 = vperm.xlu0 %6214, %v1325
  %v6216 = vpop.permute.xlu0 %6215
  %6218 = vset.pattern.permute.xlu0 10
  %6219 = vperm.xlu0 %6218, %v1326
  %v6220 = vpop.permute.xlu0 %6219
  %6222 = vset.pattern.permute.xlu0 10
  %6223 = vperm.xlu0 %6222, %v1327
  %v6224 = vpop.permute.xlu0 %6223
  %6226 = vset.pattern.permute.xlu0 10
  %6227 = vperm.xlu0 %6226, %v1328
  %v6228 = vpop.permute.xlu0 %6227
  %6230 = vset.pattern.permute.xlu0 10
  %6231 = vperm.xlu0 %6230, %v1329
  %v6232 = vpop.permute.xlu0 %6231
  %6234 = vset.pattern.permute.xlu0 10
  %6235 = vperm.xlu0 %6234, %v1330
  %v6236 = vpop.permute.xlu0 %6235
  %6238 = vset.pattern.permute.xlu0 10
  %6239 = vperm.xlu0 %6238, %v1331
  %v6240 = vpop.permute.xlu0 %6239
  %6242 = vset.pattern.permute.xlu0 10
  %6243 = vperm.xlu0 %6242, %v1332
  %v6244 = vpop.permute.xlu0 %6243
  %6246 = vset.pattern.permute.xlu0 10
  %6247 = vperm.xlu0 %6246, %v1333
  %v6248 = vpop.permute.xlu0 %6247
  %6250 = vset.pattern.permute.xlu0 10
  %6251 = vperm.xlu0 %6250, %v1334
  %v6252 = vpop.permute.xlu0 %6251
  %6254 = vset.pattern.permute.xlu0 10
  %6255 = vperm.xlu0 %6254, %v1335
  %v6256 = vpop.permute.xlu0 %6255
  %6258 = vset.pattern.permute.xlu0 10
  %6259 = vperm.xlu0 %6258, %v1336
  %v6260 = vpop.permute.xlu0 %6259
  %6262 = vset.pattern.permute.xlu0 10
  %6263 = vperm.xlu0 %6262, %v1337
  %v6264 = vpop.permute.xlu0 %6263
  %6266 = vset.pattern.permute.xlu0 10
  %6267 = vperm.xlu0 %6266, %v1338
  %v6268 = vpop.permute.xlu0 %6267
  %6270 = vset.pattern.permute.xlu0 10
  %6271 = vperm.xlu0 %6270, %v1339
  %v6272 = vpop.permute.xlu0 %6271
  %6274 = vset.pattern.permute.xlu0 10
  %6275 = vperm.xlu0 %6274, %v1340
  %v6276 = vpop.permute.xlu0 %6275
  %6278 = vset.pattern.permute.xlu0 10
  %6279 = vperm.xlu0 %6278, %v1341
  %v6280 = vpop.permute.xlu0 %6279
  %6282 = vset.pattern.permute.xlu0 10
  %6283 = vperm.xlu0 %6282, %v1342
  %v6284 = vpop.permute.xlu0 %6283
  %6286 = vset.pattern.permute.xlu0 10
  %6287 = vperm.xlu0 %6286, %v1343
  %v6288 = vpop.permute.xlu0 %6287
  %6290 = vset.pattern.permute.xlu0 10
  %6291 = vperm.xlu0 %6290, %v1344
  %v6292 = vpop.permute.xlu0 %6291
  %6294 = vset.pattern.permute.xlu0 10
  %6295 = vperm.xlu0 %6294, %v1345
  %v6296 = vpop.permute.xlu0 %6295
  %6298 = vset.pattern.permute.xlu0 10
  %6299 = vperm.xlu0 %6298, %v1346
  %v6300 = vpop.permute.xlu0 %6299
  %6302 = vset.pattern.permute.xlu0 10
  %6303 = vperm.xlu0 %6302, %v1347
  %v6304 = vpop.permute.xlu0 %6303
  %6306 = vset.pattern.permute.xlu0 10
  %6307 = vperm.xlu0 %6306, %v1348
  %v6308 = vpop.permute.xlu0 %6307
  %6310 = vset.pattern.permute.xlu0 10
  %6311 = vperm.xlu0 %6310, %v1349
  %v6312 = vpop.permute.xlu0 %6311
  %6314 = vset.pattern.permute.xlu0 10
  %6315 = vperm.xlu0 %6314, %v1350
  %v6316 = vpop.permute.xlu0 %6315
  %6318 = vset.pattern.permute.xlu0 10
  %6319 = vperm.xlu0 %6318, %v1351
  %v6320 = vpop.permute.xlu0 %6319
  %6322 = vset.pattern.permute.xlu0 10
  %6323 = vperm.xlu0 %6322, %v1352
  %v6324 = vpop.permute.xlu0 %6323
  %6326 = vset.pattern.permute.xlu0 10
  %6327 = vperm.xlu0 %6326, %v1353
  %v6328 = vpop.permute.xlu0 %6327
  %6330 = vset.pattern.permute.xlu0 10
  %6331 = vperm.xlu0 %6330, %v1354
  %v6332 = vpop.permute.xlu0 %6331
  %6334 = vset.pattern.permute.xlu0 10
  %6335 = vperm.xlu0 %6334, %v1355
  %v6336 = vpop.permute.xlu0 %6335
  %6338 = vset.pattern.permute.xlu0 10
  %6339 = vperm.xlu0 %6338, %v1356
  %v6340 = vpop.permute.xlu0 %6339
  %6342 = vset.pattern.permute.xlu0 10
  %6343 = vperm.xlu0 %6342, %v1357
  %v6344 = vpop.permute.xlu0 %6343
  %6346 = vset.pattern.permute.xlu0 10
  %6347 = vperm.xlu0 %6346, %v1358
  %v6348 = vpop.permute.xlu0 %6347
  %6350 = vset.pattern.permute.xlu0 10
  %6351 = vperm.xlu0 %6350, %v1359
  %v6352 = vpop.permute.xlu0 %6351
  %6354 = vset.pattern.permute.xlu0 10
  %6355 = vperm.xlu0 %6354, %v1360
  %v6356 = vpop.permute.xlu0 %6355
  %6358 = vset.pattern.permute.xlu0 10
  %6359 = vperm.xlu0 %6358, %v1361
  %v6360 = vpop.permute.xlu0 %6359
  %6362 = vset.pattern.permute.xlu0 10
  %6363 = vperm.xlu0 %6362, %v1362
  %v6364 = vpop.permute.xlu0 %6363
  %6366 = vset.pattern.permute.xlu0 10
  %6367 = vperm.xlu0 %6366, %v1363
  %v6368 = vpop.permute.xlu0 %6367
  %6370 = vset.pattern.permute.xlu0 10
  %6371 = vperm.xlu0 %6370, %v1364
  %v6372 = vpop.permute.xlu0 %6371
  %6374 = vset.pattern.permute.xlu0 10
  %6375 = vperm.xlu0 %6374, %v1365
  %v6376 = vpop.permute.xlu0 %6375
  %6378 = vset.pattern.permute.xlu0 10
  %6379 = vperm.xlu0 %6378, %v1366
  %v6380 = vpop.permute.xlu0 %6379
  %6382 = vset.pattern.permute.xlu0 10
  %6383 = vperm.xlu0 %6382, %v1367
  %v6384 = vpop.permute.xlu0 %6383
  %6386 = vset.pattern.permute.xlu0 10
  %6387 = vperm.xlu0 %6386, %v1368
  %v6388 = vpop.permute.xlu0 %6387
  %6390 = vset.pattern.permute.xlu0 10
  %6391 = vperm.xlu0 %6390, %v1369
  %v6392 = vpop.permute.xlu0 %6391
  %6394 = vset.pattern.permute.xlu0 10
  %6395 = vperm.xlu0 %6394, %v1370
  %v6396 = vpop.permute.xlu0 %6395
  %6398 = vset.pattern.permute.xlu0 10
  %6399 = vperm.xlu0 %6398, %v1371
  %v6400 = vpop.permute.xlu0 %6399
  %6402 = vset.pattern.permute.xlu0 10
  %6403 = vperm.xlu0 %6402, %v1372
  %v6404 = vpop.permute.xlu0 %6403
  %6406 = vset.pattern.permute.xlu0 10
  %6407 = vperm.xlu0 %6406, %v1373
  %v6408 = vpop.permute.xlu0 %6407
  %6410 = vset.pattern.permute.xlu0 10
  %6411 = vperm.xlu0 %6410, %v1374
  %v6412 = vpop.permute.xlu0 %6411
  %6414 = vset.pattern.permute.xlu0 10
  %6415 = vperm.xlu0 %6414, %v1375
  %v6416 = vpop.permute.xlu0 %6415
  %v6418 = vmul.f32 %v1306, %v6164
  %v6419 = vmul.f32 %v1305, %v6168
  %v6420 = vmul.f32 %v1304, %v6172
  %v6421 = vmul.f32 %v1303, %v6176
  %v6422 = vmul.f32 %v1302, %v6180
  %v6423 = vmul.f32 %v1301, %v6184
  %v6424 = vmul.f32 %v1300, %v6188
  %v6425 = vmul.f32 %v1299, %v6192
  %v6426 = vmul.f32 %v1298, %v6196
  %v6427 = vmul.f32 %v1297, %v6200
  %v6428 = vmul.f32 %v1296, %v6204
  %v6429 = vmul.f32 %v1295, %v6208
  %v6430 = vmul.f32 %v1294, %v6212
  %v6431 = vmul.f32 %v1293, %v6216
  %v6432 = vmul.f32 %v1292, %v6220
  %v6433 = vmul.f32 %v1291, %v6224
  %v6434 = vmul.f32 %v1290, %v6228
  %v6435 = vmul.f32 %v1289, %v6232
  %v6436 = vmul.f32 %v1288, %v6236
  %v6437 = vmul.f32 %v1287, %v6240
  %v6438 = vmul.f32 %v1286, %v6244
  %v6439 = vmul.f32 %v1285, %v6248
  %v6440 = vmul.f32 %v1284, %v6252
  %v6441 = vmul.f32 %v1283, %v6256
  %v6442 = vmul.f32 %v1282, %v6260
  %v6443 = vmul.f32 %v1281, %v6264
  %v6444 = vmul.f32 %v1280, %v6268
  %v6445 = vmul.f32 %v1279, %v6272
  %v6446 = vmul.f32 %v1278, %v6276
  %v6447 = vmul.f32 %v1277, %v6280
  %v6448 = vmul.f32 %v1276, %v6284
  %v6449 = vmul.f32 %v1275, %v6288
  %v6450 = vmul.f32 %v1274, %v6292
  %v6451 = vmul.f32 %v1273, %v6296
  %v6452 = vmul.f32 %v1272, %v6300
  %v6453 = vmul.f32 %v1271, %v6304
  %v6454 = vmul.f32 %v1270, %v6308
  %v6455 = vmul.f32 %v1269, %v6312
  %v6456 = vmul.f32 %v1268, %v6316
  %v6457 = vmul.f32 %v1267, %v6320
  %v6458 = vmul.f32 %v1266, %v6324
  %v6459 = vmul.f32 %v1265, %v6328
  %v6460 = vmul.f32 %v1264, %v6332
  %v6461 = vmul.f32 %v1263, %v6336
  %v6462 = vmul.f32 %v1262, %v6340
  %v6463 = vmul.f32 %v1261, %v6344
  %v6464 = vmul.f32 %v1260, %v6348
  %v6465 = vmul.f32 %v1259, %v6352
  %v6466 = vmul.f32 %v1258, %v6356
  %v6467 = vmul.f32 %v1257, %v6360
  %v6468 = vmul.f32 %v1256, %v6364
  %v6469 = vmul.f32 %v1255, %v6368
  %v6470 = vmul.f32 %v1254, %v6372
  %v6471 = vmul.f32 %v1253, %v6376
  %v6472 = vmul.f32 %v1252, %v6380
  %v6473 = vmul.f32 %v1251, %v6384
  %v6474 = vmul.f32 %v1250, %v6388
  %v6475 = vmul.f32 %v1249, %v6392
  %v6476 = vmul.f32 %v1248, %v6396
  %v6477 = vmul.f32 %v1311, %v6400
  %v6478 = vmul.f32 %v1310, %v6404
  %v6479 = vmul.f32 %v1309, %v6408
  %v6480 = vmul.f32 %v1308, %v6412
  %v6481 = vmul.f32 %v1307, %v6416
  %v6482 = vld [vmem:[%s2 + $0xa] sm:$0x1]
  %v6483 = vlaneseq
  %v6484 = vshrl.u32 %v6483, 7
  %v6485 = vsub.s32 0, %v6484
  %v6486 = vrot.slane %v6482, %v6485
  %v6487 = vmul.f32 %v6418, %v6486
  %v6488 = vmul.f32 %v6419, %v6486
  %v6489 = vmul.f32 %v6420, %v6486
  %v6490 = vmul.f32 %v6421, %v6486
  %v6491 = vmul.f32 %v6422, %v6486
  %v6492 = vmul.f32 %v6423, %v6486
  %v6493 = vmul.f32 %v6424, %v6486
  %v6494 = vmul.f32 %v6425, %v6486
  %v6495 = vmul.f32 %v6426, %v6486
  %v6496 = vmul.f32 %v6427, %v6486
  %v6497 = vmul.f32 %v6428, %v6486
  %v6498 = vmul.f32 %v6429, %v6486
  %v6499 = vmul.f32 %v6430, %v6486
  %v6500 = vmul.f32 %v6431, %v6486
  %v6501 = vmul.f32 %v6432, %v6486
  %v6502 = vmul.f32 %v6433, %v6486
  %v6503 = vmul.f32 %v6434, %v6486
  %v6504 = vmul.f32 %v6435, %v6486
  %v6505 = vmul.f32 %v6436, %v6486
  %v6506 = vmul.f32 %v6437, %v6486
  %v6507 = vmul.f32 %v6438, %v6486
  %v6508 = vmul.f32 %v6439, %v6486
  %v6509 = vmul.f32 %v6440, %v6486
  %v6510 = vmul.f32 %v6441, %v6486
  %v6511 = vmul.f32 %v6442, %v6486
  %v6512 = vmul.f32 %v6443, %v6486
  %v6513 = vmul.f32 %v6444, %v6486
  %v6514 = vmul.f32 %v6445, %v6486
  %v6515 = vmul.f32 %v6446, %v6486
  %v6516 = vmul.f32 %v6447, %v6486
  %v6517 = vmul.f32 %v6448, %v6486
  %v6518 = vmul.f32 %v6449, %v6486
  %v6519 = vmul.f32 %v6450, %v6486
  %v6520 = vmul.f32 %v6451, %v6486
  %v6521 = vmul.f32 %v6452, %v6486
  %v6522 = vmul.f32 %v6453, %v6486
  %v6523 = vmul.f32 %v6454, %v6486
  %v6524 = vmul.f32 %v6455, %v6486
  %v6525 = vmul.f32 %v6456, %v6486
  %v6526 = vmul.f32 %v6457, %v6486
  %v6527 = vmul.f32 %v6458, %v6486
  %v6528 = vmul.f32 %v6459, %v6486
  %v6529 = vmul.f32 %v6460, %v6486
  %v6530 = vmul.f32 %v6461, %v6486
  %v6531 = vmul.f32 %v6462, %v6486
  %v6532 = vmul.f32 %v6463, %v6486
  %v6533 = vmul.f32 %v6464, %v6486
  %v6534 = vmul.f32 %v6465, %v6486
  %v6535 = vmul.f32 %v6466, %v6486
  %v6536 = vmul.f32 %v6467, %v6486
  %v6537 = vmul.f32 %v6468, %v6486
  %v6538 = vmul.f32 %v6469, %v6486
  %v6539 = vmul.f32 %v6470, %v6486
  %v6540 = vmul.f32 %v6471, %v6486
  %v6541 = vmul.f32 %v6472, %v6486
  %v6542 = vmul.f32 %v6473, %v6486
  %v6543 = vmul.f32 %v6474, %v6486
  %v6544 = vmul.f32 %v6475, %v6486
  %v6545 = vmul.f32 %v6476, %v6486
  %v6546 = vmul.f32 %v6477, %v6486
  %v6547 = vmul.f32 %v6478, %v6486
  %v6548 = vmul.f32 %v6479, %v6486
  %v6549 = vmul.f32 %v6480, %v6486
  %v6550 = vmul.f32 %v6481, %v6486
  %v6551 = vadd.f32 %v6098, %v6487
  %v6552 = vadd.f32 %v6099, %v6488
  %v6553 = vadd.f32 %v6100, %v6489
  %v6554 = vadd.f32 %v6101, %v6490
  %v6555 = vadd.f32 %v6102, %v6491
  %v6556 = vadd.f32 %v6103, %v6492
  %v6557 = vadd.f32 %v6104, %v6493
  %v6558 = vadd.f32 %v6105, %v6494
  %v6559 = vadd.f32 %v6106, %v6495
  %v6560 = vadd.f32 %v6107, %v6496
  %v6561 = vadd.f32 %v6108, %v6497
  %v6562 = vadd.f32 %v6109, %v6498
  %v6563 = vadd.f32 %v6110, %v6499
  %v6564 = vadd.f32 %v6111, %v6500
  %v6565 = vadd.f32 %v6112, %v6501
  %v6566 = vadd.f32 %v6113, %v6502
  %v6567 = vadd.f32 %v6114, %v6503
  %v6568 = vadd.f32 %v6115, %v6504
  %v6569 = vadd.f32 %v6116, %v6505
  %v6570 = vadd.f32 %v6117, %v6506
  %v6571 = vadd.f32 %v6118, %v6507
  %v6572 = vadd.f32 %v6119, %v6508
  %v6573 = vadd.f32 %v6120, %v6509
  %v6574 = vadd.f32 %v6121, %v6510
  %v6575 = vadd.f32 %v6122, %v6511
  %v6576 = vadd.f32 %v6123, %v6512
  %v6577 = vadd.f32 %v6124, %v6513
  %v6578 = vadd.f32 %v6125, %v6514
  %v6579 = vadd.f32 %v6126, %v6515
  %v6580 = vadd.f32 %v6127, %v6516
  %v6581 = vadd.f32 %v6128, %v6517
  %v6582 = vadd.f32 %v6129, %v6518
  %v6583 = vadd.f32 %v6130, %v6519
  %v6584 = vadd.f32 %v6131, %v6520
  %v6585 = vadd.f32 %v6132, %v6521
  %v6586 = vadd.f32 %v6133, %v6522
  %v6587 = vadd.f32 %v6134, %v6523
  %v6588 = vadd.f32 %v6135, %v6524
  %v6589 = vadd.f32 %v6136, %v6525
  %v6590 = vadd.f32 %v6137, %v6526
  %v6591 = vadd.f32 %v6138, %v6527
  %v6592 = vadd.f32 %v6139, %v6528
  %v6593 = vadd.f32 %v6140, %v6529
  %v6594 = vadd.f32 %v6141, %v6530
  %v6595 = vadd.f32 %v6142, %v6531
  %v6596 = vadd.f32 %v6143, %v6532
  %v6597 = vadd.f32 %v6144, %v6533
  %v6598 = vadd.f32 %v6145, %v6534
  %v6599 = vadd.f32 %v6146, %v6535
  %v6600 = vadd.f32 %v6147, %v6536
  %v6601 = vadd.f32 %v6148, %v6537
  %v6602 = vadd.f32 %v6149, %v6538
  %v6603 = vadd.f32 %v6150, %v6539
  %v6604 = vadd.f32 %v6151, %v6540
  %v6605 = vadd.f32 %v6152, %v6541
  %v6606 = vadd.f32 %v6153, %v6542
  %v6607 = vadd.f32 %v6154, %v6543
  %v6608 = vadd.f32 %v6155, %v6544
  %v6609 = vadd.f32 %v6156, %v6545
  %v6610 = vadd.f32 %v6157, %v6546
  %v6611 = vadd.f32 %v6158, %v6547
  %v6612 = vadd.f32 %v6159, %v6548
  %v6613 = vadd.f32 %v6160, %v6549
  %v6614 = vadd.f32 %v6161, %v6550
  %6615 = vset.pattern.permute.xlu0 11
  %6616 = vperm.xlu0 %6615, %v1312
  %v6617 = vpop.permute.xlu0 %6616
  %6619 = vset.pattern.permute.xlu0 11
  %6620 = vperm.xlu0 %6619, %v1313
  %v6621 = vpop.permute.xlu0 %6620
  %6623 = vset.pattern.permute.xlu0 11
  %6624 = vperm.xlu0 %6623, %v1314
  %v6625 = vpop.permute.xlu0 %6624
  %6627 = vset.pattern.permute.xlu0 11
  %6628 = vperm.xlu0 %6627, %v1315
  %v6629 = vpop.permute.xlu0 %6628
  %6631 = vset.pattern.permute.xlu0 11
  %6632 = vperm.xlu0 %6631, %v1316
  %v6633 = vpop.permute.xlu0 %6632
  %6635 = vset.pattern.permute.xlu0 11
  %6636 = vperm.xlu0 %6635, %v1317
  %v6637 = vpop.permute.xlu0 %6636
  %6639 = vset.pattern.permute.xlu0 11
  %6640 = vperm.xlu0 %6639, %v1318
  %v6641 = vpop.permute.xlu0 %6640
  %6643 = vset.pattern.permute.xlu0 11
  %6644 = vperm.xlu0 %6643, %v1319
  %v6645 = vpop.permute.xlu0 %6644
  %6647 = vset.pattern.permute.xlu0 11
  %6648 = vperm.xlu0 %6647, %v1320
  %v6649 = vpop.permute.xlu0 %6648
  %6651 = vset.pattern.permute.xlu0 11
  %6652 = vperm.xlu0 %6651, %v1321
  %v6653 = vpop.permute.xlu0 %6652
  %6655 = vset.pattern.permute.xlu0 11
  %6656 = vperm.xlu0 %6655, %v1322
  %v6657 = vpop.permute.xlu0 %6656
  %6659 = vset.pattern.permute.xlu0 11
  %6660 = vperm.xlu0 %6659, %v1323
  %v6661 = vpop.permute.xlu0 %6660
  %6663 = vset.pattern.permute.xlu0 11
  %6664 = vperm.xlu0 %6663, %v1324
  %v6665 = vpop.permute.xlu0 %6664
  %6667 = vset.pattern.permute.xlu0 11
  %6668 = vperm.xlu0 %6667, %v1325
  %v6669 = vpop.permute.xlu0 %6668
  %6671 = vset.pattern.permute.xlu0 11
  %6672 = vperm.xlu0 %6671, %v1326
  %v6673 = vpop.permute.xlu0 %6672
  %6675 = vset.pattern.permute.xlu0 11
  %6676 = vperm.xlu0 %6675, %v1327
  %v6677 = vpop.permute.xlu0 %6676
  %6679 = vset.pattern.permute.xlu0 11
  %6680 = vperm.xlu0 %6679, %v1328
  %v6681 = vpop.permute.xlu0 %6680
  %6683 = vset.pattern.permute.xlu0 11
  %6684 = vperm.xlu0 %6683, %v1329
  %v6685 = vpop.permute.xlu0 %6684
  %6687 = vset.pattern.permute.xlu0 11
  %6688 = vperm.xlu0 %6687, %v1330
  %v6689 = vpop.permute.xlu0 %6688
  %6691 = vset.pattern.permute.xlu0 11
  %6692 = vperm.xlu0 %6691, %v1331
  %v6693 = vpop.permute.xlu0 %6692
  %6695 = vset.pattern.permute.xlu0 11
  %6696 = vperm.xlu0 %6695, %v1332
  %v6697 = vpop.permute.xlu0 %6696
  %6699 = vset.pattern.permute.xlu0 11
  %6700 = vperm.xlu0 %6699, %v1333
  %v6701 = vpop.permute.xlu0 %6700
  %6703 = vset.pattern.permute.xlu0 11
  %6704 = vperm.xlu0 %6703, %v1334
  %v6705 = vpop.permute.xlu0 %6704
  %6707 = vset.pattern.permute.xlu0 11
  %6708 = vperm.xlu0 %6707, %v1335
  %v6709 = vpop.permute.xlu0 %6708
  %6711 = vset.pattern.permute.xlu0 11
  %6712 = vperm.xlu0 %6711, %v1336
  %v6713 = vpop.permute.xlu0 %6712
  %6715 = vset.pattern.permute.xlu0 11
  %6716 = vperm.xlu0 %6715, %v1337
  %v6717 = vpop.permute.xlu0 %6716
  %6719 = vset.pattern.permute.xlu0 11
  %6720 = vperm.xlu0 %6719, %v1338
  %v6721 = vpop.permute.xlu0 %6720
  %6723 = vset.pattern.permute.xlu0 11
  %6724 = vperm.xlu0 %6723, %v1339
  %v6725 = vpop.permute.xlu0 %6724
  %6727 = vset.pattern.permute.xlu0 11
  %6728 = vperm.xlu0 %6727, %v1340
  %v6729 = vpop.permute.xlu0 %6728
  %6731 = vset.pattern.permute.xlu0 11
  %6732 = vperm.xlu0 %6731, %v1341
  %v6733 = vpop.permute.xlu0 %6732
  %6735 = vset.pattern.permute.xlu0 11
  %6736 = vperm.xlu0 %6735, %v1342
  %v6737 = vpop.permute.xlu0 %6736
  %6739 = vset.pattern.permute.xlu0 11
  %6740 = vperm.xlu0 %6739, %v1343
  %v6741 = vpop.permute.xlu0 %6740
  %6743 = vset.pattern.permute.xlu0 11
  %6744 = vperm.xlu0 %6743, %v1344
  %v6745 = vpop.permute.xlu0 %6744
  %6747 = vset.pattern.permute.xlu0 11
  %6748 = vperm.xlu0 %6747, %v1345
  %v6749 = vpop.permute.xlu0 %6748
  %6751 = vset.pattern.permute.xlu0 11
  %6752 = vperm.xlu0 %6751, %v1346
  %v6753 = vpop.permute.xlu0 %6752
  %6755 = vset.pattern.permute.xlu0 11
  %6756 = vperm.xlu0 %6755, %v1347
  %v6757 = vpop.permute.xlu0 %6756
  %6759 = vset.pattern.permute.xlu0 11
  %6760 = vperm.xlu0 %6759, %v1348
  %v6761 = vpop.permute.xlu0 %6760
  %6763 = vset.pattern.permute.xlu0 11
  %6764 = vperm.xlu0 %6763, %v1349
  %v6765 = vpop.permute.xlu0 %6764
  %6767 = vset.pattern.permute.xlu0 11
  %6768 = vperm.xlu0 %6767, %v1350
  %v6769 = vpop.permute.xlu0 %6768
  %6771 = vset.pattern.permute.xlu0 11
  %6772 = vperm.xlu0 %6771, %v1351
  %v6773 = vpop.permute.xlu0 %6772
  %6775 = vset.pattern.permute.xlu0 11
  %6776 = vperm.xlu0 %6775, %v1352
  %v6777 = vpop.permute.xlu0 %6776
  %6779 = vset.pattern.permute.xlu0 11
  %6780 = vperm.xlu0 %6779, %v1353
  %v6781 = vpop.permute.xlu0 %6780
  %6783 = vset.pattern.permute.xlu0 11
  %6784 = vperm.xlu0 %6783, %v1354
  %v6785 = vpop.permute.xlu0 %6784
  %6787 = vset.pattern.permute.xlu0 11
  %6788 = vperm.xlu0 %6787, %v1355
  %v6789 = vpop.permute.xlu0 %6788
  %6791 = vset.pattern.permute.xlu0 11
  %6792 = vperm.xlu0 %6791, %v1356
  %v6793 = vpop.permute.xlu0 %6792
  %6795 = vset.pattern.permute.xlu0 11
  %6796 = vperm.xlu0 %6795, %v1357
  %v6797 = vpop.permute.xlu0 %6796
  %6799 = vset.pattern.permute.xlu0 11
  %6800 = vperm.xlu0 %6799, %v1358
  %v6801 = vpop.permute.xlu0 %6800
  %6803 = vset.pattern.permute.xlu0 11
  %6804 = vperm.xlu0 %6803, %v1359
  %v6805 = vpop.permute.xlu0 %6804
  %6807 = vset.pattern.permute.xlu0 11
  %6808 = vperm.xlu0 %6807, %v1360
  %v6809 = vpop.permute.xlu0 %6808
  %6811 = vset.pattern.permute.xlu0 11
  %6812 = vperm.xlu0 %6811, %v1361
  %v6813 = vpop.permute.xlu0 %6812
  %6815 = vset.pattern.permute.xlu0 11
  %6816 = vperm.xlu0 %6815, %v1362
  %v6817 = vpop.permute.xlu0 %6816
  %6819 = vset.pattern.permute.xlu0 11
  %6820 = vperm.xlu0 %6819, %v1363
  %v6821 = vpop.permute.xlu0 %6820
  %6823 = vset.pattern.permute.xlu0 11
  %6824 = vperm.xlu0 %6823, %v1364
  %v6825 = vpop.permute.xlu0 %6824
  %6827 = vset.pattern.permute.xlu0 11
  %6828 = vperm.xlu0 %6827, %v1365
  %v6829 = vpop.permute.xlu0 %6828
  %6831 = vset.pattern.permute.xlu0 11
  %6832 = vperm.xlu0 %6831, %v1366
  %v6833 = vpop.permute.xlu0 %6832
  %6835 = vset.pattern.permute.xlu0 11
  %6836 = vperm.xlu0 %6835, %v1367
  %v6837 = vpop.permute.xlu0 %6836
  %6839 = vset.pattern.permute.xlu0 11
  %6840 = vperm.xlu0 %6839, %v1368
  %v6841 = vpop.permute.xlu0 %6840
  %6843 = vset.pattern.permute.xlu0 11
  %6844 = vperm.xlu0 %6843, %v1369
  %v6845 = vpop.permute.xlu0 %6844
  %6847 = vset.pattern.permute.xlu0 11
  %6848 = vperm.xlu0 %6847, %v1370
  %v6849 = vpop.permute.xlu0 %6848
  %6851 = vset.pattern.permute.xlu0 11
  %6852 = vperm.xlu0 %6851, %v1371
  %v6853 = vpop.permute.xlu0 %6852
  %6855 = vset.pattern.permute.xlu0 11
  %6856 = vperm.xlu0 %6855, %v1372
  %v6857 = vpop.permute.xlu0 %6856
  %6859 = vset.pattern.permute.xlu0 11
  %6860 = vperm.xlu0 %6859, %v1373
  %v6861 = vpop.permute.xlu0 %6860
  %6863 = vset.pattern.permute.xlu0 11
  %6864 = vperm.xlu0 %6863, %v1374
  %v6865 = vpop.permute.xlu0 %6864
  %6867 = vset.pattern.permute.xlu0 11
  %6868 = vperm.xlu0 %6867, %v1375
  %v6869 = vpop.permute.xlu0 %6868
  %v6871 = vmul.f32 %v2016, %v6617
  %v6872 = vmul.f32 %v2015, %v6621
  %v6873 = vmul.f32 %v2014, %v6625
  %v6874 = vmul.f32 %v2013, %v6629
  %v6875 = vmul.f32 %v2012, %v6633
  %v6876 = vmul.f32 %v2011, %v6637
  %v6877 = vmul.f32 %v2010, %v6641
  %v6878 = vmul.f32 %v2009, %v6645
  %v6879 = vmul.f32 %v2008, %v6649
  %v6880 = vmul.f32 %v2007, %v6653
  %v6881 = vmul.f32 %v2006, %v6657
  %v6882 = vmul.f32 %v2005, %v6661
  %v6883 = vmul.f32 %v2004, %v6665
  %v6884 = vmul.f32 %v2003, %v6669
  %v6885 = vmul.f32 %v2002, %v6673
  %v6886 = vmul.f32 %v2001, %v6677
  %v6887 = vmul.f32 %v2000, %v6681
  %v6888 = vmul.f32 %v1999, %v6685
  %v6889 = vmul.f32 %v1998, %v6689
  %v6890 = vmul.f32 %v1997, %v6693
  %v6891 = vmul.f32 %v1996, %v6697
  %v6892 = vmul.f32 %v1995, %v6701
  %v6893 = vmul.f32 %v1994, %v6705
  %v6894 = vmul.f32 %v1993, %v6709
  %v6895 = vmul.f32 %v1992, %v6713
  %v6896 = vmul.f32 %v1991, %v6717
  %v6897 = vmul.f32 %v1990, %v6721
  %v6898 = vmul.f32 %v1989, %v6725
  %v6899 = vmul.f32 %v1988, %v6729
  %v6900 = vmul.f32 %v1987, %v6733
  %v6901 = vmul.f32 %v1986, %v6737
  %v6902 = vmul.f32 %v1985, %v6741
  %v6903 = vmul.f32 %v1984, %v6745
  %v6904 = vmul.f32 %v1983, %v6749
  %v6905 = vmul.f32 %v1982, %v6753
  %v6906 = vmul.f32 %v1981, %v6757
  %v6907 = vmul.f32 %v1980, %v6761
  %v6908 = vmul.f32 %v1979, %v6765
  %v6909 = vmul.f32 %v1978, %v6769
  %v6910 = vmul.f32 %v1977, %v6773
  %v6911 = vmul.f32 %v1976, %v6777
  %v6912 = vmul.f32 %v1975, %v6781
  %v6913 = vmul.f32 %v1974, %v6785
  %v6914 = vmul.f32 %v1973, %v6789
  %v6915 = vmul.f32 %v1972, %v6793
  %v6916 = vmul.f32 %v1971, %v6797
  %v6917 = vmul.f32 %v1970, %v6801
  %v6918 = vmul.f32 %v1969, %v6805
  %v6919 = vmul.f32 %v1968, %v6809
  %v6920 = vmul.f32 %v1967, %v6813
  %v6921 = vmul.f32 %v1966, %v6817
  %v6922 = vmul.f32 %v1965, %v6821
  %v6923 = vmul.f32 %v1964, %v6825
  %v6924 = vmul.f32 %v1963, %v6829
  %v6925 = vmul.f32 %v1962, %v6833
  %v6926 = vmul.f32 %v1961, %v6837
  %v6927 = vmul.f32 %v1960, %v6841
  %v6928 = vmul.f32 %v1959, %v6845
  %v6929 = vmul.f32 %v1958, %v6849
  %v6930 = vmul.f32 %v2021, %v6853
  %v6931 = vmul.f32 %v2020, %v6857
  %v6932 = vmul.f32 %v2019, %v6861
  %v6933 = vmul.f32 %v2018, %v6865
  %v6934 = vmul.f32 %v2017, %v6869
  %v6935 = vld [vmem:[%s2 + $0xb] sm:$0x1]
  %v6936 = vlaneseq
  %v6937 = vshrl.u32 %v6936, 7
  %v6938 = vsub.s32 0, %v6937
  %v6939 = vrot.slane %v6935, %v6938
  %v6940 = vmul.f32 %v6871, %v6939
  %v6941 = vmul.f32 %v6872, %v6939
  %v6942 = vmul.f32 %v6873, %v6939
  %v6943 = vmul.f32 %v6874, %v6939
  %v6944 = vmul.f32 %v6875, %v6939
  %v6945 = vmul.f32 %v6876, %v6939
  %v6946 = vmul.f32 %v6877, %v6939
  %v6947 = vmul.f32 %v6878, %v6939
  %v6948 = vmul.f32 %v6879, %v6939
  %v6949 = vmul.f32 %v6880, %v6939
  %v6950 = vmul.f32 %v6881, %v6939
  %v6951 = vmul.f32 %v6882, %v6939
  %v6952 = vmul.f32 %v6883, %v6939
  %v6953 = vmul.f32 %v6884, %v6939
  %v6954 = vmul.f32 %v6885, %v6939
  %v6955 = vmul.f32 %v6886, %v6939
  %v6956 = vmul.f32 %v6887, %v6939
  %v6957 = vmul.f32 %v6888, %v6939
  %v6958 = vmul.f32 %v6889, %v6939
  %v6959 = vmul.f32 %v6890, %v6939
  %v6960 = vmul.f32 %v6891, %v6939
  %v6961 = vmul.f32 %v6892, %v6939
  %v6962 = vmul.f32 %v6893, %v6939
  %v6963 = vmul.f32 %v6894, %v6939
  %v6964 = vmul.f32 %v6895, %v6939
  %v6965 = vmul.f32 %v6896, %v6939
  %v6966 = vmul.f32 %v6897, %v6939
  %v6967 = vmul.f32 %v6898, %v6939
  %v6968 = vmul.f32 %v6899, %v6939
  %v6969 = vmul.f32 %v6900, %v6939
  %v6970 = vmul.f32 %v6901, %v6939
  %v6971 = vmul.f32 %v6902, %v6939
  %v6972 = vmul.f32 %v6903, %v6939
  %v6973 = vmul.f32 %v6904, %v6939
  %v6974 = vmul.f32 %v6905, %v6939
  %v6975 = vmul.f32 %v6906, %v6939
  %v6976 = vmul.f32 %v6907, %v6939
  %v6977 = vmul.f32 %v6908, %v6939
  %v6978 = vmul.f32 %v6909, %v6939
  %v6979 = vmul.f32 %v6910, %v6939
  %v6980 = vmul.f32 %v6911, %v6939
  %v6981 = vmul.f32 %v6912, %v6939
  %v6982 = vmul.f32 %v6913, %v6939
  %v6983 = vmul.f32 %v6914, %v6939
  %v6984 = vmul.f32 %v6915, %v6939
  %v6985 = vmul.f32 %v6916, %v6939
  %v6986 = vmul.f32 %v6917, %v6939
  %v6987 = vmul.f32 %v6918, %v6939
  %v6988 = vmul.f32 %v6919, %v6939
  %v6989 = vmul.f32 %v6920, %v6939
  %v6990 = vmul.f32 %v6921, %v6939
  %v6991 = vmul.f32 %v6922, %v6939
  %v6992 = vmul.f32 %v6923, %v6939
  %v6993 = vmul.f32 %v6924, %v6939
  %v6994 = vmul.f32 %v6925, %v6939
  %v6995 = vmul.f32 %v6926, %v6939
  %v6996 = vmul.f32 %v6927, %v6939
  %v6997 = vmul.f32 %v6928, %v6939
  %v6998 = vmul.f32 %v6929, %v6939
  %v6999 = vmul.f32 %v6930, %v6939
  %v7000 = vmul.f32 %v6931, %v6939
  %v7001 = vmul.f32 %v6932, %v6939
  %v7002 = vmul.f32 %v6933, %v6939
  %v7003 = vmul.f32 %v6934, %v6939
  %v7004 = vadd.f32 %v6551, %v6940
  %v7005 = vadd.f32 %v6552, %v6941
  %v7006 = vadd.f32 %v6553, %v6942
  %v7007 = vadd.f32 %v6554, %v6943
  %v7008 = vadd.f32 %v6555, %v6944
  %v7009 = vadd.f32 %v6556, %v6945
  %v7010 = vadd.f32 %v6557, %v6946
  %v7011 = vadd.f32 %v6558, %v6947
  %v7012 = vadd.f32 %v6559, %v6948
  %v7013 = vadd.f32 %v6560, %v6949
  %v7014 = vadd.f32 %v6561, %v6950
  %v7015 = vadd.f32 %v6562, %v6951
  %v7016 = vadd.f32 %v6563, %v6952
  %v7017 = vadd.f32 %v6564, %v6953
  %v7018 = vadd.f32 %v6565, %v6954
  %v7019 = vadd.f32 %v6566, %v6955
  %v7020 = vadd.f32 %v6567, %v6956
  %v7021 = vadd.f32 %v6568, %v6957
  %v7022 = vadd.f32 %v6569, %v6958
  %v7023 = vadd.f32 %v6570, %v6959
  %v7024 = vadd.f32 %v6571, %v6960
  %v7025 = vadd.f32 %v6572, %v6961
  %v7026 = vadd.f32 %v6573, %v6962
  %v7027 = vadd.f32 %v6574, %v6963
  %v7028 = vadd.f32 %v6575, %v6964
  %v7029 = vadd.f32 %v6576, %v6965
  %v7030 = vadd.f32 %v6577, %v6966
  %v7031 = vadd.f32 %v6578, %v6967
  %v7032 = vadd.f32 %v6579, %v6968
  %v7033 = vadd.f32 %v6580, %v6969
  %v7034 = vadd.f32 %v6581, %v6970
  %v7035 = vadd.f32 %v6582, %v6971
  %v7036 = vadd.f32 %v6583, %v6972
  %v7037 = vadd.f32 %v6584, %v6973
  %v7038 = vadd.f32 %v6585, %v6974
  %v7039 = vadd.f32 %v6586, %v6975
  %v7040 = vadd.f32 %v6587, %v6976
  %v7041 = vadd.f32 %v6588, %v6977
  %v7042 = vadd.f32 %v6589, %v6978
  %v7043 = vadd.f32 %v6590, %v6979
  %v7044 = vadd.f32 %v6591, %v6980
  %v7045 = vadd.f32 %v6592, %v6981
  %v7046 = vadd.f32 %v6593, %v6982
  %v7047 = vadd.f32 %v6594, %v6983
  %v7048 = vadd.f32 %v6595, %v6984
  %v7049 = vadd.f32 %v6596, %v6985
  %v7050 = vadd.f32 %v6597, %v6986
  %v7051 = vadd.f32 %v6598, %v6987
  %v7052 = vadd.f32 %v6599, %v6988
  %v7053 = vadd.f32 %v6600, %v6989
  %v7054 = vadd.f32 %v6601, %v6990
  %v7055 = vadd.f32 %v6602, %v6991
  %v7056 = vadd.f32 %v6603, %v6992
  %v7057 = vadd.f32 %v6604, %v6993
  %v7058 = vadd.f32 %v6605, %v6994
  %v7059 = vadd.f32 %v6606, %v6995
  %v7060 = vadd.f32 %v6607, %v6996
  %v7061 = vadd.f32 %v6608, %v6997
  %v7062 = vadd.f32 %v6609, %v6998
  %v7063 = vadd.f32 %v6610, %v6999
  %v7064 = vadd.f32 %v6611, %v7000
  %v7065 = vadd.f32 %v6612, %v7001
  %v7066 = vadd.f32 %v6613, %v7002
  %v7067 = vadd.f32 %v6614, %v7003
  %7068 = vset.pattern.permute.xlu0 12
  %7069 = vperm.xlu0 %7068, %v1312
  %v7070 = vpop.permute.xlu0 %7069
  %7072 = vset.pattern.permute.xlu0 12
  %7073 = vperm.xlu0 %7072, %v1313
  %v7074 = vpop.permute.xlu0 %7073
  %7076 = vset.pattern.permute.xlu0 12
  %7077 = vperm.xlu0 %7076, %v1314
  %v7078 = vpop.permute.xlu0 %7077
  %7080 = vset.pattern.permute.xlu0 12
  %7081 = vperm.xlu0 %7080, %v1315
  %v7082 = vpop.permute.xlu0 %7081
  %7084 = vset.pattern.permute.xlu0 12
  %7085 = vperm.xlu0 %7084, %v1316
  %v7086 = vpop.permute.xlu0 %7085
  %7088 = vset.pattern.permute.xlu0 12
  %7089 = vperm.xlu0 %7088, %v1317
  %v7090 = vpop.permute.xlu0 %7089
  %7092 = vset.pattern.permute.xlu0 12
  %7093 = vperm.xlu0 %7092, %v1318
  %v7094 = vpop.permute.xlu0 %7093
  %7096 = vset.pattern.permute.xlu0 12
  %7097 = vperm.xlu0 %7096, %v1319
  %v7098 = vpop.permute.xlu0 %7097
  %7100 = vset.pattern.permute.xlu0 12
  %7101 = vperm.xlu0 %7100, %v1320
  %v7102 = vpop.permute.xlu0 %7101
  %7104 = vset.pattern.permute.xlu0 12
  %7105 = vperm.xlu0 %7104, %v1321
  %v7106 = vpop.permute.xlu0 %7105
  %7108 = vset.pattern.permute.xlu0 12
  %7109 = vperm.xlu0 %7108, %v1322
  %v7110 = vpop.permute.xlu0 %7109
  %7112 = vset.pattern.permute.xlu0 12
  %7113 = vperm.xlu0 %7112, %v1323
  %v7114 = vpop.permute.xlu0 %7113
  %7116 = vset.pattern.permute.xlu0 12
  %7117 = vperm.xlu0 %7116, %v1324
  %v7118 = vpop.permute.xlu0 %7117
  %7120 = vset.pattern.permute.xlu0 12
  %7121 = vperm.xlu0 %7120, %v1325
  %v7122 = vpop.permute.xlu0 %7121
  %7124 = vset.pattern.permute.xlu0 12
  %7125 = vperm.xlu0 %7124, %v1326
  %v7126 = vpop.permute.xlu0 %7125
  %7128 = vset.pattern.permute.xlu0 12
  %7129 = vperm.xlu0 %7128, %v1327
  %v7130 = vpop.permute.xlu0 %7129
  %7132 = vset.pattern.permute.xlu0 12
  %7133 = vperm.xlu0 %7132, %v1328
  %v7134 = vpop.permute.xlu0 %7133
  %7136 = vset.pattern.permute.xlu0 12
  %7137 = vperm.xlu0 %7136, %v1329
  %v7138 = vpop.permute.xlu0 %7137
  %7140 = vset.pattern.permute.xlu0 12
  %7141 = vperm.xlu0 %7140, %v1330
  %v7142 = vpop.permute.xlu0 %7141
  %7144 = vset.pattern.permute.xlu0 12
  %7145 = vperm.xlu0 %7144, %v1331
  %v7146 = vpop.permute.xlu0 %7145
  %7148 = vset.pattern.permute.xlu0 12
  %7149 = vperm.xlu0 %7148, %v1332
  %v7150 = vpop.permute.xlu0 %7149
  %7152 = vset.pattern.permute.xlu0 12
  %7153 = vperm.xlu0 %7152, %v1333
  %v7154 = vpop.permute.xlu0 %7153
  %7156 = vset.pattern.permute.xlu0 12
  %7157 = vperm.xlu0 %7156, %v1334
  %v7158 = vpop.permute.xlu0 %7157
  %7160 = vset.pattern.permute.xlu0 12
  %7161 = vperm.xlu0 %7160, %v1335
  %v7162 = vpop.permute.xlu0 %7161
  %7164 = vset.pattern.permute.xlu0 12
  %7165 = vperm.xlu0 %7164, %v1336
  %v7166 = vpop.permute.xlu0 %7165
  %7168 = vset.pattern.permute.xlu0 12
  %7169 = vperm.xlu0 %7168, %v1337
  %v7170 = vpop.permute.xlu0 %7169
  %7172 = vset.pattern.permute.xlu0 12
  %7173 = vperm.xlu0 %7172, %v1338
  %v7174 = vpop.permute.xlu0 %7173
  %7176 = vset.pattern.permute.xlu0 12
  %7177 = vperm.xlu0 %7176, %v1339
  %v7178 = vpop.permute.xlu0 %7177
  %7180 = vset.pattern.permute.xlu0 12
  %7181 = vperm.xlu0 %7180, %v1340
  %v7182 = vpop.permute.xlu0 %7181
  %7184 = vset.pattern.permute.xlu0 12
  %7185 = vperm.xlu0 %7184, %v1341
  %v7186 = vpop.permute.xlu0 %7185
  %7188 = vset.pattern.permute.xlu0 12
  %7189 = vperm.xlu0 %7188, %v1342
  %v7190 = vpop.permute.xlu0 %7189
  %7192 = vset.pattern.permute.xlu0 12
  %7193 = vperm.xlu0 %7192, %v1343
  %v7194 = vpop.permute.xlu0 %7193
  %7196 = vset.pattern.permute.xlu0 12
  %7197 = vperm.xlu0 %7196, %v1344
  %v7198 = vpop.permute.xlu0 %7197
  %7200 = vset.pattern.permute.xlu0 12
  %7201 = vperm.xlu0 %7200, %v1345
  %v7202 = vpop.permute.xlu0 %7201
  %7204 = vset.pattern.permute.xlu0 12
  %7205 = vperm.xlu0 %7204, %v1346
  %v7206 = vpop.permute.xlu0 %7205
  %7208 = vset.pattern.permute.xlu0 12
  %7209 = vperm.xlu0 %7208, %v1347
  %v7210 = vpop.permute.xlu0 %7209
  %7212 = vset.pattern.permute.xlu0 12
  %7213 = vperm.xlu0 %7212, %v1348
  %v7214 = vpop.permute.xlu0 %7213
  %7216 = vset.pattern.permute.xlu0 12
  %7217 = vperm.xlu0 %7216, %v1349
  %v7218 = vpop.permute.xlu0 %7217
  %7220 = vset.pattern.permute.xlu0 12
  %7221 = vperm.xlu0 %7220, %v1350
  %v7222 = vpop.permute.xlu0 %7221
  %7224 = vset.pattern.permute.xlu0 12
  %7225 = vperm.xlu0 %7224, %v1351
  %v7226 = vpop.permute.xlu0 %7225
  %7228 = vset.pattern.permute.xlu0 12
  %7229 = vperm.xlu0 %7228, %v1352
  %v7230 = vpop.permute.xlu0 %7229
  %7232 = vset.pattern.permute.xlu0 12
  %7233 = vperm.xlu0 %7232, %v1353
  %v7234 = vpop.permute.xlu0 %7233
  %7236 = vset.pattern.permute.xlu0 12
  %7237 = vperm.xlu0 %7236, %v1354
  %v7238 = vpop.permute.xlu0 %7237
  %7240 = vset.pattern.permute.xlu0 12
  %7241 = vperm.xlu0 %7240, %v1355
  %v7242 = vpop.permute.xlu0 %7241
  %7244 = vset.pattern.permute.xlu0 12
  %7245 = vperm.xlu0 %7244, %v1356
  %v7246 = vpop.permute.xlu0 %7245
  %7248 = vset.pattern.permute.xlu0 12
  %7249 = vperm.xlu0 %7248, %v1357
  %v7250 = vpop.permute.xlu0 %7249
  %7252 = vset.pattern.permute.xlu0 12
  %7253 = vperm.xlu0 %7252, %v1358
  %v7254 = vpop.permute.xlu0 %7253
  %7256 = vset.pattern.permute.xlu0 12
  %7257 = vperm.xlu0 %7256, %v1359
  %v7258 = vpop.permute.xlu0 %7257
  %7260 = vset.pattern.permute.xlu0 12
  %7261 = vperm.xlu0 %7260, %v1360
  %v7262 = vpop.permute.xlu0 %7261
  %7264 = vset.pattern.permute.xlu0 12
  %7265 = vperm.xlu0 %7264, %v1361
  %v7266 = vpop.permute.xlu0 %7265
  %7268 = vset.pattern.permute.xlu0 12
  %7269 = vperm.xlu0 %7268, %v1362
  %v7270 = vpop.permute.xlu0 %7269
  %7272 = vset.pattern.permute.xlu0 12
  %7273 = vperm.xlu0 %7272, %v1363
  %v7274 = vpop.permute.xlu0 %7273
  %7276 = vset.pattern.permute.xlu0 12
  %7277 = vperm.xlu0 %7276, %v1364
  %v7278 = vpop.permute.xlu0 %7277
  %7280 = vset.pattern.permute.xlu0 12
  %7281 = vperm.xlu0 %7280, %v1365
  %v7282 = vpop.permute.xlu0 %7281
  %7284 = vset.pattern.permute.xlu0 12
  %7285 = vperm.xlu0 %7284, %v1366
  %v7286 = vpop.permute.xlu0 %7285
  %7288 = vset.pattern.permute.xlu0 12
  %7289 = vperm.xlu0 %7288, %v1367
  %v7290 = vpop.permute.xlu0 %7289
  %7292 = vset.pattern.permute.xlu0 12
  %7293 = vperm.xlu0 %7292, %v1368
  %v7294 = vpop.permute.xlu0 %7293
  %7296 = vset.pattern.permute.xlu0 12
  %7297 = vperm.xlu0 %7296, %v1369
  %v7298 = vpop.permute.xlu0 %7297
  %7300 = vset.pattern.permute.xlu0 12
  %7301 = vperm.xlu0 %7300, %v1370
  %v7302 = vpop.permute.xlu0 %7301
  %7304 = vset.pattern.permute.xlu0 12
  %7305 = vperm.xlu0 %7304, %v1371
  %v7306 = vpop.permute.xlu0 %7305
  %7308 = vset.pattern.permute.xlu0 12
  %7309 = vperm.xlu0 %7308, %v1372
  %v7310 = vpop.permute.xlu0 %7309
  %7312 = vset.pattern.permute.xlu0 12
  %7313 = vperm.xlu0 %7312, %v1373
  %v7314 = vpop.permute.xlu0 %7313
  %7316 = vset.pattern.permute.xlu0 12
  %7317 = vperm.xlu0 %7316, %v1374
  %v7318 = vpop.permute.xlu0 %7317
  %7320 = vset.pattern.permute.xlu0 12
  %7321 = vperm.xlu0 %7320, %v1375
  %v7322 = vpop.permute.xlu0 %7321
  %v7324 = vmul.f32 %v2598, %v7070
  %v7325 = vmul.f32 %v2597, %v7074
  %v7326 = vmul.f32 %v2596, %v7078
  %v7327 = vmul.f32 %v2595, %v7082
  %v7328 = vmul.f32 %v2594, %v7086
  %v7329 = vmul.f32 %v2593, %v7090
  %v7330 = vmul.f32 %v2592, %v7094
  %v7331 = vmul.f32 %v2591, %v7098
  %v7332 = vmul.f32 %v2590, %v7102
  %v7333 = vmul.f32 %v2589, %v7106
  %v7334 = vmul.f32 %v2588, %v7110
  %v7335 = vmul.f32 %v2587, %v7114
  %v7336 = vmul.f32 %v2586, %v7118
  %v7337 = vmul.f32 %v2585, %v7122
  %v7338 = vmul.f32 %v2584, %v7126
  %v7339 = vmul.f32 %v2583, %v7130
  %v7340 = vmul.f32 %v2582, %v7134
  %v7341 = vmul.f32 %v2581, %v7138
  %v7342 = vmul.f32 %v2580, %v7142
  %v7343 = vmul.f32 %v2579, %v7146
  %v7344 = vmul.f32 %v2578, %v7150
  %v7345 = vmul.f32 %v2577, %v7154
  %v7346 = vmul.f32 %v2576, %v7158
  %v7347 = vmul.f32 %v2575, %v7162
  %v7348 = vmul.f32 %v2574, %v7166
  %v7349 = vmul.f32 %v2573, %v7170
  %v7350 = vmul.f32 %v2572, %v7174
  %v7351 = vmul.f32 %v2571, %v7178
  %v7352 = vmul.f32 %v2570, %v7182
  %v7353 = vmul.f32 %v2569, %v7186
  %v7354 = vmul.f32 %v2568, %v7190
  %v7355 = vmul.f32 %v2567, %v7194
  %v7356 = vmul.f32 %v2566, %v7198
  %v7357 = vmul.f32 %v2565, %v7202
  %v7358 = vmul.f32 %v2564, %v7206
  %v7359 = vmul.f32 %v2563, %v7210
  %v7360 = vmul.f32 %v2562, %v7214
  %v7361 = vmul.f32 %v2561, %v7218
  %v7362 = vmul.f32 %v2560, %v7222
  %v7363 = vmul.f32 %v2559, %v7226
  %v7364 = vmul.f32 %v2558, %v7230
  %v7365 = vmul.f32 %v2557, %v7234
  %v7366 = vmul.f32 %v2556, %v7238
  %v7367 = vmul.f32 %v2555, %v7242
  %v7368 = vmul.f32 %v2554, %v7246
  %v7369 = vmul.f32 %v2553, %v7250
  %v7370 = vmul.f32 %v2552, %v7254
  %v7371 = vmul.f32 %v2551, %v7258
  %v7372 = vmul.f32 %v2550, %v7262
  %v7373 = vmul.f32 %v2549, %v7266
  %v7374 = vmul.f32 %v2548, %v7270
  %v7375 = vmul.f32 %v2547, %v7274
  %v7376 = vmul.f32 %v2546, %v7278
  %v7377 = vmul.f32 %v2545, %v7282
  %v7378 = vmul.f32 %v2544, %v7286
  %v7379 = vmul.f32 %v2543, %v7290
  %v7380 = vmul.f32 %v2542, %v7294
  %v7381 = vmul.f32 %v2541, %v7298
  %v7382 = vmul.f32 %v2540, %v7302
  %v7383 = vmul.f32 %v2603, %v7306
  %v7384 = vmul.f32 %v2602, %v7310
  %v7385 = vmul.f32 %v2601, %v7314
  %v7386 = vmul.f32 %v2600, %v7318
  %v7387 = vmul.f32 %v2599, %v7322
  %v7388 = vld [vmem:[%s2 + $0xc] sm:$0x1]
  %v7389 = vlaneseq
  %v7390 = vshrl.u32 %v7389, 7
  %v7391 = vsub.s32 0, %v7390
  %v7392 = vrot.slane %v7388, %v7391
  %v7393 = vmul.f32 %v7324, %v7392
  %v7394 = vmul.f32 %v7325, %v7392
  %v7395 = vmul.f32 %v7326, %v7392
  %v7396 = vmul.f32 %v7327, %v7392
  %v7397 = vmul.f32 %v7328, %v7392
  %v7398 = vmul.f32 %v7329, %v7392
  %v7399 = vmul.f32 %v7330, %v7392
  %v7400 = vmul.f32 %v7331, %v7392
  %v7401 = vmul.f32 %v7332, %v7392
  %v7402 = vmul.f32 %v7333, %v7392
  %v7403 = vmul.f32 %v7334, %v7392
  %v7404 = vmul.f32 %v7335, %v7392
  %v7405 = vmul.f32 %v7336, %v7392
  %v7406 = vmul.f32 %v7337, %v7392
  %v7407 = vmul.f32 %v7338, %v7392
  %v7408 = vmul.f32 %v7339, %v7392
  %v7409 = vmul.f32 %v7340, %v7392
  %v7410 = vmul.f32 %v7341, %v7392
  %v7411 = vmul.f32 %v7342, %v7392
  %v7412 = vmul.f32 %v7343, %v7392
  %v7413 = vmul.f32 %v7344, %v7392
  %v7414 = vmul.f32 %v7345, %v7392
  %v7415 = vmul.f32 %v7346, %v7392
  %v7416 = vmul.f32 %v7347, %v7392
  %v7417 = vmul.f32 %v7348, %v7392
  %v7418 = vmul.f32 %v7349, %v7392
  %v7419 = vmul.f32 %v7350, %v7392
  %v7420 = vmul.f32 %v7351, %v7392
  %v7421 = vmul.f32 %v7352, %v7392
  %v7422 = vmul.f32 %v7353, %v7392
  %v7423 = vmul.f32 %v7354, %v7392
  %v7424 = vmul.f32 %v7355, %v7392
  %v7425 = vmul.f32 %v7356, %v7392
  %v7426 = vmul.f32 %v7357, %v7392
  %v7427 = vmul.f32 %v7358, %v7392
  %v7428 = vmul.f32 %v7359, %v7392
  %v7429 = vmul.f32 %v7360, %v7392
  %v7430 = vmul.f32 %v7361, %v7392
  %v7431 = vmul.f32 %v7362, %v7392
  %v7432 = vmul.f32 %v7363, %v7392
  %v7433 = vmul.f32 %v7364, %v7392
  %v7434 = vmul.f32 %v7365, %v7392
  %v7435 = vmul.f32 %v7366, %v7392
  %v7436 = vmul.f32 %v7367, %v7392
  %v7437 = vmul.f32 %v7368, %v7392
  %v7438 = vmul.f32 %v7369, %v7392
  %v7439 = vmul.f32 %v7370, %v7392
  %v7440 = vmul.f32 %v7371, %v7392
  %v7441 = vmul.f32 %v7372, %v7392
  %v7442 = vmul.f32 %v7373, %v7392
  %v7443 = vmul.f32 %v7374, %v7392
  %v7444 = vmul.f32 %v7375, %v7392
  %v7445 = vmul.f32 %v7376, %v7392
  %v7446 = vmul.f32 %v7377, %v7392
  %v7447 = vmul.f32 %v7378, %v7392
  %v7448 = vmul.f32 %v7379, %v7392
  %v7449 = vmul.f32 %v7380, %v7392
  %v7450 = vmul.f32 %v7381, %v7392
  %v7451 = vmul.f32 %v7382, %v7392
  %v7452 = vmul.f32 %v7383, %v7392
  %v7453 = vmul.f32 %v7384, %v7392
  %v7454 = vmul.f32 %v7385, %v7392
  %v7455 = vmul.f32 %v7386, %v7392
  %v7456 = vmul.f32 %v7387, %v7392
  %v7457 = vadd.f32 %v7004, %v7393
  %v7458 = vadd.f32 %v7005, %v7394
  %v7459 = vadd.f32 %v7006, %v7395
  %v7460 = vadd.f32 %v7007, %v7396
  %v7461 = vadd.f32 %v7008, %v7397
  %v7462 = vadd.f32 %v7009, %v7398
  %v7463 = vadd.f32 %v7010, %v7399
  %v7464 = vadd.f32 %v7011, %v7400
  %v7465 = vadd.f32 %v7012, %v7401
  %v7466 = vadd.f32 %v7013, %v7402
  %v7467 = vadd.f32 %v7014, %v7403
  %v7468 = vadd.f32 %v7015, %v7404
  %v7469 = vadd.f32 %v7016, %v7405
  %v7470 = vadd.f32 %v7017, %v7406
  %v7471 = vadd.f32 %v7018, %v7407
  %v7472 = vadd.f32 %v7019, %v7408
  %v7473 = vadd.f32 %v7020, %v7409
  %v7474 = vadd.f32 %v7021, %v7410
  %v7475 = vadd.f32 %v7022, %v7411
  %v7476 = vadd.f32 %v7023, %v7412
  %v7477 = vadd.f32 %v7024, %v7413
  %v7478 = vadd.f32 %v7025, %v7414
  %v7479 = vadd.f32 %v7026, %v7415
  %v7480 = vadd.f32 %v7027, %v7416
  %v7481 = vadd.f32 %v7028, %v7417
  %v7482 = vadd.f32 %v7029, %v7418
  %v7483 = vadd.f32 %v7030, %v7419
  %v7484 = vadd.f32 %v7031, %v7420
  %v7485 = vadd.f32 %v7032, %v7421
  %v7486 = vadd.f32 %v7033, %v7422
  %v7487 = vadd.f32 %v7034, %v7423
  %v7488 = vadd.f32 %v7035, %v7424
  %v7489 = vadd.f32 %v7036, %v7425
  %v7490 = vadd.f32 %v7037, %v7426
  %v7491 = vadd.f32 %v7038, %v7427
  %v7492 = vadd.f32 %v7039, %v7428
  %v7493 = vadd.f32 %v7040, %v7429
  %v7494 = vadd.f32 %v7041, %v7430
  %v7495 = vadd.f32 %v7042, %v7431
  %v7496 = vadd.f32 %v7043, %v7432
  %v7497 = vadd.f32 %v7044, %v7433
  %v7498 = vadd.f32 %v7045, %v7434
  %v7499 = vadd.f32 %v7046, %v7435
  %v7500 = vadd.f32 %v7047, %v7436
  %v7501 = vadd.f32 %v7048, %v7437
  %v7502 = vadd.f32 %v7049, %v7438
  %v7503 = vadd.f32 %v7050, %v7439
  %v7504 = vadd.f32 %v7051, %v7440
  %v7505 = vadd.f32 %v7052, %v7441
  %v7506 = vadd.f32 %v7053, %v7442
  %v7507 = vadd.f32 %v7054, %v7443
  %v7508 = vadd.f32 %v7055, %v7444
  %v7509 = vadd.f32 %v7056, %v7445
  %v7510 = vadd.f32 %v7057, %v7446
  %v7511 = vadd.f32 %v7058, %v7447
  %v7512 = vadd.f32 %v7059, %v7448
  %v7513 = vadd.f32 %v7060, %v7449
  %v7514 = vadd.f32 %v7061, %v7450
  %v7515 = vadd.f32 %v7062, %v7451
  %v7516 = vadd.f32 %v7063, %v7452
  %v7517 = vadd.f32 %v7064, %v7453
  %v7518 = vadd.f32 %v7065, %v7454
  %v7519 = vadd.f32 %v7066, %v7455
  %v7520 = vadd.f32 %v7067, %v7456
  %7521 = vset.pattern.permute.xlu0 13
  %7522 = vperm.xlu0 %7521, %v1312
  %v7523 = vpop.permute.xlu0 %7522
  %7525 = vset.pattern.permute.xlu0 13
  %7526 = vperm.xlu0 %7525, %v1313
  %v7527 = vpop.permute.xlu0 %7526
  %7529 = vset.pattern.permute.xlu0 13
  %7530 = vperm.xlu0 %7529, %v1314
  %v7531 = vpop.permute.xlu0 %7530
  %7533 = vset.pattern.permute.xlu0 13
  %7534 = vperm.xlu0 %7533, %v1315
  %v7535 = vpop.permute.xlu0 %7534
  %7537 = vset.pattern.permute.xlu0 13
  %7538 = vperm.xlu0 %7537, %v1316
  %v7539 = vpop.permute.xlu0 %7538
  %7541 = vset.pattern.permute.xlu0 13
  %7542 = vperm.xlu0 %7541, %v1317
  %v7543 = vpop.permute.xlu0 %7542
  %7545 = vset.pattern.permute.xlu0 13
  %7546 = vperm.xlu0 %7545, %v1318
  %v7547 = vpop.permute.xlu0 %7546
  %7549 = vset.pattern.permute.xlu0 13
  %7550 = vperm.xlu0 %7549, %v1319
  %v7551 = vpop.permute.xlu0 %7550
  %7553 = vset.pattern.permute.xlu0 13
  %7554 = vperm.xlu0 %7553, %v1320
  %v7555 = vpop.permute.xlu0 %7554
  %7557 = vset.pattern.permute.xlu0 13
  %7558 = vperm.xlu0 %7557, %v1321
  %v7559 = vpop.permute.xlu0 %7558
  %7561 = vset.pattern.permute.xlu0 13
  %7562 = vperm.xlu0 %7561, %v1322
  %v7563 = vpop.permute.xlu0 %7562
  %7565 = vset.pattern.permute.xlu0 13
  %7566 = vperm.xlu0 %7565, %v1323
  %v7567 = vpop.permute.xlu0 %7566
  %7569 = vset.pattern.permute.xlu0 13
  %7570 = vperm.xlu0 %7569, %v1324
  %v7571 = vpop.permute.xlu0 %7570
  %7573 = vset.pattern.permute.xlu0 13
  %7574 = vperm.xlu0 %7573, %v1325
  %v7575 = vpop.permute.xlu0 %7574
  %7577 = vset.pattern.permute.xlu0 13
  %7578 = vperm.xlu0 %7577, %v1326
  %v7579 = vpop.permute.xlu0 %7578
  %7581 = vset.pattern.permute.xlu0 13
  %7582 = vperm.xlu0 %7581, %v1327
  %v7583 = vpop.permute.xlu0 %7582
  %7585 = vset.pattern.permute.xlu0 13
  %7586 = vperm.xlu0 %7585, %v1328
  %v7587 = vpop.permute.xlu0 %7586
  %7589 = vset.pattern.permute.xlu0 13
  %7590 = vperm.xlu0 %7589, %v1329
  %v7591 = vpop.permute.xlu0 %7590
  %7593 = vset.pattern.permute.xlu0 13
  %7594 = vperm.xlu0 %7593, %v1330
  %v7595 = vpop.permute.xlu0 %7594
  %7597 = vset.pattern.permute.xlu0 13
  %7598 = vperm.xlu0 %7597, %v1331
  %v7599 = vpop.permute.xlu0 %7598
  %7601 = vset.pattern.permute.xlu0 13
  %7602 = vperm.xlu0 %7601, %v1332
  %v7603 = vpop.permute.xlu0 %7602
  %7605 = vset.pattern.permute.xlu0 13
  %7606 = vperm.xlu0 %7605, %v1333
  %v7607 = vpop.permute.xlu0 %7606
  %7609 = vset.pattern.permute.xlu0 13
  %7610 = vperm.xlu0 %7609, %v1334
  %v7611 = vpop.permute.xlu0 %7610
  %7613 = vset.pattern.permute.xlu0 13
  %7614 = vperm.xlu0 %7613, %v1335
  %v7615 = vpop.permute.xlu0 %7614
  %7617 = vset.pattern.permute.xlu0 13
  %7618 = vperm.xlu0 %7617, %v1336
  %v7619 = vpop.permute.xlu0 %7618
  %7621 = vset.pattern.permute.xlu0 13
  %7622 = vperm.xlu0 %7621, %v1337
  %v7623 = vpop.permute.xlu0 %7622
  %7625 = vset.pattern.permute.xlu0 13
  %7626 = vperm.xlu0 %7625, %v1338
  %v7627 = vpop.permute.xlu0 %7626
  %7629 = vset.pattern.permute.xlu0 13
  %7630 = vperm.xlu0 %7629, %v1339
  %v7631 = vpop.permute.xlu0 %7630
  %7633 = vset.pattern.permute.xlu0 13
  %7634 = vperm.xlu0 %7633, %v1340
  %v7635 = vpop.permute.xlu0 %7634
  %7637 = vset.pattern.permute.xlu0 13
  %7638 = vperm.xlu0 %7637, %v1341
  %v7639 = vpop.permute.xlu0 %7638
  %7641 = vset.pattern.permute.xlu0 13
  %7642 = vperm.xlu0 %7641, %v1342
  %v7643 = vpop.permute.xlu0 %7642
  %7645 = vset.pattern.permute.xlu0 13
  %7646 = vperm.xlu0 %7645, %v1343
  %v7647 = vpop.permute.xlu0 %7646
  %7649 = vset.pattern.permute.xlu0 13
  %7650 = vperm.xlu0 %7649, %v1344
  %v7651 = vpop.permute.xlu0 %7650
  %7653 = vset.pattern.permute.xlu0 13
  %7654 = vperm.xlu0 %7653, %v1345
  %v7655 = vpop.permute.xlu0 %7654
  %7657 = vset.pattern.permute.xlu0 13
  %7658 = vperm.xlu0 %7657, %v1346
  %v7659 = vpop.permute.xlu0 %7658
  %7661 = vset.pattern.permute.xlu0 13
  %7662 = vperm.xlu0 %7661, %v1347
  %v7663 = vpop.permute.xlu0 %7662
  %7665 = vset.pattern.permute.xlu0 13
  %7666 = vperm.xlu0 %7665, %v1348
  %v7667 = vpop.permute.xlu0 %7666
  %7669 = vset.pattern.permute.xlu0 13
  %7670 = vperm.xlu0 %7669, %v1349
  %v7671 = vpop.permute.xlu0 %7670
  %7673 = vset.pattern.permute.xlu0 13
  %7674 = vperm.xlu0 %7673, %v1350
  %v7675 = vpop.permute.xlu0 %7674
  %7677 = vset.pattern.permute.xlu0 13
  %7678 = vperm.xlu0 %7677, %v1351
  %v7679 = vpop.permute.xlu0 %7678
  %7681 = vset.pattern.permute.xlu0 13
  %7682 = vperm.xlu0 %7681, %v1352
  %v7683 = vpop.permute.xlu0 %7682
  %7685 = vset.pattern.permute.xlu0 13
  %7686 = vperm.xlu0 %7685, %v1353
  %v7687 = vpop.permute.xlu0 %7686
  %7689 = vset.pattern.permute.xlu0 13
  %7690 = vperm.xlu0 %7689, %v1354
  %v7691 = vpop.permute.xlu0 %7690
  %7693 = vset.pattern.permute.xlu0 13
  %7694 = vperm.xlu0 %7693, %v1355
  %v7695 = vpop.permute.xlu0 %7694
  %7697 = vset.pattern.permute.xlu0 13
  %7698 = vperm.xlu0 %7697, %v1356
  %v7699 = vpop.permute.xlu0 %7698
  %7701 = vset.pattern.permute.xlu0 13
  %7702 = vperm.xlu0 %7701, %v1357
  %v7703 = vpop.permute.xlu0 %7702
  %7705 = vset.pattern.permute.xlu0 13
  %7706 = vperm.xlu0 %7705, %v1358
  %v7707 = vpop.permute.xlu0 %7706
  %7709 = vset.pattern.permute.xlu0 13
  %7710 = vperm.xlu0 %7709, %v1359
  %v7711 = vpop.permute.xlu0 %7710
  %7713 = vset.pattern.permute.xlu0 13
  %7714 = vperm.xlu0 %7713, %v1360
  %v7715 = vpop.permute.xlu0 %7714
  %7717 = vset.pattern.permute.xlu0 13
  %7718 = vperm.xlu0 %7717, %v1361
  %v7719 = vpop.permute.xlu0 %7718
  %7721 = vset.pattern.permute.xlu0 13
  %7722 = vperm.xlu0 %7721, %v1362
  %v7723 = vpop.permute.xlu0 %7722
  %7725 = vset.pattern.permute.xlu0 13
  %7726 = vperm.xlu0 %7725, %v1363
  %v7727 = vpop.permute.xlu0 %7726
  %7729 = vset.pattern.permute.xlu0 13
  %7730 = vperm.xlu0 %7729, %v1364
  %v7731 = vpop.permute.xlu0 %7730
  %7733 = vset.pattern.permute.xlu0 13
  %7734 = vperm.xlu0 %7733, %v1365
  %v7735 = vpop.permute.xlu0 %7734
  %7737 = vset.pattern.permute.xlu0 13
  %7738 = vperm.xlu0 %7737, %v1366
  %v7739 = vpop.permute.xlu0 %7738
  %7741 = vset.pattern.permute.xlu0 13
  %7742 = vperm.xlu0 %7741, %v1367
  %v7743 = vpop.permute.xlu0 %7742
  %7745 = vset.pattern.permute.xlu0 13
  %7746 = vperm.xlu0 %7745, %v1368
  %v7747 = vpop.permute.xlu0 %7746
  %7749 = vset.pattern.permute.xlu0 13
  %7750 = vperm.xlu0 %7749, %v1369
  %v7751 = vpop.permute.xlu0 %7750
  %7753 = vset.pattern.permute.xlu0 13
  %7754 = vperm.xlu0 %7753, %v1370
  %v7755 = vpop.permute.xlu0 %7754
  %7757 = vset.pattern.permute.xlu0 13
  %7758 = vperm.xlu0 %7757, %v1371
  %v7759 = vpop.permute.xlu0 %7758
  %7761 = vset.pattern.permute.xlu0 13
  %7762 = vperm.xlu0 %7761, %v1372
  %v7763 = vpop.permute.xlu0 %7762
  %7765 = vset.pattern.permute.xlu0 13
  %7766 = vperm.xlu0 %7765, %v1373
  %v7767 = vpop.permute.xlu0 %7766
  %7769 = vset.pattern.permute.xlu0 13
  %7770 = vperm.xlu0 %7769, %v1374
  %v7771 = vpop.permute.xlu0 %7770
  %7773 = vset.pattern.permute.xlu0 13
  %7774 = vperm.xlu0 %7773, %v1375
  %v7775 = vpop.permute.xlu0 %7774
  %v7777 = vmul.f32 %v3180, %v7523
  %v7778 = vmul.f32 %v3179, %v7527
  %v7779 = vmul.f32 %v3178, %v7531
  %v7780 = vmul.f32 %v3177, %v7535
  %v7781 = vmul.f32 %v3176, %v7539
  %v7782 = vmul.f32 %v3175, %v7543
  %v7783 = vmul.f32 %v3174, %v7547
  %v7784 = vmul.f32 %v3173, %v7551
  %v7785 = vmul.f32 %v3172, %v7555
  %v7786 = vmul.f32 %v3171, %v7559
  %v7787 = vmul.f32 %v3170, %v7563
  %v7788 = vmul.f32 %v3169, %v7567
  %v7789 = vmul.f32 %v3168, %v7571
  %v7790 = vmul.f32 %v3167, %v7575
  %v7791 = vmul.f32 %v3166, %v7579
  %v7792 = vmul.f32 %v3165, %v7583
  %v7793 = vmul.f32 %v3164, %v7587
  %v7794 = vmul.f32 %v3163, %v7591
  %v7795 = vmul.f32 %v3162, %v7595
  %v7796 = vmul.f32 %v3161, %v7599
  %v7797 = vmul.f32 %v3160, %v7603
  %v7798 = vmul.f32 %v3159, %v7607
  %v7799 = vmul.f32 %v3158, %v7611
  %v7800 = vmul.f32 %v3157, %v7615
  %v7801 = vmul.f32 %v3156, %v7619
  %v7802 = vmul.f32 %v3155, %v7623
  %v7803 = vmul.f32 %v3154, %v7627
  %v7804 = vmul.f32 %v3153, %v7631
  %v7805 = vmul.f32 %v3152, %v7635
  %v7806 = vmul.f32 %v3151, %v7639
  %v7807 = vmul.f32 %v3150, %v7643
  %v7808 = vmul.f32 %v3149, %v7647
  %v7809 = vmul.f32 %v3148, %v7651
  %v7810 = vmul.f32 %v3147, %v7655
  %v7811 = vmul.f32 %v3146, %v7659
  %v7812 = vmul.f32 %v3145, %v7663
  %v7813 = vmul.f32 %v3144, %v7667
  %v7814 = vmul.f32 %v3143, %v7671
  %v7815 = vmul.f32 %v3142, %v7675
  %v7816 = vmul.f32 %v3141, %v7679
  %v7817 = vmul.f32 %v3140, %v7683
  %v7818 = vmul.f32 %v3139, %v7687
  %v7819 = vmul.f32 %v3138, %v7691
  %v7820 = vmul.f32 %v3137, %v7695
  %v7821 = vmul.f32 %v3136, %v7699
  %v7822 = vmul.f32 %v3135, %v7703
  %v7823 = vmul.f32 %v3134, %v7707
  %v7824 = vmul.f32 %v3133, %v7711
  %v7825 = vmul.f32 %v3132, %v7715
  %v7826 = vmul.f32 %v3131, %v7719
  %v7827 = vmul.f32 %v3130, %v7723
  %v7828 = vmul.f32 %v3129, %v7727
  %v7829 = vmul.f32 %v3128, %v7731
  %v7830 = vmul.f32 %v3127, %v7735
  %v7831 = vmul.f32 %v3126, %v7739
  %v7832 = vmul.f32 %v3125, %v7743
  %v7833 = vmul.f32 %v3124, %v7747
  %v7834 = vmul.f32 %v3123, %v7751
  %v7835 = vmul.f32 %v3122, %v7755
  %v7836 = vmul.f32 %v3185, %v7759
  %v7837 = vmul.f32 %v3184, %v7763
  %v7838 = vmul.f32 %v3183, %v7767
  %v7839 = vmul.f32 %v3182, %v7771
  %v7840 = vmul.f32 %v3181, %v7775
  %v7841 = vld [vmem:[%s2 + $0xd] sm:$0x1]
  %v7842 = vlaneseq
  %v7843 = vshrl.u32 %v7842, 7
  %v7844 = vsub.s32 0, %v7843
  %v7845 = vrot.slane %v7841, %v7844
  %v7846 = vmul.f32 %v7777, %v7845
  %v7847 = vmul.f32 %v7778, %v7845
  %v7848 = vmul.f32 %v7779, %v7845
  %v7849 = vmul.f32 %v7780, %v7845
  %v7850 = vmul.f32 %v7781, %v7845
  %v7851 = vmul.f32 %v7782, %v7845
  %v7852 = vmul.f32 %v7783, %v7845
  %v7853 = vmul.f32 %v7784, %v7845
  %v7854 = vmul.f32 %v7785, %v7845
  %v7855 = vmul.f32 %v7786, %v7845
  %v7856 = vmul.f32 %v7787, %v7845
  %v7857 = vmul.f32 %v7788, %v7845
  %v7858 = vmul.f32 %v7789, %v7845
  %v7859 = vmul.f32 %v7790, %v7845
  %v7860 = vmul.f32 %v7791, %v7845
  %v7861 = vmul.f32 %v7792, %v7845
  %v7862 = vmul.f32 %v7793, %v7845
  %v7863 = vmul.f32 %v7794, %v7845
  %v7864 = vmul.f32 %v7795, %v7845
  %v7865 = vmul.f32 %v7796, %v7845
  %v7866 = vmul.f32 %v7797, %v7845
  %v7867 = vmul.f32 %v7798, %v7845
  %v7868 = vmul.f32 %v7799, %v7845
  %v7869 = vmul.f32 %v7800, %v7845
  %v7870 = vmul.f32 %v7801, %v7845
  %v7871 = vmul.f32 %v7802, %v7845
  %v7872 = vmul.f32 %v7803, %v7845
  %v7873 = vmul.f32 %v7804, %v7845
  %v7874 = vmul.f32 %v7805, %v7845
  %v7875 = vmul.f32 %v7806, %v7845
  %v7876 = vmul.f32 %v7807, %v7845
  %v7877 = vmul.f32 %v7808, %v7845
  %v7878 = vmul.f32 %v7809, %v7845
  %v7879 = vmul.f32 %v7810, %v7845
  %v7880 = vmul.f32 %v7811, %v7845
  %v7881 = vmul.f32 %v7812, %v7845
  %v7882 = vmul.f32 %v7813, %v7845
  %v7883 = vmul.f32 %v7814, %v7845
  %v7884 = vmul.f32 %v7815, %v7845
  %v7885 = vmul.f32 %v7816, %v7845
  %v7886 = vmul.f32 %v7817, %v7845
  %v7887 = vmul.f32 %v7818, %v7845
  %v7888 = vmul.f32 %v7819, %v7845
  %v7889 = vmul.f32 %v7820, %v7845
  %v7890 = vmul.f32 %v7821, %v7845
  %v7891 = vmul.f32 %v7822, %v7845
  %v7892 = vmul.f32 %v7823, %v7845
  %v7893 = vmul.f32 %v7824, %v7845
  %v7894 = vmul.f32 %v7825, %v7845
  %v7895 = vmul.f32 %v7826, %v7845
  %v7896 = vmul.f32 %v7827, %v7845
  %v7897 = vmul.f32 %v7828, %v7845
  %v7898 = vmul.f32 %v7829, %v7845
  %v7899 = vmul.f32 %v7830, %v7845
  %v7900 = vmul.f32 %v7831, %v7845
  %v7901 = vmul.f32 %v7832, %v7845
  %v7902 = vmul.f32 %v7833, %v7845
  %v7903 = vmul.f32 %v7834, %v7845
  %v7904 = vmul.f32 %v7835, %v7845
  %v7905 = vmul.f32 %v7836, %v7845
  %v7906 = vmul.f32 %v7837, %v7845
  %v7907 = vmul.f32 %v7838, %v7845
  %v7908 = vmul.f32 %v7839, %v7845
  %v7909 = vmul.f32 %v7840, %v7845
  %v7910 = vadd.f32 %v7457, %v7846
  %v7911 = vadd.f32 %v7458, %v7847
  %v7912 = vadd.f32 %v7459, %v7848
  %v7913 = vadd.f32 %v7460, %v7849
  %v7914 = vadd.f32 %v7461, %v7850
  %v7915 = vadd.f32 %v7462, %v7851
  %v7916 = vadd.f32 %v7463, %v7852
  %v7917 = vadd.f32 %v7464, %v7853
  %v7918 = vadd.f32 %v7465, %v7854
  %v7919 = vadd.f32 %v7466, %v7855
  %v7920 = vadd.f32 %v7467, %v7856
  %v7921 = vadd.f32 %v7468, %v7857
  %v7922 = vadd.f32 %v7469, %v7858
  %v7923 = vadd.f32 %v7470, %v7859
  %v7924 = vadd.f32 %v7471, %v7860
  %v7925 = vadd.f32 %v7472, %v7861
  %v7926 = vadd.f32 %v7473, %v7862
  %v7927 = vadd.f32 %v7474, %v7863
  %v7928 = vadd.f32 %v7475, %v7864
  %v7929 = vadd.f32 %v7476, %v7865
  %v7930 = vadd.f32 %v7477, %v7866
  %v7931 = vadd.f32 %v7478, %v7867
  %v7932 = vadd.f32 %v7479, %v7868
  %v7933 = vadd.f32 %v7480, %v7869
  %v7934 = vadd.f32 %v7481, %v7870
  %v7935 = vadd.f32 %v7482, %v7871
  %v7936 = vadd.f32 %v7483, %v7872
  %v7937 = vadd.f32 %v7484, %v7873
  %v7938 = vadd.f32 %v7485, %v7874
  %v7939 = vadd.f32 %v7486, %v7875
  %v7940 = vadd.f32 %v7487, %v7876
  %v7941 = vadd.f32 %v7488, %v7877
  %v7942 = vadd.f32 %v7489, %v7878
  %v7943 = vadd.f32 %v7490, %v7879
  %v7944 = vadd.f32 %v7491, %v7880
  %v7945 = vadd.f32 %v7492, %v7881
  %v7946 = vadd.f32 %v7493, %v7882
  %v7947 = vadd.f32 %v7494, %v7883
  %v7948 = vadd.f32 %v7495, %v7884
  %v7949 = vadd.f32 %v7496, %v7885
  %v7950 = vadd.f32 %v7497, %v7886
  %v7951 = vadd.f32 %v7498, %v7887
  %v7952 = vadd.f32 %v7499, %v7888
  %v7953 = vadd.f32 %v7500, %v7889
  %v7954 = vadd.f32 %v7501, %v7890
  %v7955 = vadd.f32 %v7502, %v7891
  %v7956 = vadd.f32 %v7503, %v7892
  %v7957 = vadd.f32 %v7504, %v7893
  %v7958 = vadd.f32 %v7505, %v7894
  %v7959 = vadd.f32 %v7506, %v7895
  %v7960 = vadd.f32 %v7507, %v7896
  %v7961 = vadd.f32 %v7508, %v7897
  %v7962 = vadd.f32 %v7509, %v7898
  %v7963 = vadd.f32 %v7510, %v7899
  %v7964 = vadd.f32 %v7511, %v7900
  %v7965 = vadd.f32 %v7512, %v7901
  %v7966 = vadd.f32 %v7513, %v7902
  %v7967 = vadd.f32 %v7514, %v7903
  %v7968 = vadd.f32 %v7515, %v7904
  %v7969 = vadd.f32 %v7516, %v7905
  %v7970 = vadd.f32 %v7517, %v7906
  %v7971 = vadd.f32 %v7518, %v7907
  %v7972 = vadd.f32 %v7519, %v7908
  %v7973 = vadd.f32 %v7520, %v7909
  %v7974 = vsel %vm138, %v7910, 0.0
  %v7975 = vsel %vm138, %v7911, 0.0
  %v7976 = vadd.f32 %v7974, %v7975
  %v7977 = vsel %vm138, %v7912, 0.0
  %v7978 = vadd.f32 %v7976, %v7977
  %v7979 = vsel %vm138, %v7913, 0.0
  %v7980 = vadd.f32 %v7978, %v7979
  %v7981 = vsel %vm138, %v7914, 0.0
  %v7982 = vadd.f32 %v7980, %v7981
  %v7983 = vsel %vm138, %v7915, 0.0
  %v7984 = vadd.f32 %v7982, %v7983
  %v7985 = vsel %vm138, %v7916, 0.0
  %v7986 = vadd.f32 %v7984, %v7985
  %v7987 = vsel %vm138, %v7917, 0.0
  %v7988 = vadd.f32 %v7986, %v7987
  %v7989 = vsel %vm138, %v7918, 0.0
  %v7990 = vadd.f32 %v7988, %v7989
  %v7991 = vsel %vm138, %v7919, 0.0
  %v7992 = vadd.f32 %v7990, %v7991
  %v7993 = vsel %vm138, %v7920, 0.0
  %v7994 = vadd.f32 %v7992, %v7993
  %v7995 = vsel %vm138, %v7921, 0.0
  %v7996 = vadd.f32 %v7994, %v7995
  %v7997 = vsel %vm138, %v7922, 0.0
  %v7998 = vadd.f32 %v7996, %v7997
  %v7999 = vsel %vm138, %v7923, 0.0
  %v8000 = vadd.f32 %v7998, %v7999
  %v8001 = vsel %vm138, %v7924, 0.0
  %v8002 = vadd.f32 %v8000, %v8001
  %v8003 = vsel %vm138, %v7925, 0.0
  %v8004 = vadd.f32 %v8002, %v8003
  %v8005 = vsel %vm138, %v7926, 0.0
  %v8006 = vadd.f32 %v8004, %v8005
  %v8007 = vsel %vm138, %v7927, 0.0
  %v8008 = vadd.f32 %v8006, %v8007
  %v8009 = vsel %vm138, %v7928, 0.0
  %v8010 = vadd.f32 %v8008, %v8009
  %v8011 = vsel %vm138, %v7929, 0.0
  %v8012 = vadd.f32 %v8010, %v8011
  %v8013 = vsel %vm138, %v7930, 0.0
  %v8014 = vadd.f32 %v8012, %v8013
  %v8015 = vsel %vm138, %v7931, 0.0
  %v8016 = vadd.f32 %v8014, %v8015
  %v8017 = vsel %vm138, %v7932, 0.0
  %v8018 = vadd.f32 %v8016, %v8017
  %v8019 = vsel %vm138, %v7933, 0.0
  %v8020 = vadd.f32 %v8018, %v8019
  %v8021 = vsel %vm138, %v7934, 0.0
  %v8022 = vadd.f32 %v8020, %v8021
  %v8023 = vsel %vm138, %v7935, 0.0
  %v8024 = vadd.f32 %v8022, %v8023
  %v8025 = vsel %vm138, %v7936, 0.0
  %v8026 = vadd.f32 %v8024, %v8025
  %v8027 = vsel %vm138, %v7937, 0.0
  %v8028 = vadd.f32 %v8026, %v8027
  %v8029 = vsel %vm138, %v7938, 0.0
  %v8030 = vadd.f32 %v8028, %v8029
  %v8031 = vsel %vm138, %v7939, 0.0
  %v8032 = vadd.f32 %v8030, %v8031
  %v8033 = vsel %vm138, %v7940, 0.0
  %v8034 = vadd.f32 %v8032, %v8033
  %v8035 = vsel %vm138, %v7941, 0.0
  %v8036 = vadd.f32 %v8034, %v8035
  %v8037 = vrot.slane %v8036, 4
  %v8038 = vadd.f32 %v8036, %v8037
  %v8039 = vrot.slane %v8038, 2
  %v8040 = vadd.f32 %v8038, %v8039
  %v8041 = vrot.slane %v8040, 1
  %v8042 = vadd.f32 %v8040, %v8041
  %v8043 = vrcp.pop 256.0
  %v8044 = vmul.f32 %v8042, %v8043
  %v8045 = vsel %vm138, %v1048, 0.0
  %v8046 = vsel %vm138, %v1049, 0.0
  %v8047 = vadd.f32 %v8045, %v8046
  %v8048 = vsel %vm138, %v1050, 0.0
  %v8049 = vadd.f32 %v8047, %v8048
  %v8050 = vsel %vm138, %v1051, 0.0
  %v8051 = vadd.f32 %v8049, %v8050
  %v8052 = vsel %vm138, %v1052, 0.0
  %v8053 = vadd.f32 %v8051, %v8052
  %v8054 = vsel %vm138, %v1053, 0.0
  %v8055 = vadd.f32 %v8053, %v8054
  %v8056 = vsel %vm138, %v1054, 0.0
  %v8057 = vadd.f32 %v8055, %v8056
  %v8058 = vsel %vm138, %v1055, 0.0
  %v8059 = vadd.f32 %v8057, %v8058
  %v8060 = vsel %vm138, %v1056, 0.0
  %v8061 = vadd.f32 %v8059, %v8060
  %v8062 = vsel %vm138, %v1057, 0.0
  %v8063 = vadd.f32 %v8061, %v8062
  %v8064 = vsel %vm138, %v1058, 0.0
  %v8065 = vadd.f32 %v8063, %v8064
  %v8066 = vsel %vm138, %v1059, 0.0
  %v8067 = vadd.f32 %v8065, %v8066
  %v8068 = vsel %vm138, %v1060, 0.0
  %v8069 = vadd.f32 %v8067, %v8068
  %v8070 = vsel %vm138, %v1061, 0.0
  %v8071 = vadd.f32 %v8069, %v8070
  %v8072 = vsel %vm138, %v1062, 0.0
  %v8073 = vadd.f32 %v8071, %v8072
  %v8074 = vsel %vm138, %v1063, 0.0
  %v8075 = vadd.f32 %v8073, %v8074
  %v8076 = vsel %vm138, %v1064, 0.0
  %v8077 = vadd.f32 %v8075, %v8076
  %v8078 = vsel %vm138, %v1065, 0.0
  %v8079 = vadd.f32 %v8077, %v8078
  %v8080 = vsel %vm138, %v1066, 0.0
  %v8081 = vadd.f32 %v8079, %v8080
  %v8082 = vsel %vm138, %v1067, 0.0
  %v8083 = vadd.f32 %v8081, %v8082
  %v8084 = vsel %vm138, %v1068, 0.0
  %v8085 = vadd.f32 %v8083, %v8084
  %v8086 = vsel %vm138, %v1069, 0.0
  %v8087 = vadd.f32 %v8085, %v8086
  %v8088 = vsel %vm138, %v1070, 0.0
  %v8089 = vadd.f32 %v8087, %v8088
  %v8090 = vsel %vm138, %v1071, 0.0
  %v8091 = vadd.f32 %v8089, %v8090
  %v8092 = vsel %vm138, %v1072, 0.0
  %v8093 = vadd.f32 %v8091, %v8092
  %v8094 = vsel %vm138, %v1073, 0.0
  %v8095 = vadd.f32 %v8093, %v8094
  %v8096 = vsel %vm138, %v1074, 0.0
  %v8097 = vadd.f32 %v8095, %v8096
  %v8098 = vsel %vm138, %v1075, 0.0
  %v8099 = vadd.f32 %v8097, %v8098
  %v8100 = vsel %vm138, %v1076, 0.0
  %v8101 = vadd.f32 %v8099, %v8100
  %v8102 = vsel %vm138, %v1077, 0.0
  %v8103 = vadd.f32 %v8101, %v8102
  %v8104 = vsel %vm138, %v1078, 0.0
  %v8105 = vadd.f32 %v8103, %v8104
  %v8106 = vsel %vm138, %v1079, 0.0
  %v8107 = vadd.f32 %v8105, %v8106
  %v8108 = vrot.slane %v8107, 4
  %v8109 = vadd.f32 %v8107, %v8108
  %v8110 = vrot.slane %v8109, 2
  %v8111 = vadd.f32 %v8109, %v8110
  %v8112 = vrot.slane %v8111, 1
  %v8113 = vadd.f32 %v8111, %v8112
  %v8114 = vmul.f32 %v8113, %v8043
  %v8115 = vpack.c.bf16 %v8044, %v8044
  %v8116 = vld [vmem:[%s5] sm:$0xf]
  %v8117 = vld [vmem:[%s5 + $0x4] sm:$0xf]
  %v8118 = vld [vmem:[%s5 + $0x8] sm:$0xf]
  %v8119 = vld [vmem:[%s5 + $0xc] sm:$0xf]
  %v8120 = vpack.c.bf16 %v8114, %v8114
  %v8121 = vld [vmem:[%s6] sm:$0xf]
  %v8122 = vld [vmem:[%s6 + $0x4] sm:$0xf]
  %v8123 = vld [vmem:[%s6 + $0x8] sm:$0xf]
  %v8124 = vld [vmem:[%s6 + $0xc] sm:$0xf]
  %v8129 = vunpack.c.l.b16 %v8121
  %v8130 = vunpack.c.l.b16 %v8122
  %v8131 = vunpack.c.l.b16 %v8123
  %v8132 = vunpack.c.l.b16 %v8124
  %v8133 = vpack.c.b16 %v8130, %v8129
  %v8134 = vpack.c.b16 %v8132, %v8131
  %v8138 = vsel %vm138, %v8120, 0
  %8140 = vmatprep.subr.bf16.mxu0 0
  %8141 = vmatpush1.bf16.msra.mxu0 %v8133
  %8142 = vmatprep.subr.bf16.mxu0 0
  %8143 = vmatpush1.bf16.msra.mxu0 %v8134
  %8144 = vmatprep.subr.bf16.mxu0 0
  %8145 = vmatpush1.bf16.msra.mxu0 0
  %8146 = vmatprep.subr.bf16.mxu0 0
  %8147 = vmatpush1.bf16.msra.mxu0 0
  %8148 = vmatprep.subr.bf16.mxu0 0
  %8149 = vmatpush1.bf16.msra.mxu0 0
  %8150 = vmatprep.subr.bf16.mxu0 0
  %8151 = vmatpush1.bf16.msra.mxu0 0
  %8152 = vmatprep.subr.bf16.mxu0 0
  %8153 = vmatpush1.bf16.msra.mxu0 0
  %8154 = vmatprep.subr.bf16.mxu0 0
  %8155 = vmatpush1.bf16.msra.mxu0 0
  %8156 = vmatprep.subr.bf16.mxu0 0
  %8157 = vmatpush1.bf16.msra.mxu0 0
  %8158 = vmatprep.subr.bf16.mxu0 0
  %8159 = vmatpush1.bf16.msra.mxu0 0
  %8160 = vmatprep.subr.bf16.mxu0 0
  %8161 = vmatpush1.bf16.msra.mxu0 0
  %8162 = vmatprep.subr.bf16.mxu0 0
  %8163 = vmatpush1.bf16.msra.mxu0 0
  %8164 = vmatprep.subr.bf16.mxu0 0
  %8165 = vmatpush1.bf16.msra.mxu0 0
  %8166 = vmatprep.subr.bf16.mxu0 0
  %8167 = vmatpush1.bf16.msra.mxu0 0
  %8168 = vmatprep.subr.bf16.mxu0 0
  %8169 = vmatpush1.bf16.msra.mxu0 0
  %8170 = vmatprep.subr.bf16.mxu0 0
  %8171 = vmatpush1.bf16.msra.mxu0 0
  %8172 = vmatprep.mubr.bf16.mxu0 0
  %8173 = vmatmul.mubr.bf16.gmra.mrb[0].mxu0 %v8138
  %v8174 = vpop.f32.mrb[0].mxu0
  %v8175 = vadd.f32 0.0, %v8174
  %v8176 = vpop.f32.mrb[0].mxu0
  %v8177 = vpop.f32.mrb[0].mxu0
  %v8178 = vpop.f32.mrb[0].mxu0
  %8179 = vdwg.mxu0
  %v8184 = vunpack.c.l.b16 %v8116
  %v8185 = vunpack.c.l.b16 %v8117
  %v8186 = vunpack.c.l.b16 %v8118
  %v8187 = vunpack.c.l.b16 %v8119
  %v8188 = vpack.c.b16 %v8185, %v8184
  %v8189 = vpack.c.b16 %v8187, %v8186
  %v8193 = vsel %vm138, %v8115, 0
  %8195 = vmatprep.subr.bf16.mxu0 0
  %8196 = vmatpush1.bf16.msra.mxu0 %v8188
  %8197 = vmatprep.subr.bf16.mxu0 0
  %8198 = vmatpush1.bf16.msra.mxu0 %v8189
  %8199 = vmatprep.subr.bf16.mxu0 0
  %8200 = vmatpush1.bf16.msra.mxu0 0
  %8201 = vmatprep.subr.bf16.mxu0 0
  %8202 = vmatpush1.bf16.msra.mxu0 0
  %8203 = vmatprep.subr.bf16.mxu0 0
  %8204 = vmatpush1.bf16.msra.mxu0 0
  %8205 = vmatprep.subr.bf16.mxu0 0
  %8206 = vmatpush1.bf16.msra.mxu0 0
  %8207 = vmatprep.subr.bf16.mxu0 0
  %8208 = vmatpush1.bf16.msra.mxu0 0
  %8209 = vmatprep.subr.bf16.mxu0 0
  %8210 = vmatpush1.bf16.msra.mxu0 0
  %8211 = vmatprep.subr.bf16.mxu0 0
  %8212 = vmatpush1.bf16.msra.mxu0 0
  %8213 = vmatprep.subr.bf16.mxu0 0
  %8214 = vmatpush1.bf16.msra.mxu0 0
  %8215 = vmatprep.subr.bf16.mxu0 0
  %8216 = vmatpush1.bf16.msra.mxu0 0
  %8217 = vmatprep.subr.bf16.mxu0 0
  %8218 = vmatpush1.bf16.msra.mxu0 0
  %8219 = vmatprep.subr.bf16.mxu0 0
  %8220 = vmatpush1.bf16.msra.mxu0 0
  %8221 = vmatprep.subr.bf16.mxu0 0
  %8222 = vmatpush1.bf16.msra.mxu0 0
  %8223 = vmatprep.subr.bf16.mxu0 0
  %8224 = vmatpush1.bf16.msra.mxu0 0
  %8225 = vmatprep.subr.bf16.mxu0 0
  %8226 = vmatpush1.bf16.msra.mxu0 0
  %8227 = vmatprep.mubr.bf16.mxu0 0
  %8228 = vmatmul.mubr.bf16.gmra.mrb[0].mxu0 %v8193
  %v8229 = vpop.f32.mrb[0].mxu0
  %v8230 = vadd.f32 %v8175, %v8229
  %v8231 = vpop.f32.mrb[0].mxu0
  %v8232 = vpop.f32.mrb[0].mxu0
  %v8233 = vpop.f32.mrb[0].mxu0
  %8234 = vdwg.mxu0
  %v8235 = vld [vmem:[%s7] sm:$0x1]
  %v8236 = vadd.f32 %v8230, %v8235
  %v8237 = vpack.c.bf16 %v8236, %v8236
  %v8238 = vld [vmem:[%s8] sm:$0xf]
  %v8239 = vld [vmem:[%s8 + $0x4] sm:$0xf]
  %v8240 = vld [vmem:[%s8 + $0x8] sm:$0xf]
  %v8241 = vld [vmem:[%s8 + $0xc] sm:$0xf]
  %v8242 = vld [vmem:[%s8 + $0x10] sm:$0xf]
  %v8243 = vld [vmem:[%s8 + $0x14] sm:$0xf]
  %v8244 = vld [vmem:[%s8 + $0x18] sm:$0xf]
  %v8245 = vld [vmem:[%s8 + $0x1c] sm:$0xf]
  %v8246 = vld [vmem:[%s9] sm:$0x1]
  %v8255 = vunpack.c.l.b16 %v8238
  %v8256 = vunpack.c.l.b16 %v8239
  %v8257 = vunpack.c.l.b16 %v8240
  %v8258 = vunpack.c.l.b16 %v8241
  %v8259 = vunpack.c.l.b16 %v8242
  %v8260 = vunpack.c.l.b16 %v8243
  %v8261 = vunpack.c.l.b16 %v8244
  %v8262 = vunpack.c.l.b16 %v8245
  %v8263 = vpack.c.b16 %v8256, %v8255
  %v8264 = vpack.c.b16 %v8258, %v8257
  %v8265 = vpack.c.b16 %v8260, %v8259
  %v8266 = vpack.c.b16 %v8262, %v8261
  %vm8271 = vcmask 523264
  %v8273 = vsel %vm8271, %v8237, 0
  %8275 = vmatprep.subr.bf16.mxu0 0
  %8276 = vmatpush1.bf16.msra.mxu0 %v8263
  %8277 = vmatprep.subr.bf16.mxu0 0
  %8278 = vmatpush1.bf16.msra.mxu0 %v8264
  %8279 = vmatprep.subr.bf16.mxu0 0
  %8280 = vmatpush1.bf16.msra.mxu0 %v8265
  %8281 = vmatprep.subr.bf16.mxu0 0
  %8282 = vmatpush1.bf16.msra.mxu0 %v8266
  %8283 = vmatprep.subr.bf16.mxu0 0
  %8284 = vmatpush1.bf16.msra.mxu0 0
  %8285 = vmatprep.subr.bf16.mxu0 0
  %8286 = vmatpush1.bf16.msra.mxu0 0
  %8287 = vmatprep.subr.bf16.mxu0 0
  %8288 = vmatpush1.bf16.msra.mxu0 0
  %8289 = vmatprep.subr.bf16.mxu0 0
  %8290 = vmatpush1.bf16.msra.mxu0 0
  %8291 = vmatprep.subr.bf16.mxu0 0
  %8292 = vmatpush1.bf16.msra.mxu0 0
  %8293 = vmatprep.subr.bf16.mxu0 0
  %8294 = vmatpush1.bf16.msra.mxu0 0
  %8295 = vmatprep.subr.bf16.mxu0 0
  %8296 = vmatpush1.bf16.msra.mxu0 0
  %8297 = vmatprep.subr.bf16.mxu0 0
  %8298 = vmatpush1.bf16.msra.mxu0 0
  %8299 = vmatprep.subr.bf16.mxu0 0
  %8300 = vmatpush1.bf16.msra.mxu0 0
  %8301 = vmatprep.subr.bf16.mxu0 0
  %8302 = vmatpush1.bf16.msra.mxu0 0
  %8303 = vmatprep.subr.bf16.mxu0 0
  %8304 = vmatpush1.bf16.msra.mxu0 0
  %8305 = vmatprep.subr.bf16.mxu0 0
  %8306 = vmatpush1.bf16.msra.mxu0 0
  %8307 = vmatprep.mubr.bf16.mxu0 0
  %8308 = vmatmul.mubr.bf16.gmra.mrb[0].mxu0 %v8273
  %v8309 = vpop.f32.mrb[0].mxu0
  %v8310 = vadd.f32 %v8246, %v8309
  %v8311 = vpop.f32.mrb[0].mxu0
  %v8312 = vpop.f32.mrb[0].mxu0
  %v8313 = vpop.f32.mrb[0].mxu0
  %8314 = vdwg.mxu0
  %v8315 = vmul.f32 %v8310, 0.5
  %v8316 = vmul.f32 %v8310, 0.044715
  %v8317 = vmul.f32 %v8316, %v8310
  %v8318 = vmul.f32 %v8317, %v8310
  %v8319 = vadd.f32 %v8310, %v8318
  %v8320 = vmul.f32 %v8319, 0.7978846
  %v8321 = vtanh.pop %v8320
  %v8322 = vadd.f32 %v8321, 1.0
  %v8323 = vmul.f32 %v8315, %v8322
  %v8324 = vpack.c.bf16 %v8323, %v8323
  %v8325 = vld [vmem:[%s10] sm:$0xf]
  %v8326 = vld [vmem:[%s11] sm:$0x1]
  %vm8327 = vcmask 64512
  %v8329 = vsel %vm8327, %v8324, 0
  %vm8331 = vcmask 1043456
  %v8333 = vsel %vm8331, %v8325, 0
  %8335 = vmatprep.subr.bf16.mxu0 0
  %8336 = vmatpush1.bf16.msra.mxu0 %v8333
  %8337 = vmatprep.subr.bf16.mxu0 0
  %8338 = vmatpush1.bf16.msra.mxu0 0
  %8339 = vmatprep.subr.bf16.mxu0 0
  %8340 = vmatpush1.bf16.msra.mxu0 0
  %8341 = vmatprep.subr.bf16.mxu0 0
  %8342 = vmatpush1.bf16.msra.mxu0 0
  %8343 = vmatprep.subr.bf16.mxu0 0
  %8344 = vmatpush1.bf16.msra.mxu0 0
  %8345 = vmatprep.subr.bf16.mxu0 0
  %8346 = vmatpush1.bf16.msra.mxu0 0
  %8347 = vmatprep.subr.bf16.mxu0 0
  %8348 = vmatpush1.bf16.msra.mxu0 0
  %8349 = vmatprep.subr.bf16.mxu0 0
  %8350 = vmatpush1.bf16.msra.mxu0 0
  %8351 = vmatprep.subr.bf16.mxu0 0
  %8352 = vmatpush1.bf16.msra.mxu0 0
  %8353 = vmatprep.subr.bf16.mxu0 0
  %8354 = vmatpush1.bf16.msra.mxu0 0
  %8355 = vmatprep.subr.bf16.mxu0 0
  %8356 = vmatpush1.bf16.msra.mxu0 0
  %8357 = vmatprep.subr.bf16.mxu0 0
  %8358 = vmatpush1.bf16.msra.mxu0 0
  %8359 = vmatprep.subr.bf16.mxu0 0
  %8360 = vmatpush1.bf16.msra.mxu0 0
  %8361 = vmatprep.subr.bf16.mxu0 0
  %8362 = vmatpush1.bf16.msra.mxu0 0
  %8363 = vmatprep.subr.bf16.mxu0 0
  %8364 = vmatpush1.bf16.msra.mxu0 0
  %8365 = vmatprep.subr.bf16.mxu0 0
  %8366 = vmatpush1.bf16.msra.mxu0 0
  %8367 = vmatprep.mubr.bf16.mxu0 0
  %8368 = vmatmul.mubr.bf16.gmra.mrb[0].mxu0 %v8329
  %v8369 = vpop.f32.mrb[0].mxu0
  %v8370 = vadd.f32 %v8326, %v8369
  %v8371 = vpop.f32.mrb[0].mxu0
  %v8372 = vpop.f32.mrb[0].mxu0
  %v8373 = vpop.f32.mrb[0].mxu0
  %8374 = vdwg.mxu0
  %v8375 = vld [vmem:[%s12] sm:$0xf]
  %v8376 = vld [vmem:[%s13] sm:$0x1]
  %v8378 = vsel %vm8331, %v8375, 0
  %8380 = vmatprep.subr.bf16.mxu0 0
  %8381 = vmatpush1.bf16.msra.mxu0 %v8378
  %8382 = vmatprep.subr.bf16.mxu0 0
  %8383 = vmatpush1.bf16.msra.mxu0 0
  %8384 = vmatprep.subr.bf16.mxu0 0
  %8385 = vmatpush1.bf16.msra.mxu0 0
  %8386 = vmatprep.subr.bf16.mxu0 0
  %8387 = vmatpush1.bf16.msra.mxu0 0
  %8388 = vmatprep.subr.bf16.mxu0 0
  %8389 = vmatpush1.bf16.msra.mxu0 0
  %8390 = vmatprep.subr.bf16.mxu0 0
  %8391 = vmatpush1.bf16.msra.mxu0 0
  %8392 = vmatprep.subr.bf16.mxu0 0
  %8393 = vmatpush1.bf16.msra.mxu0 0
  %8394 = vmatprep.subr.bf16.mxu0 0
  %8395 = vmatpush1.bf16.msra.mxu0 0
  %8396 = vmatprep.subr.bf16.mxu0 0
  %8397 = vmatpush1.bf16.msra.mxu0 0
  %8398 = vmatprep.subr.bf16.mxu0 0
  %8399 = vmatpush1.bf16.msra.mxu0 0
  %8400 = vmatprep.subr.bf16.mxu0 0
  %8401 = vmatpush1.bf16.msra.mxu0 0
  %8402 = vmatprep.subr.bf16.mxu0 0
  %8403 = vmatpush1.bf16.msra.mxu0 0
  %8404 = vmatprep.subr.bf16.mxu0 0
  %8405 = vmatpush1.bf16.msra.mxu0 0
  %8406 = vmatprep.subr.bf16.mxu0 0
  %8407 = vmatpush1.bf16.msra.mxu0 0
  %8408 = vmatprep.subr.bf16.mxu0 0
  %8409 = vmatpush1.bf16.msra.mxu0 0
  %8410 = vmatprep.subr.bf16.mxu0 0
  %8411 = vmatpush1.bf16.msra.mxu0 0
  %8412 = vmatprep.mubr.bf16.mxu0 0
  %8413 = vmatmul.mubr.bf16.gmra.mrb[0].mxu0 %v8329
  %v8414 = vpop.f32.mrb[0].mxu0
  %v8415 = vadd.f32 %v8376, %v8414
  %v8416 = vpop.f32.mrb[0].mxu0
  %v8417 = vpop.f32.mrb[0].mxu0
  %v8418 = vpop.f32.mrb[0].mxu0
  %8419 = vdwg.mxu0
  %v8420 = vmax.f32 %v8370, %v8415
  %v8421 = vsub.f32 %v8370, %v8420
  %v8422 = vmul.f32 %v8421, 1.442695
  %v8423 = vpow.pop %v8422
  %v8424 = vsub.f32 %v8415, %v8420
  %v8425 = vmul.f32 %v8424, 1.442695
  %v8426 = vpow.pop %v8425
  %v8427 = vadd.f32 %v8423, %v8426
  %v8428 = vrcp.pop %v8427
  %v8429 = vmul.f32 %v8423, %v8428
  %v8430 = vsel %vm138, %v7942, 0.0
  %v8431 = vsel %vm138, %v7943, 0.0
  %v8432 = vadd.f32 %v8430, %v8431
  %v8433 = vsel %vm138, %v7944, 0.0
  %v8434 = vadd.f32 %v8432, %v8433
  %v8435 = vsel %vm138, %v7945, 0.0
  %v8436 = vadd.f32 %v8434, %v8435
  %v8437 = vsel %vm138, %v7946, 0.0
  %v8438 = vadd.f32 %v8436, %v8437
  %v8439 = vsel %vm138, %v7947, 0.0
  %v8440 = vadd.f32 %v8438, %v8439
  %v8441 = vsel %vm138, %v7948, 0.0
  %v8442 = vadd.f32 %v8440, %v8441
  %v8443 = vsel %vm138, %v7949, 0.0
  %v8444 = vadd.f32 %v8442, %v8443
  %v8445 = vsel %vm138, %v7950, 0.0
  %v8446 = vadd.f32 %v8444, %v8445
  %v8447 = vsel %vm138, %v7951, 0.0
  %v8448 = vadd.f32 %v8446, %v8447
  %v8449 = vsel %vm138, %v7952, 0.0
  %v8450 = vadd.f32 %v8448, %v8449
  %v8451 = vsel %vm138, %v7953, 0.0
  %v8452 = vadd.f32 %v8450, %v8451
  %v8453 = vsel %vm138, %v7954, 0.0
  %v8454 = vadd.f32 %v8452, %v8453
  %v8455 = vsel %vm138, %v7955, 0.0
  %v8456 = vadd.f32 %v8454, %v8455
  %v8457 = vsel %vm138, %v7956, 0.0
  %v8458 = vadd.f32 %v8456, %v8457
  %v8459 = vsel %vm138, %v7957, 0.0
  %v8460 = vadd.f32 %v8458, %v8459
  %v8461 = vsel %vm138, %v7958, 0.0
  %v8462 = vadd.f32 %v8460, %v8461
  %v8463 = vsel %vm138, %v7959, 0.0
  %v8464 = vadd.f32 %v8462, %v8463
  %v8465 = vsel %vm138, %v7960, 0.0
  %v8466 = vadd.f32 %v8464, %v8465
  %v8467 = vsel %vm138, %v7961, 0.0
  %v8468 = vadd.f32 %v8466, %v8467
  %v8469 = vsel %vm138, %v7962, 0.0
  %v8470 = vadd.f32 %v8468, %v8469
  %v8471 = vsel %vm138, %v7963, 0.0
  %v8472 = vadd.f32 %v8470, %v8471
  %v8473 = vsel %vm138, %v7964, 0.0
  %v8474 = vadd.f32 %v8472, %v8473
  %v8475 = vsel %vm138, %v7965, 0.0
  %v8476 = vadd.f32 %v8474, %v8475
  %v8477 = vsel %vm138, %v7966, 0.0
  %v8478 = vadd.f32 %v8476, %v8477
  %v8479 = vsel %vm138, %v7967, 0.0
  %v8480 = vadd.f32 %v8478, %v8479
  %v8481 = vsel %vm138, %v7968, 0.0
  %v8482 = vadd.f32 %v8480, %v8481
  %v8483 = vsel %vm138, %v7969, 0.0
  %v8484 = vadd.f32 %v8482, %v8483
  %v8485 = vsel %vm138, %v7970, 0.0
  %v8486 = vadd.f32 %v8484, %v8485
  %v8487 = vsel %vm138, %v7971, 0.0
  %v8488 = vadd.f32 %v8486, %v8487
  %v8489 = vsel %vm138, %v7972, 0.0
  %v8490 = vadd.f32 %v8488, %v8489
  %v8491 = vsel %vm138, %v7973, 0.0
  %v8492 = vadd.f32 %v8490, %v8491
  %v8493 = vrot.slane %v8492, 4
  %v8494 = vadd.f32 %v8492, %v8493
  %v8495 = vrot.slane %v8494, 2
  %v8496 = vadd.f32 %v8494, %v8495
  %v8497 = vrot.slane %v8496, 1
  %v8498 = vadd.f32 %v8496, %v8497
  %v8499 = vmul.f32 %v8498, %v8043
  %v8500 = vsel %vm138, %v1080, 0.0
  %v8501 = vsel %vm138, %v1081, 0.0
  %v8502 = vadd.f32 %v8500, %v8501
  %v8503 = vsel %vm138, %v1082, 0.0
  %v8504 = vadd.f32 %v8502, %v8503
  %v8505 = vsel %vm138, %v1083, 0.0
  %v8506 = vadd.f32 %v8504, %v8505
  %v8507 = vsel %vm138, %v1084, 0.0
  %v8508 = vadd.f32 %v8506, %v8507
  %v8509 = vsel %vm138, %v1085, 0.0
  %v8510 = vadd.f32 %v8508, %v8509
  %v8511 = vsel %vm138, %v1086, 0.0
  %v8512 = vadd.f32 %v8510, %v8511
  %v8513 = vsel %vm138, %v1087, 0.0
  %v8514 = vadd.f32 %v8512, %v8513
  %v8515 = vsel %vm138, %v1088, 0.0
  %v8516 = vadd.f32 %v8514, %v8515
  %v8517 = vsel %vm138, %v1089, 0.0
  %v8518 = vadd.f32 %v8516, %v8517
  %v8519 = vsel %vm138, %v1090, 0.0
  %v8520 = vadd.f32 %v8518, %v8519
  %v8521 = vsel %vm138, %v1091, 0.0
  %v8522 = vadd.f32 %v8520, %v8521
  %v8523 = vsel %vm138, %v1092, 0.0
  %v8524 = vadd.f32 %v8522, %v8523
  %v8525 = vsel %vm138, %v1093, 0.0
  %v8526 = vadd.f32 %v8524, %v8525
  %v8527 = vsel %vm138, %v1094, 0.0
  %v8528 = vadd.f32 %v8526, %v8527
  %v8529 = vsel %vm138, %v1095, 0.0
  %v8530 = vadd.f32 %v8528, %v8529
  %v8531 = vsel %vm138, %v1096, 0.0
  %v8532 = vadd.f32 %v8530, %v8531
  %v8533 = vsel %vm138, %v1097, 0.0
  %v8534 = vadd.f32 %v8532, %v8533
  %v8535 = vsel %vm138, %v1098, 0.0
  %v8536 = vadd.f32 %v8534, %v8535
  %v8537 = vsel %vm138, %v1099, 0.0
  %v8538 = vadd.f32 %v8536, %v8537
  %v8539 = vsel %vm138, %v1100, 0.0
  %v8540 = vadd.f32 %v8538, %v8539
  %v8541 = vsel %vm138, %v1101, 0.0
  %v8542 = vadd.f32 %v8540, %v8541
  %v8543 = vsel %vm138, %v1102, 0.0
  %v8544 = vadd.f32 %v8542, %v8543
  %v8545 = vsel %vm138, %v1103, 0.0
  %v8546 = vadd.f32 %v8544, %v8545
  %v8547 = vsel %vm138, %v1104, 0.0
  %v8548 = vadd.f32 %v8546, %v8547
  %v8549 = vsel %vm138, %v1105, 0.0
  %v8550 = vadd.f32 %v8548, %v8549
  %v8551 = vsel %vm138, %v1106, 0.0
  %v8552 = vadd.f32 %v8550, %v8551
  %v8553 = vsel %vm138, %v1107, 0.0
  %v8554 = vadd.f32 %v8552, %v8553
  %v8555 = vsel %vm138, %v1108, 0.0
  %v8556 = vadd.f32 %v8554, %v8555
  %v8557 = vsel %vm138, %v1109, 0.0
  %v8558 = vadd.f32 %v8556, %v8557
  %v8559 = vsel %vm138, %v1110, 0.0
  %v8560 = vadd.f32 %v8558, %v8559
  %v8561 = vsel %vm138, %v1111, 0.0
  %v8562 = vadd.f32 %v8560, %v8561
  %v8563 = vrot.slane %v8562, 4
  %v8564 = vadd.f32 %v8562, %v8563
  %v8565 = vrot.slane %v8564, 2
  %v8566 = vadd.f32 %v8564, %v8565
  %v8567 = vrot.slane %v8566, 1
  %v8568 = vadd.f32 %v8566, %v8567
  %v8569 = vmul.f32 %v8568, %v8043
  %v8570 = vpack.c.bf16 %v8499, %v8499
  %v8571 = vpack.c.bf16 %v8569, %v8569
  %v8573 = vsel %vm138, %v8571, 0
  %8575 = vmatprep.subr.bf16.mxu0 0
  %8576 = vmatpush1.bf16.msra.mxu0 %v8133
  %8577 = vmatprep.subr.bf16.mxu0 0
  %8578 = vmatpush1.bf16.msra.mxu0 %v8134
  %8579 = vmatprep.subr.bf16.mxu0 0
  %8580 = vmatpush1.bf16.msra.mxu0 0
  %8581 = vmatprep.subr.bf16.mxu0 0
  %8582 = vmatpush1.bf16.msra.mxu0 0
  %8583 = vmatprep.subr.bf16.mxu0 0
  %8584 = vmatpush1.bf16.msra.mxu0 0
  %8585 = vmatprep.subr.bf16.mxu0 0
  %8586 = vmatpush1.bf16.msra.mxu0 0
  %8587 = vmatprep.subr.bf16.mxu0 0
  %8588 = vmatpush1.bf16.msra.mxu0 0
  %8589 = vmatprep.subr.bf16.mxu0 0
  %8590 = vmatpush1.bf16.msra.mxu0 0
  %8591 = vmatprep.subr.bf16.mxu0 0
  %8592 = vmatpush1.bf16.msra.mxu0 0
  %8593 = vmatprep.subr.bf16.mxu0 0
  %8594 = vmatpush1.bf16.msra.mxu0 0
  %8595 = vmatprep.subr.bf16.mxu0 0
  %8596 = vmatpush1.bf16.msra.mxu0 0
  %8597 = vmatprep.subr.bf16.mxu0 0
  %8598 = vmatpush1.bf16.msra.mxu0 0
  %8599 = vmatprep.subr.bf16.mxu0 0
  %8600 = vmatpush1.bf16.msra.mxu0 0
  %8601 = vmatprep.subr.bf16.mxu0 0
  %8602 = vmatpush1.bf16.msra.mxu0 0
  %8603 = vmatprep.subr.bf16.mxu0 0
  %8604 = vmatpush1.bf16.msra.mxu0 0
  %8605 = vmatprep.subr.bf16.mxu0 0
  %8606 = vmatpush1.bf16.msra.mxu0 0
  %8607 = vmatprep.mubr.bf16.mxu0 0
  %8608 = vmatmul.mubr.bf16.gmra.mrb[0].mxu0 %v8573
  %v8609 = vpop.f32.mrb[0].mxu0
  %v8610 = vadd.f32 0.0, %v8609
  %v8611 = vpop.f32.mrb[0].mxu0
  %v8612 = vpop.f32.mrb[0].mxu0
  %v8613 = vpop.f32.mrb[0].mxu0
  %8614 = vdwg.mxu0
  %v8616 = vsel %vm138, %v8570, 0
  %8618 = vmatprep.subr.bf16.mxu0 0
  %8619 = vmatpush1.bf16.msra.mxu0 %v8188
  %8620 = vmatprep.subr.bf16.mxu0 0
  %8621 = vmatpush1.bf16.msra.mxu0 %v8189
  %8622 = vmatprep.subr.bf16.mxu0 0
  %8623 = vmatpush1.bf16.msra.mxu0 0
  %8624 = vmatprep.subr.bf16.mxu0 0
  %8625 = vmatpush1.bf16.msra.mxu0 0
  %8626 = vmatprep.subr.bf16.mxu0 0
  %8627 = vmatpush1.bf16.msra.mxu0 0
  %8628 = vmatprep.subr.bf16.mxu0 0
  %8629 = vmatpush1.bf16.msra.mxu0 0
  %8630 = vmatprep.subr.bf16.mxu0 0
  %8631 = vmatpush1.bf16.msra.mxu0 0
  %8632 = vmatprep.subr.bf16.mxu0 0
  %8633 = vmatpush1.bf16.msra.mxu0 0
  %8634 = vmatprep.subr.bf16.mxu0 0
  %8635 = vmatpush1.bf16.msra.mxu0 0
  %8636 = vmatprep.subr.bf16.mxu0 0
  %8637 = vmatpush1.bf16.msra.mxu0 0
  %8638 = vmatprep.subr.bf16.mxu0 0
  %8639 = vmatpush1.bf16.msra.mxu0 0
  %8640 = vmatprep.subr.bf16.mxu0 0
  %8641 = vmatpush1.bf16.msra.mxu0 0
  %8642 = vmatprep.subr.bf16.mxu0 0
  %8643 = vmatpush1.bf16.msra.mxu0 0
  %8644 = vmatprep.subr.bf16.mxu0 0
  %8645 = vmatpush1.bf16.msra.mxu0 0
  %8646 = vmatprep.subr.bf16.mxu0 0
  %8647 = vmatpush1.bf16.msra.mxu0 0
  %8648 = vmatprep.subr.bf16.mxu0 0
  %8649 = vmatpush1.bf16.msra.mxu0 0
  %8650 = vmatprep.mubr.bf16.mxu0 0
  %8651 = vmatmul.mubr.bf16.gmra.mrb[0].mxu0 %v8616
  %v8652 = vpop.f32.mrb[0].mxu0
  %v8653 = vadd.f32 %v8610, %v8652
  %v8654 = vpop.f32.mrb[0].mxu0
  %v8655 = vpop.f32.mrb[0].mxu0
  %v8656 = vpop.f32.mrb[0].mxu0
  %8657 = vdwg.mxu0
  %v8658 = vadd.f32 %v8653, %v8235
  %v8659 = vpack.c.bf16 %v8658, %v8658
  %v8661 = vsel %vm8271, %v8659, 0
  %8663 = vmatprep.subr.bf16.mxu0 0
  %8664 = vmatpush1.bf16.msra.mxu0 %v8263
  %8665 = vmatprep.subr.bf16.mxu0 0
  %8666 = vmatpush1.bf16.msra.mxu0 %v8264
  %8667 = vmatprep.subr.bf16.mxu0 0
  %8668 = vmatpush1.bf16.msra.mxu0 %v8265
  %8669 = vmatprep.subr.bf16.mxu0 0
  %8670 = vmatpush1.bf16.msra.mxu0 %v8266
  %8671 = vmatprep.subr.bf16.mxu0 0
  %8672 = vmatpush1.bf16.msra.mxu0 0
  %8673 = vmatprep.subr.bf16.mxu0 0
  %8674 = vmatpush1.bf16.msra.mxu0 0
  %8675 = vmatprep.subr.bf16.mxu0 0
  %8676 = vmatpush1.bf16.msra.mxu0 0
  %8677 = vmatprep.subr.bf16.mxu0 0
  %8678 = vmatpush1.bf16.msra.mxu0 0
  %8679 = vmatprep.subr.bf16.mxu0 0
  %8680 = vmatpush1.bf16.msra.mxu0 0
  %8681 = vmatprep.subr.bf16.mxu0 0
  %8682 = vmatpush1.bf16.msra.mxu0 0
  %8683 = vmatprep.subr.bf16.mxu0 0
  %8684 = vmatpush1.bf16.msra.mxu0 0
  %8685 = vmatprep.subr.bf16.mxu0 0
  %8686 = vmatpush1.bf16.msra.mxu0 0
  %8687 = vmatprep.subr.bf16.mxu0 0
  %8688 = vmatpush1.bf16.msra.mxu0 0
  %8689 = vmatprep.subr.bf16.mxu0 0
  %8690 = vmatpush1.bf16.msra.mxu0 0
  %8691 = vmatprep.subr.bf16.mxu0 0
  %8692 = vmatpush1.bf16.msra.mxu0 0
  %8693 = vmatprep.subr.bf16.mxu0 0
  %8694 = vmatpush1.bf16.msra.mxu0 0
  %8695 = vmatprep.mubr.bf16.mxu0 0
  %8696 = vmatmul.mubr.bf16.gmra.mrb[0].mxu0 %v8661
  %v8697 = vpop.f32.mrb[0].mxu0
  %v8698 = vadd.f32 %v8246, %v8697
  %v8699 = vpop.f32.mrb[0].mxu0
  %v8700 = vpop.f32.mrb[0].mxu0
  %v8701 = vpop.f32.mrb[0].mxu0
  %8702 = vdwg.mxu0
  %v8703 = vmul.f32 %v8698, 0.5
  %v8704 = vmul.f32 %v8698, 0.044715
  %v8705 = vmul.f32 %v8704, %v8698
  %v8706 = vmul.f32 %v8705, %v8698
  %v8707 = vadd.f32 %v8698, %v8706
  %v8708 = vmul.f32 %v8707, 0.7978846
  %v8709 = vtanh.pop %v8708
  %v8710 = vadd.f32 %v8709, 1.0
  %v8711 = vmul.f32 %v8703, %v8710
  %v8712 = vpack.c.bf16 %v8711, %v8711
  %v8714 = vsel %vm8327, %v8712, 0
  %8716 = vmatprep.subr.bf16.mxu0 0
  %8717 = vmatpush1.bf16.msra.mxu0 %v8333
  %8718 = vmatprep.subr.bf16.mxu0 0
  %8719 = vmatpush1.bf16.msra.mxu0 0
  %8720 = vmatprep.subr.bf16.mxu0 0
  %8721 = vmatpush1.bf16.msra.mxu0 0
  %8722 = vmatprep.subr.bf16.mxu0 0
  %8723 = vmatpush1.bf16.msra.mxu0 0
  %8724 = vmatprep.subr.bf16.mxu0 0
  %8725 = vmatpush1.bf16.msra.mxu0 0
  %8726 = vmatprep.subr.bf16.mxu0 0
  %8727 = vmatpush1.bf16.msra.mxu0 0
  %8728 = vmatprep.subr.bf16.mxu0 0
  %8729 = vmatpush1.bf16.msra.mxu0 0
  %8730 = vmatprep.subr.bf16.mxu0 0
  %8731 = vmatpush1.bf16.msra.mxu0 0
  %8732 = vmatprep.subr.bf16.mxu0 0
  %8733 = vmatpush1.bf16.msra.mxu0 0
  %8734 = vmatprep.subr.bf16.mxu0 0
  %8735 = vmatpush1.bf16.msra.mxu0 0
  %8736 = vmatprep.subr.bf16.mxu0 0
  %8737 = vmatpush1.bf16.msra.mxu0 0
  %8738 = vmatprep.subr.bf16.mxu0 0
  %8739 = vmatpush1.bf16.msra.mxu0 0
  %8740 = vmatprep.subr.bf16.mxu0 0
  %8741 = vmatpush1.bf16.msra.mxu0 0
  %8742 = vmatprep.subr.bf16.mxu0 0
  %8743 = vmatpush1.bf16.msra.mxu0 0
  %8744 = vmatprep.subr.bf16.mxu0 0
  %8745 = vmatpush1.bf16.msra.mxu0 0
  %8746 = vmatprep.subr.bf16.mxu0 0
  %8747 = vmatpush1.bf16.msra.mxu0 0
  %8748 = vmatprep.mubr.bf16.mxu0 0
  %8749 = vmatmul.mubr.bf16.gmra.mrb[0].mxu0 %v8714
  %v8750 = vpop.f32.mrb[0].mxu0
  %v8751 = vadd.f32 %v8326, %v8750
  %v8752 = vpop.f32.mrb[0].mxu0
  %v8753 = vpop.f32.mrb[0].mxu0
  %v8754 = vpop.f32.mrb[0].mxu0
  %8755 = vdwg.mxu0
  %8756 = vmatprep.subr.bf16.mxu0 0
  %8757 = vmatpush1.bf16.msra.mxu0 %v8378
  %8758 = vmatprep.subr.bf16.mxu0 0
  %8759 = vmatpush1.bf16.msra.mxu0 0
  %8760 = vmatprep.subr.bf16.mxu0 0
  %8761 = vmatpush1.bf16.msra.mxu0 0
  %8762 = vmatprep.subr.bf16.mxu0 0
  %8763 = vmatpush1.bf16.msra.mxu0 0
  %8764 = vmatprep.subr.bf16.mxu0 0
  %8765 = vmatpush1.bf16.msra.mxu0 0
  %8766 = vmatprep.subr.bf16.mxu0 0
  %8767 = vmatpush1.bf16.msra.mxu0 0
  %8768 = vmatprep.subr.bf16.mxu0 0
  %8769 = vmatpush1.bf16.msra.mxu0 0
  %8770 = vmatprep.subr.bf16.mxu0 0
  %8771 = vmatpush1.bf16.msra.mxu0 0
  %8772 = vmatprep.subr.bf16.mxu0 0
  %8773 = vmatpush1.bf16.msra.mxu0 0
  %8774 = vmatprep.subr.bf16.mxu0 0
  %8775 = vmatpush1.bf16.msra.mxu0 0
  %8776 = vmatprep.subr.bf16.mxu0 0
  %8777 = vmatpush1.bf16.msra.mxu0 0
  %8778 = vmatprep.subr.bf16.mxu0 0
  %8779 = vmatpush1.bf16.msra.mxu0 0
  %8780 = vmatprep.subr.bf16.mxu0 0
  %8781 = vmatpush1.bf16.msra.mxu0 0
  %8782 = vmatprep.subr.bf16.mxu0 0
  %8783 = vmatpush1.bf16.msra.mxu0 0
  %8784 = vmatprep.subr.bf16.mxu0 0
  %8785 = vmatpush1.bf16.msra.mxu0 0
  %8786 = vmatprep.subr.bf16.mxu0 0
  %8787 = vmatpush1.bf16.msra.mxu0 0
  %8788 = vmatprep.mubr.bf16.mxu0 0
  %8789 = vmatmul.mubr.bf16.gmra.mrb[0].mxu0 %v8714
  %v8790 = vpop.f32.mrb[0].mxu0
  %v8791 = vadd.f32 %v8376, %v8790
  %v8792 = vpop.f32.mrb[0].mxu0
  %v8793 = vpop.f32.mrb[0].mxu0
  %v8794 = vpop.f32.mrb[0].mxu0
  %8795 = vdwg.mxu0
  %v8796 = vmax.f32 %v8751, %v8791
  %v8797 = vsub.f32 %v8751, %v8796
  %v8798 = vmul.f32 %v8797, 1.442695
  %v8799 = vpow.pop %v8798
  %v8800 = vsub.f32 %v8791, %v8796
  %v8801 = vmul.f32 %v8800, 1.442695
  %v8802 = vpow.pop %v8801
  %v8803 = vadd.f32 %v8799, %v8802
  %v8804 = vrcp.pop %v8803
  %v8805 = vmul.f32 %v8799, %v8804
  %v8806 = vpack.c.bf16 %v7911, %v7910
  %v8807 = vpack.c.bf16 %v7913, %v7912
  %v8808 = vpack.c.bf16 %v7915, %v7914
  %v8809 = vpack.c.bf16 %v7917, %v7916
  %v8810 = vpack.c.bf16 %v7919, %v7918
  %v8811 = vpack.c.bf16 %v7921, %v7920
  %v8812 = vpack.c.bf16 %v7923, %v7922
  %v8813 = vpack.c.bf16 %v7925, %v7924
  %v8814 = vpack.c.bf16 %v7927, %v7926
  %v8815 = vpack.c.bf16 %v7929, %v7928
  %v8816 = vpack.c.bf16 %v7931, %v7930
  %v8817 = vpack.c.bf16 %v7933, %v7932
  %v8818 = vpack.c.bf16 %v7935, %v7934
  %v8819 = vpack.c.bf16 %v7937, %v7936
  %v8820 = vpack.c.bf16 %v7939, %v7938
  %v8821 = vpack.c.bf16 %v7941, %v7940
  %v8822 = vpack.c.bf16 %v7943, %v7942
  %v8823 = vpack.c.bf16 %v7945, %v7944
  %v8824 = vpack.c.bf16 %v7947, %v7946
  %v8825 = vpack.c.bf16 %v7949, %v7948
  %v8826 = vpack.c.bf16 %v7951, %v7950
  %v8827 = vpack.c.bf16 %v7953, %v7952
  %v8828 = vpack.c.bf16 %v7955, %v7954
  %v8829 = vpack.c.bf16 %v7957, %v7956
  %v8830 = vpack.c.bf16 %v7959, %v7958
  %v8831 = vpack.c.bf16 %v7961, %v7960
  %v8832 = vpack.c.bf16 %v7963, %v7962
  %v8833 = vpack.c.bf16 %v7965, %v7964
  %v8834 = vpack.c.bf16 %v7967, %v7966
  %v8835 = vpack.c.bf16 %v7969, %v7968
  %v8836 = vpack.c.bf16 %v7971, %v7970
  %v8837 = vpack.c.bf16 %v7973, %v7972
  %v8838 = vpack.c.bf16 %v1049, %v1048
  %v8839 = vpack.c.bf16 %v1051, %v1050
  %v8840 = vpack.c.bf16 %v1053, %v1052
  %v8841 = vpack.c.bf16 %v1055, %v1054
  %v8842 = vpack.c.bf16 %v1057, %v1056
  %v8843 = vpack.c.bf16 %v1059, %v1058
  %v8844 = vpack.c.bf16 %v1061, %v1060
  %v8845 = vpack.c.bf16 %v1063, %v1062
  %v8846 = vpack.c.bf16 %v1065, %v1064
  %v8847 = vpack.c.bf16 %v1067, %v1066
  %v8848 = vpack.c.bf16 %v1069, %v1068
  %v8849 = vpack.c.bf16 %v1071, %v1070
  %v8850 = vpack.c.bf16 %v1073, %v1072
  %v8851 = vpack.c.bf16 %v1075, %v1074
  %v8852 = vpack.c.bf16 %v1077, %v1076
  %v8853 = vpack.c.bf16 %v1079, %v1078
  %v8854 = vpack.c.bf16 %v1081, %v1080
  %v8855 = vpack.c.bf16 %v1083, %v1082
  %v8856 = vpack.c.bf16 %v1085, %v1084
  %v8857 = vpack.c.bf16 %v1087, %v1086
  %v8858 = vpack.c.bf16 %v1089, %v1088
  %v8859 = vpack.c.bf16 %v1091, %v1090
  %v8860 = vpack.c.bf16 %v1093, %v1092
  %v8861 = vpack.c.bf16 %v1095, %v1094
  %v8862 = vpack.c.bf16 %v1097, %v1096
  %v8863 = vpack.c.bf16 %v1099, %v1098
  %v8864 = vpack.c.bf16 %v1101, %v1100
  %v8865 = vpack.c.bf16 %v1103, %v1102
  %v8866 = vpack.c.bf16 %v1105, %v1104
  %v8867 = vpack.c.bf16 %v1107, %v1106
  %v8868 = vpack.c.bf16 %v1109, %v1108
  %v8869 = vpack.c.bf16 %v1111, %v1110
  %v8871 = vsel %vm138, %v8838, 0
  %v8874 = vsel %vm138, %v8839, 0
  %v8877 = vsel %vm138, %v8840, 0
  %v8880 = vsel %vm138, %v8841, 0
  %v8883 = vsel %vm138, %v8842, 0
  %v8886 = vsel %vm138, %v8843, 0
  %v8889 = vsel %vm138, %v8844, 0
  %v8892 = vsel %vm138, %v8845, 0
  %v8895 = vsel %vm138, %v8846, 0
  %v8898 = vsel %vm138, %v8847, 0
  %v8901 = vsel %vm138, %v8848, 0
  %v8904 = vsel %vm138, %v8849, 0
  %v8907 = vsel %vm138, %v8850, 0
  %v8910 = vsel %vm138, %v8851, 0
  %v8913 = vsel %vm138, %v8852, 0
  %v8916 = vsel %vm138, %v8853, 0
  %v8919 = vsel %vm138, %v8854, 0
  %v8922 = vsel %vm138, %v8855, 0
  %v8925 = vsel %vm138, %v8856, 0
  %v8928 = vsel %vm138, %v8857, 0
  %v8931 = vsel %vm138, %v8858, 0
  %v8934 = vsel %vm138, %v8859, 0
  %v8937 = vsel %vm138, %v8860, 0
  %v8940 = vsel %vm138, %v8861, 0
  %v8943 = vsel %vm138, %v8862, 0
  %v8946 = vsel %vm138, %v8863, 0
  %v8949 = vsel %vm138, %v8864, 0
  %v8952 = vsel %vm138, %v8865, 0
  %v8955 = vsel %vm138, %v8866, 0
  %v8958 = vsel %vm138, %v8867, 0
  %v8961 = vsel %vm138, %v8868, 0
  %v8964 = vsel %vm138, %v8869, 0
  %8966 = vmatprep.subr.bf16.mxu0 0
  %8967 = vmatpush1.bf16.msra.mxu0 %v8133
  %8968 = vmatprep.subr.bf16.mxu0 0
  %8969 = vmatpush1.bf16.msra.mxu0 %v8134
  %8970 = vmatprep.subr.bf16.mxu0 0
  %8971 = vmatpush1.bf16.msra.mxu0 0
  %8972 = vmatprep.subr.bf16.mxu0 0
  %8973 = vmatpush1.bf16.msra.mxu0 0
  %8974 = vmatprep.subr.bf16.mxu0 0
  %8975 = vmatpush1.bf16.msra.mxu0 0
  %8976 = vmatprep.subr.bf16.mxu0 0
  %8977 = vmatpush1.bf16.msra.mxu0 0
  %8978 = vmatprep.subr.bf16.mxu0 0
  %8979 = vmatpush1.bf16.msra.mxu0 0
  %8980 = vmatprep.subr.bf16.mxu0 0
  %8981 = vmatpush1.bf16.msra.mxu0 0
  %8982 = vmatprep.subr.bf16.mxu0 0
  %8983 = vmatpush1.bf16.msra.mxu0 0
  %8984 = vmatprep.subr.bf16.mxu0 0
  %8985 = vmatpush1.bf16.msra.mxu0 0
  %8986 = vmatprep.subr.bf16.mxu0 0
  %8987 = vmatpush1.bf16.msra.mxu0 0
  %8988 = vmatprep.subr.bf16.mxu0 0
  %8989 = vmatpush1.bf16.msra.mxu0 0
  %8990 = vmatprep.subr.bf16.mxu0 0
  %8991 = vmatpush1.bf16.msra.mxu0 0
  %8992 = vmatprep.subr.bf16.mxu0 0
  %8993 = vmatpush1.bf16.msra.mxu0 0
  %8994 = vmatprep.subr.bf16.mxu0 0
  %8995 = vmatpush1.bf16.msra.mxu0 0
  %8996 = vmatprep.subr.bf16.mxu0 0
  %8997 = vmatpush1.bf16.msra.mxu0 0
  %8998 = vmatprep.mubr.bf16.mxu0 0
  %8999 = vmatmul.mubr.bf16.gmra.mrb[0].mxu0 %v8871
  %v9000 = vpop.f32.mrb[0].mxu0
  %v9001 = vadd.f32 0.0, %v9000
  %v9002 = vpop.f32.mrb[0].mxu0
  %v9003 = vpop.f32.mrb[0].mxu0
  %v9004 = vadd.f32 0.0, %v9003
  %v9005 = vpop.f32.mrb[0].mxu0
  %9006 = vmatprep.mubr.bf16.mxu0 0
  %9007 = vmatmul.mubr.bf16.gmra.mrb[0].mxu0 %v8874
  %v9008 = vpop.f32.mrb[0].mxu0
  %v9009 = vadd.f32 0.0, %v9008
  %v9010 = vpop.f32.mrb[0].mxu0
  %v9011 = vpop.f32.mrb[0].mxu0
  %v9012 = vadd.f32 0.0, %v9011
  %v9013 = vpop.f32.mrb[0].mxu0
  %9014 = vmatprep.mubr.bf16.mxu0 0
  %9015 = vmatmul.mubr.bf16.gmra.mrb[0].mxu0 %v8877
  %v9016 = vpop.f32.mrb[0].mxu0
  %v9017 = vadd.f32 0.0, %v9016
  %v9018 = vpop.f32.mrb[0].mxu0
  %v9019 = vpop.f32.mrb[0].mxu0
  %v9020 = vadd.f32 0.0, %v9019
  %v9021 = vpop.f32.mrb[0].mxu0
  %9022 = vmatprep.mubr.bf16.mxu0 0
  %9023 = vmatmul.mubr.bf16.gmra.mrb[0].mxu0 %v8880
  %v9024 = vpop.f32.mrb[0].mxu0
  %v9025 = vadd.f32 0.0, %v9024
  %v9026 = vpop.f32.mrb[0].mxu0
  %v9027 = vpop.f32.mrb[0].mxu0
  %v9028 = vadd.f32 0.0, %v9027
  %v9029 = vpop.f32.mrb[0].mxu0
  %9030 = vmatprep.mubr.bf16.mxu0 0
  %9031 = vmatmul.mubr.bf16.gmra.mrb[0].mxu0 %v8883
  %v9032 = vpop.f32.mrb[0].mxu0
  %v9033 = vadd.f32 0.0, %v9032
  %v9034 = vpop.f32.mrb[0].mxu0
  %v9035 = vpop.f32.mrb[0].mxu0
  %v9036 = vadd.f32 0.0, %v9035
  %v9037 = vpop.f32.mrb[0].mxu0
  %9038 = vmatprep.mubr.bf16.mxu0 0
  %9039 = vmatmul.mubr.bf16.gmra.mrb[0].mxu0 %v8886
  %v9040 = vpop.f32.mrb[0].mxu0
  %v9041 = vadd.f32 0.0, %v9040
  %v9042 = vpop.f32.mrb[0].mxu0
  %v9043 = vpop.f32.mrb[0].mxu0
  %v9044 = vadd.f32 0.0, %v9043
  %v9045 = vpop.f32.mrb[0].mxu0
  %9046 = vmatprep.mubr.bf16.mxu0 0
  %9047 = vmatmul.mubr.bf16.gmra.mrb[0].mxu0 %v8889
  %v9048 = vpop.f32.mrb[0].mxu0
  %v9049 = vadd.f32 0.0, %v9048
  %v9050 = vpop.f32.mrb[0].mxu0
  %v9051 = vpop.f32.mrb[0].mxu0
  %v9052 = vadd.f32 0.0, %v9051
  %v9053 = vpop.f32.mrb[0].mxu0
  %9054 = vmatprep.mubr.bf16.mxu0 0
  %9055 = vmatmul.mubr.bf16.gmra.mrb[0].mxu0 %v8892
  %v9056 = vpop.f32.mrb[0].mxu0
  %v9057 = vadd.f32 0.0, %v9056
  %v9058 = vpop.f32.mrb[0].mxu0
  %v9059 = vpop.f32.mrb[0].mxu0
  %v9060 = vadd.f32 0.0, %v9059
  %v9061 = vpop.f32.mrb[0].mxu0
  %9062 = vmatprep.mubr.bf16.mxu0 0
  %9063 = vmatmul.mubr.bf16.gmra.mrb[0].mxu0 %v8895
  %v9064 = vpop.f32.mrb[0].mxu0
  %v9065 = vadd.f32 0.0, %v9064
  %v9066 = vpop.f32.mrb[0].mxu0
  %v9067 = vpop.f32.mrb[0].mxu0
  %v9068 = vadd.f32 0.0, %v9067
  %v9069 = vpop.f32.mrb[0].mxu0
  %9070 = vmatprep.mubr.bf16.mxu0 0
  %9071 = vmatmul.mubr.bf16.gmra.mrb[0].mxu0 %v8898
  %v9072 = vpop.f32.mrb[0].mxu0
  %v9073 = vadd.f32 0.0, %v9072
  %v9074 = vpop.f32.mrb[0].mxu0
  %v9075 = vpop.f32.mrb[0].mxu0
  %v9076 = vadd.f32 0.0, %v9075
  %v9077 = vpop.f32.mrb[0].mxu0
  %9078 = vmatprep.mubr.bf16.mxu0 0
  %9079 = vmatmul.mubr.bf16.gmra.mrb[0].mxu0 %v8901
  %v9080 = vpop.f32.mrb[0].mxu0
  %v9081 = vadd.f32 0.0, %v9080
  %v9082 = vpop.f32.mrb[0].mxu0
  %v9083 = vpop.f32.mrb[0].mxu0
  %v9084 = vadd.f32 0.0, %v9083
  %v9085 = vpop.f32.mrb[0].mxu0
  %9086 = vmatprep.mubr.bf16.mxu0 0
  %9087 = vmatmul.mubr.bf16.gmra.mrb[0].mxu0 %v8904
  %v9088 = vpop.f32.mrb[0].mxu0
  %v9089 = vadd.f32 0.0, %v9088
  %v9090 = vpop.f32.mrb[0].mxu0
  %v9091 = vpop.f32.mrb[0].mxu0
  %v9092 = vadd.f32 0.0, %v9091
  %v9093 = vpop.f32.mrb[0].mxu0
  %9094 = vmatprep.mubr.bf16.mxu0 0
  %9095 = vmatmul.mubr.bf16.gmra.mrb[0].mxu0 %v8907
  %v9096 = vpop.f32.mrb[0].mxu0
  %v9097 = vadd.f32 0.0, %v9096
  %v9098 = vpop.f32.mrb[0].mxu0
  %v9099 = vpop.f32.mrb[0].mxu0
  %v9100 = vadd.f32 0.0, %v9099
  %v9101 = vpop.f32.mrb[0].mxu0
  %9102 = vmatprep.mubr.bf16.mxu0 0
  %9103 = vmatmul.mubr.bf16.gmra.mrb[0].mxu0 %v8910
  %v9104 = vpop.f32.mrb[0].mxu0
  %v9105 = vadd.f32 0.0, %v9104
  %v9106 = vpop.f32.mrb[0].mxu0
  %v9107 = vpop.f32.mrb[0].mxu0
  %v9108 = vadd.f32 0.0, %v9107
  %v9109 = vpop.f32.mrb[0].mxu0
  %9110 = vmatprep.mubr.bf16.mxu0 0
  %9111 = vmatmul.mubr.bf16.gmra.mrb[0].mxu0 %v8913
  %v9112 = vpop.f32.mrb[0].mxu0
  %v9113 = vadd.f32 0.0, %v9112
  %v9114 = vpop.f32.mrb[0].mxu0
  %v9115 = vpop.f32.mrb[0].mxu0
  %v9116 = vadd.f32 0.0, %v9115
  %v9117 = vpop.f32.mrb[0].mxu0
  %9118 = vmatprep.mubr.bf16.mxu0 0
  %9119 = vmatmul.mubr.bf16.gmra.mrb[0].mxu0 %v8916
  %v9120 = vpop.f32.mrb[0].mxu0
  %v9121 = vadd.f32 0.0, %v9120
  %v9122 = vpop.f32.mrb[0].mxu0
  %v9123 = vpop.f32.mrb[0].mxu0
  %v9124 = vadd.f32 0.0, %v9123
  %v9125 = vpop.f32.mrb[0].mxu0
  %9126 = vmatprep.mubr.bf16.mxu0 0
  %9127 = vmatmul.mubr.bf16.gmra.mrb[0].mxu0 %v8919
  %v9128 = vpop.f32.mrb[0].mxu0
  %v9129 = vadd.f32 0.0, %v9128
  %v9130 = vpop.f32.mrb[0].mxu0
  %v9131 = vpop.f32.mrb[0].mxu0
  %v9132 = vadd.f32 0.0, %v9131
  %v9133 = vpop.f32.mrb[0].mxu0
  %9134 = vmatprep.mubr.bf16.mxu0 0
  %9135 = vmatmul.mubr.bf16.gmra.mrb[0].mxu0 %v8922
  %v9136 = vpop.f32.mrb[0].mxu0
  %v9137 = vadd.f32 0.0, %v9136
  %v9138 = vpop.f32.mrb[0].mxu0
  %v9139 = vpop.f32.mrb[0].mxu0
  %v9140 = vadd.f32 0.0, %v9139
  %v9141 = vpop.f32.mrb[0].mxu0
  %9142 = vmatprep.mubr.bf16.mxu0 0
  %9143 = vmatmul.mubr.bf16.gmra.mrb[0].mxu0 %v8925
  %v9144 = vpop.f32.mrb[0].mxu0
  %v9145 = vadd.f32 0.0, %v9144
  %v9146 = vpop.f32.mrb[0].mxu0
  %v9147 = vpop.f32.mrb[0].mxu0
  %v9148 = vadd.f32 0.0, %v9147
  %v9149 = vpop.f32.mrb[0].mxu0
  %9150 = vmatprep.mubr.bf16.mxu0 0
  %9151 = vmatmul.mubr.bf16.gmra.mrb[0].mxu0 %v8928
  %v9152 = vpop.f32.mrb[0].mxu0
  %v9153 = vadd.f32 0.0, %v9152
  %v9154 = vpop.f32.mrb[0].mxu0
  %v9155 = vpop.f32.mrb[0].mxu0
  %v9156 = vadd.f32 0.0, %v9155
  %v9157 = vpop.f32.mrb[0].mxu0
  %9158 = vmatprep.mubr.bf16.mxu0 0
  %9159 = vmatmul.mubr.bf16.gmra.mrb[0].mxu0 %v8931
  %v9160 = vpop.f32.mrb[0].mxu0
  %v9161 = vadd.f32 0.0, %v9160
  %v9162 = vpop.f32.mrb[0].mxu0
  %v9163 = vpop.f32.mrb[0].mxu0
  %v9164 = vadd.f32 0.0, %v9163
  %v9165 = vpop.f32.mrb[0].mxu0
  %9166 = vmatprep.mubr.bf16.mxu0 0
  %9167 = vmatmul.mubr.bf16.gmra.mrb[0].mxu0 %v8934
  %v9168 = vpop.f32.mrb[0].mxu0
  %v9169 = vadd.f32 0.0, %v9168
  %v9170 = vpop.f32.mrb[0].mxu0
  %v9171 = vpop.f32.mrb[0].mxu0
  %v9172 = vadd.f32 0.0, %v9171
  %v9173 = vpop.f32.mrb[0].mxu0
  %9174 = vmatprep.mubr.bf16.mxu0 0
  %9175 = vmatmul.mubr.bf16.gmra.mrb[0].mxu0 %v8937
  %v9176 = vpop.f32.mrb[0].mxu0
  %v9177 = vadd.f32 0.0, %v9176
  %v9178 = vpop.f32.mrb[0].mxu0
  %v9179 = vpop.f32.mrb[0].mxu0
  %v9180 = vadd.f32 0.0, %v9179
  %v9181 = vpop.f32.mrb[0].mxu0
  %9182 = vmatprep.mubr.bf16.mxu0 0
  %9183 = vmatmul.mubr.bf16.gmra.mrb[0].mxu0 %v8940
  %v9184 = vpop.f32.mrb[0].mxu0
  %v9185 = vadd.f32 0.0, %v9184
  %v9186 = vpop.f32.mrb[0].mxu0
  %v9187 = vpop.f32.mrb[0].mxu0
  %v9188 = vadd.f32 0.0, %v9187
  %v9189 = vpop.f32.mrb[0].mxu0
  %9190 = vmatprep.mubr.bf16.mxu0 0
  %9191 = vmatmul.mubr.bf16.gmra.mrb[0].mxu0 %v8943
  %v9192 = vpop.f32.mrb[0].mxu0
  %v9193 = vadd.f32 0.0, %v9192
  %v9194 = vpop.f32.mrb[0].mxu0
  %v9195 = vpop.f32.mrb[0].mxu0
  %v9196 = vadd.f32 0.0, %v9195
  %v9197 = vpop.f32.mrb[0].mxu0
  %9198 = vmatprep.mubr.bf16.mxu0 0
  %9199 = vmatmul.mubr.bf16.gmra.mrb[0].mxu0 %v8946
  %v9200 = vpop.f32.mrb[0].mxu0
  %v9201 = vadd.f32 0.0, %v9200
  %v9202 = vpop.f32.mrb[0].mxu0
  %v9203 = vpop.f32.mrb[0].mxu0
  %v9204 = vadd.f32 0.0, %v9203
  %v9205 = vpop.f32.mrb[0].mxu0
  %9206 = vmatprep.mubr.bf16.mxu0 0
  %9207 = vmatmul.mubr.bf16.gmra.mrb[0].mxu0 %v8949
  %v9208 = vpop.f32.mrb[0].mxu0
  %v9209 = vadd.f32 0.0, %v9208
  %v9210 = vpop.f32.mrb[0].mxu0
  %v9211 = vpop.f32.mrb[0].mxu0
  %v9212 = vadd.f32 0.0, %v9211
  %v9213 = vpop.f32.mrb[0].mxu0
  %9214 = vmatprep.mubr.bf16.mxu0 0
  %9215 = vmatmul.mubr.bf16.gmra.mrb[0].mxu0 %v8952
  %v9216 = vpop.f32.mrb[0].mxu0
  %v9217 = vadd.f32 0.0, %v9216
  %v9218 = vpop.f32.mrb[0].mxu0
  %v9219 = vpop.f32.mrb[0].mxu0
  %v9220 = vadd.f32 0.0, %v9219
  %v9221 = vpop.f32.mrb[0].mxu0
  %9222 = vmatprep.mubr.bf16.mxu0 0
  %9223 = vmatmul.mubr.bf16.gmra.mrb[0].mxu0 %v8955
  %v9224 = vpop.f32.mrb[0].mxu0
  %v9225 = vadd.f32 0.0, %v9224
  %v9226 = vpop.f32.mrb[0].mxu0
  %v9227 = vpop.f32.mrb[0].mxu0
  %v9228 = vadd.f32 0.0, %v9227
  %v9229 = vpop.f32.mrb[0].mxu0
  %9230 = vmatprep.mubr.bf16.mxu0 0
  %9231 = vmatmul.mubr.bf16.gmra.mrb[0].mxu0 %v8958
  %v9232 = vpop.f32.mrb[0].mxu0
  %v9233 = vadd.f32 0.0, %v9232
  %v9234 = vpop.f32.mrb[0].mxu0
  %v9235 = vpop.f32.mrb[0].mxu0
  %v9236 = vadd.f32 0.0, %v9235
  %v9237 = vpop.f32.mrb[0].mxu0
  %9238 = vmatprep.mubr.bf16.mxu0 0
  %9239 = vmatmul.mubr.bf16.gmra.mrb[0].mxu0 %v8961
  %v9240 = vpop.f32.mrb[0].mxu0
  %v9241 = vadd.f32 0.0, %v9240
  %v9242 = vpop.f32.mrb[0].mxu0
  %v9243 = vpop.f32.mrb[0].mxu0
  %v9244 = vadd.f32 0.0, %v9243
  %v9245 = vpop.f32.mrb[0].mxu0
  %9246 = vmatprep.mubr.bf16.mxu0 0
  %9247 = vmatmul.mubr.bf16.gmra.mrb[0].mxu0 %v8964
  %v9248 = vpop.f32.mrb[0].mxu0
  %v9249 = vadd.f32 0.0, %v9248
  %v9250 = vpop.f32.mrb[0].mxu0
  %v9251 = vpop.f32.mrb[0].mxu0
  %v9252 = vadd.f32 0.0, %v9251
  %v9253 = vpop.f32.mrb[0].mxu0
  %9254 = vdwg.mxu0
  %v9256 = vsel %vm138, %v8806, 0
  %v9259 = vsel %vm138, %v8807, 0
  %v9262 = vsel %vm138, %v8808, 0
  %v9265 = vsel %vm138, %v8809, 0
  %v9268 = vsel %vm138, %v8810, 0
  %v9271 = vsel %vm138, %v8811, 0
  %v9274 = vsel %vm138, %v8812, 0
  %v9277 = vsel %vm138, %v8813, 0
  %v9280 = vsel %vm138, %v8814, 0
  %v9283 = vsel %vm138, %v8815, 0
  %v9286 = vsel %vm138, %v8816, 0
  %v9289 = vsel %vm138, %v8817, 0
  %v9292 = vsel %vm138, %v8818, 0
  %v9295 = vsel %vm138, %v8819, 0
  %v9298 = vsel %vm138, %v8820, 0
  %v9301 = vsel %vm138, %v8821, 0
  %v9304 = vsel %vm138, %v8822, 0
  %v9307 = vsel %vm138, %v8823, 0
  %v9310 = vsel %vm138, %v8824, 0
  %v9313 = vsel %vm138, %v8825, 0
  %v9316 = vsel %vm138, %v8826, 0
  %v9319 = vsel %vm138, %v8827, 0
  %v9322 = vsel %vm138, %v8828, 0
  %v9325 = vsel %vm138, %v8829, 0
  %v9328 = vsel %vm138, %v8830, 0
  %v9331 = vsel %vm138, %v8831, 0
  %v9334 = vsel %vm138, %v8832, 0
  %v9337 = vsel %vm138, %v8833, 0
  %v9340 = vsel %vm138, %v8834, 0
  %v9343 = vsel %vm138, %v8835, 0
  %v9346 = vsel %vm138, %v8836, 0
  %v9349 = vsel %vm138, %v8837, 0
  %9351 = vmatprep.subr.bf16.mxu0 0
  %9352 = vmatpush1.bf16.msra.mxu0 %v8188
  %9353 = vmatprep.subr.bf16.mxu0 0
  %9354 = vmatpush1.bf16.msra.mxu0 %v8189
  %9355 = vmatprep.subr.bf16.mxu0 0
  %9356 = vmatpush1.bf16.msra.mxu0 0
  %9357 = vmatprep.subr.bf16.mxu0 0
  %9358 = vmatpush1.bf16.msra.mxu0 0
  %9359 = vmatprep.subr.bf16.mxu0 0
  %9360 = vmatpush1.bf16.msra.mxu0 0
  %9361 = vmatprep.subr.bf16.mxu0 0
  %9362 = vmatpush1.bf16.msra.mxu0 0
  %9363 = vmatprep.subr.bf16.mxu0 0
  %9364 = vmatpush1.bf16.msra.mxu0 0
  %9365 = vmatprep.subr.bf16.mxu0 0
  %9366 = vmatpush1.bf16.msra.mxu0 0
  %9367 = vmatprep.subr.bf16.mxu0 0
  %9368 = vmatpush1.bf16.msra.mxu0 0
  %9369 = vmatprep.subr.bf16.mxu0 0
  %9370 = vmatpush1.bf16.msra.mxu0 0
  %9371 = vmatprep.subr.bf16.mxu0 0
  %9372 = vmatpush1.bf16.msra.mxu0 0
  %9373 = vmatprep.subr.bf16.mxu0 0
  %9374 = vmatpush1.bf16.msra.mxu0 0
  %9375 = vmatprep.subr.bf16.mxu0 0
  %9376 = vmatpush1.bf16.msra.mxu0 0
  %9377 = vmatprep.subr.bf16.mxu0 0
  %9378 = vmatpush1.bf16.msra.mxu0 0
  %9379 = vmatprep.subr.bf16.mxu0 0
  %9380 = vmatpush1.bf16.msra.mxu0 0
  %9381 = vmatprep.subr.bf16.mxu0 0
  %9382 = vmatpush1.bf16.msra.mxu0 0
  %9383 = vmatprep.mubr.bf16.mxu0 0
  %9384 = vmatmul.mubr.bf16.gmra.mrb[0].mxu0 %v9256
  %v9385 = vpop.f32.mrb[0].mxu0
  %v9386 = vadd.f32 %v9001, %v9385
  %v9387 = vpop.f32.mrb[0].mxu0
  %v9388 = vpop.f32.mrb[0].mxu0
  %v9389 = vadd.f32 %v9004, %v9388
  %v9390 = vpop.f32.mrb[0].mxu0
  %9391 = vmatprep.mubr.bf16.mxu0 0
  %9392 = vmatmul.mubr.bf16.gmra.mrb[0].mxu0 %v9259
  %v9393 = vpop.f32.mrb[0].mxu0
  %v9394 = vadd.f32 %v9009, %v9393
  %v9395 = vpop.f32.mrb[0].mxu0
  %v9396 = vpop.f32.mrb[0].mxu0
  %v9397 = vadd.f32 %v9012, %v9396
  %v9398 = vpop.f32.mrb[0].mxu0
  %9399 = vmatprep.mubr.bf16.mxu0 0
  %9400 = vmatmul.mubr.bf16.gmra.mrb[0].mxu0 %v9262
  %v9401 = vpop.f32.mrb[0].mxu0
  %v9402 = vadd.f32 %v9017, %v9401
  %v9403 = vpop.f32.mrb[0].mxu0
  %v9404 = vpop.f32.mrb[0].mxu0
  %v9405 = vadd.f32 %v9020, %v9404
  %v9406 = vpop.f32.mrb[0].mxu0
  %9407 = vmatprep.mubr.bf16.mxu0 0
  %9408 = vmatmul.mubr.bf16.gmra.mrb[0].mxu0 %v9265
  %v9409 = vpop.f32.mrb[0].mxu0
  %v9410 = vadd.f32 %v9025, %v9409
  %v9411 = vpop.f32.mrb[0].mxu0
  %v9412 = vpop.f32.mrb[0].mxu0
  %v9413 = vadd.f32 %v9028, %v9412
  %v9414 = vpop.f32.mrb[0].mxu0
  %9415 = vmatprep.mubr.bf16.mxu0 0
  %9416 = vmatmul.mubr.bf16.gmra.mrb[0].mxu0 %v9268
  %v9417 = vpop.f32.mrb[0].mxu0
  %v9418 = vadd.f32 %v9033, %v9417
  %v9419 = vpop.f32.mrb[0].mxu0
  %v9420 = vpop.f32.mrb[0].mxu0
  %v9421 = vadd.f32 %v9036, %v9420
  %v9422 = vpop.f32.mrb[0].mxu0
  %9423 = vmatprep.mubr.bf16.mxu0 0
  %9424 = vmatmul.mubr.bf16.gmra.mrb[0].mxu0 %v9271
  %v9425 = vpop.f32.mrb[0].mxu0
  %v9426 = vadd.f32 %v9041, %v9425
  %v9427 = vpop.f32.mrb[0].mxu0
  %v9428 = vpop.f32.mrb[0].mxu0
  %v9429 = vadd.f32 %v9044, %v9428
  %v9430 = vpop.f32.mrb[0].mxu0
  %9431 = vmatprep.mubr.bf16.mxu0 0
  %9432 = vmatmul.mubr.bf16.gmra.mrb[0].mxu0 %v9274
  %v9433 = vpop.f32.mrb[0].mxu0
  %v9434 = vadd.f32 %v9049, %v9433
  %v9435 = vpop.f32.mrb[0].mxu0
  %v9436 = vpop.f32.mrb[0].mxu0
  %v9437 = vadd.f32 %v9052, %v9436
  %v9438 = vpop.f32.mrb[0].mxu0
  %9439 = vmatprep.mubr.bf16.mxu0 0
  %9440 = vmatmul.mubr.bf16.gmra.mrb[0].mxu0 %v9277
  %v9441 = vpop.f32.mrb[0].mxu0
  %v9442 = vadd.f32 %v9057, %v9441
  %v9443 = vpop.f32.mrb[0].mxu0
  %v9444 = vpop.f32.mrb[0].mxu0
  %v9445 = vadd.f32 %v9060, %v9444
  %v9446 = vpop.f32.mrb[0].mxu0
  %9447 = vmatprep.mubr.bf16.mxu0 0
  %9448 = vmatmul.mubr.bf16.gmra.mrb[0].mxu0 %v9280
  %v9449 = vpop.f32.mrb[0].mxu0
  %v9450 = vadd.f32 %v9065, %v9449
  %v9451 = vpop.f32.mrb[0].mxu0
  %v9452 = vpop.f32.mrb[0].mxu0
  %v9453 = vadd.f32 %v9068, %v9452
  %v9454 = vpop.f32.mrb[0].mxu0
  %9455 = vmatprep.mubr.bf16.mxu0 0
  %9456 = vmatmul.mubr.bf16.gmra.mrb[0].mxu0 %v9283
  %v9457 = vpop.f32.mrb[0].mxu0
  %v9458 = vadd.f32 %v9073, %v9457
  %v9459 = vpop.f32.mrb[0].mxu0
  %v9460 = vpop.f32.mrb[0].mxu0
  %v9461 = vadd.f32 %v9076, %v9460
  %v9462 = vpop.f32.mrb[0].mxu0
  %9463 = vmatprep.mubr.bf16.mxu0 0
  %9464 = vmatmul.mubr.bf16.gmra.mrb[0].mxu0 %v9286
  %v9465 = vpop.f32.mrb[0].mxu0
  %v9466 = vadd.f32 %v9081, %v9465
  %v9467 = vpop.f32.mrb[0].mxu0
  %v9468 = vpop.f32.mrb[0].mxu0
  %v9469 = vadd.f32 %v9084, %v9468
  %v9470 = vpop.f32.mrb[0].mxu0
  %9471 = vmatprep.mubr.bf16.mxu0 0
  %9472 = vmatmul.mubr.bf16.gmra.mrb[0].mxu0 %v9289
  %v9473 = vpop.f32.mrb[0].mxu0
  %v9474 = vadd.f32 %v9089, %v9473
  %v9475 = vpop.f32.mrb[0].mxu0
  %v9476 = vpop.f32.mrb[0].mxu0
  %v9477 = vadd.f32 %v9092, %v9476
  %v9478 = vpop.f32.mrb[0].mxu0
  %9479 = vmatprep.mubr.bf16.mxu0 0
  %9480 = vmatmul.mubr.bf16.gmra.mrb[0].mxu0 %v9292
  %v9481 = vpop.f32.mrb[0].mxu0
  %v9482 = vadd.f32 %v9097, %v9481
  %v9483 = vpop.f32.mrb[0].mxu0
  %v9484 = vpop.f32.mrb[0].mxu0
  %v9485 = vadd.f32 %v9100, %v9484
  %v9486 = vpop.f32.mrb[0].mxu0
  %9487 = vmatprep.mubr.bf16.mxu0 0
  %9488 = vmatmul.mubr.bf16.gmra.mrb[0].mxu0 %v9295
  %v9489 = vpop.f32.mrb[0].mxu0
  %v9490 = vadd.f32 %v9105, %v9489
  %v9491 = vpop.f32.mrb[0].mxu0
  %v9492 = vpop.f32.mrb[0].mxu0
  %v9493 = vadd.f32 %v9108, %v9492
  %v9494 = vpop.f32.mrb[0].mxu0
  %9495 = vmatprep.mubr.bf16.mxu0 0
  %9496 = vmatmul.mubr.bf16.gmra.mrb[0].mxu0 %v9298
  %v9497 = vpop.f32.mrb[0].mxu0
  %v9498 = vadd.f32 %v9113, %v9497
  %v9499 = vpop.f32.mrb[0].mxu0
  %v9500 = vpop.f32.mrb[0].mxu0
  %v9501 = vadd.f32 %v9116, %v9500
  %v9502 = vpop.f32.mrb[0].mxu0
  %9503 = vmatprep.mubr.bf16.mxu0 0
  %9504 = vmatmul.mubr.bf16.gmra.mrb[0].mxu0 %v9301
  %v9505 = vpop.f32.mrb[0].mxu0
  %v9506 = vadd.f32 %v9121, %v9505
  %v9507 = vpop.f32.mrb[0].mxu0
  %v9508 = vpop.f32.mrb[0].mxu0
  %v9509 = vadd.f32 %v9124, %v9508
  %v9510 = vpop.f32.mrb[0].mxu0
  %9511 = vmatprep.mubr.bf16.mxu0 0
  %9512 = vmatmul.mubr.bf16.gmra.mrb[0].mxu0 %v9304
  %v9513 = vpop.f32.mrb[0].mxu0
  %v9514 = vadd.f32 %v9129, %v9513
  %v9515 = vpop.f32.mrb[0].mxu0
  %v9516 = vpop.f32.mrb[0].mxu0
  %v9517 = vadd.f32 %v9132, %v9516
  %v9518 = vpop.f32.mrb[0].mxu0
  %9519 = vmatprep.mubr.bf16.mxu0 0
  %9520 = vmatmul.mubr.bf16.gmra.mrb[0].mxu0 %v9307
  %v9521 = vpop.f32.mrb[0].mxu0
  %v9522 = vadd.f32 %v9137, %v9521
  %v9523 = vpop.f32.mrb[0].mxu0
  %v9524 = vpop.f32.mrb[0].mxu0
  %v9525 = vadd.f32 %v9140, %v9524
  %v9526 = vpop.f32.mrb[0].mxu0
  %9527 = vmatprep.mubr.bf16.mxu0 0
  %9528 = vmatmul.mubr.bf16.gmra.mrb[0].mxu0 %v9310
  %v9529 = vpop.f32.mrb[0].mxu0
  %v9530 = vadd.f32 %v9145, %v9529
  %v9531 = vpop.f32.mrb[0].mxu0
  %v9532 = vpop.f32.mrb[0].mxu0
  %v9533 = vadd.f32 %v9148, %v9532
  %v9534 = vpop.f32.mrb[0].mxu0
  %9535 = vmatprep.mubr.bf16.mxu0 0
  %9536 = vmatmul.mubr.bf16.gmra.mrb[0].mxu0 %v9313
  %v9537 = vpop.f32.mrb[0].mxu0
  %v9538 = vadd.f32 %v9153, %v9537
  %v9539 = vpop.f32.mrb[0].mxu0
  %v9540 = vpop.f32.mrb[0].mxu0
  %v9541 = vadd.f32 %v9156, %v9540
  %v9542 = vpop.f32.mrb[0].mxu0
  %9543 = vmatprep.mubr.bf16.mxu0 0
  %9544 = vmatmul.mubr.bf16.gmra.mrb[0].mxu0 %v9316
  %v9545 = vpop.f32.mrb[0].mxu0
  %v9546 = vadd.f32 %v9161, %v9545
  %v9547 = vpop.f32.mrb[0].mxu0
  %v9548 = vpop.f32.mrb[0].mxu0
  %v9549 = vadd.f32 %v9164, %v9548
  %v9550 = vpop.f32.mrb[0].mxu0
  %9551 = vmatprep.mubr.bf16.mxu0 0
  %9552 = vmatmul.mubr.bf16.gmra.mrb[0].mxu0 %v9319
  %v9553 = vpop.f32.mrb[0].mxu0
  %v9554 = vadd.f32 %v9169, %v9553
  %v9555 = vpop.f32.mrb[0].mxu0
  %v9556 = vpop.f32.mrb[0].mxu0
  %v9557 = vadd.f32 %v9172, %v9556
  %v9558 = vpop.f32.mrb[0].mxu0
  %9559 = vmatprep.mubr.bf16.mxu0 0
  %9560 = vmatmul.mubr.bf16.gmra.mrb[0].mxu0 %v9322
  %v9561 = vpop.f32.mrb[0].mxu0
  %v9562 = vadd.f32 %v9177, %v9561
  %v9563 = vpop.f32.mrb[0].mxu0
  %v9564 = vpop.f32.mrb[0].mxu0
  %v9565 = vadd.f32 %v9180, %v9564
  %v9566 = vpop.f32.mrb[0].mxu0
  %9567 = vmatprep.mubr.bf16.mxu0 0
  %9568 = vmatmul.mubr.bf16.gmra.mrb[0].mxu0 %v9325
  %v9569 = vpop.f32.mrb[0].mxu0
  %v9570 = vadd.f32 %v9185, %v9569
  %v9571 = vpop.f32.mrb[0].mxu0
  %v9572 = vpop.f32.mrb[0].mxu0
  %v9573 = vadd.f32 %v9188, %v9572
  %v9574 = vpop.f32.mrb[0].mxu0
  %9575 = vmatprep.mubr.bf16.mxu0 0
  %9576 = vmatmul.mubr.bf16.gmra.mrb[0].mxu0 %v9328
  %v9577 = vpop.f32.mrb[0].mxu0
  %v9578 = vadd.f32 %v9193, %v9577
  %v9579 = vpop.f32.mrb[0].mxu0
  %v9580 = vpop.f32.mrb[0].mxu0
  %v9581 = vadd.f32 %v9196, %v9580
  %v9582 = vpop.f32.mrb[0].mxu0
  %9583 = vmatprep.mubr.bf16.mxu0 0
  %9584 = vmatmul.mubr.bf16.gmra.mrb[0].mxu0 %v9331
  %v9585 = vpop.f32.mrb[0].mxu0
  %v9586 = vadd.f32 %v9201, %v9585
  %v9587 = vpop.f32.mrb[0].mxu0
  %v9588 = vpop.f32.mrb[0].mxu0
  %v9589 = vadd.f32 %v9204, %v9588
  %v9590 = vpop.f32.mrb[0].mxu0
  %9591 = vmatprep.mubr.bf16.mxu0 0
  %9592 = vmatmul.mubr.bf16.gmra.mrb[0].mxu0 %v9334
  %v9593 = vpop.f32.mrb[0].mxu0
  %v9594 = vadd.f32 %v9209, %v9593
  %v9595 = vpop.f32.mrb[0].mxu0
  %v9596 = vpop.f32.mrb[0].mxu0
  %v9597 = vadd.f32 %v9212, %v9596
  %v9598 = vpop.f32.mrb[0].mxu0
  %9599 = vmatprep.mubr.bf16.mxu0 0
  %9600 = vmatmul.mubr.bf16.gmra.mrb[0].mxu0 %v9337
  %v9601 = vpop.f32.mrb[0].mxu0
  %v9602 = vadd.f32 %v9217, %v9601
  %v9603 = vpop.f32.mrb[0].mxu0
  %v9604 = vpop.f32.mrb[0].mxu0
  %v9605 = vadd.f32 %v9220, %v9604
  %v9606 = vpop.f32.mrb[0].mxu0
  %9607 = vmatprep.mubr.bf16.mxu0 0
  %9608 = vmatmul.mubr.bf16.gmra.mrb[0].mxu0 %v9340
  %v9609 = vpop.f32.mrb[0].mxu0
  %v9610 = vadd.f32 %v9225, %v9609
  %v9611 = vpop.f32.mrb[0].mxu0
  %v9612 = vpop.f32.mrb[0].mxu0
  %v9613 = vadd.f32 %v9228, %v9612
  %v9614 = vpop.f32.mrb[0].mxu0
  %9615 = vmatprep.mubr.bf16.mxu0 0
  %9616 = vmatmul.mubr.bf16.gmra.mrb[0].mxu0 %v9343
  %v9617 = vpop.f32.mrb[0].mxu0
  %v9618 = vadd.f32 %v9233, %v9617
  %v9619 = vpop.f32.mrb[0].mxu0
  %v9620 = vpop.f32.mrb[0].mxu0
  %v9621 = vadd.f32 %v9236, %v9620
  %v9622 = vpop.f32.mrb[0].mxu0
  %9623 = vmatprep.mubr.bf16.mxu0 0
  %9624 = vmatmul.mubr.bf16.gmra.mrb[0].mxu0 %v9346
  %v9625 = vpop.f32.mrb[0].mxu0
  %v9626 = vadd.f32 %v9241, %v9625
  %v9627 = vpop.f32.mrb[0].mxu0
  %v9628 = vpop.f32.mrb[0].mxu0
  %v9629 = vadd.f32 %v9244, %v9628
  %v9630 = vpop.f32.mrb[0].mxu0
  %9631 = vmatprep.mubr.bf16.mxu0 0
  %9632 = vmatmul.mubr.bf16.gmra.mrb[0].mxu0 %v9349
  %v9633 = vpop.f32.mrb[0].mxu0
  %v9634 = vadd.f32 %v9249, %v9633
  %v9635 = vpop.f32.mrb[0].mxu0
  %v9636 = vpop.f32.mrb[0].mxu0
  %v9637 = vadd.f32 %v9252, %v9636
  %v9638 = vpop.f32.mrb[0].mxu0
  %9639 = vdwg.mxu0
  %v9641 = vlaneseq
  %v9642 = vshrl.u32 %v9641, 7
  %v9643 = vsub.s32 0, %v9642
  %v9644 = vrot.slane %v8235, %v9643
  %v9646 = vadd.f32 %v9386, %v9644
  %v9647 = vadd.f32 %v9389, %v9644
  %v9648 = vadd.f32 %v9394, %v9644
  %v9649 = vadd.f32 %v9397, %v9644
  %v9650 = vadd.f32 %v9402, %v9644
  %v9651 = vadd.f32 %v9405, %v9644
  %v9652 = vadd.f32 %v9410, %v9644
  %v9653 = vadd.f32 %v9413, %v9644
  %v9654 = vadd.f32 %v9418, %v9644
  %v9655 = vadd.f32 %v9421, %v9644
  %v9656 = vadd.f32 %v9426, %v9644
  %v9657 = vadd.f32 %v9429, %v9644
  %v9658 = vadd.f32 %v9434, %v9644
  %v9659 = vadd.f32 %v9437, %v9644
  %v9660 = vadd.f32 %v9442, %v9644
  %v9661 = vadd.f32 %v9445, %v9644
  %v9662 = vadd.f32 %v9450, %v9644
  %v9663 = vadd.f32 %v9453, %v9644
  %v9664 = vadd.f32 %v9458, %v9644
  %v9665 = vadd.f32 %v9461, %v9644
  %v9666 = vadd.f32 %v9466, %v9644
  %v9667 = vadd.f32 %v9469, %v9644
  %v9668 = vadd.f32 %v9474, %v9644
  %v9669 = vadd.f32 %v9477, %v9644
  %v9670 = vadd.f32 %v9482, %v9644
  %v9671 = vadd.f32 %v9485, %v9644
  %v9672 = vadd.f32 %v9490, %v9644
  %v9673 = vadd.f32 %v9493, %v9644
  %v9674 = vadd.f32 %v9498, %v9644
  %v9675 = vadd.f32 %v9501, %v9644
  %v9676 = vadd.f32 %v9506, %v9644
  %v9677 = vadd.f32 %v9509, %v9644
  %v9678 = vadd.f32 %v9514, %v9644
  %v9679 = vadd.f32 %v9517, %v9644
  %v9680 = vadd.f32 %v9522, %v9644
  %v9681 = vadd.f32 %v9525, %v9644
  %v9682 = vadd.f32 %v9530, %v9644
  %v9683 = vadd.f32 %v9533, %v9644
  %v9684 = vadd.f32 %v9538, %v9644
  %v9685 = vadd.f32 %v9541, %v9644
  %v9686 = vadd.f32 %v9546, %v9644
  %v9687 = vadd.f32 %v9549, %v9644
  %v9688 = vadd.f32 %v9554, %v9644
  %v9689 = vadd.f32 %v9557, %v9644
  %v9690 = vadd.f32 %v9562, %v9644
  %v9691 = vadd.f32 %v9565, %v9644
  %v9692 = vadd.f32 %v9570, %v9644
  %v9693 = vadd.f32 %v9573, %v9644
  %v9694 = vadd.f32 %v9578, %v9644
  %v9695 = vadd.f32 %v9581, %v9644
  %v9696 = vadd.f32 %v9586, %v9644
  %v9697 = vadd.f32 %v9589, %v9644
  %v9698 = vadd.f32 %v9594, %v9644
  %v9699 = vadd.f32 %v9597, %v9644
  %v9700 = vadd.f32 %v9602, %v9644
  %v9701 = vadd.f32 %v9605, %v9644
  %v9702 = vadd.f32 %v9610, %v9644
  %v9703 = vadd.f32 %v9613, %v9644
  %v9704 = vadd.f32 %v9618, %v9644
  %v9705 = vadd.f32 %v9621, %v9644
  %v9706 = vadd.f32 %v9626, %v9644
  %v9707 = vadd.f32 %v9629, %v9644
  %v9708 = vadd.f32 %v9634, %v9644
  %v9709 = vadd.f32 %v9637, %v9644
  %v9710 = vlaneseq
  %v9711 = vshrl.u32 %v9710, 7
  %v9712 = vsub.s32 0, %v9711
  %v9713 = vrot.slane %v8429, %v9712
  %v9714 = vmul.f32 %v9646, %v9713
  %v9715 = vmul.f32 %v9647, %v9713
  %v9716 = vmul.f32 %v9648, %v9713
  %v9717 = vmul.f32 %v9649, %v9713
  %v9718 = vmul.f32 %v9650, %v9713
  %v9719 = vmul.f32 %v9651, %v9713
  %v9720 = vmul.f32 %v9652, %v9713
  %v9721 = vmul.f32 %v9653, %v9713
  %v9722 = vmul.f32 %v9654, %v9713
  %v9723 = vmul.f32 %v9655, %v9713
  %v9724 = vmul.f32 %v9656, %v9713
  %v9725 = vmul.f32 %v9657, %v9713
  %v9726 = vmul.f32 %v9658, %v9713
  %v9727 = vmul.f32 %v9659, %v9713
  %v9728 = vmul.f32 %v9660, %v9713
  %v9729 = vmul.f32 %v9661, %v9713
  %v9730 = vmul.f32 %v9662, %v9713
  %v9731 = vmul.f32 %v9663, %v9713
  %v9732 = vmul.f32 %v9664, %v9713
  %v9733 = vmul.f32 %v9665, %v9713
  %v9734 = vmul.f32 %v9666, %v9713
  %v9735 = vmul.f32 %v9667, %v9713
  %v9736 = vmul.f32 %v9668, %v9713
  %v9737 = vmul.f32 %v9669, %v9713
  %v9738 = vmul.f32 %v9670, %v9713
  %v9739 = vmul.f32 %v9671, %v9713
  %v9740 = vmul.f32 %v9672, %v9713
  %v9741 = vmul.f32 %v9673, %v9713
  %v9742 = vmul.f32 %v9674, %v9713
  %v9743 = vmul.f32 %v9675, %v9713
  %v9744 = vmul.f32 %v9676, %v9713
  %v9745 = vmul.f32 %v9677, %v9713
  %v9746 = vlaneseq
  %v9747 = vshrl.u32 %v9746, 7
  %v9748 = vsub.s32 0, %v9747
  %v9749 = vrot.slane %v8805, %v9748
  %v9750 = vmul.f32 %v9678, %v9749
  %v9751 = vmul.f32 %v9679, %v9749
  %v9752 = vmul.f32 %v9680, %v9749
  %v9753 = vmul.f32 %v9681, %v9749
  %v9754 = vmul.f32 %v9682, %v9749
  %v9755 = vmul.f32 %v9683, %v9749
  %v9756 = vmul.f32 %v9684, %v9749
  %v9757 = vmul.f32 %v9685, %v9749
  %v9758 = vmul.f32 %v9686, %v9749
  %v9759 = vmul.f32 %v9687, %v9749
  %v9760 = vmul.f32 %v9688, %v9749
  %v9761 = vmul.f32 %v9689, %v9749
  %v9762 = vmul.f32 %v9690, %v9749
  %v9763 = vmul.f32 %v9691, %v9749
  %v9764 = vmul.f32 %v9692, %v9749
  %v9765 = vmul.f32 %v9693, %v9749
  %v9766 = vmul.f32 %v9694, %v9749
  %v9767 = vmul.f32 %v9695, %v9749
  %v9768 = vmul.f32 %v9696, %v9749
  %v9769 = vmul.f32 %v9697, %v9749
  %v9770 = vmul.f32 %v9698, %v9749
  %v9771 = vmul.f32 %v9699, %v9749
  %v9772 = vmul.f32 %v9700, %v9749
  %v9773 = vmul.f32 %v9701, %v9749
  %v9774 = vmul.f32 %v9702, %v9749
  %v9775 = vmul.f32 %v9703, %v9749
  %v9776 = vmul.f32 %v9704, %v9749
  %v9777 = vmul.f32 %v9705, %v9749
  %v9778 = vmul.f32 %v9706, %v9749
  %v9779 = vmul.f32 %v9707, %v9749
  %v9780 = vmul.f32 %v9708, %v9749
  %v9781 = vmul.f32 %v9709, %v9749
  %v9782 = vpack.c.bf16 %v9715, %v9714
  %v9783 = vpack.c.bf16 %v9717, %v9716
  %v9784 = vpack.c.bf16 %v9719, %v9718
  %v9785 = vpack.c.bf16 %v9721, %v9720
  %v9786 = vpack.c.bf16 %v9723, %v9722
  %v9787 = vpack.c.bf16 %v9725, %v9724
  %v9788 = vpack.c.bf16 %v9727, %v9726
  %v9789 = vpack.c.bf16 %v9729, %v9728
  %v9790 = vpack.c.bf16 %v9731, %v9730
  %v9791 = vpack.c.bf16 %v9733, %v9732
  %v9792 = vpack.c.bf16 %v9735, %v9734
  %v9793 = vpack.c.bf16 %v9737, %v9736
  %v9794 = vpack.c.bf16 %v9739, %v9738
  %v9795 = vpack.c.bf16 %v9741, %v9740
  %v9796 = vpack.c.bf16 %v9743, %v9742
  %v9797 = vpack.c.bf16 %v9745, %v9744
  %v9798 = vpack.c.bf16 %v9751, %v9750
  %v9799 = vpack.c.bf16 %v9753, %v9752
  %v9800 = vpack.c.bf16 %v9755, %v9754
  %v9801 = vpack.c.bf16 %v9757, %v9756
  %v9802 = vpack.c.bf16 %v9759, %v9758
  %v9803 = vpack.c.bf16 %v9761, %v9760
  %v9804 = vpack.c.bf16 %v9763, %v9762
  %v9805 = vpack.c.bf16 %v9765, %v9764
  %v9806 = vpack.c.bf16 %v9767, %v9766
  %v9807 = vpack.c.bf16 %v9769, %v9768
  %v9808 = vpack.c.bf16 %v9771, %v9770
  %v9809 = vpack.c.bf16 %v9773, %v9772
  %v9810 = vpack.c.bf16 %v9775, %v9774
  %v9811 = vpack.c.bf16 %v9777, %v9776
  %v9812 = vpack.c.bf16 %v9779, %v9778
  %v9813 = vpack.c.bf16 %v9781, %v9780
  %v9814 = vld [vmem:[%s14] sm:$0xf]
  %v9815 = vld [vmem:[%s14 + $0x4] sm:$0xf]
  %v9816 = vld [vmem:[%s14 + $0x8] sm:$0xf]
  %v9817 = vld [vmem:[%s14 + $0xc] sm:$0xf]
  %v9818 = vld [vmem:[%s14 + $0x10] sm:$0xf]
  %v9819 = vld [vmem:[%s14 + $0x14] sm:$0xf]
  %v9820 = vld [vmem:[%s14 + $0x18] sm:$0xf]
  %v9821 = vld [vmem:[%s14 + $0x1c] sm:$0xf]
  %v9822 = vld [vmem:[%s15] sm:$0x1]
  %v9824 = vlaneseq
  %v9825 = vshrl.u32 %v9824, 7
  %v9826 = vsub.s32 0, %v9825
  %v9827 = vrot.slane %v9822, %v9826
  %v9837 = vunpack.c.l.b16 %v9814
  %v9838 = vunpack.c.l.b16 %v9815
  %v9839 = vunpack.c.l.b16 %v9816
  %v9840 = vunpack.c.l.b16 %v9817
  %v9841 = vunpack.c.l.b16 %v9818
  %v9842 = vunpack.c.l.b16 %v9819
  %v9843 = vunpack.c.l.b16 %v9820
  %v9844 = vunpack.c.l.b16 %v9821
  %v9845 = vpack.c.b16 %v9838, %v9837
  %v9846 = vpack.c.b16 %v9840, %v9839
  %v9847 = vpack.c.b16 %v9842, %v9841
  %v9848 = vpack.c.b16 %v9844, %v9843
  %v9854 = vsel %vm8271, %v9782, 0
  %v9857 = vsel %vm8271, %v9783, 0
  %v9860 = vsel %vm8271, %v9784, 0
  %v9863 = vsel %vm8271, %v9785, 0
  %v9866 = vsel %vm8271, %v9786, 0
  %v9869 = vsel %vm8271, %v9787, 0
  %v9872 = vsel %vm8271, %v9788, 0
  %v9875 = vsel %vm8271, %v9789, 0
  %v9878 = vsel %vm8271, %v9790, 0
  %v9881 = vsel %vm8271, %v9791, 0
  %v9884 = vsel %vm8271, %v9792, 0
  %v9887 = vsel %vm8271, %v9793, 0
  %v9890 = vsel %vm8271, %v9794, 0
  %v9893 = vsel %vm8271, %v9795, 0
  %v9896 = vsel %vm8271, %v9796, 0
  %v9899 = vsel %vm8271, %v9797, 0
  %v9902 = vsel %vm8271, %v9798, 0
  %v9905 = vsel %vm8271, %v9799, 0
  %v9908 = vsel %vm8271, %v9800, 0
  %v9911 = vsel %vm8271, %v9801, 0
  %v9914 = vsel %vm8271, %v9802, 0
  %v9917 = vsel %vm8271, %v9803, 0
  %v9920 = vsel %vm8271, %v9804, 0
  %v9923 = vsel %vm8271, %v9805, 0
  %v9926 = vsel %vm8271, %v9806, 0
  %v9929 = vsel %vm8271, %v9807, 0
  %v9932 = vsel %vm8271, %v9808, 0
  %v9935 = vsel %vm8271, %v9809, 0
  %v9938 = vsel %vm8271, %v9810, 0
  %v9941 = vsel %vm8271, %v9811, 0
  %v9944 = vsel %vm8271, %v9812, 0
  %v9947 = vsel %vm8271, %v9813, 0
  %9949 = vmatprep.subr.bf16.mxu0 0
  %9950 = vmatpush1.bf16.msra.mxu0 %v9845
  %9951 = vmatprep.subr.bf16.mxu0 0
  %9952 = vmatpush1.bf16.msra.mxu0 %v9846
  %9953 = vmatprep.subr.bf16.mxu0 0
  %9954 = vmatpush1.bf16.msra.mxu0 %v9847
  %9955 = vmatprep.subr.bf16.mxu0 0
  %9956 = vmatpush1.bf16.msra.mxu0 %v9848
  %9957 = vmatprep.subr.bf16.mxu0 0
  %9958 = vmatpush1.bf16.msra.mxu0 0
  %9959 = vmatprep.subr.bf16.mxu0 0
  %9960 = vmatpush1.bf16.msra.mxu0 0
  %9961 = vmatprep.subr.bf16.mxu0 0
  %9962 = vmatpush1.bf16.msra.mxu0 0
  %9963 = vmatprep.subr.bf16.mxu0 0
  %9964 = vmatpush1.bf16.msra.mxu0 0
  %9965 = vmatprep.subr.bf16.mxu0 0
  %9966 = vmatpush1.bf16.msra.mxu0 0
  %9967 = vmatprep.subr.bf16.mxu0 0
  %9968 = vmatpush1.bf16.msra.mxu0 0
  %9969 = vmatprep.subr.bf16.mxu0 0
  %9970 = vmatpush1.bf16.msra.mxu0 0
  %9971 = vmatprep.subr.bf16.mxu0 0
  %9972 = vmatpush1.bf16.msra.mxu0 0
  %9973 = vmatprep.subr.bf16.mxu0 0
  %9974 = vmatpush1.bf16.msra.mxu0 0
  %9975 = vmatprep.subr.bf16.mxu0 0
  %9976 = vmatpush1.bf16.msra.mxu0 0
  %9977 = vmatprep.subr.bf16.mxu0 0
  %9978 = vmatpush1.bf16.msra.mxu0 0
  %9979 = vmatprep.subr.bf16.mxu0 0
  %9980 = vmatpush1.bf16.msra.mxu0 0
  %9981 = vmatprep.mubr.bf16.mxu0 0
  %9982 = vmatmul.mubr.bf16.gmra.mrb[0].mxu0 %v9854
  %v9983 = vpop.f32.mrb[0].mxu0
  %v9984 = vadd.f32 %v9827, %v9983
  %v9985 = vpop.f32.mrb[0].mxu0
  %v9986 = vpop.f32.mrb[0].mxu0
  %v9987 = vadd.f32 %v9827, %v9986
  %v9988 = vpop.f32.mrb[0].mxu0
  %9989 = vmatprep.mubr.bf16.mxu0 0
  %9990 = vmatmul.mubr.bf16.gmra.mrb[0].mxu0 %v9857
  %v9991 = vpop.f32.mrb[0].mxu0
  %v9992 = vadd.f32 %v9827, %v9991
  %v9993 = vpop.f32.mrb[0].mxu0
  %v9994 = vpop.f32.mrb[0].mxu0
  %v9995 = vadd.f32 %v9827, %v9994
  %v9996 = vpop.f32.mrb[0].mxu0
  %9997 = vmatprep.mubr.bf16.mxu0 0
  %9998 = vmatmul.mubr.bf16.gmra.mrb[0].mxu0 %v9860
  %v9999 = vpop.f32.mrb[0].mxu0
  %v10000 = vadd.f32 %v9827, %v9999
  %v10001 = vpop.f32.mrb[0].mxu0
  %v10002 = vpop.f32.mrb[0].mxu0
  %v10003 = vadd.f32 %v9827, %v10002
  %v10004 = vpop.f32.mrb[0].mxu0
  %10005 = vmatprep.mubr.bf16.mxu0 0
  %10006 = vmatmul.mubr.bf16.gmra.mrb[0].mxu0 %v9863
  %v10007 = vpop.f32.mrb[0].mxu0
  %v10008 = vadd.f32 %v9827, %v10007
  %v10009 = vpop.f32.mrb[0].mxu0
  %v10010 = vpop.f32.mrb[0].mxu0
  %v10011 = vadd.f32 %v9827, %v10010
  %v10012 = vpop.f32.mrb[0].mxu0
  %10013 = vmatprep.mubr.bf16.mxu0 0
  %10014 = vmatmul.mubr.bf16.gmra.mrb[0].mxu0 %v9866
  %v10015 = vpop.f32.mrb[0].mxu0
  %v10016 = vadd.f32 %v9827, %v10015
  %v10017 = vpop.f32.mrb[0].mxu0
  %v10018 = vpop.f32.mrb[0].mxu0
  %v10019 = vadd.f32 %v9827, %v10018
  %v10020 = vpop.f32.mrb[0].mxu0
  %10021 = vmatprep.mubr.bf16.mxu0 0
  %10022 = vmatmul.mubr.bf16.gmra.mrb[0].mxu0 %v9869
  %v10023 = vpop.f32.mrb[0].mxu0
  %v10024 = vadd.f32 %v9827, %v10023
  %v10025 = vpop.f32.mrb[0].mxu0
  %v10026 = vpop.f32.mrb[0].mxu0
  %v10027 = vadd.f32 %v9827, %v10026
  %v10028 = vpop.f32.mrb[0].mxu0
  %10029 = vmatprep.mubr.bf16.mxu0 0
  %10030 = vmatmul.mubr.bf16.gmra.mrb[0].mxu0 %v9872
  %v10031 = vpop.f32.mrb[0].mxu0
  %v10032 = vadd.f32 %v9827, %v10031
  %v10033 = vpop.f32.mrb[0].mxu0
  %v10034 = vpop.f32.mrb[0].mxu0
  %v10035 = vadd.f32 %v9827, %v10034
  %v10036 = vpop.f32.mrb[0].mxu0
  %10037 = vmatprep.mubr.bf16.mxu0 0
  %10038 = vmatmul.mubr.bf16.gmra.mrb[0].mxu0 %v9875
  %v10039 = vpop.f32.mrb[0].mxu0
  %v10040 = vadd.f32 %v9827, %v10039
  %v10041 = vpop.f32.mrb[0].mxu0
  %v10042 = vpop.f32.mrb[0].mxu0
  %v10043 = vadd.f32 %v9827, %v10042
  %v10044 = vpop.f32.mrb[0].mxu0
  %10045 = vmatprep.mubr.bf16.mxu0 0
  %10046 = vmatmul.mubr.bf16.gmra.mrb[0].mxu0 %v9878
  %v10047 = vpop.f32.mrb[0].mxu0
  %v10048 = vadd.f32 %v9827, %v10047
  %v10049 = vpop.f32.mrb[0].mxu0
  %v10050 = vpop.f32.mrb[0].mxu0
  %v10051 = vadd.f32 %v9827, %v10050
  %v10052 = vpop.f32.mrb[0].mxu0
  %10053 = vmatprep.mubr.bf16.mxu0 0
  %10054 = vmatmul.mubr.bf16.gmra.mrb[0].mxu0 %v9881
  %v10055 = vpop.f32.mrb[0].mxu0
  %v10056 = vadd.f32 %v9827, %v10055
  %v10057 = vpop.f32.mrb[0].mxu0
  %v10058 = vpop.f32.mrb[0].mxu0
  %v10059 = vadd.f32 %v9827, %v10058
  %v10060 = vpop.f32.mrb[0].mxu0
  %10061 = vmatprep.mubr.bf16.mxu0 0
  %10062 = vmatmul.mubr.bf16.gmra.mrb[0].mxu0 %v9884
  %v10063 = vpop.f32.mrb[0].mxu0
  %v10064 = vadd.f32 %v9827, %v10063
  %v10065 = vpop.f32.mrb[0].mxu0
  %v10066 = vpop.f32.mrb[0].mxu0
  %v10067 = vadd.f32 %v9827, %v10066
  %v10068 = vpop.f32.mrb[0].mxu0
  %10069 = vmatprep.mubr.bf16.mxu0 0
  %10070 = vmatmul.mubr.bf16.gmra.mrb[0].mxu0 %v9887
  %v10071 = vpop.f32.mrb[0].mxu0
  %v10072 = vadd.f32 %v9827, %v10071
  %v10073 = vpop.f32.mrb[0].mxu0
  %v10074 = vpop.f32.mrb[0].mxu0
  %v10075 = vadd.f32 %v9827, %v10074
  %v10076 = vpop.f32.mrb[0].mxu0
  %10077 = vmatprep.mubr.bf16.mxu0 0
  %10078 = vmatmul.mubr.bf16.gmra.mrb[0].mxu0 %v9890
  %v10079 = vpop.f32.mrb[0].mxu0
  %v10080 = vadd.f32 %v9827, %v10079
  %v10081 = vpop.f32.mrb[0].mxu0
  %v10082 = vpop.f32.mrb[0].mxu0
  %v10083 = vadd.f32 %v9827, %v10082
  %v10084 = vpop.f32.mrb[0].mxu0
  %10085 = vmatprep.mubr.bf16.mxu0 0
  %10086 = vmatmul.mubr.bf16.gmra.mrb[0].mxu0 %v9893
  %v10087 = vpop.f32.mrb[0].mxu0
  %v10088 = vadd.f32 %v9827, %v10087
  %v10089 = vpop.f32.mrb[0].mxu0
  %v10090 = vpop.f32.mrb[0].mxu0
  %v10091 = vadd.f32 %v9827, %v10090
  %v10092 = vpop.f32.mrb[0].mxu0
  %10093 = vmatprep.mubr.bf16.mxu0 0
  %10094 = vmatmul.mubr.bf16.gmra.mrb[0].mxu0 %v9896
  %v10095 = vpop.f32.mrb[0].mxu0
  %v10096 = vadd.f32 %v9827, %v10095
  %v10097 = vpop.f32.mrb[0].mxu0
  %v10098 = vpop.f32.mrb[0].mxu0
  %v10099 = vadd.f32 %v9827, %v10098
  %v10100 = vpop.f32.mrb[0].mxu0
  %10101 = vmatprep.mubr.bf16.mxu0 0
  %10102 = vmatmul.mubr.bf16.gmra.mrb[0].mxu0 %v9899
  %v10103 = vpop.f32.mrb[0].mxu0
  %v10104 = vadd.f32 %v9827, %v10103
  %v10105 = vpop.f32.mrb[0].mxu0
  %v10106 = vpop.f32.mrb[0].mxu0
  %v10107 = vadd.f32 %v9827, %v10106
  %v10108 = vpop.f32.mrb[0].mxu0
  %10109 = vmatprep.mubr.bf16.mxu0 0
  %10110 = vmatmul.mubr.bf16.gmra.mrb[0].mxu0 %v9902
  %v10111 = vpop.f32.mrb[0].mxu0
  %v10112 = vadd.f32 %v9827, %v10111
  %v10113 = vpop.f32.mrb[0].mxu0
  %v10114 = vpop.f32.mrb[0].mxu0
  %v10115 = vadd.f32 %v9827, %v10114
  %v10116 = vpop.f32.mrb[0].mxu0
  %10117 = vmatprep.mubr.bf16.mxu0 0
  %10118 = vmatmul.mubr.bf16.gmra.mrb[0].mxu0 %v9905
  %v10119 = vpop.f32.mrb[0].mxu0
  %v10120 = vadd.f32 %v9827, %v10119
  %v10121 = vpop.f32.mrb[0].mxu0
  %v10122 = vpop.f32.mrb[0].mxu0
  %v10123 = vadd.f32 %v9827, %v10122
  %v10124 = vpop.f32.mrb[0].mxu0
  %10125 = vmatprep.mubr.bf16.mxu0 0
  %10126 = vmatmul.mubr.bf16.gmra.mrb[0].mxu0 %v9908
  %v10127 = vpop.f32.mrb[0].mxu0
  %v10128 = vadd.f32 %v9827, %v10127
  %v10129 = vpop.f32.mrb[0].mxu0
  %v10130 = vpop.f32.mrb[0].mxu0
  %v10131 = vadd.f32 %v9827, %v10130
  %v10132 = vpop.f32.mrb[0].mxu0
  %10133 = vmatprep.mubr.bf16.mxu0 0
  %10134 = vmatmul.mubr.bf16.gmra.mrb[0].mxu0 %v9911
  %v10135 = vpop.f32.mrb[0].mxu0
  %v10136 = vadd.f32 %v9827, %v10135
  %v10137 = vpop.f32.mrb[0].mxu0
  %v10138 = vpop.f32.mrb[0].mxu0
  %v10139 = vadd.f32 %v9827, %v10138
  %v10140 = vpop.f32.mrb[0].mxu0
  %10141 = vmatprep.mubr.bf16.mxu0 0
  %10142 = vmatmul.mubr.bf16.gmra.mrb[0].mxu0 %v9914
  %v10143 = vpop.f32.mrb[0].mxu0
  %v10144 = vadd.f32 %v9827, %v10143
  %v10145 = vpop.f32.mrb[0].mxu0
  %v10146 = vpop.f32.mrb[0].mxu0
  %v10147 = vadd.f32 %v9827, %v10146
  %v10148 = vpop.f32.mrb[0].mxu0
  %10149 = vmatprep.mubr.bf16.mxu0 0
  %10150 = vmatmul.mubr.bf16.gmra.mrb[0].mxu0 %v9917
  %v10151 = vpop.f32.mrb[0].mxu0
  %v10152 = vadd.f32 %v9827, %v10151
  %v10153 = vpop.f32.mrb[0].mxu0
  %v10154 = vpop.f32.mrb[0].mxu0
  %v10155 = vadd.f32 %v9827, %v10154
  %v10156 = vpop.f32.mrb[0].mxu0
  %10157 = vmatprep.mubr.bf16.mxu0 0
  %10158 = vmatmul.mubr.bf16.gmra.mrb[0].mxu0 %v9920
  %v10159 = vpop.f32.mrb[0].mxu0
  %v10160 = vadd.f32 %v9827, %v10159
  %v10161 = vpop.f32.mrb[0].mxu0
  %v10162 = vpop.f32.mrb[0].mxu0
  %v10163 = vadd.f32 %v9827, %v10162
  %v10164 = vpop.f32.mrb[0].mxu0
  %10165 = vmatprep.mubr.bf16.mxu0 0
  %10166 = vmatmul.mubr.bf16.gmra.mrb[0].mxu0 %v9923
  %v10167 = vpop.f32.mrb[0].mxu0
  %v10168 = vadd.f32 %v9827, %v10167
  %v10169 = vpop.f32.mrb[0].mxu0
  %v10170 = vpop.f32.mrb[0].mxu0
  %v10171 = vadd.f32 %v9827, %v10170
  %v10172 = vpop.f32.mrb[0].mxu0
  %10173 = vmatprep.mubr.bf16.mxu0 0
  %10174 = vmatmul.mubr.bf16.gmra.mrb[0].mxu0 %v9926
  %v10175 = vpop.f32.mrb[0].mxu0
  %v10176 = vadd.f32 %v9827, %v10175
  %v10177 = vpop.f32.mrb[0].mxu0
  %v10178 = vpop.f32.mrb[0].mxu0
  %v10179 = vadd.f32 %v9827, %v10178
  %v10180 = vpop.f32.mrb[0].mxu0
  %10181 = vmatprep.mubr.bf16.mxu0 0
  %10182 = vmatmul.mubr.bf16.gmra.mrb[0].mxu0 %v9929
  %v10183 = vpop.f32.mrb[0].mxu0
  %v10184 = vadd.f32 %v9827, %v10183
  %v10185 = vpop.f32.mrb[0].mxu0
  %v10186 = vpop.f32.mrb[0].mxu0
  %v10187 = vadd.f32 %v9827, %v10186
  %v10188 = vpop.f32.mrb[0].mxu0
  %10189 = vmatprep.mubr.bf16.mxu0 0
  %10190 = vmatmul.mubr.bf16.gmra.mrb[0].mxu0 %v9932
  %v10191 = vpop.f32.mrb[0].mxu0
  %v10192 = vadd.f32 %v9827, %v10191
  %v10193 = vpop.f32.mrb[0].mxu0
  %v10194 = vpop.f32.mrb[0].mxu0
  %v10195 = vadd.f32 %v9827, %v10194
  %v10196 = vpop.f32.mrb[0].mxu0
  %10197 = vmatprep.mubr.bf16.mxu0 0
  %10198 = vmatmul.mubr.bf16.gmra.mrb[0].mxu0 %v9935
  %v10199 = vpop.f32.mrb[0].mxu0
  %v10200 = vadd.f32 %v9827, %v10199
  %v10201 = vpop.f32.mrb[0].mxu0
  %v10202 = vpop.f32.mrb[0].mxu0
  %v10203 = vadd.f32 %v9827, %v10202
  %v10204 = vpop.f32.mrb[0].mxu0
  %10205 = vmatprep.mubr.bf16.mxu0 0
  %10206 = vmatmul.mubr.bf16.gmra.mrb[0].mxu0 %v9938
  %v10207 = vpop.f32.mrb[0].mxu0
  %v10208 = vadd.f32 %v9827, %v10207
  %v10209 = vpop.f32.mrb[0].mxu0
  %v10210 = vpop.f32.mrb[0].mxu0
  %v10211 = vadd.f32 %v9827, %v10210
  %v10212 = vpop.f32.mrb[0].mxu0
  %10213 = vmatprep.mubr.bf16.mxu0 0
  %10214 = vmatmul.mubr.bf16.gmra.mrb[0].mxu0 %v9941
  %v10215 = vpop.f32.mrb[0].mxu0
  %v10216 = vadd.f32 %v9827, %v10215
  %v10217 = vpop.f32.mrb[0].mxu0
  %v10218 = vpop.f32.mrb[0].mxu0
  %v10219 = vadd.f32 %v9827, %v10218
  %v10220 = vpop.f32.mrb[0].mxu0
  %10221 = vmatprep.mubr.bf16.mxu0 0
  %10222 = vmatmul.mubr.bf16.gmra.mrb[0].mxu0 %v9944
  %v10223 = vpop.f32.mrb[0].mxu0
  %v10224 = vadd.f32 %v9827, %v10223
  %v10225 = vpop.f32.mrb[0].mxu0
  %v10226 = vpop.f32.mrb[0].mxu0
  %v10227 = vadd.f32 %v9827, %v10226
  %v10228 = vpop.f32.mrb[0].mxu0
  %10229 = vmatprep.mubr.bf16.mxu0 0
  %10230 = vmatmul.mubr.bf16.gmra.mrb[0].mxu0 %v9947
  %v10231 = vpop.f32.mrb[0].mxu0
  %v10232 = vadd.f32 %v9827, %v10231
  %v10233 = vpop.f32.mrb[0].mxu0
  %v10234 = vpop.f32.mrb[0].mxu0
  %v10235 = vadd.f32 %v9827, %v10234
  %v10236 = vpop.f32.mrb[0].mxu0
  %10237 = vdwg.mxu0
  %v10238 = vmul.f32 %v9984, 0.5
  %v10239 = vmul.f32 %v9987, 0.5
  %v10240 = vmul.f32 %v9992, 0.5
  %v10241 = vmul.f32 %v9995, 0.5
  %v10242 = vmul.f32 %v10000, 0.5
  %v10243 = vmul.f32 %v10003, 0.5
  %v10244 = vmul.f32 %v10008, 0.5
  %v10245 = vmul.f32 %v10011, 0.5
  %v10246 = vmul.f32 %v10016, 0.5
  %v10247 = vmul.f32 %v10019, 0.5
  %v10248 = vmul.f32 %v10024, 0.5
  %v10249 = vmul.f32 %v10027, 0.5
  %v10250 = vmul.f32 %v10032, 0.5
  %v10251 = vmul.f32 %v10035, 0.5
  %v10252 = vmul.f32 %v10040, 0.5
  %v10253 = vmul.f32 %v10043, 0.5
  %v10254 = vmul.f32 %v10048, 0.5
  %v10255 = vmul.f32 %v10051, 0.5
  %v10256 = vmul.f32 %v10056, 0.5
  %v10257 = vmul.f32 %v10059, 0.5
  %v10258 = vmul.f32 %v10064, 0.5
  %v10259 = vmul.f32 %v10067, 0.5
  %v10260 = vmul.f32 %v10072, 0.5
  %v10261 = vmul.f32 %v10075, 0.5
  %v10262 = vmul.f32 %v10080, 0.5
  %v10263 = vmul.f32 %v10083, 0.5
  %v10264 = vmul.f32 %v10088, 0.5
  %v10265 = vmul.f32 %v10091, 0.5
  %v10266 = vmul.f32 %v10096, 0.5
  %v10267 = vmul.f32 %v10099, 0.5
  %v10268 = vmul.f32 %v10104, 0.5
  %v10269 = vmul.f32 %v10107, 0.5
  %v10270 = vmul.f32 %v10112, 0.5
  %v10271 = vmul.f32 %v10115, 0.5
  %v10272 = vmul.f32 %v10120, 0.5
  %v10273 = vmul.f32 %v10123, 0.5
  %v10274 = vmul.f32 %v10128, 0.5
  %v10275 = vmul.f32 %v10131, 0.5
  %v10276 = vmul.f32 %v10136, 0.5
  %v10277 = vmul.f32 %v10139, 0.5
  %v10278 = vmul.f32 %v10144, 0.5
  %v10279 = vmul.f32 %v10147, 0.5
  %v10280 = vmul.f32 %v10152, 0.5
  %v10281 = vmul.f32 %v10155, 0.5
  %v10282 = vmul.f32 %v10160, 0.5
  %v10283 = vmul.f32 %v10163, 0.5
  %v10284 = vmul.f32 %v10168, 0.5
  %v10285 = vmul.f32 %v10171, 0.5
  %v10286 = vmul.f32 %v10176, 0.5
  %v10287 = vmul.f32 %v10179, 0.5
  %v10288 = vmul.f32 %v10184, 0.5
  %v10289 = vmul.f32 %v10187, 0.5
  %v10290 = vmul.f32 %v10192, 0.5
  %v10291 = vmul.f32 %v10195, 0.5
  %v10292 = vmul.f32 %v10200, 0.5
  %v10293 = vmul.f32 %v10203, 0.5
  %v10294 = vmul.f32 %v10208, 0.5
  %v10295 = vmul.f32 %v10211, 0.5
  %v10296 = vmul.f32 %v10216, 0.5
  %v10297 = vmul.f32 %v10219, 0.5
  %v10298 = vmul.f32 %v10224, 0.5
  %v10299 = vmul.f32 %v10227, 0.5
  %v10300 = vmul.f32 %v10232, 0.5
  %v10301 = vmul.f32 %v10235, 0.5
  %v10302 = vadd.f32 %v72, %v10238
  %v10303 = vadd.f32 %v73, %v10239
  %v10304 = vadd.f32 %v74, %v10240
  %v10305 = vadd.f32 %v75, %v10241
  %v10306 = vadd.f32 %v76, %v10242
  %v10307 = vadd.f32 %v77, %v10243
  %v10308 = vadd.f32 %v78, %v10244
  %v10309 = vadd.f32 %v79, %v10245
  %v10310 = vadd.f32 %v80, %v10246
  %v10311 = vadd.f32 %v81, %v10247
  %v10312 = vadd.f32 %v82, %v10248
  %v10313 = vadd.f32 %v83, %v10249
  %v10314 = vadd.f32 %v84, %v10250
  %v10315 = vadd.f32 %v85, %v10251
  %v10316 = vadd.f32 %v86, %v10252
  %v10317 = vadd.f32 %v87, %v10253
  %v10318 = vadd.f32 %v88, %v10254
  %v10319 = vadd.f32 %v89, %v10255
  %v10320 = vadd.f32 %v90, %v10256
  %v10321 = vadd.f32 %v91, %v10257
  %v10322 = vadd.f32 %v92, %v10258
  %v10323 = vadd.f32 %v93, %v10259
  %v10324 = vadd.f32 %v94, %v10260
  %v10325 = vadd.f32 %v95, %v10261
  %v10326 = vadd.f32 %v96, %v10262
  %v10327 = vadd.f32 %v97, %v10263
  %v10328 = vadd.f32 %v98, %v10264
  %v10329 = vadd.f32 %v99, %v10265
  %v10330 = vadd.f32 %v100, %v10266
  %v10331 = vadd.f32 %v101, %v10267
  %v10332 = vadd.f32 %v102, %v10268
  %v10333 = vadd.f32 %v103, %v10269
  %v10334 = vadd.f32 %v104, %v10270
  %v10335 = vadd.f32 %v105, %v10271
  %v10336 = vadd.f32 %v106, %v10272
  %v10337 = vadd.f32 %v107, %v10273
  %v10338 = vadd.f32 %v108, %v10274
  %v10339 = vadd.f32 %v109, %v10275
  %v10340 = vadd.f32 %v110, %v10276
  %v10341 = vadd.f32 %v111, %v10277
  %v10342 = vadd.f32 %v112, %v10278
  %v10343 = vadd.f32 %v113, %v10279
  %v10344 = vadd.f32 %v114, %v10280
  %v10345 = vadd.f32 %v115, %v10281
  %v10346 = vadd.f32 %v116, %v10282
  %v10347 = vadd.f32 %v117, %v10283
  %v10348 = vadd.f32 %v118, %v10284
  %v10349 = vadd.f32 %v119, %v10285
  %v10350 = vadd.f32 %v120, %v10286
  %v10351 = vadd.f32 %v121, %v10287
  %v10352 = vadd.f32 %v122, %v10288
  %v10353 = vadd.f32 %v123, %v10289
  %v10354 = vadd.f32 %v124, %v10290
  %v10355 = vadd.f32 %v125, %v10291
  %v10356 = vadd.f32 %v126, %v10292
  %v10357 = vadd.f32 %v127, %v10293
  %v10358 = vadd.f32 %v128, %v10294
  %v10359 = vadd.f32 %v129, %v10295
  %v10360 = vadd.f32 %v130, %v10296
  %v10361 = vadd.f32 %v131, %v10297
  %v10362 = vadd.f32 %v132, %v10298
  %v10363 = vadd.f32 %v133, %v10299
  %v10364 = vadd.f32 %v134, %v10300
  %v10365 = vadd.f32 %v135, %v10301
  %v10366 = vld [vmem:[%s16] sm:$0x1]
  %v10367 = vld [vmem:[%s17] sm:$0x1]
  %v10368 = vsel %vm138, %v10302, 0.0
  %10369 = vadd.xlane.f32.xlu0 %v10368
  %v10370 = vpop.xlane.xlu0 %10369
  %v10371 = vsel %vm138, %v10303, 0.0
  %10372 = vadd.xlane.f32.xlu0 %v10371
  %v10373 = vpop.xlane.xlu0 %10372
  %v10374 = vsel %vm138, %v10304, 0.0
  %10375 = vadd.xlane.f32.xlu0 %v10374
  %v10376 = vpop.xlane.xlu0 %10375
  %v10377 = vsel %vm138, %v10305, 0.0
  %10378 = vadd.xlane.f32.xlu0 %v10377
  %v10379 = vpop.xlane.xlu0 %10378
  %v10380 = vsel %vm138, %v10306, 0.0
  %10381 = vadd.xlane.f32.xlu0 %v10380
  %v10382 = vpop.xlane.xlu0 %10381
  %v10383 = vsel %vm138, %v10307, 0.0
  %10384 = vadd.xlane.f32.xlu0 %v10383
  %v10385 = vpop.xlane.xlu0 %10384
  %v10386 = vsel %vm138, %v10308, 0.0
  %10387 = vadd.xlane.f32.xlu0 %v10386
  %v10388 = vpop.xlane.xlu0 %10387
  %v10389 = vsel %vm138, %v10309, 0.0
  %10390 = vadd.xlane.f32.xlu0 %v10389
  %v10391 = vpop.xlane.xlu0 %10390
  %v10392 = vsel %vm138, %v10310, 0.0
  %10393 = vadd.xlane.f32.xlu0 %v10392
  %v10394 = vpop.xlane.xlu0 %10393
  %v10395 = vsel %vm138, %v10311, 0.0
  %10396 = vadd.xlane.f32.xlu0 %v10395
  %v10397 = vpop.xlane.xlu0 %10396
  %v10398 = vsel %vm138, %v10312, 0.0
  %10399 = vadd.xlane.f32.xlu0 %v10398
  %v10400 = vpop.xlane.xlu0 %10399
  %v10401 = vsel %vm138, %v10313, 0.0
  %10402 = vadd.xlane.f32.xlu0 %v10401
  %v10403 = vpop.xlane.xlu0 %10402
  %v10404 = vsel %vm138, %v10314, 0.0
  %10405 = vadd.xlane.f32.xlu0 %v10404
  %v10406 = vpop.xlane.xlu0 %10405
  %v10407 = vsel %vm138, %v10315, 0.0
  %10408 = vadd.xlane.f32.xlu0 %v10407
  %v10409 = vpop.xlane.xlu0 %10408
  %v10410 = vsel %vm138, %v10316, 0.0
  %10411 = vadd.xlane.f32.xlu0 %v10410
  %v10412 = vpop.xlane.xlu0 %10411
  %v10413 = vsel %vm138, %v10317, 0.0
  %10414 = vadd.xlane.f32.xlu0 %v10413
  %v10415 = vpop.xlane.xlu0 %10414
  %v10416 = vsel %vm138, %v10318, 0.0
  %10417 = vadd.xlane.f32.xlu0 %v10416
  %v10418 = vpop.xlane.xlu0 %10417
  %v10419 = vsel %vm138, %v10319, 0.0
  %10420 = vadd.xlane.f32.xlu0 %v10419
  %v10421 = vpop.xlane.xlu0 %10420
  %v10422 = vsel %vm138, %v10320, 0.0
  %10423 = vadd.xlane.f32.xlu0 %v10422
  %v10424 = vpop.xlane.xlu0 %10423
  %v10425 = vsel %vm138, %v10321, 0.0
  %10426 = vadd.xlane.f32.xlu0 %v10425
  %v10427 = vpop.xlane.xlu0 %10426
  %v10428 = vsel %vm138, %v10322, 0.0
  %10429 = vadd.xlane.f32.xlu0 %v10428
  %v10430 = vpop.xlane.xlu0 %10429
  %v10431 = vsel %vm138, %v10323, 0.0
  %10432 = vadd.xlane.f32.xlu0 %v10431
  %v10433 = vpop.xlane.xlu0 %10432
  %v10434 = vsel %vm138, %v10324, 0.0
  %10435 = vadd.xlane.f32.xlu0 %v10434
  %v10436 = vpop.xlane.xlu0 %10435
  %v10437 = vsel %vm138, %v10325, 0.0
  %10438 = vadd.xlane.f32.xlu0 %v10437
  %v10439 = vpop.xlane.xlu0 %10438
  %v10440 = vsel %vm138, %v10326, 0.0
  %10441 = vadd.xlane.f32.xlu0 %v10440
  %v10442 = vpop.xlane.xlu0 %10441
  %v10443 = vsel %vm138, %v10327, 0.0
  %10444 = vadd.xlane.f32.xlu0 %v10443
  %v10445 = vpop.xlane.xlu0 %10444
  %v10446 = vsel %vm138, %v10328, 0.0
  %10447 = vadd.xlane.f32.xlu0 %v10446
  %v10448 = vpop.xlane.xlu0 %10447
  %v10449 = vsel %vm138, %v10329, 0.0
  %10450 = vadd.xlane.f32.xlu0 %v10449
  %v10451 = vpop.xlane.xlu0 %10450
  %v10452 = vsel %vm138, %v10330, 0.0
  %10453 = vadd.xlane.f32.xlu0 %v10452
  %v10454 = vpop.xlane.xlu0 %10453
  %v10455 = vsel %vm138, %v10331, 0.0
  %10456 = vadd.xlane.f32.xlu0 %v10455
  %v10457 = vpop.xlane.xlu0 %10456
  %v10458 = vsel %vm138, %v10332, 0.0
  %10459 = vadd.xlane.f32.xlu0 %v10458
  %v10460 = vpop.xlane.xlu0 %10459
  %v10461 = vsel %vm138, %v10333, 0.0
  %10462 = vadd.xlane.f32.xlu0 %v10461
  %v10463 = vpop.xlane.xlu0 %10462
  %v10464 = vsel %vm138, %v10334, 0.0
  %10465 = vadd.xlane.f32.xlu0 %v10464
  %v10466 = vpop.xlane.xlu0 %10465
  %v10467 = vsel %vm138, %v10335, 0.0
  %10468 = vadd.xlane.f32.xlu0 %v10467
  %v10469 = vpop.xlane.xlu0 %10468
  %v10470 = vsel %vm138, %v10336, 0.0
  %10471 = vadd.xlane.f32.xlu0 %v10470
  %v10472 = vpop.xlane.xlu0 %10471
  %v10473 = vsel %vm138, %v10337, 0.0
  %10474 = vadd.xlane.f32.xlu0 %v10473
  %v10475 = vpop.xlane.xlu0 %10474
  %v10476 = vsel %vm138, %v10338, 0.0
  %10477 = vadd.xlane.f32.xlu0 %v10476
  %v10478 = vpop.xlane.xlu0 %10477
  %v10479 = vsel %vm138, %v10339, 0.0
  %10480 = vadd.xlane.f32.xlu0 %v10479
  %v10481 = vpop.xlane.xlu0 %10480
  %v10482 = vsel %vm138, %v10340, 0.0
  %10483 = vadd.xlane.f32.xlu0 %v10482
  %v10484 = vpop.xlane.xlu0 %10483
  %v10485 = vsel %vm138, %v10341, 0.0
  %10486 = vadd.xlane.f32.xlu0 %v10485
  %v10487 = vpop.xlane.xlu0 %10486
  %v10488 = vsel %vm138, %v10342, 0.0
  %10489 = vadd.xlane.f32.xlu0 %v10488
  %v10490 = vpop.xlane.xlu0 %10489
  %v10491 = vsel %vm138, %v10343, 0.0
  %10492 = vadd.xlane.f32.xlu0 %v10491
  %v10493 = vpop.xlane.xlu0 %10492
  %v10494 = vsel %vm138, %v10344, 0.0
  %10495 = vadd.xlane.f32.xlu0 %v10494
  %v10496 = vpop.xlane.xlu0 %10495
  %v10497 = vsel %vm138, %v10345, 0.0
  %10498 = vadd.xlane.f32.xlu0 %v10497
  %v10499 = vpop.xlane.xlu0 %10498
  %v10500 = vsel %vm138, %v10346, 0.0
  %10501 = vadd.xlane.f32.xlu0 %v10500
  %v10502 = vpop.xlane.xlu0 %10501
  %v10503 = vsel %vm138, %v10347, 0.0
  %10504 = vadd.xlane.f32.xlu0 %v10503
  %v10505 = vpop.xlane.xlu0 %10504
  %v10506 = vsel %vm138, %v10348, 0.0
  %10507 = vadd.xlane.f32.xlu0 %v10506
  %v10508 = vpop.xlane.xlu0 %10507
  %v10509 = vsel %vm138, %v10349, 0.0
  %10510 = vadd.xlane.f32.xlu0 %v10509
  %v10511 = vpop.xlane.xlu0 %10510
  %v10512 = vsel %vm138, %v10350, 0.0
  %10513 = vadd.xlane.f32.xlu0 %v10512
  %v10514 = vpop.xlane.xlu0 %10513
  %v10515 = vsel %vm138, %v10351, 0.0
  %10516 = vadd.xlane.f32.xlu0 %v10515
  %v10517 = vpop.xlane.xlu0 %10516
  %v10518 = vsel %vm138, %v10352, 0.0
  %10519 = vadd.xlane.f32.xlu0 %v10518
  %v10520 = vpop.xlane.xlu0 %10519
  %v10521 = vsel %vm138, %v10353, 0.0
  %10522 = vadd.xlane.f32.xlu0 %v10521
  %v10523 = vpop.xlane.xlu0 %10522
  %v10524 = vsel %vm138, %v10354, 0.0
  %10525 = vadd.xlane.f32.xlu0 %v10524
  %v10526 = vpop.xlane.xlu0 %10525
  %v10527 = vsel %vm138, %v10355, 0.0
  %10528 = vadd.xlane.f32.xlu0 %v10527
  %v10529 = vpop.xlane.xlu0 %10528
  %v10530 = vsel %vm138, %v10356, 0.0
  %10531 = vadd.xlane.f32.xlu0 %v10530
  %v10532 = vpop.xlane.xlu0 %10531
  %v10533 = vsel %vm138, %v10357, 0.0
  %10534 = vadd.xlane.f32.xlu0 %v10533
  %v10535 = vpop.xlane.xlu0 %10534
  %v10536 = vsel %vm138, %v10358, 0.0
  %10537 = vadd.xlane.f32.xlu0 %v10536
  %v10538 = vpop.xlane.xlu0 %10537
  %v10539 = vsel %vm138, %v10359, 0.0
  %10540 = vadd.xlane.f32.xlu0 %v10539
  %v10541 = vpop.xlane.xlu0 %10540
  %v10542 = vsel %vm138, %v10360, 0.0
  %10543 = vadd.xlane.f32.xlu0 %v10542
  %v10544 = vpop.xlane.xlu0 %10543
  %v10545 = vsel %vm138, %v10361, 0.0
  %10546 = vadd.xlane.f32.xlu0 %v10545
  %v10547 = vpop.xlane.xlu0 %10546
  %v10548 = vsel %vm138, %v10362, 0.0
  %10549 = vadd.xlane.f32.xlu0 %v10548
  %v10550 = vpop.xlane.xlu0 %10549
  %v10551 = vsel %vm138, %v10363, 0.0
  %10552 = vadd.xlane.f32.xlu0 %v10551
  %v10553 = vpop.xlane.xlu0 %10552
  %v10554 = vsel %vm138, %v10364, 0.0
  %10555 = vadd.xlane.f32.xlu0 %v10554
  %v10556 = vpop.xlane.xlu0 %10555
  %v10557 = vsel %vm138, %v10365, 0.0
  %10558 = vadd.xlane.f32.xlu0 %v10557
  %v10559 = vpop.xlane.xlu0 %10558
  %v10560 = vmul.f32 %v10370, %v331
  %v10561 = vmul.f32 %v10373, %v331
  %v10562 = vmul.f32 %v10376, %v331
  %v10563 = vmul.f32 %v10379, %v331
  %v10564 = vmul.f32 %v10382, %v331
  %v10565 = vmul.f32 %v10385, %v331
  %v10566 = vmul.f32 %v10388, %v331
  %v10567 = vmul.f32 %v10391, %v331
  %v10568 = vmul.f32 %v10394, %v331
  %v10569 = vmul.f32 %v10397, %v331
  %v10570 = vmul.f32 %v10400, %v331
  %v10571 = vmul.f32 %v10403, %v331
  %v10572 = vmul.f32 %v10406, %v331
  %v10573 = vmul.f32 %v10409, %v331
  %v10574 = vmul.f32 %v10412, %v331
  %v10575 = vmul.f32 %v10415, %v331
  %v10576 = vmul.f32 %v10418, %v331
  %v10577 = vmul.f32 %v10421, %v331
  %v10578 = vmul.f32 %v10424, %v331
  %v10579 = vmul.f32 %v10427, %v331
  %v10580 = vmul.f32 %v10430, %v331
  %v10581 = vmul.f32 %v10433, %v331
  %v10582 = vmul.f32 %v10436, %v331
  %v10583 = vmul.f32 %v10439, %v331
  %v10584 = vmul.f32 %v10442, %v331
  %v10585 = vmul.f32 %v10445, %v331
  %v10586 = vmul.f32 %v10448, %v331
  %v10587 = vmul.f32 %v10451, %v331
  %v10588 = vmul.f32 %v10454, %v331
  %v10589 = vmul.f32 %v10457, %v331
  %v10590 = vmul.f32 %v10460, %v331
  %v10591 = vmul.f32 %v10463, %v331
  %v10592 = vmul.f32 %v10466, %v331
  %v10593 = vmul.f32 %v10469, %v331
  %v10594 = vmul.f32 %v10472, %v331
  %v10595 = vmul.f32 %v10475, %v331
  %v10596 = vmul.f32 %v10478, %v331
  %v10597 = vmul.f32 %v10481, %v331
  %v10598 = vmul.f32 %v10484, %v331
  %v10599 = vmul.f32 %v10487, %v331
  %v10600 = vmul.f32 %v10490, %v331
  %v10601 = vmul.f32 %v10493, %v331
  %v10602 = vmul.f32 %v10496, %v331
  %v10603 = vmul.f32 %v10499, %v331
  %v10604 = vmul.f32 %v10502, %v331
  %v10605 = vmul.f32 %v10505, %v331
  %v10606 = vmul.f32 %v10508, %v331
  %v10607 = vmul.f32 %v10511, %v331
  %v10608 = vmul.f32 %v10514, %v331
  %v10609 = vmul.f32 %v10517, %v331
  %v10610 = vmul.f32 %v10520, %v331
  %v10611 = vmul.f32 %v10523, %v331
  %v10612 = vmul.f32 %v10526, %v331
  %v10613 = vmul.f32 %v10529, %v331
  %v10614 = vmul.f32 %v10532, %v331
  %v10615 = vmul.f32 %v10535, %v331
  %v10616 = vmul.f32 %v10538, %v331
  %v10617 = vmul.f32 %v10541, %v331
  %v10618 = vmul.f32 %v10544, %v331
  %v10619 = vmul.f32 %v10547, %v331
  %v10620 = vmul.f32 %v10550, %v331
  %v10621 = vmul.f32 %v10553, %v331
  %v10622 = vmul.f32 %v10556, %v331
  %v10623 = vmul.f32 %v10559, %v331
  %v10624 = vsub.f32 %v10302, %v10560
  %v10625 = vsub.f32 %v10303, %v10561
  %v10626 = vsub.f32 %v10304, %v10562
  %v10627 = vsub.f32 %v10305, %v10563
  %v10628 = vsub.f32 %v10306, %v10564
  %v10629 = vsub.f32 %v10307, %v10565
  %v10630 = vsub.f32 %v10308, %v10566
  %v10631 = vsub.f32 %v10309, %v10567
  %v10632 = vsub.f32 %v10310, %v10568
  %v10633 = vsub.f32 %v10311, %v10569
  %v10634 = vsub.f32 %v10312, %v10570
  %v10635 = vsub.f32 %v10313, %v10571
  %v10636 = vsub.f32 %v10314, %v10572
  %v10637 = vsub.f32 %v10315, %v10573
  %v10638 = vsub.f32 %v10316, %v10574
  %v10639 = vsub.f32 %v10317, %v10575
  %v10640 = vsub.f32 %v10318, %v10576
  %v10641 = vsub.f32 %v10319, %v10577
  %v10642 = vsub.f32 %v10320, %v10578
  %v10643 = vsub.f32 %v10321, %v10579
  %v10644 = vsub.f32 %v10322, %v10580
  %v10645 = vsub.f32 %v10323, %v10581
  %v10646 = vsub.f32 %v10324, %v10582
  %v10647 = vsub.f32 %v10325, %v10583
  %v10648 = vsub.f32 %v10326, %v10584
  %v10649 = vsub.f32 %v10327, %v10585
  %v10650 = vsub.f32 %v10328, %v10586
  %v10651 = vsub.f32 %v10329, %v10587
  %v10652 = vsub.f32 %v10330, %v10588
  %v10653 = vsub.f32 %v10331, %v10589
  %v10654 = vsub.f32 %v10332, %v10590
  %v10655 = vsub.f32 %v10333, %v10591
  %v10656 = vsub.f32 %v10334, %v10592
  %v10657 = vsub.f32 %v10335, %v10593
  %v10658 = vsub.f32 %v10336, %v10594
  %v10659 = vsub.f32 %v10337, %v10595
  %v10660 = vsub.f32 %v10338, %v10596
  %v10661 = vsub.f32 %v10339, %v10597
  %v10662 = vsub.f32 %v10340, %v10598
  %v10663 = vsub.f32 %v10341, %v10599
  %v10664 = vsub.f32 %v10342, %v10600
  %v10665 = vsub.f32 %v10343, %v10601
  %v10666 = vsub.f32 %v10344, %v10602
  %v10667 = vsub.f32 %v10345, %v10603
  %v10668 = vsub.f32 %v10346, %v10604
  %v10669 = vsub.f32 %v10347, %v10605
  %v10670 = vsub.f32 %v10348, %v10606
  %v10671 = vsub.f32 %v10349, %v10607
  %v10672 = vsub.f32 %v10350, %v10608
  %v10673 = vsub.f32 %v10351, %v10609
  %v10674 = vsub.f32 %v10352, %v10610
  %v10675 = vsub.f32 %v10353, %v10611
  %v10676 = vsub.f32 %v10354, %v10612
  %v10677 = vsub.f32 %v10355, %v10613
  %v10678 = vsub.f32 %v10356, %v10614
  %v10679 = vsub.f32 %v10357, %v10615
  %v10680 = vsub.f32 %v10358, %v10616
  %v10681 = vsub.f32 %v10359, %v10617
  %v10682 = vsub.f32 %v10360, %v10618
  %v10683 = vsub.f32 %v10361, %v10619
  %v10684 = vsub.f32 %v10362, %v10620
  %v10685 = vsub.f32 %v10363, %v10621
  %v10686 = vsub.f32 %v10364, %v10622
  %v10687 = vsub.f32 %v10365, %v10623
  %v10688 = vmul.f32 %v10624, %v10624
  %v10689 = vmul.f32 %v10625, %v10625
  %v10690 = vmul.f32 %v10626, %v10626
  %v10691 = vmul.f32 %v10627, %v10627
  %v10692 = vmul.f32 %v10628, %v10628
  %v10693 = vmul.f32 %v10629, %v10629
  %v10694 = vmul.f32 %v10630, %v10630
  %v10695 = vmul.f32 %v10631, %v10631
  %v10696 = vmul.f32 %v10632, %v10632
  %v10697 = vmul.f32 %v10633, %v10633
  %v10698 = vmul.f32 %v10634, %v10634
  %v10699 = vmul.f32 %v10635, %v10635
  %v10700 = vmul.f32 %v10636, %v10636
  %v10701 = vmul.f32 %v10637, %v10637
  %v10702 = vmul.f32 %v10638, %v10638
  %v10703 = vmul.f32 %v10639, %v10639
  %v10704 = vmul.f32 %v10640, %v10640
  %v10705 = vmul.f32 %v10641, %v10641
  %v10706 = vmul.f32 %v10642, %v10642
  %v10707 = vmul.f32 %v10643, %v10643
  %v10708 = vmul.f32 %v10644, %v10644
  %v10709 = vmul.f32 %v10645, %v10645
  %v10710 = vmul.f32 %v10646, %v10646
  %v10711 = vmul.f32 %v10647, %v10647
  %v10712 = vmul.f32 %v10648, %v10648
  %v10713 = vmul.f32 %v10649, %v10649
  %v10714 = vmul.f32 %v10650, %v10650
  %v10715 = vmul.f32 %v10651, %v10651
  %v10716 = vmul.f32 %v10652, %v10652
  %v10717 = vmul.f32 %v10653, %v10653
  %v10718 = vmul.f32 %v10654, %v10654
  %v10719 = vmul.f32 %v10655, %v10655
  %v10720 = vmul.f32 %v10656, %v10656
  %v10721 = vmul.f32 %v10657, %v10657
  %v10722 = vmul.f32 %v10658, %v10658
  %v10723 = vmul.f32 %v10659, %v10659
  %v10724 = vmul.f32 %v10660, %v10660
  %v10725 = vmul.f32 %v10661, %v10661
  %v10726 = vmul.f32 %v10662, %v10662
  %v10727 = vmul.f32 %v10663, %v10663
  %v10728 = vmul.f32 %v10664, %v10664
  %v10729 = vmul.f32 %v10665, %v10665
  %v10730 = vmul.f32 %v10666, %v10666
  %v10731 = vmul.f32 %v10667, %v10667
  %v10732 = vmul.f32 %v10668, %v10668
  %v10733 = vmul.f32 %v10669, %v10669
  %v10734 = vmul.f32 %v10670, %v10670
  %v10735 = vmul.f32 %v10671, %v10671
  %v10736 = vmul.f32 %v10672, %v10672
  %v10737 = vmul.f32 %v10673, %v10673
  %v10738 = vmul.f32 %v10674, %v10674
  %v10739 = vmul.f32 %v10675, %v10675
  %v10740 = vmul.f32 %v10676, %v10676
  %v10741 = vmul.f32 %v10677, %v10677
  %v10742 = vmul.f32 %v10678, %v10678
  %v10743 = vmul.f32 %v10679, %v10679
  %v10744 = vmul.f32 %v10680, %v10680
  %v10745 = vmul.f32 %v10681, %v10681
  %v10746 = vmul.f32 %v10682, %v10682
  %v10747 = vmul.f32 %v10683, %v10683
  %v10748 = vmul.f32 %v10684, %v10684
  %v10749 = vmul.f32 %v10685, %v10685
  %v10750 = vmul.f32 %v10686, %v10686
  %v10751 = vmul.f32 %v10687, %v10687
  %v10752 = vsel %vm138, %v10688, 0.0
  %10753 = vadd.xlane.f32.xlu0 %v10752
  %v10754 = vpop.xlane.xlu0 %10753
  %v10755 = vsel %vm138, %v10689, 0.0
  %10756 = vadd.xlane.f32.xlu0 %v10755
  %v10757 = vpop.xlane.xlu0 %10756
  %v10758 = vsel %vm138, %v10690, 0.0
  %10759 = vadd.xlane.f32.xlu0 %v10758
  %v10760 = vpop.xlane.xlu0 %10759
  %v10761 = vsel %vm138, %v10691, 0.0
  %10762 = vadd.xlane.f32.xlu0 %v10761
  %v10763 = vpop.xlane.xlu0 %10762
  %v10764 = vsel %vm138, %v10692, 0.0
  %10765 = vadd.xlane.f32.xlu0 %v10764
  %v10766 = vpop.xlane.xlu0 %10765
  %v10767 = vsel %vm138, %v10693, 0.0
  %10768 = vadd.xlane.f32.xlu0 %v10767
  %v10769 = vpop.xlane.xlu0 %10768
  %v10770 = vsel %vm138, %v10694, 0.0
  %10771 = vadd.xlane.f32.xlu0 %v10770
  %v10772 = vpop.xlane.xlu0 %10771
  %v10773 = vsel %vm138, %v10695, 0.0
  %10774 = vadd.xlane.f32.xlu0 %v10773
  %v10775 = vpop.xlane.xlu0 %10774
  %v10776 = vsel %vm138, %v10696, 0.0
  %10777 = vadd.xlane.f32.xlu0 %v10776
  %v10778 = vpop.xlane.xlu0 %10777
  %v10779 = vsel %vm138, %v10697, 0.0
  %10780 = vadd.xlane.f32.xlu0 %v10779
  %v10781 = vpop.xlane.xlu0 %10780
  %v10782 = vsel %vm138, %v10698, 0.0
  %10783 = vadd.xlane.f32.xlu0 %v10782
  %v10784 = vpop.xlane.xlu0 %10783
  %v10785 = vsel %vm138, %v10699, 0.0
  %10786 = vadd.xlane.f32.xlu0 %v10785
  %v10787 = vpop.xlane.xlu0 %10786
  %v10788 = vsel %vm138, %v10700, 0.0
  %10789 = vadd.xlane.f32.xlu0 %v10788
  %v10790 = vpop.xlane.xlu0 %10789
  %v10791 = vsel %vm138, %v10701, 0.0
  %10792 = vadd.xlane.f32.xlu0 %v10791
  %v10793 = vpop.xlane.xlu0 %10792
  %v10794 = vsel %vm138, %v10702, 0.0
  %10795 = vadd.xlane.f32.xlu0 %v10794
  %v10796 = vpop.xlane.xlu0 %10795
  %v10797 = vsel %vm138, %v10703, 0.0
  %10798 = vadd.xlane.f32.xlu0 %v10797
  %v10799 = vpop.xlane.xlu0 %10798
  %v10800 = vsel %vm138, %v10704, 0.0
  %10801 = vadd.xlane.f32.xlu0 %v10800
  %v10802 = vpop.xlane.xlu0 %10801
  %v10803 = vsel %vm138, %v10705, 0.0
  %10804 = vadd.xlane.f32.xlu0 %v10803
  %v10805 = vpop.xlane.xlu0 %10804
  %v10806 = vsel %vm138, %v10706, 0.0
  %10807 = vadd.xlane.f32.xlu0 %v10806
  %v10808 = vpop.xlane.xlu0 %10807
  %v10809 = vsel %vm138, %v10707, 0.0
  %10810 = vadd.xlane.f32.xlu0 %v10809
  %v10811 = vpop.xlane.xlu0 %10810
  %v10812 = vsel %vm138, %v10708, 0.0
  %10813 = vadd.xlane.f32.xlu0 %v10812
  %v10814 = vpop.xlane.xlu0 %10813
  %v10815 = vsel %vm138, %v10709, 0.0
  %10816 = vadd.xlane.f32.xlu0 %v10815
  %v10817 = vpop.xlane.xlu0 %10816
  %v10818 = vsel %vm138, %v10710, 0.0
  %10819 = vadd.xlane.f32.xlu0 %v10818
  %v10820 = vpop.xlane.xlu0 %10819
  %v10821 = vsel %vm138, %v10711, 0.0
  %10822 = vadd.xlane.f32.xlu0 %v10821
  %v10823 = vpop.xlane.xlu0 %10822
  %v10824 = vsel %vm138, %v10712, 0.0
  %10825 = vadd.xlane.f32.xlu0 %v10824
  %v10826 = vpop.xlane.xlu0 %10825
  %v10827 = vsel %vm138, %v10713, 0.0
  %10828 = vadd.xlane.f32.xlu0 %v10827
  %v10829 = vpop.xlane.xlu0 %10828
  %v10830 = vsel %vm138, %v10714, 0.0
  %10831 = vadd.xlane.f32.xlu0 %v10830
  %v10832 = vpop.xlane.xlu0 %10831
  %v10833 = vsel %vm138, %v10715, 0.0
  %10834 = vadd.xlane.f32.xlu0 %v10833
  %v10835 = vpop.xlane.xlu0 %10834
  %v10836 = vsel %vm138, %v10716, 0.0
  %10837 = vadd.xlane.f32.xlu0 %v10836
  %v10838 = vpop.xlane.xlu0 %10837
  %v10839 = vsel %vm138, %v10717, 0.0
  %10840 = vadd.xlane.f32.xlu0 %v10839
  %v10841 = vpop.xlane.xlu0 %10840
  %v10842 = vsel %vm138, %v10718, 0.0
  %10843 = vadd.xlane.f32.xlu0 %v10842
  %v10844 = vpop.xlane.xlu0 %10843
  %v10845 = vsel %vm138, %v10719, 0.0
  %10846 = vadd.xlane.f32.xlu0 %v10845
  %v10847 = vpop.xlane.xlu0 %10846
  %v10848 = vsel %vm138, %v10720, 0.0
  %10849 = vadd.xlane.f32.xlu0 %v10848
  %v10850 = vpop.xlane.xlu0 %10849
  %v10851 = vsel %vm138, %v10721, 0.0
  %10852 = vadd.xlane.f32.xlu0 %v10851
  %v10853 = vpop.xlane.xlu0 %10852
  %v10854 = vsel %vm138, %v10722, 0.0
  %10855 = vadd.xlane.f32.xlu0 %v10854
  %v10856 = vpop.xlane.xlu0 %10855
  %v10857 = vsel %vm138, %v10723, 0.0
  %10858 = vadd.xlane.f32.xlu0 %v10857
  %v10859 = vpop.xlane.xlu0 %10858
  %v10860 = vsel %vm138, %v10724, 0.0
  %10861 = vadd.xlane.f32.xlu0 %v10860
  %v10862 = vpop.xlane.xlu0 %10861
  %v10863 = vsel %vm138, %v10725, 0.0
  %10864 = vadd.xlane.f32.xlu0 %v10863
  %v10865 = vpop.xlane.xlu0 %10864
  %v10866 = vsel %vm138, %v10726, 0.0
  %10867 = vadd.xlane.f32.xlu0 %v10866
  %v10868 = vpop.xlane.xlu0 %10867
  %v10869 = vsel %vm138, %v10727, 0.0
  %10870 = vadd.xlane.f32.xlu0 %v10869
  %v10871 = vpop.xlane.xlu0 %10870
  %v10872 = vsel %vm138, %v10728, 0.0
  %10873 = vadd.xlane.f32.xlu0 %v10872
  %v10874 = vpop.xlane.xlu0 %10873
  %v10875 = vsel %vm138, %v10729, 0.0
  %10876 = vadd.xlane.f32.xlu0 %v10875
  %v10877 = vpop.xlane.xlu0 %10876
  %v10878 = vsel %vm138, %v10730, 0.0
  %10879 = vadd.xlane.f32.xlu0 %v10878
  %v10880 = vpop.xlane.xlu0 %10879
  %v10881 = vsel %vm138, %v10731, 0.0
  %10882 = vadd.xlane.f32.xlu0 %v10881
  %v10883 = vpop.xlane.xlu0 %10882
  %v10884 = vsel %vm138, %v10732, 0.0
  %10885 = vadd.xlane.f32.xlu0 %v10884
  %v10886 = vpop.xlane.xlu0 %10885
  %v10887 = vsel %vm138, %v10733, 0.0
  %10888 = vadd.xlane.f32.xlu0 %v10887
  %v10889 = vpop.xlane.xlu0 %10888
  %v10890 = vsel %vm138, %v10734, 0.0
  %10891 = vadd.xlane.f32.xlu0 %v10890
  %v10892 = vpop.xlane.xlu0 %10891
  %v10893 = vsel %vm138, %v10735, 0.0
  %10894 = vadd.xlane.f32.xlu0 %v10893
  %v10895 = vpop.xlane.xlu0 %10894
  %v10896 = vsel %vm138, %v10736, 0.0
  %10897 = vadd.xlane.f32.xlu0 %v10896
  %v10898 = vpop.xlane.xlu0 %10897
  %v10899 = vsel %vm138, %v10737, 0.0
  %10900 = vadd.xlane.f32.xlu0 %v10899
  %v10901 = vpop.xlane.xlu0 %10900
  %v10902 = vsel %vm138, %v10738, 0.0
  %10903 = vadd.xlane.f32.xlu0 %v10902
  %v10904 = vpop.xlane.xlu0 %10903
  %v10905 = vsel %vm138, %v10739, 0.0
  %10906 = vadd.xlane.f32.xlu0 %v10905
  %v10907 = vpop.xlane.xlu0 %10906
  %v10908 = vsel %vm138, %v10740, 0.0
  %10909 = vadd.xlane.f32.xlu0 %v10908
  %v10910 = vpop.xlane.xlu0 %10909
  %v10911 = vsel %vm138, %v10741, 0.0
  %10912 = vadd.xlane.f32.xlu0 %v10911
  %v10913 = vpop.xlane.xlu0 %10912
  %v10914 = vsel %vm138, %v10742, 0.0
  %10915 = vadd.xlane.f32.xlu0 %v10914
  %v10916 = vpop.xlane.xlu0 %10915
  %v10917 = vsel %vm138, %v10743, 0.0
  %10918 = vadd.xlane.f32.xlu0 %v10917
  %v10919 = vpop.xlane.xlu0 %10918
  %v10920 = vsel %vm138, %v10744, 0.0
  %10921 = vadd.xlane.f32.xlu0 %v10920
  %v10922 = vpop.xlane.xlu0 %10921
  %v10923 = vsel %vm138, %v10745, 0.0
  %10924 = vadd.xlane.f32.xlu0 %v10923
  %v10925 = vpop.xlane.xlu0 %10924
  %v10926 = vsel %vm138, %v10746, 0.0
  %10927 = vadd.xlane.f32.xlu0 %v10926
  %v10928 = vpop.xlane.xlu0 %10927
  %v10929 = vsel %vm138, %v10747, 0.0
  %10930 = vadd.xlane.f32.xlu0 %v10929
  %v10931 = vpop.xlane.xlu0 %10930
  %v10932 = vsel %vm138, %v10748, 0.0
  %10933 = vadd.xlane.f32.xlu0 %v10932
  %v10934 = vpop.xlane.xlu0 %10933
  %v10935 = vsel %vm138, %v10749, 0.0
  %10936 = vadd.xlane.f32.xlu0 %v10935
  %v10937 = vpop.xlane.xlu0 %10936
  %v10938 = vsel %vm138, %v10750, 0.0
  %10939 = vadd.xlane.f32.xlu0 %v10938
  %v10940 = vpop.xlane.xlu0 %10939
  %v10941 = vsel %vm138, %v10751, 0.0
  %10942 = vadd.xlane.f32.xlu0 %v10941
  %v10943 = vpop.xlane.xlu0 %10942
  %v10944 = vmul.f32 %v10754, %v331
  %v10945 = vmul.f32 %v10757, %v331
  %v10946 = vmul.f32 %v10760, %v331
  %v10947 = vmul.f32 %v10763, %v331
  %v10948 = vmul.f32 %v10766, %v331
  %v10949 = vmul.f32 %v10769, %v331
  %v10950 = vmul.f32 %v10772, %v331
  %v10951 = vmul.f32 %v10775, %v331
  %v10952 = vmul.f32 %v10778, %v331
  %v10953 = vmul.f32 %v10781, %v331
  %v10954 = vmul.f32 %v10784, %v331
  %v10955 = vmul.f32 %v10787, %v331
  %v10956 = vmul.f32 %v10790, %v331
  %v10957 = vmul.f32 %v10793, %v331
  %v10958 = vmul.f32 %v10796, %v331
  %v10959 = vmul.f32 %v10799, %v331
  %v10960 = vmul.f32 %v10802, %v331
  %v10961 = vmul.f32 %v10805, %v331
  %v10962 = vmul.f32 %v10808, %v331
  %v10963 = vmul.f32 %v10811, %v331
  %v10964 = vmul.f32 %v10814, %v331
  %v10965 = vmul.f32 %v10817, %v331
  %v10966 = vmul.f32 %v10820, %v331
  %v10967 = vmul.f32 %v10823, %v331
  %v10968 = vmul.f32 %v10826, %v331
  %v10969 = vmul.f32 %v10829, %v331
  %v10970 = vmul.f32 %v10832, %v331
  %v10971 = vmul.f32 %v10835, %v331
  %v10972 = vmul.f32 %v10838, %v331
  %v10973 = vmul.f32 %v10841, %v331
  %v10974 = vmul.f32 %v10844, %v331
  %v10975 = vmul.f32 %v10847, %v331
  %v10976 = vmul.f32 %v10850, %v331
  %v10977 = vmul.f32 %v10853, %v331
  %v10978 = vmul.f32 %v10856, %v331
  %v10979 = vmul.f32 %v10859, %v331
  %v10980 = vmul.f32 %v10862, %v331
  %v10981 = vmul.f32 %v10865, %v331
  %v10982 = vmul.f32 %v10868, %v331
  %v10983 = vmul.f32 %v10871, %v331
  %v10984 = vmul.f32 %v10874, %v331
  %v10985 = vmul.f32 %v10877, %v331
  %v10986 = vmul.f32 %v10880, %v331
  %v10987 = vmul.f32 %v10883, %v331
  %v10988 = vmul.f32 %v10886, %v331
  %v10989 = vmul.f32 %v10889, %v331
  %v10990 = vmul.f32 %v10892, %v331
  %v10991 = vmul.f32 %v10895, %v331
  %v10992 = vmul.f32 %v10898, %v331
  %v10993 = vmul.f32 %v10901, %v331
  %v10994 = vmul.f32 %v10904, %v331
  %v10995 = vmul.f32 %v10907, %v331
  %v10996 = vmul.f32 %v10910, %v331
  %v10997 = vmul.f32 %v10913, %v331
  %v10998 = vmul.f32 %v10916, %v331
  %v10999 = vmul.f32 %v10919, %v331
  %v11000 = vmul.f32 %v10922, %v331
  %v11001 = vmul.f32 %v10925, %v331
  %v11002 = vmul.f32 %v10928, %v331
  %v11003 = vmul.f32 %v10931, %v331
  %v11004 = vmul.f32 %v10934, %v331
  %v11005 = vmul.f32 %v10937, %v331
  %v11006 = vmul.f32 %v10940, %v331
  %v11007 = vmul.f32 %v10943, %v331
  %v11008 = vadd.f32 %v10944, 1e-05
  %v11009 = vadd.f32 %v10945, 1e-05
  %v11010 = vadd.f32 %v10946, 1e-05
  %v11011 = vadd.f32 %v10947, 1e-05
  %v11012 = vadd.f32 %v10948, 1e-05
  %v11013 = vadd.f32 %v10949, 1e-05
  %v11014 = vadd.f32 %v10950, 1e-05
  %v11015 = vadd.f32 %v10951, 1e-05
  %v11016 = vadd.f32 %v10952, 1e-05
  %v11017 = vadd.f32 %v10953, 1e-05
  %v11018 = vadd.f32 %v10954, 1e-05
  %v11019 = vadd.f32 %v10955, 1e-05
  %v11020 = vadd.f32 %v10956, 1e-05
  %v11021 = vadd.f32 %v10957, 1e-05
  %v11022 = vadd.f32 %v10958, 1e-05
  %v11023 = vadd.f32 %v10959, 1e-05
  %v11024 = vadd.f32 %v10960, 1e-05
  %v11025 = vadd.f32 %v10961, 1e-05
  %v11026 = vadd.f32 %v10962, 1e-05
  %v11027 = vadd.f32 %v10963, 1e-05
  %v11028 = vadd.f32 %v10964, 1e-05
  %v11029 = vadd.f32 %v10965, 1e-05
  %v11030 = vadd.f32 %v10966, 1e-05
  %v11031 = vadd.f32 %v10967, 1e-05
  %v11032 = vadd.f32 %v10968, 1e-05
  %v11033 = vadd.f32 %v10969, 1e-05
  %v11034 = vadd.f32 %v10970, 1e-05
  %v11035 = vadd.f32 %v10971, 1e-05
  %v11036 = vadd.f32 %v10972, 1e-05
  %v11037 = vadd.f32 %v10973, 1e-05
  %v11038 = vadd.f32 %v10974, 1e-05
  %v11039 = vadd.f32 %v10975, 1e-05
  %v11040 = vadd.f32 %v10976, 1e-05
  %v11041 = vadd.f32 %v10977, 1e-05
  %v11042 = vadd.f32 %v10978, 1e-05
  %v11043 = vadd.f32 %v10979, 1e-05
  %v11044 = vadd.f32 %v10980, 1e-05
  %v11045 = vadd.f32 %v10981, 1e-05
  %v11046 = vadd.f32 %v10982, 1e-05
  %v11047 = vadd.f32 %v10983, 1e-05
  %v11048 = vadd.f32 %v10984, 1e-05
  %v11049 = vadd.f32 %v10985, 1e-05
  %v11050 = vadd.f32 %v10986, 1e-05
  %v11051 = vadd.f32 %v10987, 1e-05
  %v11052 = vadd.f32 %v10988, 1e-05
  %v11053 = vadd.f32 %v10989, 1e-05
  %v11054 = vadd.f32 %v10990, 1e-05
  %v11055 = vadd.f32 %v10991, 1e-05
  %v11056 = vadd.f32 %v10992, 1e-05
  %v11057 = vadd.f32 %v10993, 1e-05
  %v11058 = vadd.f32 %v10994, 1e-05
  %v11059 = vadd.f32 %v10995, 1e-05
  %v11060 = vadd.f32 %v10996, 1e-05
  %v11061 = vadd.f32 %v10997, 1e-05
  %v11062 = vadd.f32 %v10998, 1e-05
  %v11063 = vadd.f32 %v10999, 1e-05
  %v11064 = vadd.f32 %v11000, 1e-05
  %v11065 = vadd.f32 %v11001, 1e-05
  %v11066 = vadd.f32 %v11002, 1e-05
  %v11067 = vadd.f32 %v11003, 1e-05
  %v11068 = vadd.f32 %v11004, 1e-05
  %v11069 = vadd.f32 %v11005, 1e-05
  %v11070 = vadd.f32 %v11006, 1e-05
  %v11071 = vadd.f32 %v11007, 1e-05
  %v11072 = vrsqrt.pop %v11008
  %v11073 = vrsqrt.pop %v11009
  %v11074 = vrsqrt.pop %v11010
  %v11075 = vrsqrt.pop %v11011
  %v11076 = vrsqrt.pop %v11012
  %v11077 = vrsqrt.pop %v11013
  %v11078 = vrsqrt.pop %v11014
  %v11079 = vrsqrt.pop %v11015
  %v11080 = vrsqrt.pop %v11016
  %v11081 = vrsqrt.pop %v11017
  %v11082 = vrsqrt.pop %v11018
  %v11083 = vrsqrt.pop %v11019
  %v11084 = vrsqrt.pop %v11020
  %v11085 = vrsqrt.pop %v11021
  %v11086 = vrsqrt.pop %v11022
  %v11087 = vrsqrt.pop %v11023
  %v11088 = vrsqrt.pop %v11024
  %v11089 = vrsqrt.pop %v11025
  %v11090 = vrsqrt.pop %v11026
  %v11091 = vrsqrt.pop %v11027
  %v11092 = vrsqrt.pop %v11028
  %v11093 = vrsqrt.pop %v11029
  %v11094 = vrsqrt.pop %v11030
  %v11095 = vrsqrt.pop %v11031
  %v11096 = vrsqrt.pop %v11032
  %v11097 = vrsqrt.pop %v11033
  %v11098 = vrsqrt.pop %v11034
  %v11099 = vrsqrt.pop %v11035
  %v11100 = vrsqrt.pop %v11036
  %v11101 = vrsqrt.pop %v11037
  %v11102 = vrsqrt.pop %v11038
  %v11103 = vrsqrt.pop %v11039
  %v11104 = vrsqrt.pop %v11040
  %v11105 = vrsqrt.pop %v11041
  %v11106 = vrsqrt.pop %v11042
  %v11107 = vrsqrt.pop %v11043
  %v11108 = vrsqrt.pop %v11044
  %v11109 = vrsqrt.pop %v11045
  %v11110 = vrsqrt.pop %v11046
  %v11111 = vrsqrt.pop %v11047
  %v11112 = vrsqrt.pop %v11048
  %v11113 = vrsqrt.pop %v11049
  %v11114 = vrsqrt.pop %v11050
  %v11115 = vrsqrt.pop %v11051
  %v11116 = vrsqrt.pop %v11052
  %v11117 = vrsqrt.pop %v11053
  %v11118 = vrsqrt.pop %v11054
  %v11119 = vrsqrt.pop %v11055
  %v11120 = vrsqrt.pop %v11056
  %v11121 = vrsqrt.pop %v11057
  %v11122 = vrsqrt.pop %v11058
  %v11123 = vrsqrt.pop %v11059
  %v11124 = vrsqrt.pop %v11060
  %v11125 = vrsqrt.pop %v11061
  %v11126 = vrsqrt.pop %v11062
  %v11127 = vrsqrt.pop %v11063
  %v11128 = vrsqrt.pop %v11064
  %v11129 = vrsqrt.pop %v11065
  %v11130 = vrsqrt.pop %v11066
  %v11131 = vrsqrt.pop %v11067
  %v11132 = vrsqrt.pop %v11068
  %v11133 = vrsqrt.pop %v11069
  %v11134 = vrsqrt.pop %v11070
  %v11135 = vrsqrt.pop %v11071
  %v11136 = vmul.f32 %v10624, %v11072
  %v11137 = vmul.f32 %v10625, %v11073
  %v11138 = vmul.f32 %v10626, %v11074
  %v11139 = vmul.f32 %v10627, %v11075
  %v11140 = vmul.f32 %v10628, %v11076
  %v11141 = vmul.f32 %v10629, %v11077
  %v11142 = vmul.f32 %v10630, %v11078
  %v11143 = vmul.f32 %v10631, %v11079
  %v11144 = vmul.f32 %v10632, %v11080
  %v11145 = vmul.f32 %v10633, %v11081
  %v11146 = vmul.f32 %v10634, %v11082
  %v11147 = vmul.f32 %v10635, %v11083
  %v11148 = vmul.f32 %v10636, %v11084
  %v11149 = vmul.f32 %v10637, %v11085
  %v11150 = vmul.f32 %v10638, %v11086
  %v11151 = vmul.f32 %v10639, %v11087
  %v11152 = vmul.f32 %v10640, %v11088
  %v11153 = vmul.f32 %v10641, %v11089
  %v11154 = vmul.f32 %v10642, %v11090
  %v11155 = vmul.f32 %v10643, %v11091
  %v11156 = vmul.f32 %v10644, %v11092
  %v11157 = vmul.f32 %v10645, %v11093
  %v11158 = vmul.f32 %v10646, %v11094
  %v11159 = vmul.f32 %v10647, %v11095
  %v11160 = vmul.f32 %v10648, %v11096
  %v11161 = vmul.f32 %v10649, %v11097
  %v11162 = vmul.f32 %v10650, %v11098
  %v11163 = vmul.f32 %v10651, %v11099
  %v11164 = vmul.f32 %v10652, %v11100
  %v11165 = vmul.f32 %v10653, %v11101
  %v11166 = vmul.f32 %v10654, %v11102
  %v11167 = vmul.f32 %v10655, %v11103
  %v11168 = vmul.f32 %v10656, %v11104
  %v11169 = vmul.f32 %v10657, %v11105
  %v11170 = vmul.f32 %v10658, %v11106
  %v11171 = vmul.f32 %v10659, %v11107
  %v11172 = vmul.f32 %v10660, %v11108
  %v11173 = vmul.f32 %v10661, %v11109
  %v11174 = vmul.f32 %v10662, %v11110
  %v11175 = vmul.f32 %v10663, %v11111
  %v11176 = vmul.f32 %v10664, %v11112
  %v11177 = vmul.f32 %v10665, %v11113
  %v11178 = vmul.f32 %v10666, %v11114
  %v11179 = vmul.f32 %v10667, %v11115
  %v11180 = vmul.f32 %v10668, %v11116
  %v11181 = vmul.f32 %v10669, %v11117
  %v11182 = vmul.f32 %v10670, %v11118
  %v11183 = vmul.f32 %v10671, %v11119
  %v11184 = vmul.f32 %v10672, %v11120
  %v11185 = vmul.f32 %v10673, %v11121
  %v11186 = vmul.f32 %v10674, %v11122
  %v11187 = vmul.f32 %v10675, %v11123
  %v11188 = vmul.f32 %v10676, %v11124
  %v11189 = vmul.f32 %v10677, %v11125
  %v11190 = vmul.f32 %v10678, %v11126
  %v11191 = vmul.f32 %v10679, %v11127
  %v11192 = vmul.f32 %v10680, %v11128
  %v11193 = vmul.f32 %v10681, %v11129
  %v11194 = vmul.f32 %v10682, %v11130
  %v11195 = vmul.f32 %v10683, %v11131
  %v11196 = vmul.f32 %v10684, %v11132
  %v11197 = vmul.f32 %v10685, %v11133
  %v11198 = vmul.f32 %v10686, %v11134
  %v11199 = vmul.f32 %v10687, %v11135
  %v11201 = vlaneseq
  %v11202 = vshrl.u32 %v11201, 7
  %v11203 = vsub.s32 0, %v11202
  %v11204 = vrot.slane %v10366, %v11203
  %v11206 = vmul.f32 %v11136, %v11204
  %v11207 = vmul.f32 %v11137, %v11204
  %v11208 = vmul.f32 %v11138, %v11204
  %v11209 = vmul.f32 %v11139, %v11204
  %v11210 = vmul.f32 %v11140, %v11204
  %v11211 = vmul.f32 %v11141, %v11204
  %v11212 = vmul.f32 %v11142, %v11204
  %v11213 = vmul.f32 %v11143, %v11204
  %v11214 = vmul.f32 %v11144, %v11204
  %v11215 = vmul.f32 %v11145, %v11204
  %v11216 = vmul.f32 %v11146, %v11204
  %v11217 = vmul.f32 %v11147, %v11204
  %v11218 = vmul.f32 %v11148, %v11204
  %v11219 = vmul.f32 %v11149, %v11204
  %v11220 = vmul.f32 %v11150, %v11204
  %v11221 = vmul.f32 %v11151, %v11204
  %v11222 = vmul.f32 %v11152, %v11204
  %v11223 = vmul.f32 %v11153, %v11204
  %v11224 = vmul.f32 %v11154, %v11204
  %v11225 = vmul.f32 %v11155, %v11204
  %v11226 = vmul.f32 %v11156, %v11204
  %v11227 = vmul.f32 %v11157, %v11204
  %v11228 = vmul.f32 %v11158, %v11204
  %v11229 = vmul.f32 %v11159, %v11204
  %v11230 = vmul.f32 %v11160, %v11204
  %v11231 = vmul.f32 %v11161, %v11204
  %v11232 = vmul.f32 %v11162, %v11204
  %v11233 = vmul.f32 %v11163, %v11204
  %v11234 = vmul.f32 %v11164, %v11204
  %v11235 = vmul.f32 %v11165, %v11204
  %v11236 = vmul.f32 %v11166, %v11204
  %v11237 = vmul.f32 %v11167, %v11204
  %v11238 = vmul.f32 %v11168, %v11204
  %v11239 = vmul.f32 %v11169, %v11204
  %v11240 = vmul.f32 %v11170, %v11204
  %v11241 = vmul.f32 %v11171, %v11204
  %v11242 = vmul.f32 %v11172, %v11204
  %v11243 = vmul.f32 %v11173, %v11204
  %v11244 = vmul.f32 %v11174, %v11204
  %v11245 = vmul.f32 %v11175, %v11204
  %v11246 = vmul.f32 %v11176, %v11204
  %v11247 = vmul.f32 %v11177, %v11204
  %v11248 = vmul.f32 %v11178, %v11204
  %v11249 = vmul.f32 %v11179, %v11204
  %v11250 = vmul.f32 %v11180, %v11204
  %v11251 = vmul.f32 %v11181, %v11204
  %v11252 = vmul.f32 %v11182, %v11204
  %v11253 = vmul.f32 %v11183, %v11204
  %v11254 = vmul.f32 %v11184, %v11204
  %v11255 = vmul.f32 %v11185, %v11204
  %v11256 = vmul.f32 %v11186, %v11204
  %v11257 = vmul.f32 %v11187, %v11204
  %v11258 = vmul.f32 %v11188, %v11204
  %v11259 = vmul.f32 %v11189, %v11204
  %v11260 = vmul.f32 %v11190, %v11204
  %v11261 = vmul.f32 %v11191, %v11204
  %v11262 = vmul.f32 %v11192, %v11204
  %v11263 = vmul.f32 %v11193, %v11204
  %v11264 = vmul.f32 %v11194, %v11204
  %v11265 = vmul.f32 %v11195, %v11204
  %v11266 = vmul.f32 %v11196, %v11204
  %v11267 = vmul.f32 %v11197, %v11204
  %v11268 = vmul.f32 %v11198, %v11204
  %v11269 = vmul.f32 %v11199, %v11204
  %v11271 = vlaneseq
  %v11272 = vshrl.u32 %v11271, 7
  %v11273 = vsub.s32 0, %v11272
  %v11274 = vrot.slane %v10367, %v11273
  %v11276 = vadd.f32 %v11206, %v11274
  %v11277 = vadd.f32 %v11207, %v11274
  %v11278 = vadd.f32 %v11208, %v11274
  %v11279 = vadd.f32 %v11209, %v11274
  %v11280 = vadd.f32 %v11210, %v11274
  %v11281 = vadd.f32 %v11211, %v11274
  %v11282 = vadd.f32 %v11212, %v11274
  %v11283 = vadd.f32 %v11213, %v11274
  %v11284 = vadd.f32 %v11214, %v11274
  %v11285 = vadd.f32 %v11215, %v11274
  %v11286 = vadd.f32 %v11216, %v11274
  %v11287 = vadd.f32 %v11217, %v11274
  %v11288 = vadd.f32 %v11218, %v11274
  %v11289 = vadd.f32 %v11219, %v11274
  %v11290 = vadd.f32 %v11220, %v11274
  %v11291 = vadd.f32 %v11221, %v11274
  %v11292 = vadd.f32 %v11222, %v11274
  %v11293 = vadd.f32 %v11223, %v11274
  %v11294 = vadd.f32 %v11224, %v11274
  %v11295 = vadd.f32 %v11225, %v11274
  %v11296 = vadd.f32 %v11226, %v11274
  %v11297 = vadd.f32 %v11227, %v11274
  %v11298 = vadd.f32 %v11228, %v11274
  %v11299 = vadd.f32 %v11229, %v11274
  %v11300 = vadd.f32 %v11230, %v11274
  %v11301 = vadd.f32 %v11231, %v11274
  %v11302 = vadd.f32 %v11232, %v11274
  %v11303 = vadd.f32 %v11233, %v11274
  %v11304 = vadd.f32 %v11234, %v11274
  %v11305 = vadd.f32 %v11235, %v11274
  %v11306 = vadd.f32 %v11236, %v11274
  %v11307 = vadd.f32 %v11237, %v11274
  %v11308 = vadd.f32 %v11238, %v11274
  %v11309 = vadd.f32 %v11239, %v11274
  %v11310 = vadd.f32 %v11240, %v11274
  %v11311 = vadd.f32 %v11241, %v11274
  %v11312 = vadd.f32 %v11242, %v11274
  %v11313 = vadd.f32 %v11243, %v11274
  %v11314 = vadd.f32 %v11244, %v11274
  %v11315 = vadd.f32 %v11245, %v11274
  %v11316 = vadd.f32 %v11246, %v11274
  %v11317 = vadd.f32 %v11247, %v11274
  %v11318 = vadd.f32 %v11248, %v11274
  %v11319 = vadd.f32 %v11249, %v11274
  %v11320 = vadd.f32 %v11250, %v11274
  %v11321 = vadd.f32 %v11251, %v11274
  %v11322 = vadd.f32 %v11252, %v11274
  %v11323 = vadd.f32 %v11253, %v11274
  %v11324 = vadd.f32 %v11254, %v11274
  %v11325 = vadd.f32 %v11255, %v11274
  %v11326 = vadd.f32 %v11256, %v11274
  %v11327 = vadd.f32 %v11257, %v11274
  %v11328 = vadd.f32 %v11258, %v11274
  %v11329 = vadd.f32 %v11259, %v11274
  %v11330 = vadd.f32 %v11260, %v11274
  %v11331 = vadd.f32 %v11261, %v11274
  %v11332 = vadd.f32 %v11262, %v11274
  %v11333 = vadd.f32 %v11263, %v11274
  %v11334 = vadd.f32 %v11264, %v11274
  %v11335 = vadd.f32 %v11265, %v11274
  %v11336 = vadd.f32 %v11266, %v11274
  %v11337 = vadd.f32 %v11267, %v11274
  %v11338 = vadd.f32 %v11268, %v11274
  %v11339 = vadd.f32 %v11269, %v11274
  %v11340 = vpack.c.bf16 %v11277, %v11276
  %v11341 = vpack.c.bf16 %v11279, %v11278
  %v11342 = vpack.c.bf16 %v11281, %v11280
  %v11343 = vpack.c.bf16 %v11283, %v11282
  %v11344 = vpack.c.bf16 %v11285, %v11284
  %v11345 = vpack.c.bf16 %v11287, %v11286
  %v11346 = vpack.c.bf16 %v11289, %v11288
  %v11347 = vpack.c.bf16 %v11291, %v11290
  %v11348 = vpack.c.bf16 %v11293, %v11292
  %v11349 = vpack.c.bf16 %v11295, %v11294
  %v11350 = vpack.c.bf16 %v11297, %v11296
  %v11351 = vpack.c.bf16 %v11299, %v11298
  %v11352 = vpack.c.bf16 %v11301, %v11300
  %v11353 = vpack.c.bf16 %v11303, %v11302
  %v11354 = vpack.c.bf16 %v11305, %v11304
  %v11355 = vpack.c.bf16 %v11307, %v11306
  %v11356 = vpack.c.bf16 %v11309, %v11308
  %v11357 = vpack.c.bf16 %v11311, %v11310
  %v11358 = vpack.c.bf16 %v11313, %v11312
  %v11359 = vpack.c.bf16 %v11315, %v11314
  %v11360 = vpack.c.bf16 %v11317, %v11316
  %v11361 = vpack.c.bf16 %v11319, %v11318
  %v11362 = vpack.c.bf16 %v11321, %v11320
  %v11363 = vpack.c.bf16 %v11323, %v11322
  %v11364 = vpack.c.bf16 %v11325, %v11324
  %v11365 = vpack.c.bf16 %v11327, %v11326
  %v11366 = vpack.c.bf16 %v11329, %v11328
  %v11367 = vpack.c.bf16 %v11331, %v11330
  %v11368 = vpack.c.bf16 %v11333, %v11332
  %v11369 = vpack.c.bf16 %v11335, %v11334
  %v11370 = vpack.c.bf16 %v11337, %v11336
  %v11371 = vpack.c.bf16 %v11339, %v11338
  %v11372 = vld [vmem:[%s18] sm:$0xf]
  %v11373 = vld [vmem:[%s18 + $0x4] sm:$0xf]
  %v11374 = vld [vmem:[%s18 + $0x8] sm:$0xf]
  %v11375 = vld [vmem:[%s18 + $0xc] sm:$0xf]
  %v11376 = vld [vmem:[%s19] sm:$0x1]
  %v11378 = vlaneseq
  %v11379 = vshrl.u32 %v11378, 7
  %v11380 = vsub.s32 0, %v11379
  %v11381 = vrot.slane %v11376, %v11380
  %v11387 = vunpack.c.l.b16 %v11372
  %v11388 = vunpack.c.l.b16 %v11373
  %v11389 = vunpack.c.l.b16 %v11374
  %v11390 = vunpack.c.l.b16 %v11375
  %v11391 = vpack.c.b16 %v11388, %v11387
  %v11392 = vpack.c.b16 %v11390, %v11389
  %v11396 = vsel %vm138, %v11340, 0
  %v11399 = vsel %vm138, %v11341, 0
  %v11402 = vsel %vm138, %v11342, 0
  %v11405 = vsel %vm138, %v11343, 0
  %v11408 = vsel %vm138, %v11344, 0
  %v11411 = vsel %vm138, %v11345, 0
  %v11414 = vsel %vm138, %v11346, 0
  %v11417 = vsel %vm138, %v11347, 0
  %v11420 = vsel %vm138, %v11348, 0
  %v11423 = vsel %vm138, %v11349, 0
  %v11426 = vsel %vm138, %v11350, 0
  %v11429 = vsel %vm138, %v11351, 0
  %v11432 = vsel %vm138, %v11352, 0
  %v11435 = vsel %vm138, %v11353, 0
  %v11438 = vsel %vm138, %v11354, 0
  %v11441 = vsel %vm138, %v11355, 0
  %v11444 = vsel %vm138, %v11356, 0
  %v11447 = vsel %vm138, %v11357, 0
  %v11450 = vsel %vm138, %v11358, 0
  %v11453 = vsel %vm138, %v11359, 0
  %v11456 = vsel %vm138, %v11360, 0
  %v11459 = vsel %vm138, %v11361, 0
  %v11462 = vsel %vm138, %v11362, 0
  %v11465 = vsel %vm138, %v11363, 0
  %v11468 = vsel %vm138, %v11364, 0
  %v11471 = vsel %vm138, %v11365, 0
  %v11474 = vsel %vm138, %v11366, 0
  %v11477 = vsel %vm138, %v11367, 0
  %v11480 = vsel %vm138, %v11368, 0
  %v11483 = vsel %vm138, %v11369, 0
  %v11486 = vsel %vm138, %v11370, 0
  %v11489 = vsel %vm138, %v11371, 0
  %11491 = vmatprep.subr.bf16.mxu0 0
  %11492 = vmatpush1.bf16.msra.mxu0 %v11391
  %11493 = vmatprep.subr.bf16.mxu0 0
  %11494 = vmatpush1.bf16.msra.mxu0 %v11392
  %11495 = vmatprep.subr.bf16.mxu0 0
  %11496 = vmatpush1.bf16.msra.mxu0 0
  %11497 = vmatprep.subr.bf16.mxu0 0
  %11498 = vmatpush1.bf16.msra.mxu0 0
  %11499 = vmatprep.subr.bf16.mxu0 0
  %11500 = vmatpush1.bf16.msra.mxu0 0
  %11501 = vmatprep.subr.bf16.mxu0 0
  %11502 = vmatpush1.bf16.msra.mxu0 0
  %11503 = vmatprep.subr.bf16.mxu0 0
  %11504 = vmatpush1.bf16.msra.mxu0 0
  %11505 = vmatprep.subr.bf16.mxu0 0
  %11506 = vmatpush1.bf16.msra.mxu0 0
  %11507 = vmatprep.subr.bf16.mxu0 0
  %11508 = vmatpush1.bf16.msra.mxu0 0
  %11509 = vmatprep.subr.bf16.mxu0 0
  %11510 = vmatpush1.bf16.msra.mxu0 0
  %11511 = vmatprep.subr.bf16.mxu0 0
  %11512 = vmatpush1.bf16.msra.mxu0 0
  %11513 = vmatprep.subr.bf16.mxu0 0
  %11514 = vmatpush1.bf16.msra.mxu0 0
  %11515 = vmatprep.subr.bf16.mxu0 0
  %11516 = vmatpush1.bf16.msra.mxu0 0
  %11517 = vmatprep.subr.bf16.mxu0 0
  %11518 = vmatpush1.bf16.msra.mxu0 0
  %11519 = vmatprep.subr.bf16.mxu0 0
  %11520 = vmatpush1.bf16.msra.mxu0 0
  %11521 = vmatprep.subr.bf16.mxu0 0
  %11522 = vmatpush1.bf16.msra.mxu0 0
  %11523 = vmatprep.mubr.bf16.mxu0 0
  %11524 = vmatmul.mubr.bf16.gmra.mrb[0].mxu0 %v11396
  %v11525 = vpop.f32.mrb[0].mxu0
  %v11526 = vadd.f32 %v11381, %v11525
  %v11527 = vpop.f32.mrb[0].mxu0
  %v11528 = vpop.f32.mrb[0].mxu0
  %v11529 = vadd.f32 %v11381, %v11528
  %v11530 = vpop.f32.mrb[0].mxu0
  %11531 = vmatprep.mubr.bf16.mxu0 0
  %11532 = vmatmul.mubr.bf16.gmra.mrb[0].mxu0 %v11399
  %v11533 = vpop.f32.mrb[0].mxu0
  %v11534 = vadd.f32 %v11381, %v11533
  %v11535 = vpop.f32.mrb[0].mxu0
  %v11536 = vpop.f32.mrb[0].mxu0
  %v11537 = vadd.f32 %v11381, %v11536
  %v11538 = vpop.f32.mrb[0].mxu0
  %11539 = vmatprep.mubr.bf16.mxu0 0
  %11540 = vmatmul.mubr.bf16.gmra.mrb[0].mxu0 %v11402
  %v11541 = vpop.f32.mrb[0].mxu0
  %v11542 = vadd.f32 %v11381, %v11541
  %v11543 = vpop.f32.mrb[0].mxu0
  %v11544 = vpop.f32.mrb[0].mxu0
  %v11545 = vadd.f32 %v11381, %v11544
  %v11546 = vpop.f32.mrb[0].mxu0
  %11547 = vmatprep.mubr.bf16.mxu0 0
  %11548 = vmatmul.mubr.bf16.gmra.mrb[0].mxu0 %v11405
  %v11549 = vpop.f32.mrb[0].mxu0
  %v11550 = vadd.f32 %v11381, %v11549
  %v11551 = vpop.f32.mrb[0].mxu0
  %v11552 = vpop.f32.mrb[0].mxu0
  %v11553 = vadd.f32 %v11381, %v11552
  %v11554 = vpop.f32.mrb[0].mxu0
  %11555 = vmatprep.mubr.bf16.mxu0 0
  %11556 = vmatmul.mubr.bf16.gmra.mrb[0].mxu0 %v11408
  %v11557 = vpop.f32.mrb[0].mxu0
  %v11558 = vadd.f32 %v11381, %v11557
  %v11559 = vpop.f32.mrb[0].mxu0
  %v11560 = vpop.f32.mrb[0].mxu0
  %v11561 = vadd.f32 %v11381, %v11560
  %v11562 = vpop.f32.mrb[0].mxu0
  %11563 = vmatprep.mubr.bf16.mxu0 0
  %11564 = vmatmul.mubr.bf16.gmra.mrb[0].mxu0 %v11411
  %v11565 = vpop.f32.mrb[0].mxu0
  %v11566 = vadd.f32 %v11381, %v11565
  %v11567 = vpop.f32.mrb[0].mxu0
  %v11568 = vpop.f32.mrb[0].mxu0
  %v11569 = vadd.f32 %v11381, %v11568
  %v11570 = vpop.f32.mrb[0].mxu0
  %11571 = vmatprep.mubr.bf16.mxu0 0
  %11572 = vmatmul.mubr.bf16.gmra.mrb[0].mxu0 %v11414
  %v11573 = vpop.f32.mrb[0].mxu0
  %v11574 = vadd.f32 %v11381, %v11573
  %v11575 = vpop.f32.mrb[0].mxu0
  %v11576 = vpop.f32.mrb[0].mxu0
  %v11577 = vadd.f32 %v11381, %v11576
  %v11578 = vpop.f32.mrb[0].mxu0
  %11579 = vmatprep.mubr.bf16.mxu0 0
  %11580 = vmatmul.mubr.bf16.gmra.mrb[0].mxu0 %v11417
  %v11581 = vpop.f32.mrb[0].mxu0
  %v11582 = vadd.f32 %v11381, %v11581
  %v11583 = vpop.f32.mrb[0].mxu0
  %v11584 = vpop.f32.mrb[0].mxu0
  %v11585 = vadd.f32 %v11381, %v11584
  %v11586 = vpop.f32.mrb[0].mxu0
  %11587 = vmatprep.mubr.bf16.mxu0 0
  %11588 = vmatmul.mubr.bf16.gmra.mrb[0].mxu0 %v11420
  %v11589 = vpop.f32.mrb[0].mxu0
  %v11590 = vadd.f32 %v11381, %v11589
  %v11591 = vpop.f32.mrb[0].mxu0
  %v11592 = vpop.f32.mrb[0].mxu0
  %v11593 = vadd.f32 %v11381, %v11592
  %v11594 = vpop.f32.mrb[0].mxu0
  %11595 = vmatprep.mubr.bf16.mxu0 0
  %11596 = vmatmul.mubr.bf16.gmra.mrb[0].mxu0 %v11423
  %v11597 = vpop.f32.mrb[0].mxu0
  %v11598 = vadd.f32 %v11381, %v11597
  %v11599 = vpop.f32.mrb[0].mxu0
  %v11600 = vpop.f32.mrb[0].mxu0
  %v11601 = vadd.f32 %v11381, %v11600
  %v11602 = vpop.f32.mrb[0].mxu0
  %11603 = vmatprep.mubr.bf16.mxu0 0
  %11604 = vmatmul.mubr.bf16.gmra.mrb[0].mxu0 %v11426
  %v11605 = vpop.f32.mrb[0].mxu0
  %v11606 = vadd.f32 %v11381, %v11605
  %v11607 = vpop.f32.mrb[0].mxu0
  %v11608 = vpop.f32.mrb[0].mxu0
  %v11609 = vadd.f32 %v11381, %v11608
  %v11610 = vpop.f32.mrb[0].mxu0
  %11611 = vmatprep.mubr.bf16.mxu0 0
  %11612 = vmatmul.mubr.bf16.gmra.mrb[0].mxu0 %v11429
  %v11613 = vpop.f32.mrb[0].mxu0
  %v11614 = vadd.f32 %v11381, %v11613
  %v11615 = vpop.f32.mrb[0].mxu0
  %v11616 = vpop.f32.mrb[0].mxu0
  %v11617 = vadd.f32 %v11381, %v11616
  %v11618 = vpop.f32.mrb[0].mxu0
  %11619 = vmatprep.mubr.bf16.mxu0 0
  %11620 = vmatmul.mubr.bf16.gmra.mrb[0].mxu0 %v11432
  %v11621 = vpop.f32.mrb[0].mxu0
  %v11622 = vadd.f32 %v11381, %v11621
  %v11623 = vpop.f32.mrb[0].mxu0
  %v11624 = vpop.f32.mrb[0].mxu0
  %v11625 = vadd.f32 %v11381, %v11624
  %v11626 = vpop.f32.mrb[0].mxu0
  %11627 = vmatprep.mubr.bf16.mxu0 0
  %11628 = vmatmul.mubr.bf16.gmra.mrb[0].mxu0 %v11435
  %v11629 = vpop.f32.mrb[0].mxu0
  %v11630 = vadd.f32 %v11381, %v11629
  %v11631 = vpop.f32.mrb[0].mxu0
  %v11632 = vpop.f32.mrb[0].mxu0
  %v11633 = vadd.f32 %v11381, %v11632
  %v11634 = vpop.f32.mrb[0].mxu0
  %11635 = vmatprep.mubr.bf16.mxu0 0
  %11636 = vmatmul.mubr.bf16.gmra.mrb[0].mxu0 %v11438
  %v11637 = vpop.f32.mrb[0].mxu0
  %v11638 = vadd.f32 %v11381, %v11637
  %v11639 = vpop.f32.mrb[0].mxu0
  %v11640 = vpop.f32.mrb[0].mxu0
  %v11641 = vadd.f32 %v11381, %v11640
  %v11642 = vpop.f32.mrb[0].mxu0
  %11643 = vmatprep.mubr.bf16.mxu0 0
  %11644 = vmatmul.mubr.bf16.gmra.mrb[0].mxu0 %v11441
  %v11645 = vpop.f32.mrb[0].mxu0
  %v11646 = vadd.f32 %v11381, %v11645
  %v11647 = vpop.f32.mrb[0].mxu0
  %v11648 = vpop.f32.mrb[0].mxu0
  %v11649 = vadd.f32 %v11381, %v11648
  %v11650 = vpop.f32.mrb[0].mxu0
  %11651 = vmatprep.mubr.bf16.mxu0 0
  %11652 = vmatmul.mubr.bf16.gmra.mrb[0].mxu0 %v11444
  %v11653 = vpop.f32.mrb[0].mxu0
  %v11654 = vadd.f32 %v11381, %v11653
  %v11655 = vpop.f32.mrb[0].mxu0
  %v11656 = vpop.f32.mrb[0].mxu0
  %v11657 = vadd.f32 %v11381, %v11656
  %v11658 = vpop.f32.mrb[0].mxu0
  %11659 = vmatprep.mubr.bf16.mxu0 0
  %11660 = vmatmul.mubr.bf16.gmra.mrb[0].mxu0 %v11447
  %v11661 = vpop.f32.mrb[0].mxu0
  %v11662 = vadd.f32 %v11381, %v11661
  %v11663 = vpop.f32.mrb[0].mxu0
  %v11664 = vpop.f32.mrb[0].mxu0
  %v11665 = vadd.f32 %v11381, %v11664
  %v11666 = vpop.f32.mrb[0].mxu0
  %11667 = vmatprep.mubr.bf16.mxu0 0
  %11668 = vmatmul.mubr.bf16.gmra.mrb[0].mxu0 %v11450
  %v11669 = vpop.f32.mrb[0].mxu0
  %v11670 = vadd.f32 %v11381, %v11669
  %v11671 = vpop.f32.mrb[0].mxu0
  %v11672 = vpop.f32.mrb[0].mxu0
  %v11673 = vadd.f32 %v11381, %v11672
  %v11674 = vpop.f32.mrb[0].mxu0
  %11675 = vmatprep.mubr.bf16.mxu0 0
  %11676 = vmatmul.mubr.bf16.gmra.mrb[0].mxu0 %v11453
  %v11677 = vpop.f32.mrb[0].mxu0
  %v11678 = vadd.f32 %v11381, %v11677
  %v11679 = vpop.f32.mrb[0].mxu0
  %v11680 = vpop.f32.mrb[0].mxu0
  %v11681 = vadd.f32 %v11381, %v11680
  %v11682 = vpop.f32.mrb[0].mxu0
  %11683 = vmatprep.mubr.bf16.mxu0 0
  %11684 = vmatmul.mubr.bf16.gmra.mrb[0].mxu0 %v11456
  %v11685 = vpop.f32.mrb[0].mxu0
  %v11686 = vadd.f32 %v11381, %v11685
  %v11687 = vpop.f32.mrb[0].mxu0
  %v11688 = vpop.f32.mrb[0].mxu0
  %v11689 = vadd.f32 %v11381, %v11688
  %v11690 = vpop.f32.mrb[0].mxu0
  %11691 = vmatprep.mubr.bf16.mxu0 0
  %11692 = vmatmul.mubr.bf16.gmra.mrb[0].mxu0 %v11459
  %v11693 = vpop.f32.mrb[0].mxu0
  %v11694 = vadd.f32 %v11381, %v11693
  %v11695 = vpop.f32.mrb[0].mxu0
  %v11696 = vpop.f32.mrb[0].mxu0
  %v11697 = vadd.f32 %v11381, %v11696
  %v11698 = vpop.f32.mrb[0].mxu0
  %11699 = vmatprep.mubr.bf16.mxu0 0
  %11700 = vmatmul.mubr.bf16.gmra.mrb[0].mxu0 %v11462
  %v11701 = vpop.f32.mrb[0].mxu0
  %v11702 = vadd.f32 %v11381, %v11701
  %v11703 = vpop.f32.mrb[0].mxu0
  %v11704 = vpop.f32.mrb[0].mxu0
  %v11705 = vadd.f32 %v11381, %v11704
  %v11706 = vpop.f32.mrb[0].mxu0
  %11707 = vmatprep.mubr.bf16.mxu0 0
  %11708 = vmatmul.mubr.bf16.gmra.mrb[0].mxu0 %v11465
  %v11709 = vpop.f32.mrb[0].mxu0
  %v11710 = vadd.f32 %v11381, %v11709
  %v11711 = vpop.f32.mrb[0].mxu0
  %v11712 = vpop.f32.mrb[0].mxu0
  %v11713 = vadd.f32 %v11381, %v11712
  %v11714 = vpop.f32.mrb[0].mxu0
  %11715 = vmatprep.mubr.bf16.mxu0 0
  %11716 = vmatmul.mubr.bf16.gmra.mrb[0].mxu0 %v11468
  %v11717 = vpop.f32.mrb[0].mxu0
  %v11718 = vadd.f32 %v11381, %v11717
  %v11719 = vpop.f32.mrb[0].mxu0
  %v11720 = vpop.f32.mrb[0].mxu0
  %v11721 = vadd.f32 %v11381, %v11720
  %v11722 = vpop.f32.mrb[0].mxu0
  %11723 = vmatprep.mubr.bf16.mxu0 0
  %11724 = vmatmul.mubr.bf16.gmra.mrb[0].mxu0 %v11471
  %v11725 = vpop.f32.mrb[0].mxu0
  %v11726 = vadd.f32 %v11381, %v11725
  %v11727 = vpop.f32.mrb[0].mxu0
  %v11728 = vpop.f32.mrb[0].mxu0
  %v11729 = vadd.f32 %v11381, %v11728
  %v11730 = vpop.f32.mrb[0].mxu0
  %11731 = vmatprep.mubr.bf16.mxu0 0
  %11732 = vmatmul.mubr.bf16.gmra.mrb[0].mxu0 %v11474
  %v11733 = vpop.f32.mrb[0].mxu0
  %v11734 = vadd.f32 %v11381, %v11733
  %v11735 = vpop.f32.mrb[0].mxu0
  %v11736 = vpop.f32.mrb[0].mxu0
  %v11737 = vadd.f32 %v11381, %v11736
  %v11738 = vpop.f32.mrb[0].mxu0
  %11739 = vmatprep.mubr.bf16.mxu0 0
  %11740 = vmatmul.mubr.bf16.gmra.mrb[0].mxu0 %v11477
  %v11741 = vpop.f32.mrb[0].mxu0
  %v11742 = vadd.f32 %v11381, %v11741
  %v11743 = vpop.f32.mrb[0].mxu0
  %v11744 = vpop.f32.mrb[0].mxu0
  %v11745 = vadd.f32 %v11381, %v11744
  %v11746 = vpop.f32.mrb[0].mxu0
  %11747 = vmatprep.mubr.bf16.mxu0 0
  %11748 = vmatmul.mubr.bf16.gmra.mrb[0].mxu0 %v11480
  %v11749 = vpop.f32.mrb[0].mxu0
  %v11750 = vadd.f32 %v11381, %v11749
  %v11751 = vpop.f32.mrb[0].mxu0
  %v11752 = vpop.f32.mrb[0].mxu0
  %v11753 = vadd.f32 %v11381, %v11752
  %v11754 = vpop.f32.mrb[0].mxu0
  %11755 = vmatprep.mubr.bf16.mxu0 0
  %11756 = vmatmul.mubr.bf16.gmra.mrb[0].mxu0 %v11483
  %v11757 = vpop.f32.mrb[0].mxu0
  %v11758 = vadd.f32 %v11381, %v11757
  %v11759 = vpop.f32.mrb[0].mxu0
  %v11760 = vpop.f32.mrb[0].mxu0
  %v11761 = vadd.f32 %v11381, %v11760
  %v11762 = vpop.f32.mrb[0].mxu0
  %11763 = vmatprep.mubr.bf16.mxu0 0
  %11764 = vmatmul.mubr.bf16.gmra.mrb[0].mxu0 %v11486
  %v11765 = vpop.f32.mrb[0].mxu0
  %v11766 = vadd.f32 %v11381, %v11765
  %v11767 = vpop.f32.mrb[0].mxu0
  %v11768 = vpop.f32.mrb[0].mxu0
  %v11769 = vadd.f32 %v11381, %v11768
  %v11770 = vpop.f32.mrb[0].mxu0
  %11771 = vmatprep.mubr.bf16.mxu0 0
  %11772 = vmatmul.mubr.bf16.gmra.mrb[0].mxu0 %v11489
  %v11773 = vpop.f32.mrb[0].mxu0
  %v11774 = vadd.f32 %v11381, %v11773
  %v11775 = vpop.f32.mrb[0].mxu0
  %v11776 = vpop.f32.mrb[0].mxu0
  %v11777 = vadd.f32 %v11381, %v11776
  %v11778 = vpop.f32.mrb[0].mxu0
  %11779 = vdwg.mxu0
  %v11780 = vmul.f32 %v11526, 0.5
  %v11781 = vmul.f32 %v11529, 0.5
  %v11782 = vmul.f32 %v11534, 0.5
  %v11783 = vmul.f32 %v11537, 0.5
  %v11784 = vmul.f32 %v11542, 0.5
  %v11785 = vmul.f32 %v11545, 0.5
  %v11786 = vmul.f32 %v11550, 0.5
  %v11787 = vmul.f32 %v11553, 0.5
  %v11788 = vmul.f32 %v11558, 0.5
  %v11789 = vmul.f32 %v11561, 0.5
  %v11790 = vmul.f32 %v11566, 0.5
  %v11791 = vmul.f32 %v11569, 0.5
  %v11792 = vmul.f32 %v11574, 0.5
  %v11793 = vmul.f32 %v11577, 0.5
  %v11794 = vmul.f32 %v11582, 0.5
  %v11795 = vmul.f32 %v11585, 0.5
  %v11796 = vmul.f32 %v11590, 0.5
  %v11797 = vmul.f32 %v11593, 0.5
  %v11798 = vmul.f32 %v11598, 0.5
  %v11799 = vmul.f32 %v11601, 0.5
  %v11800 = vmul.f32 %v11606, 0.5
  %v11801 = vmul.f32 %v11609, 0.5
  %v11802 = vmul.f32 %v11614, 0.5
  %v11803 = vmul.f32 %v11617, 0.5
  %v11804 = vmul.f32 %v11622, 0.5
  %v11805 = vmul.f32 %v11625, 0.5
  %v11806 = vmul.f32 %v11630, 0.5
  %v11807 = vmul.f32 %v11633, 0.5
  %v11808 = vmul.f32 %v11638, 0.5
  %v11809 = vmul.f32 %v11641, 0.5
  %v11810 = vmul.f32 %v11646, 0.5
  %v11811 = vmul.f32 %v11649, 0.5
  %v11812 = vmul.f32 %v11654, 0.5
  %v11813 = vmul.f32 %v11657, 0.5
  %v11814 = vmul.f32 %v11662, 0.5
  %v11815 = vmul.f32 %v11665, 0.5
  %v11816 = vmul.f32 %v11670, 0.5
  %v11817 = vmul.f32 %v11673, 0.5
  %v11818 = vmul.f32 %v11678, 0.5
  %v11819 = vmul.f32 %v11681, 0.5
  %v11820 = vmul.f32 %v11686, 0.5
  %v11821 = vmul.f32 %v11689, 0.5
  %v11822 = vmul.f32 %v11694, 0.5
  %v11823 = vmul.f32 %v11697, 0.5
  %v11824 = vmul.f32 %v11702, 0.5
  %v11825 = vmul.f32 %v11705, 0.5
  %v11826 = vmul.f32 %v11710, 0.5
  %v11827 = vmul.f32 %v11713, 0.5
  %v11828 = vmul.f32 %v11718, 0.5
  %v11829 = vmul.f32 %v11721, 0.5
  %v11830 = vmul.f32 %v11726, 0.5
  %v11831 = vmul.f32 %v11729, 0.5
  %v11832 = vmul.f32 %v11734, 0.5
  %v11833 = vmul.f32 %v11737, 0.5
  %v11834 = vmul.f32 %v11742, 0.5
  %v11835 = vmul.f32 %v11745, 0.5
  %v11836 = vmul.f32 %v11750, 0.5
  %v11837 = vmul.f32 %v11753, 0.5
  %v11838 = vmul.f32 %v11758, 0.5
  %v11839 = vmul.f32 %v11761, 0.5
  %v11840 = vmul.f32 %v11766, 0.5
  %v11841 = vmul.f32 %v11769, 0.5
  %v11842 = vmul.f32 %v11774, 0.5
  %v11843 = vmul.f32 %v11777, 0.5
  %v11844 = vmul.f32 %v11526, 0.044715
  %v11845 = vmul.f32 %v11529, 0.044715
  %v11846 = vmul.f32 %v11534, 0.044715
  %v11847 = vmul.f32 %v11537, 0.044715
  %v11848 = vmul.f32 %v11542, 0.044715
  %v11849 = vmul.f32 %v11545, 0.044715
  %v11850 = vmul.f32 %v11550, 0.044715
  %v11851 = vmul.f32 %v11553, 0.044715
  %v11852 = vmul.f32 %v11558, 0.044715
  %v11853 = vmul.f32 %v11561, 0.044715
  %v11854 = vmul.f32 %v11566, 0.044715
  %v11855 = vmul.f32 %v11569, 0.044715
  %v11856 = vmul.f32 %v11574, 0.044715
  %v11857 = vmul.f32 %v11577, 0.044715
  %v11858 = vmul.f32 %v11582, 0.044715
  %v11859 = vmul.f32 %v11585, 0.044715
  %v11860 = vmul.f32 %v11590, 0.044715
  %v11861 = vmul.f32 %v11593, 0.044715
  %v11862 = vmul.f32 %v11598, 0.044715
  %v11863 = vmul.f32 %v11601, 0.044715
  %v11864 = vmul.f32 %v11606, 0.044715
  %v11865 = vmul.f32 %v11609, 0.044715
  %v11866 = vmul.f32 %v11614, 0.044715
  %v11867 = vmul.f32 %v11617, 0.044715
  %v11868 = vmul.f32 %v11622, 0.044715
  %v11869 = vmul.f32 %v11625, 0.044715
  %v11870 = vmul.f32 %v11630, 0.044715
  %v11871 = vmul.f32 %v11633, 0.044715
  %v11872 = vmul.f32 %v11638, 0.044715
  %v11873 = vmul.f32 %v11641, 0.044715
  %v11874 = vmul.f32 %v11646, 0.044715
  %v11875 = vmul.f32 %v11649, 0.044715
  %v11876 = vmul.f32 %v11654, 0.044715
  %v11877 = vmul.f32 %v11657, 0.044715
  %v11878 = vmul.f32 %v11662, 0.044715
  %v11879 = vmul.f32 %v11665, 0.044715
  %v11880 = vmul.f32 %v11670, 0.044715
  %v11881 = vmul.f32 %v11673, 0.044715
  %v11882 = vmul.f32 %v11678, 0.044715
  %v11883 = vmul.f32 %v11681, 0.044715
  %v11884 = vmul.f32 %v11686, 0.044715
  %v11885 = vmul.f32 %v11689, 0.044715
  %v11886 = vmul.f32 %v11694, 0.044715
  %v11887 = vmul.f32 %v11697, 0.044715
  %v11888 = vmul.f32 %v11702, 0.044715
  %v11889 = vmul.f32 %v11705, 0.044715
  %v11890 = vmul.f32 %v11710, 0.044715
  %v11891 = vmul.f32 %v11713, 0.044715
  %v11892 = vmul.f32 %v11718, 0.044715
  %v11893 = vmul.f32 %v11721, 0.044715
  %v11894 = vmul.f32 %v11726, 0.044715
  %v11895 = vmul.f32 %v11729, 0.044715
  %v11896 = vmul.f32 %v11734, 0.044715
  %v11897 = vmul.f32 %v11737, 0.044715
  %v11898 = vmul.f32 %v11742, 0.044715
  %v11899 = vmul.f32 %v11745, 0.044715
  %v11900 = vmul.f32 %v11750, 0.044715
  %v11901 = vmul.f32 %v11753, 0.044715
  %v11902 = vmul.f32 %v11758, 0.044715
  %v11903 = vmul.f32 %v11761, 0.044715
  %v11904 = vmul.f32 %v11766, 0.044715
  %v11905 = vmul.f32 %v11769, 0.044715
  %v11906 = vmul.f32 %v11774, 0.044715
  %v11907 = vmul.f32 %v11777, 0.044715
  %v11908 = vmul.f32 %v11844, %v11526
  %v11909 = vmul.f32 %v11845, %v11529
  %v11910 = vmul.f32 %v11846, %v11534
  %v11911 = vmul.f32 %v11847, %v11537
  %v11912 = vmul.f32 %v11848, %v11542
  %v11913 = vmul.f32 %v11849, %v11545
  %v11914 = vmul.f32 %v11850, %v11550
  %v11915 = vmul.f32 %v11851, %v11553
  %v11916 = vmul.f32 %v11852, %v11558
  %v11917 = vmul.f32 %v11853, %v11561
  %v11918 = vmul.f32 %v11854, %v11566
  %v11919 = vmul.f32 %v11855, %v11569
  %v11920 = vmul.f32 %v11856, %v11574
  %v11921 = vmul.f32 %v11857, %v11577
  %v11922 = vmul.f32 %v11858, %v11582
  %v11923 = vmul.f32 %v11859, %v11585
  %v11924 = vmul.f32 %v11860, %v11590
  %v11925 = vmul.f32 %v11861, %v11593
  %v11926 = vmul.f32 %v11862, %v11598
  %v11927 = vmul.f32 %v11863, %v11601
  %v11928 = vmul.f32 %v11864, %v11606
  %v11929 = vmul.f32 %v11865, %v11609
  %v11930 = vmul.f32 %v11866, %v11614
  %v11931 = vmul.f32 %v11867, %v11617
  %v11932 = vmul.f32 %v11868, %v11622
  %v11933 = vmul.f32 %v11869, %v11625
  %v11934 = vmul.f32 %v11870, %v11630
  %v11935 = vmul.f32 %v11871, %v11633
  %v11936 = vmul.f32 %v11872, %v11638
  %v11937 = vmul.f32 %v11873, %v11641
  %v11938 = vmul.f32 %v11874, %v11646
  %v11939 = vmul.f32 %v11875, %v11649
  %v11940 = vmul.f32 %v11876, %v11654
  %v11941 = vmul.f32 %v11877, %v11657
  %v11942 = vmul.f32 %v11878, %v11662
  %v11943 = vmul.f32 %v11879, %v11665
  %v11944 = vmul.f32 %v11880, %v11670
  %v11945 = vmul.f32 %v11881, %v11673
  %v11946 = vmul.f32 %v11882, %v11678
  %v11947 = vmul.f32 %v11883, %v11681
  %v11948 = vmul.f32 %v11884, %v11686
  %v11949 = vmul.f32 %v11885, %v11689
  %v11950 = vmul.f32 %v11886, %v11694
  %v11951 = vmul.f32 %v11887, %v11697
  %v11952 = vmul.f32 %v11888, %v11702
  %v11953 = vmul.f32 %v11889, %v11705
  %v11954 = vmul.f32 %v11890, %v11710
  %v11955 = vmul.f32 %v11891, %v11713
  %v11956 = vmul.f32 %v11892, %v11718
  %v11957 = vmul.f32 %v11893, %v11721
  %v11958 = vmul.f32 %v11894, %v11726
  %v11959 = vmul.f32 %v11895, %v11729
  %v11960 = vmul.f32 %v11896, %v11734
  %v11961 = vmul.f32 %v11897, %v11737
  %v11962 = vmul.f32 %v11898, %v11742
  %v11963 = vmul.f32 %v11899, %v11745
  %v11964 = vmul.f32 %v11900, %v11750
  %v11965 = vmul.f32 %v11901, %v11753
  %v11966 = vmul.f32 %v11902, %v11758
  %v11967 = vmul.f32 %v11903, %v11761
  %v11968 = vmul.f32 %v11904, %v11766
  %v11969 = vmul.f32 %v11905, %v11769
  %v11970 = vmul.f32 %v11906, %v11774
  %v11971 = vmul.f32 %v11907, %v11777
  %v11972 = vmul.f32 %v11908, %v11526
  %v11973 = vmul.f32 %v11909, %v11529
  %v11974 = vmul.f32 %v11910, %v11534
  %v11975 = vmul.f32 %v11911, %v11537
  %v11976 = vmul.f32 %v11912, %v11542
  %v11977 = vmul.f32 %v11913, %v11545
  %v11978 = vmul.f32 %v11914, %v11550
  %v11979 = vmul.f32 %v11915, %v11553
  %v11980 = vmul.f32 %v11916, %v11558
  %v11981 = vmul.f32 %v11917, %v11561
  %v11982 = vmul.f32 %v11918, %v11566
  %v11983 = vmul.f32 %v11919, %v11569
  %v11984 = vmul.f32 %v11920, %v11574
  %v11985 = vmul.f32 %v11921, %v11577
  %v11986 = vmul.f32 %v11922, %v11582
  %v11987 = vmul.f32 %v11923, %v11585
  %v11988 = vmul.f32 %v11924, %v11590
  %v11989 = vmul.f32 %v11925, %v11593
  %v11990 = vmul.f32 %v11926, %v11598
  %v11991 = vmul.f32 %v11927, %v11601
  %v11992 = vmul.f32 %v11928, %v11606
  %v11993 = vmul.f32 %v11929, %v11609
  %v11994 = vmul.f32 %v11930, %v11614
  %v11995 = vmul.f32 %v11931, %v11617
  %v11996 = vmul.f32 %v11932, %v11622
  %v11997 = vmul.f32 %v11933, %v11625
  %v11998 = vmul.f32 %v11934, %v11630
  %v11999 = vmul.f32 %v11935, %v11633
  %v12000 = vmul.f32 %v11936, %v11638
  %v12001 = vmul.f32 %v11937, %v11641
  %v12002 = vmul.f32 %v11938, %v11646
  %v12003 = vmul.f32 %v11939, %v11649
  %v12004 = vmul.f32 %v11940, %v11654
  %v12005 = vmul.f32 %v11941, %v11657
  %v12006 = vmul.f32 %v11942, %v11662
  %v12007 = vmul.f32 %v11943, %v11665
  %v12008 = vmul.f32 %v11944, %v11670
  %v12009 = vmul.f32 %v11945, %v11673
  %v12010 = vmul.f32 %v11946, %v11678
  %v12011 = vmul.f32 %v11947, %v11681
  %v12012 = vmul.f32 %v11948, %v11686
  %v12013 = vmul.f32 %v11949, %v11689
  %v12014 = vmul.f32 %v11950, %v11694
  %v12015 = vmul.f32 %v11951, %v11697
  %v12016 = vmul.f32 %v11952, %v11702
  %v12017 = vmul.f32 %v11953, %v11705
  %v12018 = vmul.f32 %v11954, %v11710
  %v12019 = vmul.f32 %v11955, %v11713
  %v12020 = vmul.f32 %v11956, %v11718
  %v12021 = vmul.f32 %v11957, %v11721
  %v12022 = vmul.f32 %v11958, %v11726
  %v12023 = vmul.f32 %v11959, %v11729
  %v12024 = vmul.f32 %v11960, %v11734
  %v12025 = vmul.f32 %v11961, %v11737
  %v12026 = vmul.f32 %v11962, %v11742
  %v12027 = vmul.f32 %v11963, %v11745
  %v12028 = vmul.f32 %v11964, %v11750
  %v12029 = vmul.f32 %v11965, %v11753
  %v12030 = vmul.f32 %v11966, %v11758
  %v12031 = vmul.f32 %v11967, %v11761
  %v12032 = vmul.f32 %v11968, %v11766
  %v12033 = vmul.f32 %v11969, %v11769
  %v12034 = vmul.f32 %v11970, %v11774
  %v12035 = vmul.f32 %v11971, %v11777
  %v12036 = vadd.f32 %v11526, %v11972
  %v12037 = vadd.f32 %v11529, %v11973
  %v12038 = vadd.f32 %v11534, %v11974
  %v12039 = vadd.f32 %v11537, %v11975
  %v12040 = vadd.f32 %v11542, %v11976
  %v12041 = vadd.f32 %v11545, %v11977
  %v12042 = vadd.f32 %v11550, %v11978
  %v12043 = vadd.f32 %v11553, %v11979
  %v12044 = vadd.f32 %v11558, %v11980
  %v12045 = vadd.f32 %v11561, %v11981
  %v12046 = vadd.f32 %v11566, %v11982
  %v12047 = vadd.f32 %v11569, %v11983
  %v12048 = vadd.f32 %v11574, %v11984
  %v12049 = vadd.f32 %v11577, %v11985
  %v12050 = vadd.f32 %v11582, %v11986
  %v12051 = vadd.f32 %v11585, %v11987
  %v12052 = vadd.f32 %v11590, %v11988
  %v12053 = vadd.f32 %v11593, %v11989
  %v12054 = vadd.f32 %v11598, %v11990
  %v12055 = vadd.f32 %v11601, %v11991
  %v12056 = vadd.f32 %v11606, %v11992
  %v12057 = vadd.f32 %v11609, %v11993
  %v12058 = vadd.f32 %v11614, %v11994
  %v12059 = vadd.f32 %v11617, %v11995
  %v12060 = vadd.f32 %v11622, %v11996
  %v12061 = vadd.f32 %v11625, %v11997
  %v12062 = vadd.f32 %v11630, %v11998
  %v12063 = vadd.f32 %v11633, %v11999
  %v12064 = vadd.f32 %v11638, %v12000
  %v12065 = vadd.f32 %v11641, %v12001
  %v12066 = vadd.f32 %v11646, %v12002
  %v12067 = vadd.f32 %v11649, %v12003
  %v12068 = vadd.f32 %v11654, %v12004
  %v12069 = vadd.f32 %v11657, %v12005
  %v12070 = vadd.f32 %v11662, %v12006
  %v12071 = vadd.f32 %v11665, %v12007
  %v12072 = vadd.f32 %v11670, %v12008
  %v12073 = vadd.f32 %v11673, %v12009
  %v12074 = vadd.f32 %v11678, %v12010
  %v12075 = vadd.f32 %v11681, %v12011
  %v12076 = vadd.f32 %v11686, %v12012
  %v12077 = vadd.f32 %v11689, %v12013
  %v12078 = vadd.f32 %v11694, %v12014
  %v12079 = vadd.f32 %v11697, %v12015
  %v12080 = vadd.f32 %v11702, %v12016
  %v12081 = vadd.f32 %v11705, %v12017
  %v12082 = vadd.f32 %v11710, %v12018
  %v12083 = vadd.f32 %v11713, %v12019
  %v12084 = vadd.f32 %v11718, %v12020
  %v12085 = vadd.f32 %v11721, %v12021
  %v12086 = vadd.f32 %v11726, %v12022
  %v12087 = vadd.f32 %v11729, %v12023
  %v12088 = vadd.f32 %v11734, %v12024
  %v12089 = vadd.f32 %v11737, %v12025
  %v12090 = vadd.f32 %v11742, %v12026
  %v12091 = vadd.f32 %v11745, %v12027
  %v12092 = vadd.f32 %v11750, %v12028
  %v12093 = vadd.f32 %v11753, %v12029
  %v12094 = vadd.f32 %v11758, %v12030
  %v12095 = vadd.f32 %v11761, %v12031
  %v12096 = vadd.f32 %v11766, %v12032
  %v12097 = vadd.f32 %v11769, %v12033
  %v12098 = vadd.f32 %v11774, %v12034
  %v12099 = vadd.f32 %v11777, %v12035
  %v12100 = vmul.f32 %v12036, 0.7978846
  %v12101 = vmul.f32 %v12037, 0.7978846
  %v12102 = vmul.f32 %v12038, 0.7978846
  %v12103 = vmul.f32 %v12039, 0.7978846
  %v12104 = vmul.f32 %v12040, 0.7978846
  %v12105 = vmul.f32 %v12041, 0.7978846
  %v12106 = vmul.f32 %v12042, 0.7978846
  %v12107 = vmul.f32 %v12043, 0.7978846
  %v12108 = vmul.f32 %v12044, 0.7978846
  %v12109 = vmul.f32 %v12045, 0.7978846
  %v12110 = vmul.f32 %v12046, 0.7978846
  %v12111 = vmul.f32 %v12047, 0.7978846
  %v12112 = vmul.f32 %v12048, 0.7978846
  %v12113 = vmul.f32 %v12049, 0.7978846
  %v12114 = vmul.f32 %v12050, 0.7978846
  %v12115 = vmul.f32 %v12051, 0.7978846
  %v12116 = vmul.f32 %v12052, 0.7978846
  %v12117 = vmul.f32 %v12053, 0.7978846
  %v12118 = vmul.f32 %v12054, 0.7978846
  %v12119 = vmul.f32 %v12055, 0.7978846
  %v12120 = vmul.f32 %v12056, 0.7978846
  %v12121 = vmul.f32 %v12057, 0.7978846
  %v12122 = vmul.f32 %v12058, 0.7978846
  %v12123 = vmul.f32 %v12059, 0.7978846
  %v12124 = vmul.f32 %v12060, 0.7978846
  %v12125 = vmul.f32 %v12061, 0.7978846
  %v12126 = vmul.f32 %v12062, 0.7978846
  %v12127 = vmul.f32 %v12063, 0.7978846
  %v12128 = vmul.f32 %v12064, 0.7978846
  %v12129 = vmul.f32 %v12065, 0.7978846
  %v12130 = vmul.f32 %v12066, 0.7978846
  %v12131 = vmul.f32 %v12067, 0.7978846
  %v12132 = vmul.f32 %v12068, 0.7978846
  %v12133 = vmul.f32 %v12069, 0.7978846
  %v12134 = vmul.f32 %v12070, 0.7978846
  %v12135 = vmul.f32 %v12071, 0.7978846
  %v12136 = vmul.f32 %v12072, 0.7978846
  %v12137 = vmul.f32 %v12073, 0.7978846
  %v12138 = vmul.f32 %v12074, 0.7978846
  %v12139 = vmul.f32 %v12075, 0.7978846
  %v12140 = vmul.f32 %v12076, 0.7978846
  %v12141 = vmul.f32 %v12077, 0.7978846
  %v12142 = vmul.f32 %v12078, 0.7978846
  %v12143 = vmul.f32 %v12079, 0.7978846
  %v12144 = vmul.f32 %v12080, 0.7978846
  %v12145 = vmul.f32 %v12081, 0.7978846
  %v12146 = vmul.f32 %v12082, 0.7978846
  %v12147 = vmul.f32 %v12083, 0.7978846
  %v12148 = vmul.f32 %v12084, 0.7978846
  %v12149 = vmul.f32 %v12085, 0.7978846
  %v12150 = vmul.f32 %v12086, 0.7978846
  %v12151 = vmul.f32 %v12087, 0.7978846
  %v12152 = vmul.f32 %v12088, 0.7978846
  %v12153 = vmul.f32 %v12089, 0.7978846
  %v12154 = vmul.f32 %v12090, 0.7978846
  %v12155 = vmul.f32 %v12091, 0.7978846
  %v12156 = vmul.f32 %v12092, 0.7978846
  %v12157 = vmul.f32 %v12093, 0.7978846
  %v12158 = vmul.f32 %v12094, 0.7978846
  %v12159 = vmul.f32 %v12095, 0.7978846
  %v12160 = vmul.f32 %v12096, 0.7978846
  %v12161 = vmul.f32 %v12097, 0.7978846
  %v12162 = vmul.f32 %v12098, 0.7978846
  %v12163 = vmul.f32 %v12099, 0.7978846
  %v12164 = vtanh.pop %v12100
  %v12165 = vtanh.pop %v12101
  %v12166 = vtanh.pop %v12102
  %v12167 = vtanh.pop %v12103
  %v12168 = vtanh.pop %v12104
  %v12169 = vtanh.pop %v12105
  %v12170 = vtanh.pop %v12106
  %v12171 = vtanh.pop %v12107
  %v12172 = vtanh.pop %v12108
  %v12173 = vtanh.pop %v12109
  %v12174 = vtanh.pop %v12110
  %v12175 = vtanh.pop %v12111
  %v12176 = vtanh.pop %v12112
  %v12177 = vtanh.pop %v12113
  %v12178 = vtanh.pop %v12114
  %v12179 = vtanh.pop %v12115
  %v12180 = vtanh.pop %v12116
  %v12181 = vtanh.pop %v12117
  %v12182 = vtanh.pop %v12118
  %v12183 = vtanh.pop %v12119
  %v12184 = vtanh.pop %v12120
  %v12185 = vtanh.pop %v12121
  %v12186 = vtanh.pop %v12122
  %v12187 = vtanh.pop %v12123
  %v12188 = vtanh.pop %v12124
  %v12189 = vtanh.pop %v12125
  %v12190 = vtanh.pop %v12126
  %v12191 = vtanh.pop %v12127
  %v12192 = vtanh.pop %v12128
  %v12193 = vtanh.pop %v12129
  %v12194 = vtanh.pop %v12130
  %v12195 = vtanh.pop %v12131
  %v12196 = vtanh.pop %v12132
  %v12197 = vtanh.pop %v12133
  %v12198 = vtanh.pop %v12134
  %v12199 = vtanh.pop %v12135
  %v12200 = vtanh.pop %v12136
  %v12201 = vtanh.pop %v12137
  %v12202 = vtanh.pop %v12138
  %v12203 = vtanh.pop %v12139
  %v12204 = vtanh.pop %v12140
  %v12205 = vtanh.pop %v12141
  %v12206 = vtanh.pop %v12142
  %v12207 = vtanh.pop %v12143
  %v12208 = vtanh.pop %v12144
  %v12209 = vtanh.pop %v12145
  %v12210 = vtanh.pop %v12146
  %v12211 = vtanh.pop %v12147
  %v12212 = vtanh.pop %v12148
  %v12213 = vtanh.pop %v12149
  %v12214 = vtanh.pop %v12150
  %v12215 = vtanh.pop %v12151
  %v12216 = vtanh.pop %v12152
  %v12217 = vtanh.pop %v12153
  %v12218 = vtanh.pop %v12154
  %v12219 = vtanh.pop %v12155
  %v12220 = vtanh.pop %v12156
  %v12221 = vtanh.pop %v12157
  %v12222 = vtanh.pop %v12158
  %v12223 = vtanh.pop %v12159
  %v12224 = vtanh.pop %v12160
  %v12225 = vtanh.pop %v12161
  %v12226 = vtanh.pop %v12162
  %v12227 = vtanh.pop %v12163
  %v12228 = vadd.f32 %v12164, 1.0
  %v12229 = vadd.f32 %v12165, 1.0
  %v12230 = vadd.f32 %v12166, 1.0
  %v12231 = vadd.f32 %v12167, 1.0
  %v12232 = vadd.f32 %v12168, 1.0
  %v12233 = vadd.f32 %v12169, 1.0
  %v12234 = vadd.f32 %v12170, 1.0
  %v12235 = vadd.f32 %v12171, 1.0
  %v12236 = vadd.f32 %v12172, 1.0
  %v12237 = vadd.f32 %v12173, 1.0
  %v12238 = vadd.f32 %v12174, 1.0
  %v12239 = vadd.f32 %v12175, 1.0
  %v12240 = vadd.f32 %v12176, 1.0
  %v12241 = vadd.f32 %v12177, 1.0
  %v12242 = vadd.f32 %v12178, 1.0
  %v12243 = vadd.f32 %v12179, 1.0
  %v12244 = vadd.f32 %v12180, 1.0
  %v12245 = vadd.f32 %v12181, 1.0
  %v12246 = vadd.f32 %v12182, 1.0
  %v12247 = vadd.f32 %v12183, 1.0
  %v12248 = vadd.f32 %v12184, 1.0
  %v12249 = vadd.f32 %v12185, 1.0
  %v12250 = vadd.f32 %v12186, 1.0
  %v12251 = vadd.f32 %v12187, 1.0
  %v12252 = vadd.f32 %v12188, 1.0
  %v12253 = vadd.f32 %v12189, 1.0
  %v12254 = vadd.f32 %v12190, 1.0
  %v12255 = vadd.f32 %v12191, 1.0
  %v12256 = vadd.f32 %v12192, 1.0
  %v12257 = vadd.f32 %v12193, 1.0
  %v12258 = vadd.f32 %v12194, 1.0
  %v12259 = vadd.f32 %v12195, 1.0
  %v12260 = vadd.f32 %v12196, 1.0
  %v12261 = vadd.f32 %v12197, 1.0
  %v12262 = vadd.f32 %v12198, 1.0
  %v12263 = vadd.f32 %v12199, 1.0
  %v12264 = vadd.f32 %v12200, 1.0
  %v12265 = vadd.f32 %v12201, 1.0
  %v12266 = vadd.f32 %v12202, 1.0
  %v12267 = vadd.f32 %v12203, 1.0
  %v12268 = vadd.f32 %v12204, 1.0
  %v12269 = vadd.f32 %v12205, 1.0
  %v12270 = vadd.f32 %v12206, 1.0
  %v12271 = vadd.f32 %v12207, 1.0
  %v12272 = vadd.f32 %v12208, 1.0
  %v12273 = vadd.f32 %v12209, 1.0
  %v12274 = vadd.f32 %v12210, 1.0
  %v12275 = vadd.f32 %v12211, 1.0
  %v12276 = vadd.f32 %v12212, 1.0
  %v12277 = vadd.f32 %v12213, 1.0
  %v12278 = vadd.f32 %v12214, 1.0
  %v12279 = vadd.f32 %v12215, 1.0
  %v12280 = vadd.f32 %v12216, 1.0
  %v12281 = vadd.f32 %v12217, 1.0
  %v12282 = vadd.f32 %v12218, 1.0
  %v12283 = vadd.f32 %v12219, 1.0
  %v12284 = vadd.f32 %v12220, 1.0
  %v12285 = vadd.f32 %v12221, 1.0
  %v12286 = vadd.f32 %v12222, 1.0
  %v12287 = vadd.f32 %v12223, 1.0
  %v12288 = vadd.f32 %v12224, 1.0
  %v12289 = vadd.f32 %v12225, 1.0
  %v12290 = vadd.f32 %v12226, 1.0
  %v12291 = vadd.f32 %v12227, 1.0
  %v12292 = vmul.f32 %v11780, %v12228
  %v12293 = vmul.f32 %v11781, %v12229
  %v12294 = vmul.f32 %v11782, %v12230
  %v12295 = vmul.f32 %v11783, %v12231
  %v12296 = vmul.f32 %v11784, %v12232
  %v12297 = vmul.f32 %v11785, %v12233
  %v12298 = vmul.f32 %v11786, %v12234
  %v12299 = vmul.f32 %v11787, %v12235
  %v12300 = vmul.f32 %v11788, %v12236
  %v12301 = vmul.f32 %v11789, %v12237
  %v12302 = vmul.f32 %v11790, %v12238
  %v12303 = vmul.f32 %v11791, %v12239
  %v12304 = vmul.f32 %v11792, %v12240
  %v12305 = vmul.f32 %v11793, %v12241
  %v12306 = vmul.f32 %v11794, %v12242
  %v12307 = vmul.f32 %v11795, %v12243
  %v12308 = vmul.f32 %v11796, %v12244
  %v12309 = vmul.f32 %v11797, %v12245
  %v12310 = vmul.f32 %v11798, %v12246
  %v12311 = vmul.f32 %v11799, %v12247
  %v12312 = vmul.f32 %v11800, %v12248
  %v12313 = vmul.f32 %v11801, %v12249
  %v12314 = vmul.f32 %v11802, %v12250
  %v12315 = vmul.f32 %v11803, %v12251
  %v12316 = vmul.f32 %v11804, %v12252
  %v12317 = vmul.f32 %v11805, %v12253
  %v12318 = vmul.f32 %v11806, %v12254
  %v12319 = vmul.f32 %v11807, %v12255
  %v12320 = vmul.f32 %v11808, %v12256
  %v12321 = vmul.f32 %v11809, %v12257
  %v12322 = vmul.f32 %v11810, %v12258
  %v12323 = vmul.f32 %v11811, %v12259
  %v12324 = vmul.f32 %v11812, %v12260
  %v12325 = vmul.f32 %v11813, %v12261
  %v12326 = vmul.f32 %v11814, %v12262
  %v12327 = vmul.f32 %v11815, %v12263
  %v12328 = vmul.f32 %v11816, %v12264
  %v12329 = vmul.f32 %v11817, %v12265
  %v12330 = vmul.f32 %v11818, %v12266
  %v12331 = vmul.f32 %v11819, %v12267
  %v12332 = vmul.f32 %v11820, %v12268
  %v12333 = vmul.f32 %v11821, %v12269
  %v12334 = vmul.f32 %v11822, %v12270
  %v12335 = vmul.f32 %v11823, %v12271
  %v12336 = vmul.f32 %v11824, %v12272
  %v12337 = vmul.f32 %v11825, %v12273
  %v12338 = vmul.f32 %v11826, %v12274
  %v12339 = vmul.f32 %v11827, %v12275
  %v12340 = vmul.f32 %v11828, %v12276
  %v12341 = vmul.f32 %v11829, %v12277
  %v12342 = vmul.f32 %v11830, %v12278
  %v12343 = vmul.f32 %v11831, %v12279
  %v12344 = vmul.f32 %v11832, %v12280
  %v12345 = vmul.f32 %v11833, %v12281
  %v12346 = vmul.f32 %v11834, %v12282
  %v12347 = vmul.f32 %v11835, %v12283
  %v12348 = vmul.f32 %v11836, %v12284
  %v12349 = vmul.f32 %v11837, %v12285
  %v12350 = vmul.f32 %v11838, %v12286
  %v12351 = vmul.f32 %v11839, %v12287
  %v12352 = vmul.f32 %v11840, %v12288
  %v12353 = vmul.f32 %v11841, %v12289
  %v12354 = vmul.f32 %v11842, %v12290
  %v12355 = vmul.f32 %v11843, %v12291
  %v12356 = vpack.c.bf16 %v12293, %v12292
  %v12357 = vpack.c.bf16 %v12295, %v12294
  %v12358 = vpack.c.bf16 %v12297, %v12296
  %v12359 = vpack.c.bf16 %v12299, %v12298
  %v12360 = vpack.c.bf16 %v12301, %v12300
  %v12361 = vpack.c.bf16 %v12303, %v12302
  %v12362 = vpack.c.bf16 %v12305, %v12304
  %v12363 = vpack.c.bf16 %v12307, %v12306
  %v12364 = vpack.c.bf16 %v12309, %v12308
  %v12365 = vpack.c.bf16 %v12311, %v12310
  %v12366 = vpack.c.bf16 %v12313, %v12312
  %v12367 = vpack.c.bf16 %v12315, %v12314
  %v12368 = vpack.c.bf16 %v12317, %v12316
  %v12369 = vpack.c.bf16 %v12319, %v12318
  %v12370 = vpack.c.bf16 %v12321, %v12320
  %v12371 = vpack.c.bf16 %v12323, %v12322
  %v12372 = vpack.c.bf16 %v12325, %v12324
  %v12373 = vpack.c.bf16 %v12327, %v12326
  %v12374 = vpack.c.bf16 %v12329, %v12328
  %v12375 = vpack.c.bf16 %v12331, %v12330
  %v12376 = vpack.c.bf16 %v12333, %v12332
  %v12377 = vpack.c.bf16 %v12335, %v12334
  %v12378 = vpack.c.bf16 %v12337, %v12336
  %v12379 = vpack.c.bf16 %v12339, %v12338
  %v12380 = vpack.c.bf16 %v12341, %v12340
  %v12381 = vpack.c.bf16 %v12343, %v12342
  %v12382 = vpack.c.bf16 %v12345, %v12344
  %v12383 = vpack.c.bf16 %v12347, %v12346
  %v12384 = vpack.c.bf16 %v12349, %v12348
  %v12385 = vpack.c.bf16 %v12351, %v12350
  %v12386 = vpack.c.bf16 %v12353, %v12352
  %v12387 = vpack.c.bf16 %v12355, %v12354
  %v12388 = vld [vmem:[%s20] sm:$0xf]
  %v12389 = vld [vmem:[%s20 + $0x4] sm:$0xf]
  %v12390 = vld [vmem:[%s20 + $0x8] sm:$0xf]
  %v12391 = vld [vmem:[%s20 + $0xc] sm:$0xf]
  %v12392 = vld [vmem:[%s20 + $0x10] sm:$0xf]
  %v12393 = vld [vmem:[%s20 + $0x14] sm:$0xf]
  %v12394 = vld [vmem:[%s20 + $0x18] sm:$0xf]
  %v12395 = vld [vmem:[%s20 + $0x1c] sm:$0xf]
  %v12396 = vld [vmem:[%s21] sm:$0x1]
  %v12398 = vlaneseq
  %v12399 = vshrl.u32 %v12398, 7
  %v12400 = vsub.s32 0, %v12399
  %v12401 = vrot.slane %v12396, %v12400
  %v12411 = vunpack.c.l.b16 %v12388
  %v12412 = vunpack.c.l.b16 %v12389
  %v12413 = vunpack.c.l.b16 %v12390
  %v12414 = vunpack.c.l.b16 %v12391
  %v12415 = vunpack.c.l.b16 %v12392
  %v12416 = vunpack.c.l.b16 %v12393
  %v12417 = vunpack.c.l.b16 %v12394
  %v12418 = vunpack.c.l.b16 %v12395
  %v12419 = vpack.c.b16 %v12412, %v12411
  %v12420 = vpack.c.b16 %v12414, %v12413
  %v12421 = vpack.c.b16 %v12416, %v12415
  %v12422 = vpack.c.b16 %v12418, %v12417
  %v12428 = vsel %vm8271, %v12356, 0
  %v12431 = vsel %vm8271, %v12357, 0
  %v12434 = vsel %vm8271, %v12358, 0
  %v12437 = vsel %vm8271, %v12359, 0
  %v12440 = vsel %vm8271, %v12360, 0
  %v12443 = vsel %vm8271, %v12361, 0
  %v12446 = vsel %vm8271, %v12362, 0
  %v12449 = vsel %vm8271, %v12363, 0
  %v12452 = vsel %vm8271, %v12364, 0
  %v12455 = vsel %vm8271, %v12365, 0
  %v12458 = vsel %vm8271, %v12366, 0
  %v12461 = vsel %vm8271, %v12367, 0
  %v12464 = vsel %vm8271, %v12368, 0
  %v12467 = vsel %vm8271, %v12369, 0
  %v12470 = vsel %vm8271, %v12370, 0
  %v12473 = vsel %vm8271, %v12371, 0
  %v12476 = vsel %vm8271, %v12372, 0
  %v12479 = vsel %vm8271, %v12373, 0
  %v12482 = vsel %vm8271, %v12374, 0
  %v12485 = vsel %vm8271, %v12375, 0
  %v12488 = vsel %vm8271, %v12376, 0
  %v12491 = vsel %vm8271, %v12377, 0
  %v12494 = vsel %vm8271, %v12378, 0
  %v12497 = vsel %vm8271, %v12379, 0
  %v12500 = vsel %vm8271, %v12380, 0
  %v12503 = vsel %vm8271, %v12381, 0
  %v12506 = vsel %vm8271, %v12382, 0
  %v12509 = vsel %vm8271, %v12383, 0
  %v12512 = vsel %vm8271, %v12384, 0
  %v12515 = vsel %vm8271, %v12385, 0
  %v12518 = vsel %vm8271, %v12386, 0
  %v12521 = vsel %vm8271, %v12387, 0
  %12523 = vmatprep.subr.bf16.mxu0 0
  %12524 = vmatpush1.bf16.msra.mxu0 %v12419
  %12525 = vmatprep.subr.bf16.mxu0 0
  %12526 = vmatpush1.bf16.msra.mxu0 %v12420
  %12527 = vmatprep.subr.bf16.mxu0 0
  %12528 = vmatpush1.bf16.msra.mxu0 %v12421
  %12529 = vmatprep.subr.bf16.mxu0 0
  %12530 = vmatpush1.bf16.msra.mxu0 %v12422
  %12531 = vmatprep.subr.bf16.mxu0 0
  %12532 = vmatpush1.bf16.msra.mxu0 0
  %12533 = vmatprep.subr.bf16.mxu0 0
  %12534 = vmatpush1.bf16.msra.mxu0 0
  %12535 = vmatprep.subr.bf16.mxu0 0
  %12536 = vmatpush1.bf16.msra.mxu0 0
  %12537 = vmatprep.subr.bf16.mxu0 0
  %12538 = vmatpush1.bf16.msra.mxu0 0
  %12539 = vmatprep.subr.bf16.mxu0 0
  %12540 = vmatpush1.bf16.msra.mxu0 0
  %12541 = vmatprep.subr.bf16.mxu0 0
  %12542 = vmatpush1.bf16.msra.mxu0 0
  %12543 = vmatprep.subr.bf16.mxu0 0
  %12544 = vmatpush1.bf16.msra.mxu0 0
  %12545 = vmatprep.subr.bf16.mxu0 0
  %12546 = vmatpush1.bf16.msra.mxu0 0
  %12547 = vmatprep.subr.bf16.mxu0 0
  %12548 = vmatpush1.bf16.msra.mxu0 0
  %12549 = vmatprep.subr.bf16.mxu0 0
  %12550 = vmatpush1.bf16.msra.mxu0 0
  %12551 = vmatprep.subr.bf16.mxu0 0
  %12552 = vmatpush1.bf16.msra.mxu0 0
  %12553 = vmatprep.subr.bf16.mxu0 0
  %12554 = vmatpush1.bf16.msra.mxu0 0
  %12555 = vmatprep.mubr.bf16.mxu0 0
  %12556 = vmatmul.mubr.bf16.gmra.mrb[0].mxu0 %v12428
  %v12557 = vpop.f32.mrb[0].mxu0
  %v12558 = vadd.f32 %v12401, %v12557
  %v12559 = vpop.f32.mrb[0].mxu0
  %v12560 = vpop.f32.mrb[0].mxu0
  %v12561 = vadd.f32 %v12401, %v12560
  %v12562 = vpop.f32.mrb[0].mxu0
  %12563 = vmatprep.mubr.bf16.mxu0 0
  %12564 = vmatmul.mubr.bf16.gmra.mrb[0].mxu0 %v12431
  %v12565 = vpop.f32.mrb[0].mxu0
  %v12566 = vadd.f32 %v12401, %v12565
  %v12567 = vpop.f32.mrb[0].mxu0
  %v12568 = vpop.f32.mrb[0].mxu0
  %v12569 = vadd.f32 %v12401, %v12568
  %v12570 = vpop.f32.mrb[0].mxu0
  %12571 = vmatprep.mubr.bf16.mxu0 0
  %12572 = vmatmul.mubr.bf16.gmra.mrb[0].mxu0 %v12434
  %v12573 = vpop.f32.mrb[0].mxu0
  %v12574 = vadd.f32 %v12401, %v12573
  %v12575 = vpop.f32.mrb[0].mxu0
  %v12576 = vpop.f32.mrb[0].mxu0
  %v12577 = vadd.f32 %v12401, %v12576
  %v12578 = vpop.f32.mrb[0].mxu0
  %12579 = vmatprep.mubr.bf16.mxu0 0
  %12580 = vmatmul.mubr.bf16.gmra.mrb[0].mxu0 %v12437
  %v12581 = vpop.f32.mrb[0].mxu0
  %v12582 = vadd.f32 %v12401, %v12581
  %v12583 = vpop.f32.mrb[0].mxu0
  %v12584 = vpop.f32.mrb[0].mxu0
  %v12585 = vadd.f32 %v12401, %v12584
  %v12586 = vpop.f32.mrb[0].mxu0
  %12587 = vmatprep.mubr.bf16.mxu0 0
  %12588 = vmatmul.mubr.bf16.gmra.mrb[0].mxu0 %v12440
  %v12589 = vpop.f32.mrb[0].mxu0
  %v12590 = vadd.f32 %v12401, %v12589
  %v12591 = vpop.f32.mrb[0].mxu0
  %v12592 = vpop.f32.mrb[0].mxu0
  %v12593 = vadd.f32 %v12401, %v12592
  %v12594 = vpop.f32.mrb[0].mxu0
  %12595 = vmatprep.mubr.bf16.mxu0 0
  %12596 = vmatmul.mubr.bf16.gmra.mrb[0].mxu0 %v12443
  %v12597 = vpop.f32.mrb[0].mxu0
  %v12598 = vadd.f32 %v12401, %v12597
  %v12599 = vpop.f32.mrb[0].mxu0
  %v12600 = vpop.f32.mrb[0].mxu0
  %v12601 = vadd.f32 %v12401, %v12600
  %v12602 = vpop.f32.mrb[0].mxu0
  %12603 = vmatprep.mubr.bf16.mxu0 0
  %12604 = vmatmul.mubr.bf16.gmra.mrb[0].mxu0 %v12446
  %v12605 = vpop.f32.mrb[0].mxu0
  %v12606 = vadd.f32 %v12401, %v12605
  %v12607 = vpop.f32.mrb[0].mxu0
  %v12608 = vpop.f32.mrb[0].mxu0
  %v12609 = vadd.f32 %v12401, %v12608
  %v12610 = vpop.f32.mrb[0].mxu0
  %12611 = vmatprep.mubr.bf16.mxu0 0
  %12612 = vmatmul.mubr.bf16.gmra.mrb[0].mxu0 %v12449
  %v12613 = vpop.f32.mrb[0].mxu0
  %v12614 = vadd.f32 %v12401, %v12613
  %v12615 = vpop.f32.mrb[0].mxu0
  %v12616 = vpop.f32.mrb[0].mxu0
  %v12617 = vadd.f32 %v12401, %v12616
  %v12618 = vpop.f32.mrb[0].mxu0
  %12619 = vmatprep.mubr.bf16.mxu0 0
  %12620 = vmatmul.mubr.bf16.gmra.mrb[0].mxu0 %v12452
  %v12621 = vpop.f32.mrb[0].mxu0
  %v12622 = vadd.f32 %v12401, %v12621
  %v12623 = vpop.f32.mrb[0].mxu0
  %v12624 = vpop.f32.mrb[0].mxu0
  %v12625 = vadd.f32 %v12401, %v12624
  %v12626 = vpop.f32.mrb[0].mxu0
  %12627 = vmatprep.mubr.bf16.mxu0 0
  %12628 = vmatmul.mubr.bf16.gmra.mrb[0].mxu0 %v12455
  %v12629 = vpop.f32.mrb[0].mxu0
  %v12630 = vadd.f32 %v12401, %v12629
  %v12631 = vpop.f32.mrb[0].mxu0
  %v12632 = vpop.f32.mrb[0].mxu0
  %v12633 = vadd.f32 %v12401, %v12632
  %v12634 = vpop.f32.mrb[0].mxu0
  %12635 = vmatprep.mubr.bf16.mxu0 0
  %12636 = vmatmul.mubr.bf16.gmra.mrb[0].mxu0 %v12458
  %v12637 = vpop.f32.mrb[0].mxu0
  %v12638 = vadd.f32 %v12401, %v12637
  %v12639 = vpop.f32.mrb[0].mxu0
  %v12640 = vpop.f32.mrb[0].mxu0
  %v12641 = vadd.f32 %v12401, %v12640
  %v12642 = vpop.f32.mrb[0].mxu0
  %12643 = vmatprep.mubr.bf16.mxu0 0
  %12644 = vmatmul.mubr.bf16.gmra.mrb[0].mxu0 %v12461
  %v12645 = vpop.f32.mrb[0].mxu0
  %v12646 = vadd.f32 %v12401, %v12645
  %v12647 = vpop.f32.mrb[0].mxu0
  %v12648 = vpop.f32.mrb[0].mxu0
  %v12649 = vadd.f32 %v12401, %v12648
  %v12650 = vpop.f32.mrb[0].mxu0
  %12651 = vmatprep.mubr.bf16.mxu0 0
  %12652 = vmatmul.mubr.bf16.gmra.mrb[0].mxu0 %v12464
  %v12653 = vpop.f32.mrb[0].mxu0
  %v12654 = vadd.f32 %v12401, %v12653
  %v12655 = vpop.f32.mrb[0].mxu0
  %v12656 = vpop.f32.mrb[0].mxu0
  %v12657 = vadd.f32 %v12401, %v12656
  %v12658 = vpop.f32.mrb[0].mxu0
  %12659 = vmatprep.mubr.bf16.mxu0 0
  %12660 = vmatmul.mubr.bf16.gmra.mrb[0].mxu0 %v12467
  %v12661 = vpop.f32.mrb[0].mxu0
  %v12662 = vadd.f32 %v12401, %v12661
  %v12663 = vpop.f32.mrb[0].mxu0
  %v12664 = vpop.f32.mrb[0].mxu0
  %v12665 = vadd.f32 %v12401, %v12664
  %v12666 = vpop.f32.mrb[0].mxu0
  %12667 = vmatprep.mubr.bf16.mxu0 0
  %12668 = vmatmul.mubr.bf16.gmra.mrb[0].mxu0 %v12470
  %v12669 = vpop.f32.mrb[0].mxu0
  %v12670 = vadd.f32 %v12401, %v12669
  %v12671 = vpop.f32.mrb[0].mxu0
  %v12672 = vpop.f32.mrb[0].mxu0
  %v12673 = vadd.f32 %v12401, %v12672
  %v12674 = vpop.f32.mrb[0].mxu0
  %12675 = vmatprep.mubr.bf16.mxu0 0
  %12676 = vmatmul.mubr.bf16.gmra.mrb[0].mxu0 %v12473
  %v12677 = vpop.f32.mrb[0].mxu0
  %v12678 = vadd.f32 %v12401, %v12677
  %v12679 = vpop.f32.mrb[0].mxu0
  %v12680 = vpop.f32.mrb[0].mxu0
  %v12681 = vadd.f32 %v12401, %v12680
  %v12682 = vpop.f32.mrb[0].mxu0
  %12683 = vmatprep.mubr.bf16.mxu0 0
  %12684 = vmatmul.mubr.bf16.gmra.mrb[0].mxu0 %v12476
  %v12685 = vpop.f32.mrb[0].mxu0
  %v12686 = vadd.f32 %v12401, %v12685
  %v12687 = vpop.f32.mrb[0].mxu0
  %v12688 = vpop.f32.mrb[0].mxu0
  %v12689 = vadd.f32 %v12401, %v12688
  %v12690 = vpop.f32.mrb[0].mxu0
  %12691 = vmatprep.mubr.bf16.mxu0 0
  %12692 = vmatmul.mubr.bf16.gmra.mrb[0].mxu0 %v12479
  %v12693 = vpop.f32.mrb[0].mxu0
  %v12694 = vadd.f32 %v12401, %v12693
  %v12695 = vpop.f32.mrb[0].mxu0
  %v12696 = vpop.f32.mrb[0].mxu0
  %v12697 = vadd.f32 %v12401, %v12696
  %v12698 = vpop.f32.mrb[0].mxu0
  %12699 = vmatprep.mubr.bf16.mxu0 0
  %12700 = vmatmul.mubr.bf16.gmra.mrb[0].mxu0 %v12482
  %v12701 = vpop.f32.mrb[0].mxu0
  %v12702 = vadd.f32 %v12401, %v12701
  %v12703 = vpop.f32.mrb[0].mxu0
  %v12704 = vpop.f32.mrb[0].mxu0
  %v12705 = vadd.f32 %v12401, %v12704
  %v12706 = vpop.f32.mrb[0].mxu0
  %12707 = vmatprep.mubr.bf16.mxu0 0
  %12708 = vmatmul.mubr.bf16.gmra.mrb[0].mxu0 %v12485
  %v12709 = vpop.f32.mrb[0].mxu0
  %v12710 = vadd.f32 %v12401, %v12709
  %v12711 = vpop.f32.mrb[0].mxu0
  %v12712 = vpop.f32.mrb[0].mxu0
  %v12713 = vadd.f32 %v12401, %v12712
  %v12714 = vpop.f32.mrb[0].mxu0
  %12715 = vmatprep.mubr.bf16.mxu0 0
  %12716 = vmatmul.mubr.bf16.gmra.mrb[0].mxu0 %v12488
  %v12717 = vpop.f32.mrb[0].mxu0
  %v12718 = vadd.f32 %v12401, %v12717
  %v12719 = vpop.f32.mrb[0].mxu0
  %v12720 = vpop.f32.mrb[0].mxu0
  %v12721 = vadd.f32 %v12401, %v12720
  %v12722 = vpop.f32.mrb[0].mxu0
  %12723 = vmatprep.mubr.bf16.mxu0 0
  %12724 = vmatmul.mubr.bf16.gmra.mrb[0].mxu0 %v12491
  %v12725 = vpop.f32.mrb[0].mxu0
  %v12726 = vadd.f32 %v12401, %v12725
  %v12727 = vpop.f32.mrb[0].mxu0
  %v12728 = vpop.f32.mrb[0].mxu0
  %v12729 = vadd.f32 %v12401, %v12728
  %v12730 = vpop.f32.mrb[0].mxu0
  %12731 = vmatprep.mubr.bf16.mxu0 0
  %12732 = vmatmul.mubr.bf16.gmra.mrb[0].mxu0 %v12494
  %v12733 = vpop.f32.mrb[0].mxu0
  %v12734 = vadd.f32 %v12401, %v12733
  %v12735 = vpop.f32.mrb[0].mxu0
  %v12736 = vpop.f32.mrb[0].mxu0
  %v12737 = vadd.f32 %v12401, %v12736
  %v12738 = vpop.f32.mrb[0].mxu0
  %12739 = vmatprep.mubr.bf16.mxu0 0
  %12740 = vmatmul.mubr.bf16.gmra.mrb[0].mxu0 %v12497
  %v12741 = vpop.f32.mrb[0].mxu0
  %v12742 = vadd.f32 %v12401, %v12741
  %v12743 = vpop.f32.mrb[0].mxu0
  %v12744 = vpop.f32.mrb[0].mxu0
  %v12745 = vadd.f32 %v12401, %v12744
  %v12746 = vpop.f32.mrb[0].mxu0
  %12747 = vmatprep.mubr.bf16.mxu0 0
  %12748 = vmatmul.mubr.bf16.gmra.mrb[0].mxu0 %v12500
  %v12749 = vpop.f32.mrb[0].mxu0
  %v12750 = vadd.f32 %v12401, %v12749
  %v12751 = vpop.f32.mrb[0].mxu0
  %v12752 = vpop.f32.mrb[0].mxu0
  %v12753 = vadd.f32 %v12401, %v12752
  %v12754 = vpop.f32.mrb[0].mxu0
  %12755 = vmatprep.mubr.bf16.mxu0 0
  %12756 = vmatmul.mubr.bf16.gmra.mrb[0].mxu0 %v12503
  %v12757 = vpop.f32.mrb[0].mxu0
  %v12758 = vadd.f32 %v12401, %v12757
  %v12759 = vpop.f32.mrb[0].mxu0
  %v12760 = vpop.f32.mrb[0].mxu0
  %v12761 = vadd.f32 %v12401, %v12760
  %v12762 = vpop.f32.mrb[0].mxu0
  %12763 = vmatprep.mubr.bf16.mxu0 0
  %12764 = vmatmul.mubr.bf16.gmra.mrb[0].mxu0 %v12506
  %v12765 = vpop.f32.mrb[0].mxu0
  %v12766 = vadd.f32 %v12401, %v12765
  %v12767 = vpop.f32.mrb[0].mxu0
  %v12768 = vpop.f32.mrb[0].mxu0
  %v12769 = vadd.f32 %v12401, %v12768
  %v12770 = vpop.f32.mrb[0].mxu0
  %12771 = vmatprep.mubr.bf16.mxu0 0
  %12772 = vmatmul.mubr.bf16.gmra.mrb[0].mxu0 %v12509
  %v12773 = vpop.f32.mrb[0].mxu0
  %v12774 = vadd.f32 %v12401, %v12773
  %v12775 = vpop.f32.mrb[0].mxu0
  %v12776 = vpop.f32.mrb[0].mxu0
  %v12777 = vadd.f32 %v12401, %v12776
  %v12778 = vpop.f32.mrb[0].mxu0
  %12779 = vmatprep.mubr.bf16.mxu0 0
  %12780 = vmatmul.mubr.bf16.gmra.mrb[0].mxu0 %v12512
  %v12781 = vpop.f32.mrb[0].mxu0
  %v12782 = vadd.f32 %v12401, %v12781
  %v12783 = vpop.f32.mrb[0].mxu0
  %v12784 = vpop.f32.mrb[0].mxu0
  %v12785 = vadd.f32 %v12401, %v12784
  %v12786 = vpop.f32.mrb[0].mxu0
  %12787 = vmatprep.mubr.bf16.mxu0 0
  %12788 = vmatmul.mubr.bf16.gmra.mrb[0].mxu0 %v12515
  %v12789 = vpop.f32.mrb[0].mxu0
  %v12790 = vadd.f32 %v12401, %v12789
  %v12791 = vpop.f32.mrb[0].mxu0
  %v12792 = vpop.f32.mrb[0].mxu0
  %v12793 = vadd.f32 %v12401, %v12792
  %v12794 = vpop.f32.mrb[0].mxu0
  %12795 = vmatprep.mubr.bf16.mxu0 0
  %12796 = vmatmul.mubr.bf16.gmra.mrb[0].mxu0 %v12518
  %v12797 = vpop.f32.mrb[0].mxu0
  %v12798 = vadd.f32 %v12401, %v12797
  %v12799 = vpop.f32.mrb[0].mxu0
  %v12800 = vpop.f32.mrb[0].mxu0
  %v12801 = vadd.f32 %v12401, %v12800
  %v12802 = vpop.f32.mrb[0].mxu0
  %12803 = vmatprep.mubr.bf16.mxu0 0
  %12804 = vmatmul.mubr.bf16.gmra.mrb[0].mxu0 %v12521
  %v12805 = vpop.f32.mrb[0].mxu0
  %v12806 = vadd.f32 %v12401, %v12805
  %v12807 = vpop.f32.mrb[0].mxu0
  %v12808 = vpop.f32.mrb[0].mxu0
  %v12809 = vadd.f32 %v12401, %v12808
  %v12810 = vpop.f32.mrb[0].mxu0
  %12811 = vdwg.mxu0
  %v12812 = vadd.f32 %v12558, %v11276
  %v12813 = vadd.f32 %v12561, %v11277
  %v12814 = vadd.f32 %v12566, %v11278
  %v12815 = vadd.f32 %v12569, %v11279
  %v12816 = vadd.f32 %v12574, %v11280
  %v12817 = vadd.f32 %v12577, %v11281
  %v12818 = vadd.f32 %v12582, %v11282
  %v12819 = vadd.f32 %v12585, %v11283
  %v12820 = vadd.f32 %v12590, %v11284
  %v12821 = vadd.f32 %v12593, %v11285
  %v12822 = vadd.f32 %v12598, %v11286
  %v12823 = vadd.f32 %v12601, %v11287
  %v12824 = vadd.f32 %v12606, %v11288
  %v12825 = vadd.f32 %v12609, %v11289
  %v12826 = vadd.f32 %v12614, %v11290
  %v12827 = vadd.f32 %v12617, %v11291
  %v12828 = vadd.f32 %v12622, %v11292
  %v12829 = vadd.f32 %v12625, %v11293
  %v12830 = vadd.f32 %v12630, %v11294
  %v12831 = vadd.f32 %v12633, %v11295
  %v12832 = vadd.f32 %v12638, %v11296
  %v12833 = vadd.f32 %v12641, %v11297
  %v12834 = vadd.f32 %v12646, %v11298
  %v12835 = vadd.f32 %v12649, %v11299
  %v12836 = vadd.f32 %v12654, %v11300
  %v12837 = vadd.f32 %v12657, %v11301
  %v12838 = vadd.f32 %v12662, %v11302
  %v12839 = vadd.f32 %v12665, %v11303
  %v12840 = vadd.f32 %v12670, %v11304
  %v12841 = vadd.f32 %v12673, %v11305
  %v12842 = vadd.f32 %v12678, %v11306
  %v12843 = vadd.f32 %v12681, %v11307
  %v12844 = vadd.f32 %v12686, %v11308
  %v12845 = vadd.f32 %v12689, %v11309
  %v12846 = vadd.f32 %v12694, %v11310
  %v12847 = vadd.f32 %v12697, %v11311
  %v12848 = vadd.f32 %v12702, %v11312
  %v12849 = vadd.f32 %v12705, %v11313
  %v12850 = vadd.f32 %v12710, %v11314
  %v12851 = vadd.f32 %v12713, %v11315
  %v12852 = vadd.f32 %v12718, %v11316
  %v12853 = vadd.f32 %v12721, %v11317
  %v12854 = vadd.f32 %v12726, %v11318
  %v12855 = vadd.f32 %v12729, %v11319
  %v12856 = vadd.f32 %v12734, %v11320
  %v12857 = vadd.f32 %v12737, %v11321
  %v12858 = vadd.f32 %v12742, %v11322
  %v12859 = vadd.f32 %v12745, %v11323
  %v12860 = vadd.f32 %v12750, %v11324
  %v12861 = vadd.f32 %v12753, %v11325
  %v12862 = vadd.f32 %v12758, %v11326
  %v12863 = vadd.f32 %v12761, %v11327
  %v12864 = vadd.f32 %v12766, %v11328
  %v12865 = vadd.f32 %v12769, %v11329
  %v12866 = vadd.f32 %v12774, %v11330
  %v12867 = vadd.f32 %v12777, %v11331
  %v12868 = vadd.f32 %v12782, %v11332
  %v12869 = vadd.f32 %v12785, %v11333
  %v12870 = vadd.f32 %v12790, %v11334
  %v12871 = vadd.f32 %v12793, %v11335
  %v12872 = vadd.f32 %v12798, %v11336
  %v12873 = vadd.f32 %v12801, %v11337
  %v12874 = vadd.f32 %v12806, %v11338
  %v12875 = vadd.f32 %v12809, %v11339
  %v12876 = vmul.f32 %v12812, 0.5
  %v12877 = vmul.f32 %v12813, 0.5
  %v12878 = vmul.f32 %v12814, 0.5
  %v12879 = vmul.f32 %v12815, 0.5
  %v12880 = vmul.f32 %v12816, 0.5
  %v12881 = vmul.f32 %v12817, 0.5
  %v12882 = vmul.f32 %v12818, 0.5
  %v12883 = vmul.f32 %v12819, 0.5
  %v12884 = vmul.f32 %v12820, 0.5
  %v12885 = vmul.f32 %v12821, 0.5
  %v12886 = vmul.f32 %v12822, 0.5
  %v12887 = vmul.f32 %v12823, 0.5
  %v12888 = vmul.f32 %v12824, 0.5
  %v12889 = vmul.f32 %v12825, 0.5
  %v12890 = vmul.f32 %v12826, 0.5
  %v12891 = vmul.f32 %v12827, 0.5
  %v12892 = vmul.f32 %v12828, 0.5
  %v12893 = vmul.f32 %v12829, 0.5
  %v12894 = vmul.f32 %v12830, 0.5
  %v12895 = vmul.f32 %v12831, 0.5
  %v12896 = vmul.f32 %v12832, 0.5
  %v12897 = vmul.f32 %v12833, 0.5
  %v12898 = vmul.f32 %v12834, 0.5
  %v12899 = vmul.f32 %v12835, 0.5
  %v12900 = vmul.f32 %v12836, 0.5
  %v12901 = vmul.f32 %v12837, 0.5
  %v12902 = vmul.f32 %v12838, 0.5
  %v12903 = vmul.f32 %v12839, 0.5
  %v12904 = vmul.f32 %v12840, 0.5
  %v12905 = vmul.f32 %v12841, 0.5
  %v12906 = vmul.f32 %v12842, 0.5
  %v12907 = vmul.f32 %v12843, 0.5
  %v12908 = vmul.f32 %v12844, 0.5
  %v12909 = vmul.f32 %v12845, 0.5
  %v12910 = vmul.f32 %v12846, 0.5
  %v12911 = vmul.f32 %v12847, 0.5
  %v12912 = vmul.f32 %v12848, 0.5
  %v12913 = vmul.f32 %v12849, 0.5
  %v12914 = vmul.f32 %v12850, 0.5
  %v12915 = vmul.f32 %v12851, 0.5
  %v12916 = vmul.f32 %v12852, 0.5
  %v12917 = vmul.f32 %v12853, 0.5
  %v12918 = vmul.f32 %v12854, 0.5
  %v12919 = vmul.f32 %v12855, 0.5
  %v12920 = vmul.f32 %v12856, 0.5
  %v12921 = vmul.f32 %v12857, 0.5
  %v12922 = vmul.f32 %v12858, 0.5
  %v12923 = vmul.f32 %v12859, 0.5
  %v12924 = vmul.f32 %v12860, 0.5
  %v12925 = vmul.f32 %v12861, 0.5
  %v12926 = vmul.f32 %v12862, 0.5
  %v12927 = vmul.f32 %v12863, 0.5
  %v12928 = vmul.f32 %v12864, 0.5
  %v12929 = vmul.f32 %v12865, 0.5
  %v12930 = vmul.f32 %v12866, 0.5
  %v12931 = vmul.f32 %v12867, 0.5
  %v12932 = vmul.f32 %v12868, 0.5
  %v12933 = vmul.f32 %v12869, 0.5
  %v12934 = vmul.f32 %v12870, 0.5
  %v12935 = vmul.f32 %v12871, 0.5
  %v12936 = vmul.f32 %v12872, 0.5
  %v12937 = vmul.f32 %v12873, 0.5
  %v12938 = vmul.f32 %v12874, 0.5
  %v12939 = vmul.f32 %v12875, 0.5
  %v12940 = vadd.f32 %v10302, %v12876
  %v12941 = vadd.f32 %v10303, %v12877
  %v12942 = vadd.f32 %v10304, %v12878
  %v12943 = vadd.f32 %v10305, %v12879
  %v12944 = vadd.f32 %v10306, %v12880
  %v12945 = vadd.f32 %v10307, %v12881
  %v12946 = vadd.f32 %v10308, %v12882
  %v12947 = vadd.f32 %v10309, %v12883
  %v12948 = vadd.f32 %v10310, %v12884
  %v12949 = vadd.f32 %v10311, %v12885
  %v12950 = vadd.f32 %v10312, %v12886
  %v12951 = vadd.f32 %v10313, %v12887
  %v12952 = vadd.f32 %v10314, %v12888
  %v12953 = vadd.f32 %v10315, %v12889
  %v12954 = vadd.f32 %v10316, %v12890
  %v12955 = vadd.f32 %v10317, %v12891
  %v12956 = vadd.f32 %v10318, %v12892
  %v12957 = vadd.f32 %v10319, %v12893
  %v12958 = vadd.f32 %v10320, %v12894
  %v12959 = vadd.f32 %v10321, %v12895
  %v12960 = vadd.f32 %v10322, %v12896
  %v12961 = vadd.f32 %v10323, %v12897
  %v12962 = vadd.f32 %v10324, %v12898
  %v12963 = vadd.f32 %v10325, %v12899
  %v12964 = vadd.f32 %v10326, %v12900
  %v12965 = vadd.f32 %v10327, %v12901
  %v12966 = vadd.f32 %v10328, %v12902
  %v12967 = vadd.f32 %v10329, %v12903
  %v12968 = vadd.f32 %v10330, %v12904
  %v12969 = vadd.f32 %v10331, %v12905
  %v12970 = vadd.f32 %v10332, %v12906
  %v12971 = vadd.f32 %v10333, %v12907
  %v12972 = vadd.f32 %v10334, %v12908
  %v12973 = vadd.f32 %v10335, %v12909
  %v12974 = vadd.f32 %v10336, %v12910
  %v12975 = vadd.f32 %v10337, %v12911
  %v12976 = vadd.f32 %v10338, %v12912
  %v12977 = vadd.f32 %v10339, %v12913
  %v12978 = vadd.f32 %v10340, %v12914
  %v12979 = vadd.f32 %v10341, %v12915
  %v12980 = vadd.f32 %v10342, %v12916
  %v12981 = vadd.f32 %v10343, %v12917
  %v12982 = vadd.f32 %v10344, %v12918
  %v12983 = vadd.f32 %v10345, %v12919
  %v12984 = vadd.f32 %v10346, %v12920
  %v12985 = vadd.f32 %v10347, %v12921
  %v12986 = vadd.f32 %v10348, %v12922
  %v12987 = vadd.f32 %v10349, %v12923
  %v12988 = vadd.f32 %v10350, %v12924
  %v12989 = vadd.f32 %v10351, %v12925
  %v12990 = vadd.f32 %v10352, %v12926
  %v12991 = vadd.f32 %v10353, %v12927
  %v12992 = vadd.f32 %v10354, %v12928
  %v12993 = vadd.f32 %v10355, %v12929
  %v12994 = vadd.f32 %v10356, %v12930
  %v12995 = vadd.f32 %v10357, %v12931
  %v12996 = vadd.f32 %v10358, %v12932
  %v12997 = vadd.f32 %v10359, %v12933
  %v12998 = vadd.f32 %v10360, %v12934
  %v12999 = vadd.f32 %v10361, %v12935
  %v13000 = vadd.f32 %v10362, %v12936
  %v13001 = vadd.f32 %v10363, %v12937
  %v13002 = vadd.f32 %v10364, %v12938
  %v13003 = vadd.f32 %v10365, %v12939
  %13004 = vst.msk [vmem:[%s22] sm:$0xff] %vm138, %v12940
  %13005 = vst.msk [vmem:[%s22 + $0x8] sm:$0xff] %vm138, %v12941
  %13006 = vst.msk [vmem:[%s22 + $0x10] sm:$0xff] %vm138, %v12942
  %13007 = vst.msk [vmem:[%s22 + $0x18] sm:$0xff] %vm138, %v12943
  %13008 = vst.msk [vmem:[%s22 + $0x20] sm:$0xff] %vm138, %v12944
  %13009 = vst.msk [vmem:[%s22 + $0x28] sm:$0xff] %vm138, %v12945
  %13010 = vst.msk [vmem:[%s22 + $0x30] sm:$0xff] %vm138, %v12946
  %13011 = vst.msk [vmem:[%s22 + $0x38] sm:$0xff] %vm138, %v12947
  %13012 = vst.msk [vmem:[%s22 + $0x40] sm:$0xff] %vm138, %v12948
  %13013 = vst.msk [vmem:[%s22 + $0x48] sm:$0xff] %vm138, %v12949
  %13014 = vst.msk [vmem:[%s22 + $0x50] sm:$0xff] %vm138, %v12950
  %13015 = vst.msk [vmem:[%s22 + $0x58] sm:$0xff] %vm138, %v12951
  %13016 = vst.msk [vmem:[%s22 + $0x60] sm:$0xff] %vm138, %v12952
  %13017 = vst.msk [vmem:[%s22 + $0x68] sm:$0xff] %vm138, %v12953
  %13018 = vst.msk [vmem:[%s22 + $0x70] sm:$0xff] %vm138, %v12954
  %13019 = vst.msk [vmem:[%s22 + $0x78] sm:$0xff] %vm138, %v12955
  %13020 = vst.msk [vmem:[%s22 + $0x80] sm:$0xff] %vm138, %v12956
  %13021 = vst.msk [vmem:[%s22 + $0x88] sm:$0xff] %vm138, %v12957
  %13022 = vst.msk [vmem:[%s22 + $0x90] sm:$0xff] %vm138, %v12958
  %13023 = vst.msk [vmem:[%s22 + $0x98] sm:$0xff] %vm138, %v12959
  %13024 = vst.msk [vmem:[%s22 + $0xa0] sm:$0xff] %vm138, %v12960
  %13025 = vst.msk [vmem:[%s22 + $0xa8] sm:$0xff] %vm138, %v12961
  %13026 = vst.msk [vmem:[%s22 + $0xb0] sm:$0xff] %vm138, %v12962
  %13027 = vst.msk [vmem:[%s22 + $0xb8] sm:$0xff] %vm138, %v12963
  %13028 = vst.msk [vmem:[%s22 + $0xc0] sm:$0xff] %vm138, %v12964
  %13029 = vst.msk [vmem:[%s22 + $0xc8] sm:$0xff] %vm138, %v12965
  %13030 = vst.msk [vmem:[%s22 + $0xd0] sm:$0xff] %vm138, %v12966
  %13031 = vst.msk [vmem:[%s22 + $0xd8] sm:$0xff] %vm138, %v12967
  %13032 = vst.msk [vmem:[%s22 + $0xe0] sm:$0xff] %vm138, %v12968
  %13033 = vst.msk [vmem:[%s22 + $0xe8] sm:$0xff] %vm138, %v12969
  %13034 = vst.msk [vmem:[%s22 + $0xf0] sm:$0xff] %vm138, %v12970
  %13035 = vst.msk [vmem:[%s22 + $0xf8] sm:$0xff] %vm138, %v12971
  %13036 = vst.msk [vmem:[%s22 + $0x100] sm:$0xff] %vm138, %v12972
  %13037 = vst.msk [vmem:[%s22 + $0x108] sm:$0xff] %vm138, %v12973
  %13038 = vst.msk [vmem:[%s22 + $0x110] sm:$0xff] %vm138, %v12974
  %13039 = vst.msk [vmem:[%s22 + $0x118] sm:$0xff] %vm138, %v12975
  %13040 = vst.msk [vmem:[%s22 + $0x120] sm:$0xff] %vm138, %v12976
  %13041 = vst.msk [vmem:[%s22 + $0x128] sm:$0xff] %vm138, %v12977
  %13042 = vst.msk [vmem:[%s22 + $0x130] sm:$0xff] %vm138, %v12978
  %13043 = vst.msk [vmem:[%s22 + $0x138] sm:$0xff] %vm138, %v12979
  %13044 = vst.msk [vmem:[%s22 + $0x140] sm:$0xff] %vm138, %v12980
  %13045 = vst.msk [vmem:[%s22 + $0x148] sm:$0xff] %vm138, %v12981
  %13046 = vst.msk [vmem:[%s22 + $0x150] sm:$0xff] %vm138, %v12982
  %13047 = vst.msk [vmem:[%s22 + $0x158] sm:$0xff] %vm138, %v12983
  %13048 = vst.msk [vmem:[%s22 + $0x160] sm:$0xff] %vm138, %v12984
  %13049 = vst.msk [vmem:[%s22 + $0x168] sm:$0xff] %vm138, %v12985
  %13050 = vst.msk [vmem:[%s22 + $0x170] sm:$0xff] %vm138, %v12986
  %13051 = vst.msk [vmem:[%s22 + $0x178] sm:$0xff] %vm138, %v12987
  %13052 = vst.msk [vmem:[%s22 + $0x180] sm:$0xff] %vm138, %v12988
  %13053 = vst.msk [vmem:[%s22 + $0x188] sm:$0xff] %vm138, %v12989
  %13054 = vst.msk [vmem:[%s22 + $0x190] sm:$0xff] %vm138, %v12990
  %13055 = vst.msk [vmem:[%s22 + $0x198] sm:$0xff] %vm138, %v12991
  %13056 = vst.msk [vmem:[%s22 + $0x1a0] sm:$0xff] %vm138, %v12992
  %13057 = vst.msk [vmem:[%s22 + $0x1a8] sm:$0xff] %vm138, %v12993
  %13058 = vst.msk [vmem:[%s22 + $0x1b0] sm:$0xff] %vm138, %v12994
  %13059 = vst.msk [vmem:[%s22 + $0x1b8] sm:$0xff] %vm138, %v12995
  %13060 = vst.msk [vmem:[%s22 + $0x1c0] sm:$0xff] %vm138, %v12996
  %13061 = vst.msk [vmem:[%s22 + $0x1c8] sm:$0xff] %vm138, %v12997
  %13062 = vst.msk [vmem:[%s22 + $0x1d0] sm:$0xff] %vm138, %v12998
  %13063 = vst.msk [vmem:[%s22 + $0x1d8] sm:$0xff] %vm138, %v12999
  %13064 = vst.msk [vmem:[%s22 + $0x1e0] sm:$0xff] %vm138, %v13000
  %13065 = vst.msk [vmem:[%s22 + $0x1e8] sm:$0xff] %vm138, %v13001
  %13066 = vst.msk [vmem:[%s22 + $0x1f0] sm:$0xff] %vm138, %v13002
  %13067 = vst.msk [vmem:[%s22 + $0x1f8] sm:$0xff] %vm138, %v13003
  // Predicated region
  $region90: #{tpu_custom_call.1} parent=0 // pred_check
    _
  $region91: #{tpu_custom_call.1} parent=0 // pred_check_branch
    %13069 = sbr.rel (0) target = $region93
  $region92: #{tpu_custom_call.1} parent=0 // pred_region
    _
  $region93: #{tpu_custom_call.1} parent=0 // pred_fallthru
    _
  // Predicated region
  $region94: #{tpu_custom_call.1} parent=0 // pred_check
    _
  $region95: #{tpu_custom_call.1} parent=0 // pred_check_branch
    %13071 = sbr.rel (0) target = $region97
  $region96: #{tpu_custom_call.1} parent=0 // pred_region
    _
  $region97: #{tpu_custom_call.1} parent=0 // pred_fallthru
    _

</llo_original>
